<compile_context>
chip_gen: v5e
topology: v5e:2x2
jax: 0.10.0
libtpu: 0.0.40
codegen_flags: <defaults>
</compile_context>

<pallas_src>
import functools

import jax
import jax.numpy as jnp
from jax import lax
from jax.experimental import pallas as pl
from jax.experimental.pallas import tpu as pltpu

EMBED_DIM = 256      # embed_dim default of the module
FEATURE_DIM = 512    # resnet18 feature_dim
LN_EPS = 1e-5        # nn.LayerNorm default
L2_EPS = 1e-12       # F.normalize default

MAX_TM = 256         # query rows per grid step (review: 256-512)
MAX_TN = 512         # text cols per grid step (review: >=512, lane-dense out)
MAX_TT = 512         # Kernel T rows per grid step (fewer, fatter steps)
IMG_CHUNK = 128      # image-tail sub-chunk rows (keeps f32 live ranges flat)


# ---------------------------------------------------------------------------
# math helpers (shared by kernels and the pure-JAX reference)
# ---------------------------------------------------------------------------
def _layernorm(x, g, b):
    mu = jnp.mean(x, axis=-1, keepdims=True)
    var = jnp.mean((x - mu) ** 2, axis=-1, keepdims=True)
    return (x - mu) * lax.rsqrt(var + LN_EPS) * g + b


def _gelu(x):
    # exact (erf-based) GELU == torch.nn.GELU() default
    return 0.5 * x * (1.0 + lax.erf(x * 0.7071067811865476))


def _l2norm(x):
    n = jnp.sqrt(jnp.sum(x * x, axis=-1, keepdims=True))
    return x / jnp.maximum(n, L2_EPS)


def _round_up(x, m):
    return (x + m - 1) // m * m


# ---------------------------------------------------------------------------
# Kernel T: text tail, transposed output fused in-kernel
# ---------------------------------------------------------------------------
def _text_tail_kernel(txt_feat_ref, w_tproj_ref, b_tproj_ref,
                      g_tn_ref, b_tn_ref, txt_T_ref):
    f32 = jnp.float32
    t = jnp.dot(txt_feat_ref[...], w_tproj_ref[...],
                preferred_element_type=f32) + b_tproj_ref[...]   # text_projector
    t = _layernorm(t, g_tn_ref[...], b_tn_ref[...])              # text_norm
    t = _l2norm(t)                                               # l2_norm
    # fused transpose: write [EMBED_DIM, TT] so the similarity matmul is a
    # plain [TM,E] x [E,TN] dot with no host-side relayout of the text matrix.
    txt_T_ref[...] = t.T.astype(txt_T_ref.dtype)


# ---------------------------------------------------------------------------
# Kernel S: image tail (hoisted to j==0, chunked) + similarity tile
# ---------------------------------------------------------------------------
def _img_sim_kernel(img_pm_ref, w_conv_ref, b_conv_ref, g_fn_ref, b_fn_ref,
                    w_proj_ref, b_proj_ref, g_pn_ref, b_pn_ref,
                    w_iproj_ref, b_iproj_ref, g_in_ref, b_in_ref,
                    txt_T_ref, inv_temp_ref,
                    sim_ref, img_sc, *, tn, txt_resident):
    f32 = jnp.float32
    bf16 = jnp.bfloat16
    j = pl.program_id(1)

    # Image branch runs once per query tile i; result (with 1/temperature
    # already folded in) is cached in VMEM scratch and reused for every j.
    @pl.when(j == 0)
    def _():
        inv_temp = inv_temp_ref[0, 0]
        n_chunks = img_sc.shape[0] // IMG_CHUNK

        def chunk(c, carry):
            r = pl.multiple_of(c * IMG_CHUNK, IMG_CHUNK)
            x = img_pm_ref[pl.ds(r, IMG_CHUNK), :]
            feat = jnp.dot(x, w_conv_ref[...],
                           preferred_element_type=f32) + b_conv_ref[...]   # backbone fold
            feat = _layernorm(feat, g_fn_ref[...], b_fn_ref[...])          # feature_norm
            emb = jnp.dot(feat.astype(bf16), w_proj_ref[...],
                          preferred_element_type=f32) + b_proj_ref[...]    # projector
            emb = _gelu(emb)                                               # activation
            emb = _layernorm(emb, g_pn_ref[...], b_pn_ref[...])            # proj_norm
            # `scaling` (clip to [1,10]) is a positive scalar immediately
            # followed by L2 normalization -> exact no-op, dropped.
            img_emb = _l2norm(emb)                                         # l2_norm
            i2 = jnp.dot(img_emb.astype(bf16), w_iproj_ref[...],
                         preferred_element_type=f32) + b_iproj_ref[...]    # image_projector
            i2 = _layernorm(i2, g_in_ref[...], b_in_ref[...])              # img_norm
            i2 = _l2norm(i2) * inv_temp                                    # l2 + fold 1/T
            img_sc[pl.ds(r, IMG_CHUNK), :] = i2.astype(bf16)
            return carry

        lax.fori_loop(0, n_chunks, chunk, 0, unroll=True)

    if txt_resident:
        # whole [E, bt] text matrix is VMEM-resident; slice the j-th column tile
        col = pl.multiple_of(j * tn, tn)
        txt_tile = txt_T_ref[:, pl.ds(col, tn)]
    else:
        txt_tile = txt_T_ref[...]

    # lane-dense [TM, TN] similarity tile; 1/temperature already folded in.
    sim_ref[...] = jnp.dot(img_sc[...], txt_tile, preferred_element_type=f32)


# ---------------------------------------------------------------------------
# host glue (reshapes / gathers only)
# ---------------------------------------------------------------------------
def _image_patch_means(image):
    """GAP(conv3x3_SAME(x)) == mean_patches(x) @ W_flat (stack never stored)."""
    B, C, H, W = image.shape
    xp = jnp.pad(image, ((0, 0), (0, 0), (1, 1), (1, 1)))
    cols = []
    for dy in range(3):
        for dx in range(3):
            cols.append(jnp.mean(xp[:, :, dy:dy + H, dx:dx + W], axis=(2, 3)))
    return jnp.stack(cols, axis=-1).reshape(B, C * 9)          # [B, C*9]


def _text_feats(text, embed_table):
    # TODO(synk): ATQTextEncoder transformer not provided; stand-in =
    # token embedding + mean pooling over the sequence.
    return embed_table[text].mean(axis=1)                      # [B, EMBED_DIM]


def _vmem_limit_bytes():
    """Per-generation VMEM budget: 3/4 of physical, capped at 100 MiB.
    (v7x: ~48 MiB of 64; v5e/v6e: ~96 MiB of 128.)"""
    cap = 128 * 1024 * 1024
    try:
        cap = int(getattr(pltpu.get_tpu_info(), "vmem_capacity_bytes", cap))
    except Exception:
        cap = 128 * 1024 * 1024
    return int(min(100 * 1024 * 1024, (cap * 3) // 4))


# ---------------------------------------------------------------------------
# parameters (deterministic, synthetic)
# ---------------------------------------------------------------------------
def init_params(key, in_ch, vocab_size):
    ks = jax.random.split(key, 8)
    kdim = in_ch * 9
    f32 = jnp.float32
    return {
        "w_conv": jax.random.normal(ks[0], (kdim, FEATURE_DIM), f32) / jnp.sqrt(kdim),
        "b_conv": jnp.zeros((1, FEATURE_DIM), f32),
        "g_fn": jnp.ones((1, FEATURE_DIM), f32),
        "b_fn": jnp.zeros((1, FEATURE_DIM), f32),
        "w_proj": jax.random.normal(ks[1], (FEATURE_DIM, EMBED_DIM), f32) / jnp.sqrt(FEATURE_DIM),
        "b_proj": jax.random.normal(ks[2], (1, EMBED_DIM), f32) * 0.01,
        "g_pn": jnp.ones((1, EMBED_DIM), f32),
        "b_pn": jnp.zeros((1, EMBED_DIM), f32),
        "scaling": jnp.full((1, 1), 4.0, f32),                 # nn.Parameter(ones(1)*4.0)
        "embed_table": jax.random.normal(ks[3], (vocab_size, EMBED_DIM), f32) * 0.02,
        "w_tproj": jax.random.normal(ks[4], (EMBED_DIM, EMBED_DIM), f32) / jnp.sqrt(EMBED_DIM),
        "b_tproj": jax.random.normal(ks[5], (1, EMBED_DIM), f32) * 0.01,
        "g_tn": jnp.ones((1, EMBED_DIM), f32),
        "b_tn": jnp.zeros((1, EMBED_DIM), f32),
        "w_iproj": jax.random.normal(ks[6], (EMBED_DIM, EMBED_DIM), f32) / jnp.sqrt(EMBED_DIM),
        "b_iproj": jax.random.normal(ks[7], (1, EMBED_DIM), f32) * 0.01,
        "g_in": jnp.ones((1, EMBED_DIM), f32),
        "b_in": jnp.zeros((1, EMBED_DIM), f32),
        "temperature": jnp.full((1, 1), 0.07, f32),            # nn.Parameter(tensor(0.07))
    }


# ---------------------------------------------------------------------------
# wrapper
# ---------------------------------------------------------------------------
@jax.jit
def atq_forward(image, text, params):
    f32, bf16 = jnp.float32, jnp.bfloat16
    B, C = image.shape[0], image.shape[1]
    kdim = C * 9
    # pad the conv-fold contraction dim only to the bf16 sublane quantum (16),
    # not 128 -- block == full array dim is layout-legal and avoids 79% zero-K.
    kdim_p = _round_up(kdim, 16)

    # adaptive tile sizes (multiples of 128, never larger than the padded batch;
    # on v7x prefer bi/tm >= 2 so both TensorCores get i-tiles when B allows).
    tm = min(MAX_TM, _round_up(B, 128))
    tn = min(MAX_TN, _round_up(B, 128))
    bi = _round_up(B, tm)                  # padded query batch
    bt = _round_up(B, tn)                  # padded text batch
    tt = min(MAX_TT, bt)                   # Kernel T row tile (bt % tt == 0)

    vmem_limit = _vmem_limit_bytes()

    # host glue + bf16 matmul operands
    img_pm = _image_patch_means(image).astype(bf16)
    img_pm = jnp.pad(img_pm, ((0, bi - B), (0, kdim_p - kdim)))
    txt_feat = _text_feats(text, params["embed_table"]).astype(bf16)
    txt_feat = jnp.pad(txt_feat, ((0, bt - B), (0, 0)))

    w_conv = jnp.pad(params["w_conv"].astype(bf16), ((0, kdim_p - kdim), (0, 0)))
    w_proj = params["w_proj"].astype(bf16)
    w_iproj = params["w_iproj"].astype(bf16)
    w_tproj = params["w_tproj"].astype(bf16)

    # `scaling` is clipped to [1,10] and immediately L2-normalized -> exact
    # no-op on this path, so it is not passed to the kernel at all.
    inv_temp = (1.0 / params["temperature"]).reshape(1, 1).astype(f32)

    smem = pltpu.MemorySpace.SMEM

    # ----- Kernel T: text tail, fat tiles, transposed bf16 output -------
    nt = bt // tt
    txt_T = pl.pallas_call(
        _text_tail_kernel,
        out_shape=jax.ShapeDtypeStruct((EMBED_DIM, bt), bf16),
        grid=(nt,),
        in_specs=[
            pl.BlockSpec((tt, EMBED_DIM), lambda j: (j, 0)),
            pl.BlockSpec((EMBED_DIM, EMBED_DIM), lambda j: (0, 0)),
            pl.BlockSpec((1, EMBED_DIM), lambda j: (0, 0)),
            pl.BlockSpec((1, EMBED_DIM), lambda j: (0, 0)),
            pl.BlockSpec((1, EMBED_DIM), lambda j: (0, 0)),
        ],
        out_specs=pl.BlockSpec((EMBED_DIM, tt), lambda j: (0, j)),
        compiler_params=pltpu.CompilerParams(
            dimension_semantics=("parallel",),
            vmem_limit_bytes=vmem_limit),
    )(txt_feat, w_tproj, params["b_tproj"], params["g_tn"], params["b_tn"])

    # ----- Kernel S: image tail + similarity, 2-D batch grid ------------
    ni, nj = bi // tm, bt // tn

    # keep the whole [E, bt] bf16 text matrix VMEM-resident across the j axis
    # (constant index_map -> DMA'd exactly once); fall back to tiled streaming
    # only when it would not comfortably fit the per-generation VMEM budget.
    txt_bytes = EMBED_DIM * bt * 2
    txt_resident = txt_bytes <= min(24 * 1024 * 1024, vmem_limit // 3)
    if txt_resident:
        txt_spec = pl.BlockSpec((EMBED_DIM, bt), lambda i, j: (0, 0))
    else:
        txt_spec = pl.BlockSpec((EMBED_DIM, tn), lambda i, j: (0, j))

    weight_bytes = (kdim_p * FEATURE_DIM + FEATURE_DIM * EMBED_DIM
                    + 2 * EMBED_DIM * EMBED_DIM) * 2
    flops = (2 * bi * (kdim_p * FEATURE_DIM + FEATURE_DIM * EMBED_DIM
                       + EMBED_DIM * EMBED_DIM)
             + 2 * bi * bt * EMBED_DIM)
    cost = pl.CostEstimate(
        flops=flops,
        transcendentals=bi * EMBED_DIM,
        bytes_accessed=img_pm.size * 2 + txt_T.size * 2 + bi * bt * 4 + weight_bytes)

    kernel = functools.partial(_img_sim_kernel, tn=tn, txt_resident=txt_resident)

    # NOTE: sim kept f32 to preserve the module's output dtype; on v5e a bf16
    # output would halve the HBM write if the caller tolerates it.
    sim = pl.pallas_call(
        kernel,
        out_shape=jax.ShapeDtypeStruct((bi, bt), f32),
        grid=(ni, nj),
        in_specs=[
            pl.BlockSpec((tm, kdim_p), lambda i, j: (i, 0)),             # img_pm tile
            pl.BlockSpec((kdim_p, FEATURE_DIM), lambda i, j: (0, 0)),    # w_conv (resident)
            pl.BlockSpec((1, FEATURE_DIM), lambda i, j: (0, 0)),         # b_conv
            pl.BlockSpec((1, FEATURE_DIM), lambda i, j: (0, 0)),         # g_fn
            pl.BlockSpec((1, FEATURE_DIM), lambda i, j: (0, 0)),         # b_fn
            pl.BlockSpec((FEATURE_DIM, EMBED_DIM), lambda i, j: (0, 0)), # w_proj
            pl.BlockSpec((1, EMBED_DIM), lambda i, j: (0, 0)),           # b_proj
            pl.BlockSpec((1, EMBED_DIM), lambda i, j: (0, 0)),           # g_pn
            pl.BlockSpec((1, EMBED_DIM), lambda i, j: (0, 0)),           # b_pn
            pl.BlockSpec((EMBED_DIM, EMBED_DIM), lambda i, j: (0, 0)),   # w_iproj
            pl.BlockSpec((1, EMBED_DIM), lambda i, j: (0, 0)),           # b_iproj
            pl.BlockSpec((1, EMBED_DIM), lambda i, j: (0, 0)),           # g_in
            pl.BlockSpec((1, EMBED_DIM), lambda i, j: (0, 0)),           # b_in
            txt_spec,                                                    # txt_T
            pl.BlockSpec((1, 1), lambda i, j: (0, 0), memory_space=smem),   # inv_temp
        ],
        out_specs=pl.BlockSpec((tm, tn), lambda i, j: (i, j)),
        scratch_shapes=[pltpu.VMEM((tm, EMBED_DIM), bf16)],
        compiler_params=pltpu.CompilerParams(
            dimension_semantics=("parallel", "arbitrary"),
            vmem_limit_bytes=vmem_limit),
        cost_estimate=cost,
    )(img_pm, w_conv, params["b_conv"], params["g_fn"], params["b_fn"],
      w_proj, params["b_proj"], params["g_pn"], params["b_pn"],
      w_iproj, params["b_iproj"], params["g_in"], params["b_in"],
      txt_T, inv_temp)

    return sim[:B, :B]


# ---------------------------------------------------------------------------
# pure-JAX reference (mirrors the kernel's bf16 matmul operands)
# ---------------------------------------------------------------------------
def atq_forward_ref(image, text, params):
    f32, bf16 = jnp.float32, jnp.bfloat16

    def bdot(a, b):
        return jnp.dot(a.astype(bf16), b.astype(bf16), preferred_element_type=f32)

    img_pm = _image_patch_means(image)
    txt_feat = _text_feats(text, params["embed_table"])

    feat = bdot(img_pm, params["w_conv"]) + params["b_conv"]
    feat = _layernorm(feat, params["g_fn"], params["b_fn"])
    emb = bdot(feat, params["w_proj"]) + params["b_proj"]
    emb = _gelu(emb)
    emb = _layernorm(emb, params["g_pn"], params["b_pn"])
    scale = jnp.clip(params["scaling"][0, 0], 1.0, 10.0)
    img_emb = _l2norm(emb * scale)          # kernel drops scale: exact no-op under L2
    i2 = bdot(img_emb, params["w_iproj"]) + params["b_iproj"]
    i2 = _layernorm(i2, params["g_in"], params["b_in"])
    i2 = _l2norm(i2)

    t = bdot(txt_feat, params["w_tproj"]) + params["b_tproj"]
    t = _layernorm(t, params["g_tn"], params["b_tn"])
    txt_emb = _l2norm(t)

    return bdot(i2, txt_emb.T) / params["temperature"][0, 0]


if __name__ == "__main__":
    B, C, H, W, SEQ, VOCAB = 2, 4, 16, 16, 8, 64
    key = jax.random.PRNGKey(0)
    k_img, k_txt, k_par = jax.random.split(key, 3)

    image = jax.random.normal(k_img, (B, C, H, W), jnp.float32)      # NCHW
    text = jax.random.randint(k_txt, (B, SEQ), 0, VOCAB, jnp.int32)  # token ids
    params = init_params(k_par, in_ch=C, vocab_size=VOCAB)

    sim = atq_forward(image, text, params)
    jax.block_until_ready(sim)

    ref = atq_forward_ref(image, text, params)
    assert sim.shape == (B, B)
    assert jnp.allclose(sim, ref, atol=3e-2, rtol=2e-2), \
        float(jnp.max(jnp.abs(sim - ref)))

    print("KERNEL_OK")
</pallas_src>

<mosaic_0001>
module attributes {stable_mosaic.version = 11 : i64} {
  func.func @_img_sim_kernel(%arg0: i32, %arg1: i32, %arg2: memref<128x48xbf16, #tpu.memory_space<vmem>>, %arg3: memref<48x512xbf16, #tpu.memory_space<vmem>>, %arg4: memref<1x512xf32, #tpu.memory_space<vmem>>, %arg5: memref<1x512xf32, #tpu.memory_space<vmem>>, %arg6: memref<1x512xf32, #tpu.memory_space<vmem>>, %arg7: memref<512x256xbf16, #tpu.memory_space<vmem>>, %arg8: memref<1x256xf32, #tpu.memory_space<vmem>>, %arg9: memref<1x256xf32, #tpu.memory_space<vmem>>, %arg10: memref<1x256xf32, #tpu.memory_space<vmem>>, %arg11: memref<256x256xbf16, #tpu.memory_space<vmem>>, %arg12: memref<1x256xf32, #tpu.memory_space<vmem>>, %arg13: memref<1x256xf32, #tpu.memory_space<vmem>>, %arg14: memref<1x256xf32, #tpu.memory_space<vmem>>, %arg15: memref<256x128xbf16, #tpu.memory_space<vmem>>, %arg16: memref<1x1xf32, #tpu.memory_space<smem>>, %arg17: memref<128x128xf32, #tpu.memory_space<vmem>>, %arg18: memref<128x256xbf16, #tpu.memory_space<vmem>>) attributes {dimension_semantics = [#tpu.dimension_semantics<parallel>, #tpu.dimension_semantics<arbitrary>], iteration_bounds = array<i64: 1, 1>, scalar_prefetch = 0 : i64, scratch_operands = 1 : i64, tpu.core_type = #tpu.core_type<tc>, window_params = [{transform_indices = @transform_0, window_bounds = array<i64: 128, 48>}, {pipeline_mode = #tpu.pipeline_mode<synchronous>, transform_indices = @transform_1, window_bounds = array<i64: 48, 512>}, {pipeline_mode = #tpu.pipeline_mode<synchronous>, transform_indices = @transform_2, window_bounds = array<i64: 1, 512>}, {pipeline_mode = #tpu.pipeline_mode<synchronous>, transform_indices = @transform_3, window_bounds = array<i64: 1, 512>}, {pipeline_mode = #tpu.pipeline_mode<synchronous>, transform_indices = @transform_4, window_bounds = array<i64: 1, 512>}, {pipeline_mode = #tpu.pipeline_mode<synchronous>, transform_indices = @transform_5, window_bounds = array<i64: 512, 256>}, {pipeline_mode = #tpu.pipeline_mode<synchronous>, transform_indices = @transform_6, window_bounds = array<i64: 1, 256>}, {pipeline_mode = #tpu.pipeline_mode<synchronous>, transform_indices = @transform_7, window_bounds = array<i64: 1, 256>}, {pipeline_mode = #tpu.pipeline_mode<synchronous>, transform_indices = @transform_8, window_bounds = array<i64: 1, 256>}, {pipeline_mode = #tpu.pipeline_mode<synchronous>, transform_indices = @transform_9, window_bounds = array<i64: 256, 256>}, {pipeline_mode = #tpu.pipeline_mode<synchronous>, transform_indices = @transform_10, window_bounds = array<i64: 1, 256>}, {pipeline_mode = #tpu.pipeline_mode<synchronous>, transform_indices = @transform_11, window_bounds = array<i64: 1, 256>}, {pipeline_mode = #tpu.pipeline_mode<synchronous>, transform_indices = @transform_12, window_bounds = array<i64: 1, 256>}, {pipeline_mode = #tpu.pipeline_mode<synchronous>, transform_indices = @transform_13, window_bounds = array<i64: 256, 128>}, {transform_indices = @transform_14, window_bounds = array<i64: 1, 1>}, {transform_indices = @transform_15, window_bounds = array<i64: 128, 128>}]} {
    %c0_i32 = arith.constant 0 : i32
    %0 = arith.cmpi eq, %arg1, %c0_i32 : i32
    %1 = arith.extui %0 : i1 to i32
    %c0_i32_0 = arith.constant 0 : i32
    %2 = arith.cmpi ne, %1, %c0_i32_0 : i32
    scf.if %2 {
      %c0_5 = arith.constant 0 : index
      %c0_6 = arith.constant 0 : index
      %10 = memref.load %arg16[%c0_5, %c0_6] : memref<1x1xf32, #tpu.memory_space<smem>>
      %c0_i32_7 = arith.constant 0 : i32
      %c128_i32_8 = arith.constant 128 : i32
      %11 = arith.muli %c0_i32_7, %c128_i32_8 : i32
      %12 = tpu.assume_multiple %11, 128 : i32
      %13 = arith.index_cast %12 : i32 to index
      %c0_9 = arith.constant 0 : index
      %14 = vector.load %arg2[%13, %c0_9] : memref<128x48xbf16, #tpu.memory_space<vmem>>, vector<128x48xbf16>
      %c0_10 = arith.constant 0 : index
      %c0_11 = arith.constant 0 : index
      %15 = vector.load %arg3[%c0_10, %c0_11] : memref<48x512xbf16, #tpu.memory_space<vmem>>, vector<48x512xbf16>
      %cst_12 = arith.constant dense<0.000000e+00> : vector<128x512xf32>
      %16 = tpu.matmul %14, %15, %cst_12 {dimension_numbers = #tpu.dot_dimension_numbers<[1], [0], [0], [1], [0, 0, 1, 1], [], []>} : vector<128x48xbf16>, vector<48x512xbf16>, vector<128x512xf32> -> vector<128x512xf32>
      %c0_13 = arith.constant 0 : index
      %c0_14 = arith.constant 0 : index
      %17 = vector.load %arg4[%c0_13, %c0_14] : memref<1x512xf32, #tpu.memory_space<vmem>>, vector<1x512xf32>
      %18 = vector.broadcast %17 : vector<1x512xf32> to vector<128x512xf32>
      %19 = arith.addf %16, %18 : vector<128x512xf32>
      %c0_15 = arith.constant 0 : index
      %c0_16 = arith.constant 0 : index
      %20 = vector.load %arg5[%c0_15, %c0_16] : memref<1x512xf32, #tpu.memory_space<vmem>>, vector<1x512xf32>
      %c0_17 = arith.constant 0 : index
      %c0_18 = arith.constant 0 : index
      %21 = vector.load %arg6[%c0_17, %c0_18] : memref<1x512xf32, #tpu.memory_space<vmem>>, vector<1x512xf32>
      %cst_19 = arith.constant dense<0.000000e+00> : vector<128xf32>
      %22 = vector.multi_reduction <add>, %19, %cst_19 [1] : vector<128x512xf32> to vector<128xf32>
      %23 = vector.shape_cast %22 : vector<128xf32> to vector<128x1xf32>
      %cst_20 = arith.constant 5.120000e+02 : f32
      %24 = vector.broadcast %cst_20 : f32 to vector<128x1xf32>
      %25 = arith.divf %23, %24 : vector<128x1xf32>
      %26 = vector.broadcast %25 : vector<128x1xf32> to vector<128x512xf32>
      %27 = arith.subf %19, %26 : vector<128x512xf32>
      %28 = arith.mulf %27, %27 : vector<128x512xf32>
      %cst_21 = arith.constant dense<0.000000e+00> : vector<128xf32>
      %29 = vector.multi_reduction <add>, %28, %cst_21 [1] : vector<128x512xf32> to vector<128xf32>
      %30 = vector.shape_cast %29 : vector<128xf32> to vector<128x1xf32>
      %cst_22 = arith.constant 5.120000e+02 : f32
      %31 = vector.broadcast %cst_22 : f32 to vector<128x1xf32>
      %32 = arith.divf %30, %31 : vector<128x1xf32>
      %33 = vector.broadcast %25 : vector<128x1xf32> to vector<128x512xf32>
      %34 = arith.subf %19, %33 : vector<128x512xf32>
      %cst_23 = arith.constant 9.99999974E-6 : f32
      %35 = vector.broadcast %cst_23 : f32 to vector<128x1xf32>
      %36 = arith.addf %32, %35 : vector<128x1xf32>
      %37 = math.rsqrt %36 : vector<128x1xf32>
      %38 = vector.broadcast %37 : vector<128x1xf32> to vector<128x512xf32>
      %39 = arith.mulf %34, %38 : vector<128x512xf32>
      %40 = vector.broadcast %20 : vector<1x512xf32> to vector<128x512xf32>
      %41 = arith.mulf %39, %40 : vector<128x512xf32>
      %42 = vector.broadcast %21 : vector<1x512xf32> to vector<128x512xf32>
      %43 = arith.addf %41, %42 : vector<128x512xf32>
      %44 = arith.truncf %43 : vector<128x512xf32> to vector<128x512xbf16>
      %c0_24 = arith.constant 0 : index
      %c0_25 = arith.constant 0 : index
      %45 = vector.load %arg7[%c0_24, %c0_25] : memref<512x256xbf16, #tpu.memory_space<vmem>>, vector<512x256xbf16>
      %cst_26 = arith.constant dense<0.000000e+00> : vector<128x256xf32>
      %46 = tpu.matmul %44, %45, %cst_26 {dimension_numbers = #tpu.dot_dimension_numbers<[1], [0], [0], [1], [0, 0, 1, 1], [], []>} : vector<128x512xbf16>, vector<512x256xbf16>, vector<128x256xf32> -> vector<128x256xf32>
      %c0_27 = arith.constant 0 : index
      %c0_28 = arith.constant 0 : index
      %47 = vector.load %arg8[%c0_27, %c0_28] : memref<1x256xf32, #tpu.memory_space<vmem>>, vector<1x256xf32>
      %48 = vector.broadcast %47 : vector<1x256xf32> to vector<128x256xf32>
      %49 = arith.addf %46, %48 : vector<128x256xf32>
      %cst_29 = arith.constant 5.000000e-01 : f32
      %50 = vector.broadcast %cst_29 : f32 to vector<128x256xf32>
      %51 = arith.mulf %50, %49 : vector<128x256xf32>
      %cst_30 = arith.constant 0.707106769 : f32
      %52 = vector.broadcast %cst_30 : f32 to vector<128x256xf32>
      %53 = arith.mulf %49, %52 : vector<128x256xf32>
      %54 = math.erf %53 : vector<128x256xf32>
      %cst_31 = arith.constant 1.000000e+00 : f32
      %55 = vector.broadcast %cst_31 : f32 to vector<128x256xf32>
      %56 = arith.addf %55, %54 : vector<128x256xf32>
      %57 = arith.mulf %51, %56 : vector<128x256xf32>
      %c0_32 = arith.constant 0 : index
      %c0_33 = arith.constant 0 : index
      %58 = vector.load %arg9[%c0_32, %c0_33] : memref<1x256xf32, #tpu.memory_space<vmem>>, vector<1x256xf32>
      %c0_34 = arith.constant 0 : index
      %c0_35 = arith.constant 0 : index
      %59 = vector.load %arg10[%c0_34, %c0_35] : memref<1x256xf32, #tpu.memory_space<vmem>>, vector<1x256xf32>
      %cst_36 = arith.constant dense<0.000000e+00> : vector<128xf32>
      %60 = vector.multi_reduction <add>, %57, %cst_36 [1] : vector<128x256xf32> to vector<128xf32>
      %61 = vector.shape_cast %60 : vector<128xf32> to vector<128x1xf32>
      %cst_37 = arith.constant 2.560000e+02 : f32
      %62 = vector.broadcast %cst_37 : f32 to vector<128x1xf32>
      %63 = arith.divf %61, %62 : vector<128x1xf32>
      %64 = vector.broadcast %63 : vector<128x1xf32> to vector<128x256xf32>
      %65 = arith.subf %57, %64 : vector<128x256xf32>
      %66 = arith.mulf %65, %65 : vector<128x256xf32>
      %cst_38 = arith.constant dense<0.000000e+00> : vector<128xf32>
      %67 = vector.multi_reduction <add>, %66, %cst_38 [1] : vector<128x256xf32> to vector<128xf32>
      %68 = vector.shape_cast %67 : vector<128xf32> to vector<128x1xf32>
      %cst_39 = arith.constant 2.560000e+02 : f32
      %69 = vector.broadcast %cst_39 : f32 to vector<128x1xf32>
      %70 = arith.divf %68, %69 : vector<128x1xf32>
      %71 = vector.broadcast %63 : vector<128x1xf32> to vector<128x256xf32>
      %72 = arith.subf %57, %71 : vector<128x256xf32>
      %cst_40 = arith.constant 9.99999974E-6 : f32
      %73 = vector.broadcast %cst_40 : f32 to vector<128x1xf32>
      %74 = arith.addf %70, %73 : vector<128x1xf32>
      %75 = math.rsqrt %74 : vector<128x1xf32>
      %76 = vector.broadcast %75 : vector<128x1xf32> to vector<128x256xf32>
      %77 = arith.mulf %72, %76 : vector<128x256xf32>
      %78 = vector.broadcast %58 : vector<1x256xf32> to vector<128x256xf32>
      %79 = arith.mulf %77, %78 : vector<128x256xf32>
      %80 = vector.broadcast %59 : vector<1x256xf32> to vector<128x256xf32>
      %81 = arith.addf %79, %80 : vector<128x256xf32>
      %82 = arith.mulf %81, %81 : vector<128x256xf32>
      %cst_41 = arith.constant dense<0.000000e+00> : vector<128xf32>
      %83 = vector.multi_reduction <add>, %82, %cst_41 [1] : vector<128x256xf32> to vector<128xf32>
      %84 = vector.shape_cast %83 : vector<128xf32> to vector<128x1xf32>
      %85 = math.sqrt %84 : vector<128x1xf32>
      %cst_42 = arith.constant 9.99999996E-13 : f32
      %86 = vector.broadcast %cst_42 : f32 to vector<128x1xf32>
      %87 = arith.maximumf %85, %86 : vector<128x1xf32>
      %88 = vector.broadcast %87 : vector<128x1xf32> to vector<128x256xf32>
      %89 = arith.divf %81, %88 : vector<128x256xf32>
      %90 = arith.truncf %89 : vector<128x256xf32> to vector<128x256xbf16>
      %c0_43 = arith.constant 0 : index
      %c0_44 = arith.constant 0 : index
      %91 = vector.load %arg11[%c0_43, %c0_44] : memref<256x256xbf16, #tpu.memory_space<vmem>>, vector<256x256xbf16>
      %cst_45 = arith.constant dense<0.000000e+00> : vector<128x256xf32>
      %92 = tpu.matmul %90, %91, %cst_45 {dimension_numbers = #tpu.dot_dimension_numbers<[1], [0], [0], [1], [0, 0, 1, 1], [], []>} : vector<128x256xbf16>, vector<256x256xbf16>, vector<128x256xf32> -> vector<128x256xf32>
      %c0_46 = arith.constant 0 : index
      %c0_47 = arith.constant 0 : index
      %93 = vector.load %arg12[%c0_46, %c0_47] : memref<1x256xf32, #tpu.memory_space<vmem>>, vector<1x256xf32>
      %94 = vector.broadcast %93 : vector<1x256xf32> to vector<128x256xf32>
      %95 = arith.addf %92, %94 : vector<128x256xf32>
      %c0_48 = arith.constant 0 : index
      %c0_49 = arith.constant 0 : index
      %96 = vector.load %arg13[%c0_48, %c0_49] : memref<1x256xf32, #tpu.memory_space<vmem>>, vector<1x256xf32>
      %c0_50 = arith.constant 0 : index
      %c0_51 = arith.constant 0 : index
      %97 = vector.load %arg14[%c0_50, %c0_51] : memref<1x256xf32, #tpu.memory_space<vmem>>, vector<1x256xf32>
      %cst_52 = arith.constant dense<0.000000e+00> : vector<128xf32>
      %98 = vector.multi_reduction <add>, %95, %cst_52 [1] : vector<128x256xf32> to vector<128xf32>
      %99 = vector.shape_cast %98 : vector<128xf32> to vector<128x1xf32>
      %cst_53 = arith.constant 2.560000e+02 : f32
      %100 = vector.broadcast %cst_53 : f32 to vector<128x1xf32>
      %101 = arith.divf %99, %100 : vector<128x1xf32>
      %102 = vector.broadcast %101 : vector<128x1xf32> to vector<128x256xf32>
      %103 = arith.subf %95, %102 : vector<128x256xf32>
      %104 = arith.mulf %103, %103 : vector<128x256xf32>
      %cst_54 = arith.constant dense<0.000000e+00> : vector<128xf32>
      %105 = vector.multi_reduction <add>, %104, %cst_54 [1] : vector<128x256xf32> to vector<128xf32>
      %106 = vector.shape_cast %105 : vector<128xf32> to vector<128x1xf32>
      %cst_55 = arith.constant 2.560000e+02 : f32
      %107 = vector.broadcast %cst_55 : f32 to vector<128x1xf32>
      %108 = arith.divf %106, %107 : vector<128x1xf32>
      %109 = vector.broadcast %101 : vector<128x1xf32> to vector<128x256xf32>
      %110 = arith.subf %95, %109 : vector<128x256xf32>
      %cst_56 = arith.constant 9.99999974E-6 : f32
      %111 = vector.broadcast %cst_56 : f32 to vector<128x1xf32>
      %112 = arith.addf %108, %111 : vector<128x1xf32>
      %113 = math.rsqrt %112 : vector<128x1xf32>
      %114 = vector.broadcast %113 : vector<128x1xf32> to vector<128x256xf32>
      %115 = arith.mulf %110, %114 : vector<128x256xf32>
      %116 = vector.broadcast %96 : vector<1x256xf32> to vector<128x256xf32>
      %117 = arith.mulf %115, %116 : vector<128x256xf32>
      %118 = vector.broadcast %97 : vector<1x256xf32> to vector<128x256xf32>
      %119 = arith.addf %117, %118 : vector<128x256xf32>
      %120 = arith.mulf %119, %119 : vector<128x256xf32>
      %cst_57 = arith.constant dense<0.000000e+00> : vector<128xf32>
      %121 = vector.multi_reduction <add>, %120, %cst_57 [1] : vector<128x256xf32> to vector<128xf32>
      %122 = vector.shape_cast %121 : vector<128xf32> to vector<128x1xf32>
      %123 = math.sqrt %122 : vector<128x1xf32>
      %cst_58 = arith.constant 9.99999996E-13 : f32
      %124 = vector.broadcast %cst_58 : f32 to vector<128x1xf32>
      %125 = arith.maximumf %123, %124 : vector<128x1xf32>
      %126 = vector.broadcast %125 : vector<128x1xf32> to vector<128x256xf32>
      %127 = arith.divf %119, %126 : vector<128x256xf32>
      %128 = vector.broadcast %10 : f32 to vector<128x256xf32>
      %129 = arith.mulf %127, %128 : vector<128x256xf32>
      %130 = arith.truncf %129 : vector<128x256xf32> to vector<128x256xbf16>
      %131 = arith.index_cast %12 : i32 to index
      %c0_59 = arith.constant 0 : index
      %132 = vector.load %arg18[%131, %c0_59] : memref<128x256xbf16, #tpu.memory_space<vmem>>, vector<128x256xbf16>
      tpu.vector_store %arg18[%131, %c0_59], %130 {strides = array<i32>} : memref<128x256xbf16, #tpu.memory_space<vmem>>, vector<128x256xbf16>,
      %c1_i32 = arith.constant 1 : i32
    } else {
    }
    %c128_i32 = arith.constant 128 : i32
    %3 = arith.muli %arg1, %c128_i32 : i32
    %4 = tpu.assume_multiple %3, 128 : i32
    %c0 = arith.constant 0 : index
    %5 = arith.index_cast %4 : i32 to index
    %6 = vector.load %arg15[%c0, %5] : memref<256x128xbf16, #tpu.memory_space<vmem>>, vector<256x128xbf16>
    %c0_1 = arith.constant 0 : index
    %c0_2 = arith.constant 0 : index
    %7 = vector.load %arg18[%c0_1, %c0_2] : memref<128x256xbf16, #tpu.memory_space<vmem>>, vector<128x256xbf16>
    %cst = arith.constant dense<0.000000e+00> : vector<128x128xf32>
    %8 = tpu.matmul %7, %6, %cst {dimension_numbers = #tpu.dot_dimension_numbers<[1], [0], [0], [1], [0, 0, 1, 1], [], []>} : vector<128x256xbf16>, vector<256x128xbf16>, vector<128x128xf32> -> vector<128x128xf32>
    %c0_3 = arith.constant 0 : index
    %c0_4 = arith.constant 0 : index
    %9 = vector.load %arg17[%c0_3, %c0_4] : memref<128x128xf32, #tpu.memory_space<vmem>>, vector<128x128xf32>
    tpu.vector_store %arg17[%c0_3, %c0_4], %8 {strides = array<i32>} : memref<128x128xf32, #tpu.memory_space<vmem>>, vector<128x128xf32>,
    return
  }
  func.func @transform_0(%arg0: i32, %arg1: i32) -> (i32, i32) {
    %c0_i32 = arith.constant 0 : i32
    %c0_i32_0 = arith.constant 0 : i32
    return %arg0, %c0_i32 : i32, i32
  }
  func.func @transform_1(%arg0: i32, %arg1: i32) -> (i32, i32) {
    %c0_i32 = arith.constant 0 : i32
    %c0_i32_0 = arith.constant 0 : i32
    %c0_i32_1 = arith.constant 0 : i32
    return %c0_i32, %c0_i32_0 : i32, i32
  }
  func.func @transform_2(%arg0: i32, %arg1: i32) -> (i32, i32) {
    %c0_i32 = arith.constant 0 : i32
    %c0_i32_0 = arith.constant 0 : i32
    %c0_i32_1 = arith.constant 0 : i32
    return %c0_i32, %c0_i32_0 : i32, i32
  }
  func.func @transform_3(%arg0: i32, %arg1: i32) -> (i32, i32) {
    %c0_i32 = arith.constant 0 : i32
    %c0_i32_0 = arith.constant 0 : i32
    %c0_i32_1 = arith.constant 0 : i32
    return %c0_i32, %c0_i32_0 : i32, i32
  }
  func.func @transform_4(%arg0: i32, %arg1: i32) -> (i32, i32) {
    %c0_i32 = arith.constant 0 : i32
    %c0_i32_0 = arith.constant 0 : i32
    %c0_i32_1 = arith.constant 0 : i32
    return %c0_i32, %c0_i32_0 : i32, i32
  }
  func.func @transform_5(%arg0: i32, %arg1: i32) -> (i32, i32) {
    %c0_i32 = arith.constant 0 : i32
    %c0_i32_0 = arith.constant 0 : i32
    %c0_i32_1 = arith.constant 0 : i32
    return %c0_i32, %c0_i32_0 : i32, i32
  }
  func.func @transform_6(%arg0: i32, %arg1: i32) -> (i32, i32) {
    %c0_i32 = arith.constant 0 : i32
    %c0_i32_0 = arith.constant 0 : i32
    %c0_i32_1 = arith.constant 0 : i32
    return %c0_i32, %c0_i32_0 : i32, i32
  }
  func.func @transform_7(%arg0: i32, %arg1: i32) -> (i32, i32) {
    %c0_i32 = arith.constant 0 : i32
    %c0_i32_0 = arith.constant 0 : i32
    %c0_i32_1 = arith.constant 0 : i32
    return %c0_i32, %c0_i32_0 : i32, i32
  }
  func.func @transform_8(%arg0: i32, %arg1: i32) -> (i32, i32) {
    %c0_i32 = arith.constant 0 : i32
    %c0_i32_0 = arith.constant 0 : i32
    %c0_i32_1 = arith.constant 0 : i32
    return %c0_i32, %c0_i32_0 : i32, i32
  }
  func.func @transform_9(%arg0: i32, %arg1: i32) -> (i32, i32) {
    %c0_i32 = arith.constant 0 : i32
    %c0_i32_0 = arith.constant 0 : i32
    %c0_i32_1 = arith.constant 0 : i32
    return %c0_i32, %c0_i32_0 : i32, i32
  }
  func.func @transform_10(%arg0: i32, %arg1: i32) -> (i32, i32) {
    %c0_i32 = arith.constant 0 : i32
    %c0_i32_0 = arith.constant 0 : i32
    %c0_i32_1 = arith.constant 0 : i32
    return %c0_i32, %c0_i32_0 : i32, i32
  }
  func.func @transform_11(%arg0: i32, %arg1: i32) -> (i32, i32) {
    %c0_i32 = arith.constant 0 : i32
    %c0_i32_0 = arith.constant 0 : i32
    %c0_i32_1 = arith.constant 0 : i32
    return %c0_i32, %c0_i32_0 : i32, i32
  }
  func.func @transform_12(%arg0: i32, %arg1: i32) -> (i32, i32) {
    %c0_i32 = arith.constant 0 : i32
    %c0_i32_0 = arith.constant 0 : i32
    %c0_i32_1 = arith.constant 0 : i32
    return %c0_i32, %c0_i32_0 : i32, i32
  }
  func.func @transform_13(%arg0: i32, %arg1: i32) -> (i32, i32) {
    %c0_i32 = arith.constant 0 : i32
    %c0_i32_0 = arith.constant 0 : i32
    %c0_i32_1 = arith.constant 0 : i32
    return %c0_i32, %c0_i32_0 : i32, i32
  }
  func.func @transform_14(%arg0: i32, %arg1: i32) -> (i32, i32) {
    %c0_i32 = arith.constant 0 : i32
    %c0_i32_0 = arith.constant 0 : i32
    %c0_i32_1 = arith.constant 0 : i32
    return %c0_i32, %c0_i32_0 : i32, i32
  }
  func.func @transform_15(%arg0: i32, %arg1: i32) -> (i32, i32) {
    %c0_i32 = arith.constant 0 : i32
    return %arg0, %arg1 : i32, i32
  }
}

module attributes {stable_mosaic.version = 11 : i64} {
  func.func @_text_tail_kernel(%arg0: i32, %arg1: memref<128x256xbf16, #tpu.memory_space<vmem>>, %arg2: memref<256x256xbf16, #tpu.memory_space<vmem>>, %arg3: memref<1x256xf32, #tpu.memory_space<vmem>>, %arg4: memref<1x256xf32, #tpu.memory_space<vmem>>, %arg5: memref<1x256xf32, #tpu.memory_space<vmem>>, %arg6: memref<256x128xbf16, #tpu.memory_space<vmem>>) attributes {dimension_semantics = [#tpu.dimension_semantics<parallel>], iteration_bounds = array<i64: 1>, scalar_prefetch = 0 : i64, scratch_operands = 0 : i64, tpu.core_type = #tpu.core_type<tc>, window_params = [{transform_indices = @transform_0, window_bounds = array<i64: 128, 256>}, {pipeline_mode = #tpu.pipeline_mode<synchronous>, transform_indices = @transform_1, window_bounds = array<i64: 256, 256>}, {pipeline_mode = #tpu.pipeline_mode<synchronous>, transform_indices = @transform_2, window_bounds = array<i64: 1, 256>}, {pipeline_mode = #tpu.pipeline_mode<synchronous>, transform_indices = @transform_3, window_bounds = array<i64: 1, 256>}, {pipeline_mode = #tpu.pipeline_mode<synchronous>, transform_indices = @transform_4, window_bounds = array<i64: 1, 256>}, {transform_indices = @transform_5, window_bounds = array<i64: 256, 128>}]} {
    %c0 = arith.constant 0 : index
    %c0_0 = arith.constant 0 : index
    %0 = vector.load %arg1[%c0, %c0_0] : memref<128x256xbf16, #tpu.memory_space<vmem>>, vector<128x256xbf16>
    %c0_1 = arith.constant 0 : index
    %c0_2 = arith.constant 0 : index
    %1 = vector.load %arg2[%c0_1, %c0_2] : memref<256x256xbf16, #tpu.memory_space<vmem>>, vector<256x256xbf16>
    %cst = arith.constant dense<0.000000e+00> : vector<128x256xf32>
    %2 = tpu.matmul %0, %1, %cst {dimension_numbers = #tpu.dot_dimension_numbers<[1], [0], [0], [1], [0, 0, 1, 1], [], []>} : vector<128x256xbf16>, vector<256x256xbf16>, vector<128x256xf32> -> vector<128x256xf32>
    %c0_3 = arith.constant 0 : index
    %c0_4 = arith.constant 0 : index
    %3 = vector.load %arg3[%c0_3, %c0_4] : memref<1x256xf32, #tpu.memory_space<vmem>>, vector<1x256xf32>
    %4 = vector.broadcast %3 : vector<1x256xf32> to vector<128x256xf32>
    %5 = arith.addf %2, %4 : vector<128x256xf32>
    %c0_5 = arith.constant 0 : index
    %c0_6 = arith.constant 0 : index
    %6 = vector.load %arg4[%c0_5, %c0_6] : memref<1x256xf32, #tpu.memory_space<vmem>>, vector<1x256xf32>
    %c0_7 = arith.constant 0 : index
    %c0_8 = arith.constant 0 : index
    %7 = vector.load %arg5[%c0_7, %c0_8] : memref<1x256xf32, #tpu.memory_space<vmem>>, vector<1x256xf32>
    %cst_9 = arith.constant dense<0.000000e+00> : vector<128xf32>
    %8 = vector.multi_reduction <add>, %5, %cst_9 [1] : vector<128x256xf32> to vector<128xf32>
    %9 = vector.shape_cast %8 : vector<128xf32> to vector<128x1xf32>
    %cst_10 = arith.constant 2.560000e+02 : f32
    %10 = vector.broadcast %cst_10 : f32 to vector<128x1xf32>
    %11 = arith.divf %9, %10 : vector<128x1xf32>
    %12 = vector.broadcast %11 : vector<128x1xf32> to vector<128x256xf32>
    %13 = arith.subf %5, %12 : vector<128x256xf32>
    %14 = arith.mulf %13, %13 : vector<128x256xf32>
    %cst_11 = arith.constant dense<0.000000e+00> : vector<128xf32>
    %15 = vector.multi_reduction <add>, %14, %cst_11 [1] : vector<128x256xf32> to vector<128xf32>
    %16 = vector.shape_cast %15 : vector<128xf32> to vector<128x1xf32>
    %cst_12 = arith.constant 2.560000e+02 : f32
    %17 = vector.broadcast %cst_12 : f32 to vector<128x1xf32>
    %18 = arith.divf %16, %17 : vector<128x1xf32>
    %19 = vector.broadcast %11 : vector<128x1xf32> to vector<128x256xf32>
    %20 = arith.subf %5, %19 : vector<128x256xf32>
    %cst_13 = arith.constant 9.99999974E-6 : f32
    %21 = vector.broadcast %cst_13 : f32 to vector<128x1xf32>
    %22 = arith.addf %18, %21 : vector<128x1xf32>
    %23 = math.rsqrt %22 : vector<128x1xf32>
    %24 = vector.broadcast %23 : vector<128x1xf32> to vector<128x256xf32>
    %25 = arith.mulf %20, %24 : vector<128x256xf32>
    %26 = vector.broadcast %6 : vector<1x256xf32> to vector<128x256xf32>
    %27 = arith.mulf %25, %26 : vector<128x256xf32>
    %28 = vector.broadcast %7 : vector<1x256xf32> to vector<128x256xf32>
    %29 = arith.addf %27, %28 : vector<128x256xf32>
    %30 = arith.mulf %29, %29 : vector<128x256xf32>
    %cst_14 = arith.constant dense<0.000000e+00> : vector<128xf32>
    %31 = vector.multi_reduction <add>, %30, %cst_14 [1] : vector<128x256xf32> to vector<128xf32>
    %32 = vector.shape_cast %31 : vector<128xf32> to vector<128x1xf32>
    %33 = math.sqrt %32 : vector<128x1xf32>
    %cst_15 = arith.constant 9.99999996E-13 : f32
    %34 = vector.broadcast %cst_15 : f32 to vector<128x1xf32>
    %35 = arith.maximumf %33, %34 : vector<128x1xf32>
    %36 = vector.broadcast %35 : vector<128x1xf32> to vector<128x256xf32>
    %37 = arith.divf %29, %36 : vector<128x256xf32>
    %38 = tpu.transpose %37, [1, 0] : vector<128x256xf32> -> vector<256x128xf32>
    %39 = arith.truncf %38 : vector<256x128xf32> to vector<256x128xbf16>
    %c0_16 = arith.constant 0 : index
    %c0_17 = arith.constant 0 : index
    %40 = vector.load %arg6[%c0_16, %c0_17] : memref<256x128xbf16, #tpu.memory_space<vmem>>, vector<256x128xbf16>
    tpu.vector_store %arg6[%c0_16, %c0_17], %39 {strides = array<i32>} : memref<256x128xbf16, #tpu.memory_space<vmem>>, vector<256x128xbf16>,
    return
  }
  func.func @transform_0(%arg0: i32) -> (i32, i32) {
    %c0_i32 = arith.constant 0 : i32
    %c0_i32_0 = arith.constant 0 : i32
    return %arg0, %c0_i32 : i32, i32
  }
  func.func @transform_1(%arg0: i32) -> (i32, i32) {
    %c0_i32 = arith.constant 0 : i32
    %c0_i32_0 = arith.constant 0 : i32
    %c0_i32_1 = arith.constant 0 : i32
    return %c0_i32, %c0_i32_0 : i32, i32
  }
  func.func @transform_2(%arg0: i32) -> (i32, i32) {
    %c0_i32 = arith.constant 0 : i32
    %c0_i32_0 = arith.constant 0 : i32
    %c0_i32_1 = arith.constant 0 : i32
    return %c0_i32, %c0_i32_0 : i32, i32
  }
  func.func @transform_3(%arg0: i32) -> (i32, i32) {
    %c0_i32 = arith.constant 0 : i32
    %c0_i32_0 = arith.constant 0 : i32
    %c0_i32_1 = arith.constant 0 : i32
    return %c0_i32, %c0_i32_0 : i32, i32
  }
  func.func @transform_4(%arg0: i32) -> (i32, i32) {
    %c0_i32 = arith.constant 0 : i32
    %c0_i32_0 = arith.constant 0 : i32
    %c0_i32_1 = arith.constant 0 : i32
    return %c0_i32, %c0_i32_0 : i32, i32
  }
  func.func @transform_5(%arg0: i32) -> (i32, i32) {
    %c0_i32 = arith.constant 0 : i32
    %c0_i32_0 = arith.constant 0 : i32
    return %c0_i32, %arg0 : i32, i32
  }
}

</mosaic_0001>

<llo_original>
// kernel: atq_forward.2
$region0: #{atq_forward.2}
  #allocation0 [shape = 'u32[]', space=smem, size = 0x4, offset = 0x4, fixed_abs, tag = 'smem constant byte address 0x4 - core index']
  #allocation1 [shape = 'u32[72,128]{1,0:T(1,128)}', space=vmem, size = 0x9000, scoped, tag = 'internal scratch']
  %s0 = inlined_call_operand.vmem [shape: bf16[128,256], index: 0, kind: input, shape index: {}]
  %s1 = inlined_call_operand.vmem [shape: bf16[256,256], index: 1, kind: input, shape index: {}]
  %s2 = inlined_call_operand.vmem [shape: f32[1,256], index: 2, kind: input, shape index: {}]
  %s3 = inlined_call_operand.vmem [shape: f32[1,256], index: 3, kind: input, shape index: {}]
  %s4 = inlined_call_operand.vmem [shape: f32[1,256], index: 4, kind: input, shape index: {}]
  %s5 = inlined_call_operand.vmem [shape: bf16[256,128], index: 5, kind: output, shape index: {}]
  %s6 = sld [smem:[#allocation0]]
  $region30: #{atq_forward.2} parent=0
    _
  %s8 = ssub.s32 1, %s6
  %s9 = scalar_select 0, %s8, %s6
  // Predicated region
  $region2: #{atq_forward.2} parent=0 // pred_check
    _
  $region3: #{atq_forward.2} parent=0 // pred_check_branch
    %11 = sbr.rel (0) target = $region5
  $region4: #{atq_forward.2} parent=0 // pred_region
    _
  $region5: #{atq_forward.2} parent=0 // pred_fallthru
    _
  // Predicated region
  $region6: #{atq_forward.2} parent=0 // pred_check
    _
  $region7: #{atq_forward.2} parent=0 // pred_check_branch
    %13 = sbr.rel (0) target = $region9
  $region8: #{atq_forward.2} parent=0 // pred_region
    _
  $region9: #{atq_forward.2} parent=0 // pred_fallthru
    _
  // Predicated region
  $region10: #{atq_forward.2} parent=0 // pred_check
    _
  $region11: #{atq_forward.2} parent=0 // pred_check_branch
    %15 = sbr.rel (0) target = $region13
  $region12: #{atq_forward.2} parent=0 // pred_region
    _
  $region13: #{atq_forward.2} parent=0 // pred_fallthru
    _
  // Predicated region
  $region14: #{atq_forward.2} parent=0 // pred_check
    _
  $region15: #{atq_forward.2} parent=0 // pred_check_branch
    %17 = sbr.rel (0) target = $region17
  $region16: #{atq_forward.2} parent=0 // pred_region
    _
  $region17: #{atq_forward.2} parent=0 // pred_fallthru
    _
  // Predicated region
  $region18: #{atq_forward.2} parent=0 // pred_check
    _
  $region19: #{atq_forward.2} parent=0 // pred_check_branch
    %19 = sbr.rel (0) target = $region21
  $region20: #{atq_forward.2} parent=0 // pred_region
    _
  $region21: #{atq_forward.2} parent=0 // pred_fallthru
    _
  %v20 = vld [vmem:[%s0] sm:$0xff]
  %v21 = vld [vmem:[%s0 + $0x8] sm:$0xff]
  %v22 = vld [vmem:[%s0 + $0x10] sm:$0xff]
  %v23 = vld [vmem:[%s0 + $0x18] sm:$0xff]
  %v24 = vld [vmem:[%s0 + $0x20] sm:$0xff]
  %v25 = vld [vmem:[%s0 + $0x28] sm:$0xff]
  %v26 = vld [vmem:[%s0 + $0x30] sm:$0xff]
  %v27 = vld [vmem:[%s0 + $0x38] sm:$0xff]
  %v28 = vld [vmem:[%s0 + $0x40] sm:$0xff]
  %v29 = vld [vmem:[%s0 + $0x48] sm:$0xff]
  %v30 = vld [vmem:[%s0 + $0x50] sm:$0xff]
  %v31 = vld [vmem:[%s0 + $0x58] sm:$0xff]
  %v32 = vld [vmem:[%s0 + $0x60] sm:$0xff]
  %v33 = vld [vmem:[%s0 + $0x68] sm:$0xff]
  %v34 = vld [vmem:[%s0 + $0x70] sm:$0xff]
  %v35 = vld [vmem:[%s0 + $0x78] sm:$0xff]
  %v36 = vld [vmem:[%s1] sm:$0xff]
  %v37 = vld [vmem:[%s1 + $0x8] sm:$0xff]
  %v38 = vld [vmem:[%s1 + $0x10] sm:$0xff]
  %v39 = vld [vmem:[%s1 + $0x18] sm:$0xff]
  %v40 = vld [vmem:[%s1 + $0x20] sm:$0xff]
  %v41 = vld [vmem:[%s1 + $0x28] sm:$0xff]
  %v42 = vld [vmem:[%s1 + $0x30] sm:$0xff]
  %v43 = vld [vmem:[%s1 + $0x38] sm:$0xff]
  %v44 = vld [vmem:[%s1 + $0x40] sm:$0xff]
  %v45 = vld [vmem:[%s1 + $0x48] sm:$0xff]
  %v46 = vld [vmem:[%s1 + $0x50] sm:$0xff]
  %v47 = vld [vmem:[%s1 + $0x58] sm:$0xff]
  %v48 = vld [vmem:[%s1 + $0x60] sm:$0xff]
  %v49 = vld [vmem:[%s1 + $0x68] sm:$0xff]
  %v50 = vld [vmem:[%s1 + $0x70] sm:$0xff]
  %v51 = vld [vmem:[%s1 + $0x78] sm:$0xff]
  %v52 = vld [vmem:[%s1 + $0x80] sm:$0xff]
  %v53 = vld [vmem:[%s1 + $0x88] sm:$0xff]
  %v54 = vld [vmem:[%s1 + $0x90] sm:$0xff]
  %v55 = vld [vmem:[%s1 + $0x98] sm:$0xff]
  %v56 = vld [vmem:[%s1 + $0xa0] sm:$0xff]
  %v57 = vld [vmem:[%s1 + $0xa8] sm:$0xff]
  %v58 = vld [vmem:[%s1 + $0xb0] sm:$0xff]
  %v59 = vld [vmem:[%s1 + $0xb8] sm:$0xff]
  %v60 = vld [vmem:[%s1 + $0xc0] sm:$0xff]
  %v61 = vld [vmem:[%s1 + $0xc8] sm:$0xff]
  %v62 = vld [vmem:[%s1 + $0xd0] sm:$0xff]
  %v63 = vld [vmem:[%s1 + $0xd8] sm:$0xff]
  %v64 = vld [vmem:[%s1 + $0xe0] sm:$0xff]
  %v65 = vld [vmem:[%s1 + $0xe8] sm:$0xff]
  %v66 = vld [vmem:[%s1 + $0xf0] sm:$0xff]
  %v67 = vld [vmem:[%s1 + $0xf8] sm:$0xff]
  %v68 = vld [vmem:[%s2] sm:$0x3]
  %v70 = vperm.slane %v68, 0
  %v71 = vperm.slane %v68, 1
  %v90 = vunpack.c.l.b16 %v20
  %v91 = vunpack.c.h.b16 %v20
  %v92 = vunpack.c.l.b16 %v21
  %v93 = vunpack.c.h.b16 %v21
  %v94 = vunpack.c.l.b16 %v22
  %v95 = vunpack.c.h.b16 %v22
  %v96 = vunpack.c.l.b16 %v23
  %v97 = vunpack.c.h.b16 %v23
  %v98 = vunpack.c.l.b16 %v24
  %v99 = vunpack.c.h.b16 %v24
  %v100 = vunpack.c.l.b16 %v25
  %v101 = vunpack.c.h.b16 %v25
  %v102 = vunpack.c.l.b16 %v26
  %v103 = vunpack.c.h.b16 %v26
  %v104 = vunpack.c.l.b16 %v27
  %v105 = vunpack.c.h.b16 %v27
  %v106 = vunpack.c.l.b16 %v28
  %v107 = vunpack.c.h.b16 %v28
  %v108 = vunpack.c.l.b16 %v29
  %v109 = vunpack.c.h.b16 %v29
  %v110 = vunpack.c.l.b16 %v30
  %v111 = vunpack.c.h.b16 %v30
  %v112 = vunpack.c.l.b16 %v31
  %v113 = vunpack.c.h.b16 %v31
  %v114 = vunpack.c.l.b16 %v32
  %v115 = vunpack.c.h.b16 %v32
  %v116 = vunpack.c.l.b16 %v33
  %v117 = vunpack.c.h.b16 %v33
  %v118 = vunpack.c.l.b16 %v34
  %v119 = vunpack.c.h.b16 %v34
  %v120 = vunpack.c.l.b16 %v35
  %v121 = vunpack.c.h.b16 %v35
  %v122 = vpack.c.b16 %v92, %v90
  %v123 = vpack.c.b16 %v93, %v91
  %v124 = vpack.c.b16 %v96, %v94
  %v125 = vpack.c.b16 %v97, %v95
  %v126 = vpack.c.b16 %v100, %v98
  %v127 = vpack.c.b16 %v101, %v99
  %v128 = vpack.c.b16 %v104, %v102
  %v129 = vpack.c.b16 %v105, %v103
  %v130 = vpack.c.b16 %v108, %v106
  %v131 = vpack.c.b16 %v109, %v107
  %v132 = vpack.c.b16 %v112, %v110
  %v133 = vpack.c.b16 %v113, %v111
  %v134 = vpack.c.b16 %v116, %v114
  %v135 = vpack.c.b16 %v117, %v115
  %v136 = vpack.c.b16 %v120, %v118
  %v137 = vpack.c.b16 %v121, %v119
  %v186 = vunpack.c.l.b16 %v36
  %v187 = vunpack.c.h.b16 %v36
  %v188 = vunpack.c.l.b16 %v37
  %v189 = vunpack.c.h.b16 %v37
  %v190 = vunpack.c.l.b16 %v38
  %v191 = vunpack.c.h.b16 %v38
  %v192 = vunpack.c.l.b16 %v39
  %v193 = vunpack.c.h.b16 %v39
  %v194 = vunpack.c.l.b16 %v40
  %v195 = vunpack.c.h.b16 %v40
  %v196 = vunpack.c.l.b16 %v41
  %v197 = vunpack.c.h.b16 %v41
  %v198 = vunpack.c.l.b16 %v42
  %v199 = vunpack.c.h.b16 %v42
  %v200 = vunpack.c.l.b16 %v43
  %v201 = vunpack.c.h.b16 %v43
  %v202 = vunpack.c.l.b16 %v44
  %v203 = vunpack.c.h.b16 %v44
  %v204 = vunpack.c.l.b16 %v45
  %v205 = vunpack.c.h.b16 %v45
  %v206 = vunpack.c.l.b16 %v46
  %v207 = vunpack.c.h.b16 %v46
  %v208 = vunpack.c.l.b16 %v47
  %v209 = vunpack.c.h.b16 %v47
  %v210 = vunpack.c.l.b16 %v48
  %v211 = vunpack.c.h.b16 %v48
  %v212 = vunpack.c.l.b16 %v49
  %v213 = vunpack.c.h.b16 %v49
  %v214 = vunpack.c.l.b16 %v50
  %v215 = vunpack.c.h.b16 %v50
  %v216 = vunpack.c.l.b16 %v51
  %v217 = vunpack.c.h.b16 %v51
  %v218 = vunpack.c.l.b16 %v52
  %v219 = vunpack.c.h.b16 %v52
  %v220 = vunpack.c.l.b16 %v53
  %v221 = vunpack.c.h.b16 %v53
  %v222 = vunpack.c.l.b16 %v54
  %v223 = vunpack.c.h.b16 %v54
  %v224 = vunpack.c.l.b16 %v55
  %v225 = vunpack.c.h.b16 %v55
  %v226 = vunpack.c.l.b16 %v56
  %v227 = vunpack.c.h.b16 %v56
  %v228 = vunpack.c.l.b16 %v57
  %v229 = vunpack.c.h.b16 %v57
  %v230 = vunpack.c.l.b16 %v58
  %v231 = vunpack.c.h.b16 %v58
  %v232 = vunpack.c.l.b16 %v59
  %v233 = vunpack.c.h.b16 %v59
  %v234 = vunpack.c.l.b16 %v60
  %v235 = vunpack.c.h.b16 %v60
  %v236 = vunpack.c.l.b16 %v61
  %v237 = vunpack.c.h.b16 %v61
  %v238 = vunpack.c.l.b16 %v62
  %v239 = vunpack.c.h.b16 %v62
  %v240 = vunpack.c.l.b16 %v63
  %v241 = vunpack.c.h.b16 %v63
  %v242 = vunpack.c.l.b16 %v64
  %v243 = vunpack.c.h.b16 %v64
  %v244 = vunpack.c.l.b16 %v65
  %v245 = vunpack.c.h.b16 %v65
  %v246 = vunpack.c.l.b16 %v66
  %v247 = vunpack.c.h.b16 %v66
  %v248 = vunpack.c.l.b16 %v67
  %v249 = vunpack.c.h.b16 %v67
  %v250 = vpack.c.b16 %v188, %v186
  %v251 = vpack.c.b16 %v189, %v187
  %v252 = vpack.c.b16 %v192, %v190
  %v253 = vpack.c.b16 %v193, %v191
  %v254 = vpack.c.b16 %v196, %v194
  %v255 = vpack.c.b16 %v197, %v195
  %v256 = vpack.c.b16 %v200, %v198
  %v257 = vpack.c.b16 %v201, %v199
  %v258 = vpack.c.b16 %v204, %v202
  %v259 = vpack.c.b16 %v205, %v203
  %v260 = vpack.c.b16 %v208, %v206
  %v261 = vpack.c.b16 %v209, %v207
  %v262 = vpack.c.b16 %v212, %v210
  %v263 = vpack.c.b16 %v213, %v211
  %v264 = vpack.c.b16 %v216, %v214
  %v265 = vpack.c.b16 %v217, %v215
  %v266 = vpack.c.b16 %v220, %v218
  %v267 = vpack.c.b16 %v221, %v219
  %v268 = vpack.c.b16 %v224, %v222
  %v269 = vpack.c.b16 %v225, %v223
  %v270 = vpack.c.b16 %v228, %v226
  %v271 = vpack.c.b16 %v229, %v227
  %v272 = vpack.c.b16 %v232, %v230
  %v273 = vpack.c.b16 %v233, %v231
  %v274 = vpack.c.b16 %v236, %v234
  %v275 = vpack.c.b16 %v237, %v235
  %v276 = vpack.c.b16 %v240, %v238
  %v277 = vpack.c.b16 %v241, %v239
  %v278 = vpack.c.b16 %v244, %v242
  %v279 = vpack.c.b16 %v245, %v243
  %v280 = vpack.c.b16 %v248, %v246
  %v281 = vpack.c.b16 %v249, %v247
  %314 = vmatpush.bf16.msra.mxu0 %v264
  %315 = vmatpush.bf16.msra.mxu0 %v262
  %316 = vmatpush.bf16.msra.mxu0 %v260
  %317 = vmatpush.bf16.msra.mxu0 %v258
  %318 = vmatpush.bf16.msra.mxu0 %v256
  %319 = vmatpush.bf16.msra.mxu0 %v254
  %320 = vmatpush.bf16.msra.mxu0 %v252
  %321 = vmatpush.bf16.msra.mxu0 %v250
  %322 = vmatmul.bf16.gmra.mxu0 %v122
  %v323 = vpop.f32.mrf.mxu0
  %v324 = vadd.f32 %v70, %v323
  %v325 = vpop.f32.mrf.mxu0
  %v326 = vadd.f32 %v70, %v325
  %327 = vmatmul.bf16.gmra.mxu0 %v124
  %v328 = vpop.f32.mrf.mxu0
  %v329 = vadd.f32 %v70, %v328
  %v330 = vpop.f32.mrf.mxu0
  %v331 = vadd.f32 %v70, %v330
  %332 = vmatmul.bf16.gmra.mxu0 %v126
  %v333 = vpop.f32.mrf.mxu0
  %v334 = vadd.f32 %v70, %v333
  %v335 = vpop.f32.mrf.mxu0
  %v336 = vadd.f32 %v70, %v335
  %337 = vmatmul.bf16.gmra.mxu0 %v128
  %v338 = vpop.f32.mrf.mxu0
  %v339 = vadd.f32 %v70, %v338
  %v340 = vpop.f32.mrf.mxu0
  %v341 = vadd.f32 %v70, %v340
  %342 = vmatmul.bf16.gmra.mxu0 %v130
  %v343 = vpop.f32.mrf.mxu0
  %v344 = vadd.f32 %v70, %v343
  %v345 = vpop.f32.mrf.mxu0
  %v346 = vadd.f32 %v70, %v345
  %347 = vmatmul.bf16.gmra.mxu0 %v132
  %v348 = vpop.f32.mrf.mxu0
  %v349 = vadd.f32 %v70, %v348
  %v350 = vpop.f32.mrf.mxu0
  %v351 = vadd.f32 %v70, %v350
  %352 = vmatmul.bf16.gmra.mxu0 %v134
  %v353 = vpop.f32.mrf.mxu0
  %v354 = vadd.f32 %v70, %v353
  %v355 = vpop.f32.mrf.mxu0
  %v356 = vadd.f32 %v70, %v355
  %357 = vmatmul.bf16.gmra.mxu0 %v136
  %v358 = vpop.f32.mrf.mxu0
  %v359 = vadd.f32 %v70, %v358
  %v360 = vpop.f32.mrf.mxu0
  %v361 = vadd.f32 %v70, %v360
  %362 = vdwg.mxu0
  %363 = vmatpush.bf16.msra.mxu0 %v280
  %364 = vmatpush.bf16.msra.mxu0 %v278
  %365 = vmatpush.bf16.msra.mxu0 %v276
  %366 = vmatpush.bf16.msra.mxu0 %v274
  %367 = vmatpush.bf16.msra.mxu0 %v272
  %368 = vmatpush.bf16.msra.mxu0 %v270
  %369 = vmatpush.bf16.msra.mxu0 %v268
  %370 = vmatpush.bf16.msra.mxu0 %v266
  %371 = vmatmul.bf16.gmra.mxu0 %v123
  %v372 = vpop.f32.mrf.mxu0
  %v373 = vadd.f32 %v324, %v372
  %v374 = vpop.f32.mrf.mxu0
  %v375 = vadd.f32 %v326, %v374
  %376 = vmatmul.bf16.gmra.mxu0 %v125
  %v377 = vpop.f32.mrf.mxu0
  %v378 = vadd.f32 %v329, %v377
  %v379 = vpop.f32.mrf.mxu0
  %v380 = vadd.f32 %v331, %v379
  %381 = vmatmul.bf16.gmra.mxu0 %v127
  %v382 = vpop.f32.mrf.mxu0
  %v383 = vadd.f32 %v334, %v382
  %v384 = vpop.f32.mrf.mxu0
  %v385 = vadd.f32 %v336, %v384
  %386 = vmatmul.bf16.gmra.mxu0 %v129
  %v387 = vpop.f32.mrf.mxu0
  %v388 = vadd.f32 %v339, %v387
  %v389 = vpop.f32.mrf.mxu0
  %v390 = vadd.f32 %v341, %v389
  %391 = vmatmul.bf16.gmra.mxu0 %v131
  %v392 = vpop.f32.mrf.mxu0
  %v393 = vadd.f32 %v344, %v392
  %v394 = vpop.f32.mrf.mxu0
  %v395 = vadd.f32 %v346, %v394
  %396 = vmatmul.bf16.gmra.mxu0 %v133
  %v397 = vpop.f32.mrf.mxu0
  %v398 = vadd.f32 %v349, %v397
  %v399 = vpop.f32.mrf.mxu0
  %v400 = vadd.f32 %v351, %v399
  %401 = vmatmul.bf16.gmra.mxu0 %v135
  %v402 = vpop.f32.mrf.mxu0
  %v403 = vadd.f32 %v354, %v402
  %v404 = vpop.f32.mrf.mxu0
  %v405 = vadd.f32 %v356, %v404
  %406 = vmatmul.bf16.gmra.mxu0 %v137
  %v407 = vpop.f32.mrf.mxu0
  %v408 = vadd.f32 %v359, %v407
  %v409 = vpop.f32.mrf.mxu0
  %v410 = vadd.f32 %v361, %v409
  %411 = vdwg.mxu0
  %412 = vmatpush.bf16.msra.mxu0 %v265
  %413 = vmatpush.bf16.msra.mxu0 %v263
  %414 = vmatpush.bf16.msra.mxu0 %v261
  %415 = vmatpush.bf16.msra.mxu0 %v259
  %416 = vmatpush.bf16.msra.mxu0 %v257
  %417 = vmatpush.bf16.msra.mxu0 %v255
  %418 = vmatpush.bf16.msra.mxu0 %v253
  %419 = vmatpush.bf16.msra.mxu0 %v251
  %420 = vmatmul.bf16.gmra.mxu0 %v122
  %v421 = vpop.f32.mrf.mxu0
  %v422 = vadd.f32 %v71, %v421
  %v423 = vpop.f32.mrf.mxu0
  %v424 = vadd.f32 %v71, %v423
  %425 = vmatmul.bf16.gmra.mxu0 %v124
  %v426 = vpop.f32.mrf.mxu0
  %v427 = vadd.f32 %v71, %v426
  %v428 = vpop.f32.mrf.mxu0
  %v429 = vadd.f32 %v71, %v428
  %430 = vmatmul.bf16.gmra.mxu0 %v126
  %v431 = vpop.f32.mrf.mxu0
  %v432 = vadd.f32 %v71, %v431
  %v433 = vpop.f32.mrf.mxu0
  %v434 = vadd.f32 %v71, %v433
  %435 = vmatmul.bf16.gmra.mxu0 %v128
  %v436 = vpop.f32.mrf.mxu0
  %v437 = vadd.f32 %v71, %v436
  %v438 = vpop.f32.mrf.mxu0
  %v439 = vadd.f32 %v71, %v438
  %440 = vmatmul.bf16.gmra.mxu0 %v130
  %v441 = vpop.f32.mrf.mxu0
  %v442 = vadd.f32 %v71, %v441
  %v443 = vpop.f32.mrf.mxu0
  %v444 = vadd.f32 %v71, %v443
  %445 = vmatmul.bf16.gmra.mxu0 %v132
  %v446 = vpop.f32.mrf.mxu0
  %v447 = vadd.f32 %v71, %v446
  %v448 = vpop.f32.mrf.mxu0
  %v449 = vadd.f32 %v71, %v448
  %450 = vmatmul.bf16.gmra.mxu0 %v134
  %v451 = vpop.f32.mrf.mxu0
  %v452 = vadd.f32 %v71, %v451
  %v453 = vpop.f32.mrf.mxu0
  %v454 = vadd.f32 %v71, %v453
  %455 = vmatmul.bf16.gmra.mxu0 %v136
  %v456 = vpop.f32.mrf.mxu0
  %v457 = vadd.f32 %v71, %v456
  %v458 = vpop.f32.mrf.mxu0
  %v459 = vadd.f32 %v71, %v458
  %460 = vdwg.mxu0
  %461 = vmatpush.bf16.msra.mxu0 %v281
  %462 = vmatpush.bf16.msra.mxu0 %v279
  %463 = vmatpush.bf16.msra.mxu0 %v277
  %464 = vmatpush.bf16.msra.mxu0 %v275
  %465 = vmatpush.bf16.msra.mxu0 %v273
  %466 = vmatpush.bf16.msra.mxu0 %v271
  %467 = vmatpush.bf16.msra.mxu0 %v269
  %468 = vmatpush.bf16.msra.mxu0 %v267
  %469 = vmatmul.bf16.gmra.mxu0 %v123
  %v470 = vpop.f32.mrf.mxu0
  %v471 = vadd.f32 %v422, %v470
  %v472 = vpop.f32.mrf.mxu0
  %v473 = vadd.f32 %v424, %v472
  %474 = vmatmul.bf16.gmra.mxu0 %v125
  %v475 = vpop.f32.mrf.mxu0
  %v476 = vadd.f32 %v427, %v475
  %v477 = vpop.f32.mrf.mxu0
  %v478 = vadd.f32 %v429, %v477
  %479 = vmatmul.bf16.gmra.mxu0 %v127
  %v480 = vpop.f32.mrf.mxu0
  %v481 = vadd.f32 %v432, %v480
  %v482 = vpop.f32.mrf.mxu0
  %v483 = vadd.f32 %v434, %v482
  %484 = vmatmul.bf16.gmra.mxu0 %v129
  %v485 = vpop.f32.mrf.mxu0
  %v486 = vadd.f32 %v437, %v485
  %v487 = vpop.f32.mrf.mxu0
  %v488 = vadd.f32 %v439, %v487
  %489 = vmatmul.bf16.gmra.mxu0 %v131
  %v490 = vpop.f32.mrf.mxu0
  %v491 = vadd.f32 %v442, %v490
  %v492 = vpop.f32.mrf.mxu0
  %v493 = vadd.f32 %v444, %v492
  %494 = vmatmul.bf16.gmra.mxu0 %v133
  %v495 = vpop.f32.mrf.mxu0
  %v496 = vadd.f32 %v447, %v495
  %v497 = vpop.f32.mrf.mxu0
  %v498 = vadd.f32 %v449, %v497
  %499 = vmatmul.bf16.gmra.mxu0 %v135
  %v500 = vpop.f32.mrf.mxu0
  %v501 = vadd.f32 %v452, %v500
  %v502 = vpop.f32.mrf.mxu0
  %v503 = vadd.f32 %v454, %v502
  %504 = vmatmul.bf16.gmra.mxu0 %v137
  %v505 = vpop.f32.mrf.mxu0
  %v506 = vadd.f32 %v457, %v505
  %v507 = vpop.f32.mrf.mxu0
  %v508 = vadd.f32 %v459, %v507
  %509 = vdwg.mxu0
  %v510 = vld [vmem:[%s3] sm:$0x3]
  %v511 = vld [vmem:[%s4] sm:$0x3]
  %v512 = vadd.f32 %v373, %v471
  %513 = vadd.xlane.f32.xlu0 %v512
  %v514 = vpop.xlane.xlu0 %513
  %v515 = vadd.f32 %v375, %v473
  %516 = vadd.xlane.f32.xlu0 %v515
  %v517 = vpop.xlane.xlu0 %516
  %v518 = vadd.f32 %v378, %v476
  %519 = vadd.xlane.f32.xlu0 %v518
  %v520 = vpop.xlane.xlu0 %519
  %v521 = vadd.f32 %v380, %v478
  %522 = vadd.xlane.f32.xlu0 %v521
  %v523 = vpop.xlane.xlu0 %522
  %v524 = vadd.f32 %v383, %v481
  %525 = vadd.xlane.f32.xlu0 %v524
  %v526 = vpop.xlane.xlu0 %525
  %v527 = vadd.f32 %v385, %v483
  %528 = vadd.xlane.f32.xlu0 %v527
  %v529 = vpop.xlane.xlu0 %528
  %v530 = vadd.f32 %v388, %v486
  %531 = vadd.xlane.f32.xlu0 %v530
  %v532 = vpop.xlane.xlu0 %531
  %v533 = vadd.f32 %v390, %v488
  %534 = vadd.xlane.f32.xlu0 %v533
  %v535 = vpop.xlane.xlu0 %534
  %v536 = vadd.f32 %v393, %v491
  %537 = vadd.xlane.f32.xlu0 %v536
  %v538 = vpop.xlane.xlu0 %537
  %v539 = vadd.f32 %v395, %v493
  %540 = vadd.xlane.f32.xlu0 %v539
  %v541 = vpop.xlane.xlu0 %540
  %v542 = vadd.f32 %v398, %v496
  %543 = vadd.xlane.f32.xlu0 %v542
  %v544 = vpop.xlane.xlu0 %543
  %v545 = vadd.f32 %v400, %v498
  %546 = vadd.xlane.f32.xlu0 %v545
  %v547 = vpop.xlane.xlu0 %546
  %v548 = vadd.f32 %v403, %v501
  %549 = vadd.xlane.f32.xlu0 %v548
  %v550 = vpop.xlane.xlu0 %549
  %v551 = vadd.f32 %v405, %v503
  %552 = vadd.xlane.f32.xlu0 %v551
  %v553 = vpop.xlane.xlu0 %552
  %v554 = vadd.f32 %v408, %v506
  %555 = vadd.xlane.f32.xlu0 %v554
  %v556 = vpop.xlane.xlu0 %555
  %v557 = vadd.f32 %v410, %v508
  %558 = vadd.xlane.f32.xlu0 %v557
  %v559 = vpop.xlane.xlu0 %558
  %v560 = vrcp.pop 256.0
  %v561 = vmul.f32 256.0, %v560
  %v562 = vsub.f32 1.0, %v561
  %v563 = vmul.f32 %v560, %v562
  %v564 = vadd.f32 %v560, %v563
  %vm565 = vweird.f32 %v560
  %v566 = vsel %vm565, %v560, %v564
  %v567 = vmul.f32 %v514, %v566
  %v568 = vmul.f32 %v517, %v566
  %v569 = vmul.f32 %v520, %v566
  %v570 = vmul.f32 %v523, %v566
  %v571 = vmul.f32 %v526, %v566
  %v572 = vmul.f32 %v529, %v566
  %v573 = vmul.f32 %v532, %v566
  %v574 = vmul.f32 %v535, %v566
  %v575 = vmul.f32 %v538, %v566
  %v576 = vmul.f32 %v541, %v566
  %v577 = vmul.f32 %v544, %v566
  %v578 = vmul.f32 %v547, %v566
  %v579 = vmul.f32 %v550, %v566
  %v580 = vmul.f32 %v553, %v566
  %v581 = vmul.f32 %v556, %v566
  %v582 = vmul.f32 %v559, %v566
  %v583 = vsub.f32 %v373, %v567
  %v584 = vsub.f32 %v471, %v567
  %v585 = vsub.f32 %v375, %v568
  %v586 = vsub.f32 %v473, %v568
  %v587 = vsub.f32 %v378, %v569
  %v588 = vsub.f32 %v476, %v569
  %v589 = vsub.f32 %v380, %v570
  %v590 = vsub.f32 %v478, %v570
  %v591 = vsub.f32 %v383, %v571
  %v592 = vsub.f32 %v481, %v571
  %v593 = vsub.f32 %v385, %v572
  %v594 = vsub.f32 %v483, %v572
  %v595 = vsub.f32 %v388, %v573
  %v596 = vsub.f32 %v486, %v573
  %v597 = vsub.f32 %v390, %v574
  %v598 = vsub.f32 %v488, %v574
  %v599 = vsub.f32 %v393, %v575
  %v600 = vsub.f32 %v491, %v575
  %v601 = vsub.f32 %v395, %v576
  %v602 = vsub.f32 %v493, %v576
  %v603 = vsub.f32 %v398, %v577
  %v604 = vsub.f32 %v496, %v577
  %v605 = vsub.f32 %v400, %v578
  %v606 = vsub.f32 %v498, %v578
  %v607 = vsub.f32 %v403, %v579
  %v608 = vsub.f32 %v501, %v579
  %v609 = vsub.f32 %v405, %v580
  %v610 = vsub.f32 %v503, %v580
  %v611 = vsub.f32 %v408, %v581
  %v612 = vsub.f32 %v506, %v581
  %v613 = vsub.f32 %v410, %v582
  %v614 = vsub.f32 %v508, %v582
  %v615 = vmul.f32 %v583, %v583
  %v616 = vmul.f32 %v584, %v584
  %v617 = vmul.f32 %v585, %v585
  %v618 = vmul.f32 %v586, %v586
  %v619 = vmul.f32 %v587, %v587
  %v620 = vmul.f32 %v588, %v588
  %v621 = vmul.f32 %v589, %v589
  %v622 = vmul.f32 %v590, %v590
  %v623 = vmul.f32 %v591, %v591
  %v624 = vmul.f32 %v592, %v592
  %v625 = vmul.f32 %v593, %v593
  %v626 = vmul.f32 %v594, %v594
  %v627 = vmul.f32 %v595, %v595
  %v628 = vmul.f32 %v596, %v596
  %v629 = vmul.f32 %v597, %v597
  %v630 = vmul.f32 %v598, %v598
  %v631 = vmul.f32 %v599, %v599
  %v632 = vmul.f32 %v600, %v600
  %v633 = vmul.f32 %v601, %v601
  %v634 = vmul.f32 %v602, %v602
  %v635 = vmul.f32 %v603, %v603
  %v636 = vmul.f32 %v604, %v604
  %v637 = vmul.f32 %v605, %v605
  %v638 = vmul.f32 %v606, %v606
  %v639 = vmul.f32 %v607, %v607
  %v640 = vmul.f32 %v608, %v608
  %v641 = vmul.f32 %v609, %v609
  %v642 = vmul.f32 %v610, %v610
  %v643 = vmul.f32 %v611, %v611
  %v644 = vmul.f32 %v612, %v612
  %v645 = vmul.f32 %v613, %v613
  %v646 = vmul.f32 %v614, %v614
  %v647 = vadd.f32 %v615, %v616
  %648 = vadd.xlane.f32.xlu0 %v647
  %v649 = vpop.xlane.xlu0 %648
  %v650 = vadd.f32 %v617, %v618
  %651 = vadd.xlane.f32.xlu0 %v650
  %v652 = vpop.xlane.xlu0 %651
  %v653 = vadd.f32 %v619, %v620
  %654 = vadd.xlane.f32.xlu0 %v653
  %v655 = vpop.xlane.xlu0 %654
  %v656 = vadd.f32 %v621, %v622
  %657 = vadd.xlane.f32.xlu0 %v656
  %v658 = vpop.xlane.xlu0 %657
  %v659 = vadd.f32 %v623, %v624
  %660 = vadd.xlane.f32.xlu0 %v659
  %v661 = vpop.xlane.xlu0 %660
  %v662 = vadd.f32 %v625, %v626
  %663 = vadd.xlane.f32.xlu0 %v662
  %v664 = vpop.xlane.xlu0 %663
  %v665 = vadd.f32 %v627, %v628
  %666 = vadd.xlane.f32.xlu0 %v665
  %v667 = vpop.xlane.xlu0 %666
  %v668 = vadd.f32 %v629, %v630
  %669 = vadd.xlane.f32.xlu0 %v668
  %v670 = vpop.xlane.xlu0 %669
  %v671 = vadd.f32 %v631, %v632
  %672 = vadd.xlane.f32.xlu0 %v671
  %v673 = vpop.xlane.xlu0 %672
  %v674 = vadd.f32 %v633, %v634
  %675 = vadd.xlane.f32.xlu0 %v674
  %v676 = vpop.xlane.xlu0 %675
  %v677 = vadd.f32 %v635, %v636
  %678 = vadd.xlane.f32.xlu0 %v677
  %v679 = vpop.xlane.xlu0 %678
  %v680 = vadd.f32 %v637, %v638
  %681 = vadd.xlane.f32.xlu0 %v680
  %v682 = vpop.xlane.xlu0 %681
  %v683 = vadd.f32 %v639, %v640
  %684 = vadd.xlane.f32.xlu0 %v683
  %v685 = vpop.xlane.xlu0 %684
  %v686 = vadd.f32 %v641, %v642
  %687 = vadd.xlane.f32.xlu0 %v686
  %v688 = vpop.xlane.xlu0 %687
  %v689 = vadd.f32 %v643, %v644
  %690 = vadd.xlane.f32.xlu0 %v689
  %v691 = vpop.xlane.xlu0 %690
  %v692 = vadd.f32 %v645, %v646
  %693 = vadd.xlane.f32.xlu0 %v692
  %v694 = vpop.xlane.xlu0 %693
  %v695 = vmul.f32 %v649, %v566
  %v696 = vmul.f32 %v652, %v566
  %v697 = vmul.f32 %v655, %v566
  %v698 = vmul.f32 %v658, %v566
  %v699 = vmul.f32 %v661, %v566
  %v700 = vmul.f32 %v664, %v566
  %v701 = vmul.f32 %v667, %v566
  %v702 = vmul.f32 %v670, %v566
  %v703 = vmul.f32 %v673, %v566
  %v704 = vmul.f32 %v676, %v566
  %v705 = vmul.f32 %v679, %v566
  %v706 = vmul.f32 %v682, %v566
  %v707 = vmul.f32 %v685, %v566
  %v708 = vmul.f32 %v688, %v566
  %v709 = vmul.f32 %v691, %v566
  %v710 = vmul.f32 %v694, %v566
  %v711 = vadd.f32 %v695, 1e-05
  %v712 = vadd.f32 %v696, 1e-05
  %v713 = vadd.f32 %v697, 1e-05
  %v714 = vadd.f32 %v698, 1e-05
  %v715 = vadd.f32 %v699, 1e-05
  %v716 = vadd.f32 %v700, 1e-05
  %v717 = vadd.f32 %v701, 1e-05
  %v718 = vadd.f32 %v702, 1e-05
  %v719 = vadd.f32 %v703, 1e-05
  %v720 = vadd.f32 %v704, 1e-05
  %v721 = vadd.f32 %v705, 1e-05
  %v722 = vadd.f32 %v706, 1e-05
  %v723 = vadd.f32 %v707, 1e-05
  %v724 = vadd.f32 %v708, 1e-05
  %v725 = vadd.f32 %v709, 1e-05
  %v726 = vadd.f32 %v710, 1e-05
  %v727 = vrsqrt.pop %v711
  %v728 = vmul.f32 %v727, %v711
  %v729 = vmul.f32 %v728, %v727
  %v730 = vmul.f32 0.5, %v729
  %v731 = vsub.f32 1.5, %v730
  %v732 = vmul.f32 %v727, %v731
  %vm733 = vweird.f32 %v711
  %vm734 = vweird.f32 %v727
  %vm735 = vmor %vm733, %vm734
  %v736 = vsel %vm735, %v727, %v732
  %v737 = vrsqrt.pop %v712
  %v738 = vmul.f32 %v737, %v712
  %v739 = vmul.f32 %v738, %v737
  %v740 = vmul.f32 0.5, %v739
  %v741 = vsub.f32 1.5, %v740
  %v742 = vmul.f32 %v737, %v741
  %vm743 = vweird.f32 %v712
  %vm744 = vweird.f32 %v737
  %vm745 = vmor %vm743, %vm744
  %v746 = vsel %vm745, %v737, %v742
  %v747 = vrsqrt.pop %v713
  %v748 = vmul.f32 %v747, %v713
  %v749 = vmul.f32 %v748, %v747
  %v750 = vmul.f32 0.5, %v749
  %v751 = vsub.f32 1.5, %v750
  %v752 = vmul.f32 %v747, %v751
  %vm753 = vweird.f32 %v713
  %vm754 = vweird.f32 %v747
  %vm755 = vmor %vm753, %vm754
  %v756 = vsel %vm755, %v747, %v752
  %v757 = vrsqrt.pop %v714
  %v758 = vmul.f32 %v757, %v714
  %v759 = vmul.f32 %v758, %v757
  %v760 = vmul.f32 0.5, %v759
  %v761 = vsub.f32 1.5, %v760
  %v762 = vmul.f32 %v757, %v761
  %vm763 = vweird.f32 %v714
  %vm764 = vweird.f32 %v757
  %vm765 = vmor %vm763, %vm764
  %v766 = vsel %vm765, %v757, %v762
  %v767 = vrsqrt.pop %v715
  %v768 = vmul.f32 %v767, %v715
  %v769 = vmul.f32 %v768, %v767
  %v770 = vmul.f32 0.5, %v769
  %v771 = vsub.f32 1.5, %v770
  %v772 = vmul.f32 %v767, %v771
  %vm773 = vweird.f32 %v715
  %vm774 = vweird.f32 %v767
  %vm775 = vmor %vm773, %vm774
  %v776 = vsel %vm775, %v767, %v772
  %v777 = vrsqrt.pop %v716
  %v778 = vmul.f32 %v777, %v716
  %v779 = vmul.f32 %v778, %v777
  %v780 = vmul.f32 0.5, %v779
  %v781 = vsub.f32 1.5, %v780
  %v782 = vmul.f32 %v777, %v781
  %vm783 = vweird.f32 %v716
  %vm784 = vweird.f32 %v777
  %vm785 = vmor %vm783, %vm784
  %v786 = vsel %vm785, %v777, %v782
  %v787 = vrsqrt.pop %v717
  %v788 = vmul.f32 %v787, %v717
  %v789 = vmul.f32 %v788, %v787
  %v790 = vmul.f32 0.5, %v789
  %v791 = vsub.f32 1.5, %v790
  %v792 = vmul.f32 %v787, %v791
  %vm793 = vweird.f32 %v717
  %vm794 = vweird.f32 %v787
  %vm795 = vmor %vm793, %vm794
  %v796 = vsel %vm795, %v787, %v792
  %v797 = vrsqrt.pop %v718
  %v798 = vmul.f32 %v797, %v718
  %v799 = vmul.f32 %v798, %v797
  %v800 = vmul.f32 0.5, %v799
  %v801 = vsub.f32 1.5, %v800
  %v802 = vmul.f32 %v797, %v801
  %vm803 = vweird.f32 %v718
  %vm804 = vweird.f32 %v797
  %vm805 = vmor %vm803, %vm804
  %v806 = vsel %vm805, %v797, %v802
  %v807 = vrsqrt.pop %v719
  %v808 = vmul.f32 %v807, %v719
  %v809 = vmul.f32 %v808, %v807
  %v810 = vmul.f32 0.5, %v809
  %v811 = vsub.f32 1.5, %v810
  %v812 = vmul.f32 %v807, %v811
  %vm813 = vweird.f32 %v719
  %vm814 = vweird.f32 %v807
  %vm815 = vmor %vm813, %vm814
  %v816 = vsel %vm815, %v807, %v812
  %v817 = vrsqrt.pop %v720
  %v818 = vmul.f32 %v817, %v720
  %v819 = vmul.f32 %v818, %v817
  %v820 = vmul.f32 0.5, %v819
  %v821 = vsub.f32 1.5, %v820
  %v822 = vmul.f32 %v817, %v821
  %vm823 = vweird.f32 %v720
  %vm824 = vweird.f32 %v817
  %vm825 = vmor %vm823, %vm824
  %v826 = vsel %vm825, %v817, %v822
  %v827 = vrsqrt.pop %v721
  %v828 = vmul.f32 %v827, %v721
  %v829 = vmul.f32 %v828, %v827
  %v830 = vmul.f32 0.5, %v829
  %v831 = vsub.f32 1.5, %v830
  %v832 = vmul.f32 %v827, %v831
  %vm833 = vweird.f32 %v721
  %vm834 = vweird.f32 %v827
  %vm835 = vmor %vm833, %vm834
  %v836 = vsel %vm835, %v827, %v832
  %v837 = vrsqrt.pop %v722
  %v838 = vmul.f32 %v837, %v722
  %v839 = vmul.f32 %v838, %v837
  %v840 = vmul.f32 0.5, %v839
  %v841 = vsub.f32 1.5, %v840
  %v842 = vmul.f32 %v837, %v841
  %vm843 = vweird.f32 %v722
  %vm844 = vweird.f32 %v837
  %vm845 = vmor %vm843, %vm844
  %v846 = vsel %vm845, %v837, %v842
  %v847 = vrsqrt.pop %v723
  %v848 = vmul.f32 %v847, %v723
  %v849 = vmul.f32 %v848, %v847
  %v850 = vmul.f32 0.5, %v849
  %v851 = vsub.f32 1.5, %v850
  %v852 = vmul.f32 %v847, %v851
  %vm853 = vweird.f32 %v723
  %vm854 = vweird.f32 %v847
  %vm855 = vmor %vm853, %vm854
  %v856 = vsel %vm855, %v847, %v852
  %v857 = vrsqrt.pop %v724
  %v858 = vmul.f32 %v857, %v724
  %v859 = vmul.f32 %v858, %v857
  %v860 = vmul.f32 0.5, %v859
  %v861 = vsub.f32 1.5, %v860
  %v862 = vmul.f32 %v857, %v861
  %vm863 = vweird.f32 %v724
  %vm864 = vweird.f32 %v857
  %vm865 = vmor %vm863, %vm864
  %v866 = vsel %vm865, %v857, %v862
  %v867 = vrsqrt.pop %v725
  %v868 = vmul.f32 %v867, %v725
  %v869 = vmul.f32 %v868, %v867
  %v870 = vmul.f32 0.5, %v869
  %v871 = vsub.f32 1.5, %v870
  %v872 = vmul.f32 %v867, %v871
  %vm873 = vweird.f32 %v725
  %vm874 = vweird.f32 %v867
  %vm875 = vmor %vm873, %vm874
  %v876 = vsel %vm875, %v867, %v872
  %v877 = vrsqrt.pop %v726
  %v878 = vmul.f32 %v877, %v726
  %v879 = vmul.f32 %v878, %v877
  %v880 = vmul.f32 0.5, %v879
  %v881 = vsub.f32 1.5, %v880
  %v882 = vmul.f32 %v877, %v881
  %vm883 = vweird.f32 %v726
  %vm884 = vweird.f32 %v877
  %vm885 = vmor %vm883, %vm884
  %v886 = vsel %vm885, %v877, %v882
  %v887 = vmul.f32 %v583, %v736
  %v888 = vmul.f32 %v584, %v736
  %v889 = vmul.f32 %v585, %v746
  %v890 = vmul.f32 %v586, %v746
  %v891 = vmul.f32 %v587, %v756
  %v892 = vmul.f32 %v588, %v756
  %v893 = vmul.f32 %v589, %v766
  %v894 = vmul.f32 %v590, %v766
  %v895 = vmul.f32 %v591, %v776
  %v896 = vmul.f32 %v592, %v776
  %v897 = vmul.f32 %v593, %v786
  %v898 = vmul.f32 %v594, %v786
  %v899 = vmul.f32 %v595, %v796
  %v900 = vmul.f32 %v596, %v796
  %v901 = vmul.f32 %v597, %v806
  %v902 = vmul.f32 %v598, %v806
  %v903 = vmul.f32 %v599, %v816
  %v904 = vmul.f32 %v600, %v816
  %v905 = vmul.f32 %v601, %v826
  %v906 = vmul.f32 %v602, %v826
  %v907 = vmul.f32 %v603, %v836
  %v908 = vmul.f32 %v604, %v836
  %v909 = vmul.f32 %v605, %v846
  %v910 = vmul.f32 %v606, %v846
  %v911 = vmul.f32 %v607, %v856
  %v912 = vmul.f32 %v608, %v856
  %v913 = vmul.f32 %v609, %v866
  %v914 = vmul.f32 %v610, %v866
  %v915 = vmul.f32 %v611, %v876
  %v916 = vmul.f32 %v612, %v876
  %v917 = vmul.f32 %v613, %v886
  %v918 = vmul.f32 %v614, %v886
  %v920 = vperm.slane %v510, 0
  %v921 = vperm.slane %v510, 1
  %v924 = vmul.f32 %v887, %v920
  %v925 = vmul.f32 %v888, %v921
  %v926 = vmul.f32 %v889, %v920
  %v927 = vmul.f32 %v890, %v921
  %v928 = vmul.f32 %v891, %v920
  %v929 = vmul.f32 %v892, %v921
  %v930 = vmul.f32 %v893, %v920
  %v931 = vmul.f32 %v894, %v921
  %v932 = vmul.f32 %v895, %v920
  %v933 = vmul.f32 %v896, %v921
  %v934 = vmul.f32 %v897, %v920
  %v935 = vmul.f32 %v898, %v921
  %v936 = vmul.f32 %v899, %v920
  %v937 = vmul.f32 %v900, %v921
  %v938 = vmul.f32 %v901, %v920
  %v939 = vmul.f32 %v902, %v921
  %v940 = vmul.f32 %v903, %v920
  %v941 = vmul.f32 %v904, %v921
  %v942 = vmul.f32 %v905, %v920
  %v943 = vmul.f32 %v906, %v921
  %v944 = vmul.f32 %v907, %v920
  %v945 = vmul.f32 %v908, %v921
  %v946 = vmul.f32 %v909, %v920
  %v947 = vmul.f32 %v910, %v921
  %v948 = vmul.f32 %v911, %v920
  %v949 = vmul.f32 %v912, %v921
  %v950 = vmul.f32 %v913, %v920
  %v951 = vmul.f32 %v914, %v921
  %v952 = vmul.f32 %v915, %v920
  %v953 = vmul.f32 %v916, %v921
  %v954 = vmul.f32 %v917, %v920
  %v955 = vmul.f32 %v918, %v921
  %v957 = vperm.slane %v511, 0
  %v958 = vperm.slane %v511, 1
  %v961 = vadd.f32 %v924, %v957
  %v962 = vadd.f32 %v925, %v958
  %v963 = vadd.f32 %v926, %v957
  %v964 = vadd.f32 %v927, %v958
  %v965 = vadd.f32 %v928, %v957
  %v966 = vadd.f32 %v929, %v958
  %v967 = vadd.f32 %v930, %v957
  %v968 = vadd.f32 %v931, %v958
  %v969 = vadd.f32 %v932, %v957
  %v970 = vadd.f32 %v933, %v958
  %v971 = vadd.f32 %v934, %v957
  %v972 = vadd.f32 %v935, %v958
  %v973 = vadd.f32 %v936, %v957
  %v974 = vadd.f32 %v937, %v958
  %v975 = vadd.f32 %v938, %v957
  %v976 = vadd.f32 %v939, %v958
  %v977 = vadd.f32 %v940, %v957
  %v978 = vadd.f32 %v941, %v958
  %v979 = vadd.f32 %v942, %v957
  %v980 = vadd.f32 %v943, %v958
  %v981 = vadd.f32 %v944, %v957
  %v982 = vadd.f32 %v945, %v958
  %v983 = vadd.f32 %v946, %v957
  %v984 = vadd.f32 %v947, %v958
  %v985 = vadd.f32 %v948, %v957
  %v986 = vadd.f32 %v949, %v958
  %v987 = vadd.f32 %v950, %v957
  %v988 = vadd.f32 %v951, %v958
  %v989 = vadd.f32 %v952, %v957
  %v990 = vadd.f32 %v953, %v958
  %v991 = vadd.f32 %v954, %v957
  %v992 = vadd.f32 %v955, %v958
  %v993 = vmul.f32 %v961, %v961
  %v994 = vmul.f32 %v962, %v962
  %v995 = vmul.f32 %v963, %v963
  %v996 = vmul.f32 %v964, %v964
  %v997 = vmul.f32 %v965, %v965
  %v998 = vmul.f32 %v966, %v966
  %v999 = vmul.f32 %v967, %v967
  %v1000 = vmul.f32 %v968, %v968
  %v1001 = vmul.f32 %v969, %v969
  %v1002 = vmul.f32 %v970, %v970
  %v1003 = vmul.f32 %v971, %v971
  %v1004 = vmul.f32 %v972, %v972
  %v1005 = vmul.f32 %v973, %v973
  %v1006 = vmul.f32 %v974, %v974
  %v1007 = vmul.f32 %v975, %v975
  %v1008 = vmul.f32 %v976, %v976
  %v1009 = vmul.f32 %v977, %v977
  %v1010 = vmul.f32 %v978, %v978
  %v1011 = vmul.f32 %v979, %v979
  %v1012 = vmul.f32 %v980, %v980
  %v1013 = vmul.f32 %v981, %v981
  %v1014 = vmul.f32 %v982, %v982
  %v1015 = vmul.f32 %v983, %v983
  %v1016 = vmul.f32 %v984, %v984
  %v1017 = vmul.f32 %v985, %v985
  %v1018 = vmul.f32 %v986, %v986
  %v1019 = vmul.f32 %v987, %v987
  %v1020 = vmul.f32 %v988, %v988
  %v1021 = vmul.f32 %v989, %v989
  %v1022 = vmul.f32 %v990, %v990
  %v1023 = vmul.f32 %v991, %v991
  %v1024 = vmul.f32 %v992, %v992
  %v1025 = vadd.f32 %v993, %v994
  %1026 = vadd.xlane.f32.xlu0 %v1025
  %v1027 = vpop.xlane.xlu0 %1026
  %v1028 = vadd.f32 %v995, %v996
  %1029 = vadd.xlane.f32.xlu0 %v1028
  %v1030 = vpop.xlane.xlu0 %1029
  %v1031 = vadd.f32 %v997, %v998
  %1032 = vadd.xlane.f32.xlu0 %v1031
  %v1033 = vpop.xlane.xlu0 %1032
  %v1034 = vadd.f32 %v999, %v1000
  %1035 = vadd.xlane.f32.xlu0 %v1034
  %v1036 = vpop.xlane.xlu0 %1035
  %v1037 = vadd.f32 %v1001, %v1002
  %1038 = vadd.xlane.f32.xlu0 %v1037
  %v1039 = vpop.xlane.xlu0 %1038
  %v1040 = vadd.f32 %v1003, %v1004
  %1041 = vadd.xlane.f32.xlu0 %v1040
  %v1042 = vpop.xlane.xlu0 %1041
  %v1043 = vadd.f32 %v1005, %v1006
  %1044 = vadd.xlane.f32.xlu0 %v1043
  %v1045 = vpop.xlane.xlu0 %1044
  %v1046 = vadd.f32 %v1007, %v1008
  %1047 = vadd.xlane.f32.xlu0 %v1046
  %v1048 = vpop.xlane.xlu0 %1047
  %v1049 = vadd.f32 %v1009, %v1010
  %1050 = vadd.xlane.f32.xlu0 %v1049
  %v1051 = vpop.xlane.xlu0 %1050
  %v1052 = vadd.f32 %v1011, %v1012
  %1053 = vadd.xlane.f32.xlu0 %v1052
  %v1054 = vpop.xlane.xlu0 %1053
  %v1055 = vadd.f32 %v1013, %v1014
  %1056 = vadd.xlane.f32.xlu0 %v1055
  %v1057 = vpop.xlane.xlu0 %1056
  %v1058 = vadd.f32 %v1015, %v1016
  %1059 = vadd.xlane.f32.xlu0 %v1058
  %v1060 = vpop.xlane.xlu0 %1059
  %v1061 = vadd.f32 %v1017, %v1018
  %1062 = vadd.xlane.f32.xlu0 %v1061
  %v1063 = vpop.xlane.xlu0 %1062
  %v1064 = vadd.f32 %v1019, %v1020
  %1065 = vadd.xlane.f32.xlu0 %v1064
  %v1066 = vpop.xlane.xlu0 %1065
  %v1067 = vadd.f32 %v1021, %v1022
  %1068 = vadd.xlane.f32.xlu0 %v1067
  %v1069 = vpop.xlane.xlu0 %1068
  %v1070 = vadd.f32 %v1023, %v1024
  %1071 = vadd.xlane.f32.xlu0 %v1070
  %v1072 = vpop.xlane.xlu0 %1071
  %v1073 = vrsqrt.pop %v1027
  %v1074 = vmul.f32 %v1073, %v1027
  %v1075 = vmul.f32 %v1074, %v1073
  %v1076 = vmul.f32 0.5, %v1075
  %v1077 = vsub.f32 1.5, %v1076
  %v1078 = vmul.f32 %v1073, %v1077
  %v1079 = vmul.f32 %v1027, %v1078
  %vm1080 = vcmp.eq.f32.partialorder %v1027, inf
  %v1081 = vsel %vm1080, %v1027, %v1079
  %vm1082 = vcmp.eq.f32.partialorder %v1027, 0.0
  %v1083 = vand.u32 %v1027, 2147483648
  %v1084 = vsel %vm1082, %v1083, %v1081
  %v1085 = vrsqrt.pop %v1030
  %v1086 = vmul.f32 %v1085, %v1030
  %v1087 = vmul.f32 %v1086, %v1085
  %v1088 = vmul.f32 0.5, %v1087
  %v1089 = vsub.f32 1.5, %v1088
  %v1090 = vmul.f32 %v1085, %v1089
  %v1091 = vmul.f32 %v1030, %v1090
  %vm1092 = vcmp.eq.f32.partialorder %v1030, inf
  %v1093 = vsel %vm1092, %v1030, %v1091
  %vm1094 = vcmp.eq.f32.partialorder %v1030, 0.0
  %v1095 = vand.u32 %v1030, 2147483648
  %v1096 = vsel %vm1094, %v1095, %v1093
  %v1097 = vrsqrt.pop %v1033
  %v1098 = vmul.f32 %v1097, %v1033
  %v1099 = vmul.f32 %v1098, %v1097
  %v1100 = vmul.f32 0.5, %v1099
  %v1101 = vsub.f32 1.5, %v1100
  %v1102 = vmul.f32 %v1097, %v1101
  %v1103 = vmul.f32 %v1033, %v1102
  %vm1104 = vcmp.eq.f32.partialorder %v1033, inf
  %v1105 = vsel %vm1104, %v1033, %v1103
  %vm1106 = vcmp.eq.f32.partialorder %v1033, 0.0
  %v1107 = vand.u32 %v1033, 2147483648
  %v1108 = vsel %vm1106, %v1107, %v1105
  %v1109 = vrsqrt.pop %v1036
  %v1110 = vmul.f32 %v1109, %v1036
  %v1111 = vmul.f32 %v1110, %v1109
  %v1112 = vmul.f32 0.5, %v1111
  %v1113 = vsub.f32 1.5, %v1112
  %v1114 = vmul.f32 %v1109, %v1113
  %v1115 = vmul.f32 %v1036, %v1114
  %vm1116 = vcmp.eq.f32.partialorder %v1036, inf
  %v1117 = vsel %vm1116, %v1036, %v1115
  %vm1118 = vcmp.eq.f32.partialorder %v1036, 0.0
  %v1119 = vand.u32 %v1036, 2147483648
  %v1120 = vsel %vm1118, %v1119, %v1117
  %v1121 = vrsqrt.pop %v1039
  %v1122 = vmul.f32 %v1121, %v1039
  %v1123 = vmul.f32 %v1122, %v1121
  %v1124 = vmul.f32 0.5, %v1123
  %v1125 = vsub.f32 1.5, %v1124
  %v1126 = vmul.f32 %v1121, %v1125
  %v1127 = vmul.f32 %v1039, %v1126
  %vm1128 = vcmp.eq.f32.partialorder %v1039, inf
  %v1129 = vsel %vm1128, %v1039, %v1127
  %vm1130 = vcmp.eq.f32.partialorder %v1039, 0.0
  %v1131 = vand.u32 %v1039, 2147483648
  %v1132 = vsel %vm1130, %v1131, %v1129
  %v1133 = vrsqrt.pop %v1042
  %v1134 = vmul.f32 %v1133, %v1042
  %v1135 = vmul.f32 %v1134, %v1133
  %v1136 = vmul.f32 0.5, %v1135
  %v1137 = vsub.f32 1.5, %v1136
  %v1138 = vmul.f32 %v1133, %v1137
  %v1139 = vmul.f32 %v1042, %v1138
  %vm1140 = vcmp.eq.f32.partialorder %v1042, inf
  %v1141 = vsel %vm1140, %v1042, %v1139
  %vm1142 = vcmp.eq.f32.partialorder %v1042, 0.0
  %v1143 = vand.u32 %v1042, 2147483648
  %v1144 = vsel %vm1142, %v1143, %v1141
  %v1145 = vrsqrt.pop %v1045
  %v1146 = vmul.f32 %v1145, %v1045
  %v1147 = vmul.f32 %v1146, %v1145
  %v1148 = vmul.f32 0.5, %v1147
  %v1149 = vsub.f32 1.5, %v1148
  %v1150 = vmul.f32 %v1145, %v1149
  %v1151 = vmul.f32 %v1045, %v1150
  %vm1152 = vcmp.eq.f32.partialorder %v1045, inf
  %v1153 = vsel %vm1152, %v1045, %v1151
  %vm1154 = vcmp.eq.f32.partialorder %v1045, 0.0
  %v1155 = vand.u32 %v1045, 2147483648
  %v1156 = vsel %vm1154, %v1155, %v1153
  %v1157 = vrsqrt.pop %v1048
  %v1158 = vmul.f32 %v1157, %v1048
  %v1159 = vmul.f32 %v1158, %v1157
  %v1160 = vmul.f32 0.5, %v1159
  %v1161 = vsub.f32 1.5, %v1160
  %v1162 = vmul.f32 %v1157, %v1161
  %v1163 = vmul.f32 %v1048, %v1162
  %vm1164 = vcmp.eq.f32.partialorder %v1048, inf
  %v1165 = vsel %vm1164, %v1048, %v1163
  %vm1166 = vcmp.eq.f32.partialorder %v1048, 0.0
  %v1167 = vand.u32 %v1048, 2147483648
  %v1168 = vsel %vm1166, %v1167, %v1165
  %v1169 = vrsqrt.pop %v1051
  %v1170 = vmul.f32 %v1169, %v1051
  %v1171 = vmul.f32 %v1170, %v1169
  %v1172 = vmul.f32 0.5, %v1171
  %v1173 = vsub.f32 1.5, %v1172
  %v1174 = vmul.f32 %v1169, %v1173
  %v1175 = vmul.f32 %v1051, %v1174
  %vm1176 = vcmp.eq.f32.partialorder %v1051, inf
  %v1177 = vsel %vm1176, %v1051, %v1175
  %vm1178 = vcmp.eq.f32.partialorder %v1051, 0.0
  %v1179 = vand.u32 %v1051, 2147483648
  %v1180 = vsel %vm1178, %v1179, %v1177
  %v1181 = vrsqrt.pop %v1054
  %v1182 = vmul.f32 %v1181, %v1054
  %v1183 = vmul.f32 %v1182, %v1181
  %v1184 = vmul.f32 0.5, %v1183
  %v1185 = vsub.f32 1.5, %v1184
  %v1186 = vmul.f32 %v1181, %v1185
  %v1187 = vmul.f32 %v1054, %v1186
  %vm1188 = vcmp.eq.f32.partialorder %v1054, inf
  %v1189 = vsel %vm1188, %v1054, %v1187
  %vm1190 = vcmp.eq.f32.partialorder %v1054, 0.0
  %v1191 = vand.u32 %v1054, 2147483648
  %v1192 = vsel %vm1190, %v1191, %v1189
  %v1193 = vrsqrt.pop %v1057
  %v1194 = vmul.f32 %v1193, %v1057
  %v1195 = vmul.f32 %v1194, %v1193
  %v1196 = vmul.f32 0.5, %v1195
  %v1197 = vsub.f32 1.5, %v1196
  %v1198 = vmul.f32 %v1193, %v1197
  %v1199 = vmul.f32 %v1057, %v1198
  %vm1200 = vcmp.eq.f32.partialorder %v1057, inf
  %v1201 = vsel %vm1200, %v1057, %v1199
  %vm1202 = vcmp.eq.f32.partialorder %v1057, 0.0
  %v1203 = vand.u32 %v1057, 2147483648
  %v1204 = vsel %vm1202, %v1203, %v1201
  %v1205 = vrsqrt.pop %v1060
  %v1206 = vmul.f32 %v1205, %v1060
  %v1207 = vmul.f32 %v1206, %v1205
  %v1208 = vmul.f32 0.5, %v1207
  %v1209 = vsub.f32 1.5, %v1208
  %v1210 = vmul.f32 %v1205, %v1209
  %v1211 = vmul.f32 %v1060, %v1210
  %vm1212 = vcmp.eq.f32.partialorder %v1060, inf
  %v1213 = vsel %vm1212, %v1060, %v1211
  %vm1214 = vcmp.eq.f32.partialorder %v1060, 0.0
  %v1215 = vand.u32 %v1060, 2147483648
  %v1216 = vsel %vm1214, %v1215, %v1213
  %v1217 = vrsqrt.pop %v1063
  %v1218 = vmul.f32 %v1217, %v1063
  %v1219 = vmul.f32 %v1218, %v1217
  %v1220 = vmul.f32 0.5, %v1219
  %v1221 = vsub.f32 1.5, %v1220
  %v1222 = vmul.f32 %v1217, %v1221
  %v1223 = vmul.f32 %v1063, %v1222
  %vm1224 = vcmp.eq.f32.partialorder %v1063, inf
  %v1225 = vsel %vm1224, %v1063, %v1223
  %vm1226 = vcmp.eq.f32.partialorder %v1063, 0.0
  %v1227 = vand.u32 %v1063, 2147483648
  %v1228 = vsel %vm1226, %v1227, %v1225
  %v1229 = vrsqrt.pop %v1066
  %v1230 = vmul.f32 %v1229, %v1066
  %v1231 = vmul.f32 %v1230, %v1229
  %v1232 = vmul.f32 0.5, %v1231
  %v1233 = vsub.f32 1.5, %v1232
  %v1234 = vmul.f32 %v1229, %v1233
  %v1235 = vmul.f32 %v1066, %v1234
  %vm1236 = vcmp.eq.f32.partialorder %v1066, inf
  %v1237 = vsel %vm1236, %v1066, %v1235
  %vm1238 = vcmp.eq.f32.partialorder %v1066, 0.0
  %v1239 = vand.u32 %v1066, 2147483648
  %v1240 = vsel %vm1238, %v1239, %v1237
  %v1241 = vrsqrt.pop %v1069
  %v1242 = vmul.f32 %v1241, %v1069
  %v1243 = vmul.f32 %v1242, %v1241
  %v1244 = vmul.f32 0.5, %v1243
  %v1245 = vsub.f32 1.5, %v1244
  %v1246 = vmul.f32 %v1241, %v1245
  %v1247 = vmul.f32 %v1069, %v1246
  %vm1248 = vcmp.eq.f32.partialorder %v1069, inf
  %v1249 = vsel %vm1248, %v1069, %v1247
  %vm1250 = vcmp.eq.f32.partialorder %v1069, 0.0
  %v1251 = vand.u32 %v1069, 2147483648
  %v1252 = vsel %vm1250, %v1251, %v1249
  %v1253 = vrsqrt.pop %v1072
  %v1254 = vmul.f32 %v1253, %v1072
  %v1255 = vmul.f32 %v1254, %v1253
  %v1256 = vmul.f32 0.5, %v1255
  %v1257 = vsub.f32 1.5, %v1256
  %v1258 = vmul.f32 %v1253, %v1257
  %v1259 = vmul.f32 %v1072, %v1258
  %vm1260 = vcmp.eq.f32.partialorder %v1072, inf
  %v1261 = vsel %vm1260, %v1072, %v1259
  %vm1262 = vcmp.eq.f32.partialorder %v1072, 0.0
  %v1263 = vand.u32 %v1072, 2147483648
  %v1264 = vsel %vm1262, %v1263, %v1261
  %v1265 = vmax.f32 %v1084, 1e-12
  %v1266 = vmax.f32 %v1096, 1e-12
  %v1267 = vmax.f32 %v1108, 1e-12
  %v1268 = vmax.f32 %v1120, 1e-12
  %v1269 = vmax.f32 %v1132, 1e-12
  %v1270 = vmax.f32 %v1144, 1e-12
  %v1271 = vmax.f32 %v1156, 1e-12
  %v1272 = vmax.f32 %v1168, 1e-12
  %v1273 = vmax.f32 %v1180, 1e-12
  %v1274 = vmax.f32 %v1192, 1e-12
  %v1275 = vmax.f32 %v1204, 1e-12
  %v1276 = vmax.f32 %v1216, 1e-12
  %v1277 = vmax.f32 %v1228, 1e-12
  %v1278 = vmax.f32 %v1240, 1e-12
  %v1279 = vmax.f32 %v1252, 1e-12
  %v1280 = vmax.f32 %v1264, 1e-12
  %v1281 = vrcp.pop %v1265
  %v1282 = vmul.f32 %v1265, %v1281
  %v1283 = vsub.f32 1.0, %v1282
  %v1284 = vmul.f32 %v1281, %v1283
  %v1285 = vadd.f32 %v1281, %v1284
  %vm1286 = vweird.f32 %v1265
  %vm1287 = vweird.f32 %v1281
  %vm1288 = vmor %vm1286, %vm1287
  %v1289 = vsel %vm1288, %v1281, %v1285
  %v1290 = vand.u32 2147483647, %v1265
  %vm1291 = vcmp.eq.f32.partialorder %v1290, 8.507059e+37
  %v1292 = vand.u32 %v1265, 2147483648
  %v1293 = vor.u32 1.1754944e-38, %v1292
  %v1294 = vsel %vm1291, %v1293, %v1289
  %v1295 = vmul.f32 %v961, %v1294
  %v1296 = vmul.f32 %v962, %v1294
  %v1297 = vrcp.pop %v1266
  %v1298 = vmul.f32 %v1266, %v1297
  %v1299 = vsub.f32 1.0, %v1298
  %v1300 = vmul.f32 %v1297, %v1299
  %v1301 = vadd.f32 %v1297, %v1300
  %vm1302 = vweird.f32 %v1266
  %vm1303 = vweird.f32 %v1297
  %vm1304 = vmor %vm1302, %vm1303
  %v1305 = vsel %vm1304, %v1297, %v1301
  %v1306 = vand.u32 2147483647, %v1266
  %vm1307 = vcmp.eq.f32.partialorder %v1306, 8.507059e+37
  %v1308 = vand.u32 %v1266, 2147483648
  %v1309 = vor.u32 1.1754944e-38, %v1308
  %v1310 = vsel %vm1307, %v1309, %v1305
  %v1311 = vmul.f32 %v963, %v1310
  %v1312 = vmul.f32 %v964, %v1310
  %v1313 = vrcp.pop %v1267
  %v1314 = vmul.f32 %v1267, %v1313
  %v1315 = vsub.f32 1.0, %v1314
  %v1316 = vmul.f32 %v1313, %v1315
  %v1317 = vadd.f32 %v1313, %v1316
  %vm1318 = vweird.f32 %v1267
  %vm1319 = vweird.f32 %v1313
  %vm1320 = vmor %vm1318, %vm1319
  %v1321 = vsel %vm1320, %v1313, %v1317
  %v1322 = vand.u32 2147483647, %v1267
  %vm1323 = vcmp.eq.f32.partialorder %v1322, 8.507059e+37
  %v1324 = vand.u32 %v1267, 2147483648
  %v1325 = vor.u32 1.1754944e-38, %v1324
  %v1326 = vsel %vm1323, %v1325, %v1321
  %v1327 = vmul.f32 %v965, %v1326
  %v1328 = vmul.f32 %v966, %v1326
  %v1329 = vrcp.pop %v1268
  %v1330 = vmul.f32 %v1268, %v1329
  %v1331 = vsub.f32 1.0, %v1330
  %v1332 = vmul.f32 %v1329, %v1331
  %v1333 = vadd.f32 %v1329, %v1332
  %vm1334 = vweird.f32 %v1268
  %vm1335 = vweird.f32 %v1329
  %vm1336 = vmor %vm1334, %vm1335
  %v1337 = vsel %vm1336, %v1329, %v1333
  %v1338 = vand.u32 2147483647, %v1268
  %vm1339 = vcmp.eq.f32.partialorder %v1338, 8.507059e+37
  %v1340 = vand.u32 %v1268, 2147483648
  %v1341 = vor.u32 1.1754944e-38, %v1340
  %v1342 = vsel %vm1339, %v1341, %v1337
  %v1343 = vmul.f32 %v967, %v1342
  %v1344 = vmul.f32 %v968, %v1342
  %v1345 = vrcp.pop %v1269
  %v1346 = vmul.f32 %v1269, %v1345
  %v1347 = vsub.f32 1.0, %v1346
  %v1348 = vmul.f32 %v1345, %v1347
  %v1349 = vadd.f32 %v1345, %v1348
  %vm1350 = vweird.f32 %v1269
  %vm1351 = vweird.f32 %v1345
  %vm1352 = vmor %vm1350, %vm1351
  %v1353 = vsel %vm1352, %v1345, %v1349
  %v1354 = vand.u32 2147483647, %v1269
  %vm1355 = vcmp.eq.f32.partialorder %v1354, 8.507059e+37
  %v1356 = vand.u32 %v1269, 2147483648
  %v1357 = vor.u32 1.1754944e-38, %v1356
  %v1358 = vsel %vm1355, %v1357, %v1353
  %v1359 = vmul.f32 %v969, %v1358
  %v1360 = vmul.f32 %v970, %v1358
  %v1361 = vrcp.pop %v1270
  %v1362 = vmul.f32 %v1270, %v1361
  %v1363 = vsub.f32 1.0, %v1362
  %v1364 = vmul.f32 %v1361, %v1363
  %v1365 = vadd.f32 %v1361, %v1364
  %vm1366 = vweird.f32 %v1270
  %vm1367 = vweird.f32 %v1361
  %vm1368 = vmor %vm1366, %vm1367
  %v1369 = vsel %vm1368, %v1361, %v1365
  %v1370 = vand.u32 2147483647, %v1270
  %vm1371 = vcmp.eq.f32.partialorder %v1370, 8.507059e+37
  %v1372 = vand.u32 %v1270, 2147483648
  %v1373 = vor.u32 1.1754944e-38, %v1372
  %v1374 = vsel %vm1371, %v1373, %v1369
  %v1375 = vmul.f32 %v971, %v1374
  %v1376 = vmul.f32 %v972, %v1374
  %v1377 = vrcp.pop %v1271
  %v1378 = vmul.f32 %v1271, %v1377
  %v1379 = vsub.f32 1.0, %v1378
  %v1380 = vmul.f32 %v1377, %v1379
  %v1381 = vadd.f32 %v1377, %v1380
  %vm1382 = vweird.f32 %v1271
  %vm1383 = vweird.f32 %v1377
  %vm1384 = vmor %vm1382, %vm1383
  %v1385 = vsel %vm1384, %v1377, %v1381
  %v1386 = vand.u32 2147483647, %v1271
  %vm1387 = vcmp.eq.f32.partialorder %v1386, 8.507059e+37
  %v1388 = vand.u32 %v1271, 2147483648
  %v1389 = vor.u32 1.1754944e-38, %v1388
  %v1390 = vsel %vm1387, %v1389, %v1385
  %v1391 = vmul.f32 %v973, %v1390
  %v1392 = vmul.f32 %v974, %v1390
  %v1393 = vrcp.pop %v1272
  %v1394 = vmul.f32 %v1272, %v1393
  %v1395 = vsub.f32 1.0, %v1394
  %v1396 = vmul.f32 %v1393, %v1395
  %v1397 = vadd.f32 %v1393, %v1396
  %vm1398 = vweird.f32 %v1272
  %vm1399 = vweird.f32 %v1393
  %vm1400 = vmor %vm1398, %vm1399
  %v1401 = vsel %vm1400, %v1393, %v1397
  %v1402 = vand.u32 2147483647, %v1272
  %vm1403 = vcmp.eq.f32.partialorder %v1402, 8.507059e+37
  %v1404 = vand.u32 %v1272, 2147483648
  %v1405 = vor.u32 1.1754944e-38, %v1404
  %v1406 = vsel %vm1403, %v1405, %v1401
  %v1407 = vmul.f32 %v975, %v1406
  %v1408 = vmul.f32 %v976, %v1406
  %v1409 = vrcp.pop %v1273
  %v1410 = vmul.f32 %v1273, %v1409
  %v1411 = vsub.f32 1.0, %v1410
  %v1412 = vmul.f32 %v1409, %v1411
  %v1413 = vadd.f32 %v1409, %v1412
  %vm1414 = vweird.f32 %v1273
  %vm1415 = vweird.f32 %v1409
  %vm1416 = vmor %vm1414, %vm1415
  %v1417 = vsel %vm1416, %v1409, %v1413
  %v1418 = vand.u32 2147483647, %v1273
  %vm1419 = vcmp.eq.f32.partialorder %v1418, 8.507059e+37
  %v1420 = vand.u32 %v1273, 2147483648
  %v1421 = vor.u32 1.1754944e-38, %v1420
  %v1422 = vsel %vm1419, %v1421, %v1417
  %v1423 = vmul.f32 %v977, %v1422
  %v1424 = vmul.f32 %v978, %v1422
  %v1425 = vrcp.pop %v1274
  %v1426 = vmul.f32 %v1274, %v1425
  %v1427 = vsub.f32 1.0, %v1426
  %v1428 = vmul.f32 %v1425, %v1427
  %v1429 = vadd.f32 %v1425, %v1428
  %vm1430 = vweird.f32 %v1274
  %vm1431 = vweird.f32 %v1425
  %vm1432 = vmor %vm1430, %vm1431
  %v1433 = vsel %vm1432, %v1425, %v1429
  %v1434 = vand.u32 2147483647, %v1274
  %vm1435 = vcmp.eq.f32.partialorder %v1434, 8.507059e+37
  %v1436 = vand.u32 %v1274, 2147483648
  %v1437 = vor.u32 1.1754944e-38, %v1436
  %v1438 = vsel %vm1435, %v1437, %v1433
  %v1439 = vmul.f32 %v979, %v1438
  %v1440 = vmul.f32 %v980, %v1438
  %v1441 = vrcp.pop %v1275
  %v1442 = vmul.f32 %v1275, %v1441
  %v1443 = vsub.f32 1.0, %v1442
  %v1444 = vmul.f32 %v1441, %v1443
  %v1445 = vadd.f32 %v1441, %v1444
  %vm1446 = vweird.f32 %v1275
  %vm1447 = vweird.f32 %v1441
  %vm1448 = vmor %vm1446, %vm1447
  %v1449 = vsel %vm1448, %v1441, %v1445
  %v1450 = vand.u32 2147483647, %v1275
  %vm1451 = vcmp.eq.f32.partialorder %v1450, 8.507059e+37
  %v1452 = vand.u32 %v1275, 2147483648
  %v1453 = vor.u32 1.1754944e-38, %v1452
  %v1454 = vsel %vm1451, %v1453, %v1449
  %v1455 = vmul.f32 %v981, %v1454
  %v1456 = vmul.f32 %v982, %v1454
  %v1457 = vrcp.pop %v1276
  %v1458 = vmul.f32 %v1276, %v1457
  %v1459 = vsub.f32 1.0, %v1458
  %v1460 = vmul.f32 %v1457, %v1459
  %v1461 = vadd.f32 %v1457, %v1460
  %vm1462 = vweird.f32 %v1276
  %vm1463 = vweird.f32 %v1457
  %vm1464 = vmor %vm1462, %vm1463
  %v1465 = vsel %vm1464, %v1457, %v1461
  %v1466 = vand.u32 2147483647, %v1276
  %vm1467 = vcmp.eq.f32.partialorder %v1466, 8.507059e+37
  %v1468 = vand.u32 %v1276, 2147483648
  %v1469 = vor.u32 1.1754944e-38, %v1468
  %v1470 = vsel %vm1467, %v1469, %v1465
  %v1471 = vmul.f32 %v983, %v1470
  %v1472 = vmul.f32 %v984, %v1470
  %v1473 = vrcp.pop %v1277
  %v1474 = vmul.f32 %v1277, %v1473
  %v1475 = vsub.f32 1.0, %v1474
  %v1476 = vmul.f32 %v1473, %v1475
  %v1477 = vadd.f32 %v1473, %v1476
  %vm1478 = vweird.f32 %v1277
  %vm1479 = vweird.f32 %v1473
  %vm1480 = vmor %vm1478, %vm1479
  %v1481 = vsel %vm1480, %v1473, %v1477
  %v1482 = vand.u32 2147483647, %v1277
  %vm1483 = vcmp.eq.f32.partialorder %v1482, 8.507059e+37
  %v1484 = vand.u32 %v1277, 2147483648
  %v1485 = vor.u32 1.1754944e-38, %v1484
  %v1486 = vsel %vm1483, %v1485, %v1481
  %v1487 = vmul.f32 %v985, %v1486
  %v1488 = vmul.f32 %v986, %v1486
  %v1489 = vrcp.pop %v1278
  %v1490 = vmul.f32 %v1278, %v1489
  %v1491 = vsub.f32 1.0, %v1490
  %v1492 = vmul.f32 %v1489, %v1491
  %v1493 = vadd.f32 %v1489, %v1492
  %vm1494 = vweird.f32 %v1278
  %vm1495 = vweird.f32 %v1489
  %vm1496 = vmor %vm1494, %vm1495
  %v1497 = vsel %vm1496, %v1489, %v1493
  %v1498 = vand.u32 2147483647, %v1278
  %vm1499 = vcmp.eq.f32.partialorder %v1498, 8.507059e+37
  %v1500 = vand.u32 %v1278, 2147483648
  %v1501 = vor.u32 1.1754944e-38, %v1500
  %v1502 = vsel %vm1499, %v1501, %v1497
  %v1503 = vmul.f32 %v987, %v1502
  %v1504 = vmul.f32 %v988, %v1502
  %v1505 = vrcp.pop %v1279
  %v1506 = vmul.f32 %v1279, %v1505
  %v1507 = vsub.f32 1.0, %v1506
  %v1508 = vmul.f32 %v1505, %v1507
  %v1509 = vadd.f32 %v1505, %v1508
  %vm1510 = vweird.f32 %v1279
  %vm1511 = vweird.f32 %v1505
  %vm1512 = vmor %vm1510, %vm1511
  %v1513 = vsel %vm1512, %v1505, %v1509
  %v1514 = vand.u32 2147483647, %v1279
  %vm1515 = vcmp.eq.f32.partialorder %v1514, 8.507059e+37
  %v1516 = vand.u32 %v1279, 2147483648
  %v1517 = vor.u32 1.1754944e-38, %v1516
  %v1518 = vsel %vm1515, %v1517, %v1513
  %v1519 = vmul.f32 %v989, %v1518
  %v1520 = vmul.f32 %v990, %v1518
  %v1521 = vrcp.pop %v1280
  %v1522 = vmul.f32 %v1280, %v1521
  %v1523 = vsub.f32 1.0, %v1522
  %v1524 = vmul.f32 %v1521, %v1523
  %v1525 = vadd.f32 %v1521, %v1524
  %vm1526 = vweird.f32 %v1280
  %vm1527 = vweird.f32 %v1521
  %vm1528 = vmor %vm1526, %vm1527
  %v1529 = vsel %vm1528, %v1521, %v1525
  %v1530 = vand.u32 2147483647, %v1280
  %vm1531 = vcmp.eq.f32.partialorder %v1530, 8.507059e+37
  %v1532 = vand.u32 %v1280, 2147483648
  %v1533 = vor.u32 1.1754944e-38, %v1532
  %v1534 = vsel %vm1531, %v1533, %v1529
  %v1535 = vmul.f32 %v991, %v1534
  %v1536 = vmul.f32 %v992, %v1534
  %1537 = vxpose.xlu0.b32.start [1/16] %v1295, 128
  %1538 = vxpose.xlu0.b32.cont [2/16] %v1311, 128
  %1539 = vxpose.xlu0.b32.cont [3/16] %v1327, 128
  %1540 = vxpose.xlu0.b32.cont [4/16] %v1343, 128
  %1541 = vxpose.xlu0.b32.cont [5/16] %v1359, 128
  %1542 = vxpose.xlu0.b32.cont [6/16] %v1375, 128
  %1543 = vxpose.xlu0.b32.cont [7/16] %v1391, 128
  %1544 = vxpose.xlu0.b32.cont [8/16] %v1407, 128
  %1545 = vxpose.xlu0.b32.cont [9/16] %v1423, 128
  %1546 = vxpose.xlu0.b32.cont [10/16] %v1439, 128
  %1547 = vxpose.xlu0.b32.cont [11/16] %v1455, 128
  %1548 = vxpose.xlu0.b32.cont [12/16] %v1471, 128
  %1549 = vxpose.xlu0.b32.cont [13/16] %v1487, 128
  %1550 = vxpose.xlu0.b32.cont [14/16] %v1503, 128
  %1551 = vxpose.xlu0.b32.cont [15/16] %v1519, 128
  %1552 = vxpose.xlu0.b32.end [16/16] %v1535, 128
  %v1553 = vpop.trf.xlu0
  %v1554 = vpop.trf.xlu0
  %v1555 = vpop.trf.xlu0
  %v1556 = vpop.trf.xlu0
  %v1557 = vpop.trf.xlu0
  %v1558 = vpop.trf.xlu0
  %v1559 = vpop.trf.xlu0
  %v1560 = vpop.trf.xlu0
  %v1561 = vpop.trf.xlu0
  %v1562 = vpop.trf.xlu0
  %v1563 = vpop.trf.xlu0
  %v1564 = vpop.trf.xlu0
  %v1565 = vpop.trf.xlu0
  %v1566 = vpop.trf.xlu0
  %v1567 = vpop.trf.xlu0
  %v1568 = vpop.trf.xlu0
  %1569 = vxpose.xlu0.b32.start [1/16] %v1296, 128
  %1570 = vxpose.xlu0.b32.cont [2/16] %v1312, 128
  %1571 = vxpose.xlu0.b32.cont [3/16] %v1328, 128
  %1572 = vxpose.xlu0.b32.cont [4/16] %v1344, 128
  %1573 = vxpose.xlu0.b32.cont [5/16] %v1360, 128
  %1574 = vxpose.xlu0.b32.cont [6/16] %v1376, 128
  %1575 = vxpose.xlu0.b32.cont [7/16] %v1392, 128
  %1576 = vxpose.xlu0.b32.cont [8/16] %v1408, 128
  %1577 = vxpose.xlu0.b32.cont [9/16] %v1424, 128
  %1578 = vxpose.xlu0.b32.cont [10/16] %v1440, 128
  %1579 = vxpose.xlu0.b32.cont [11/16] %v1456, 128
  %1580 = vxpose.xlu0.b32.cont [12/16] %v1472, 128
  %1581 = vxpose.xlu0.b32.cont [13/16] %v1488, 128
  %1582 = vxpose.xlu0.b32.cont [14/16] %v1504, 128
  %1583 = vxpose.xlu0.b32.cont [15/16] %v1520, 128
  %1584 = vxpose.xlu0.b32.end [16/16] %v1536, 128
  %v1585 = vpop.trf.xlu0
  %v1586 = vpop.trf.xlu0
  %v1587 = vpop.trf.xlu0
  %v1588 = vpop.trf.xlu0
  %v1589 = vpop.trf.xlu0
  %v1590 = vpop.trf.xlu0
  %v1591 = vpop.trf.xlu0
  %v1592 = vpop.trf.xlu0
  %v1593 = vpop.trf.xlu0
  %v1594 = vpop.trf.xlu0
  %v1595 = vpop.trf.xlu0
  %v1596 = vpop.trf.xlu0
  %v1597 = vpop.trf.xlu0
  %v1598 = vpop.trf.xlu0
  %v1599 = vpop.trf.xlu0
  %v1600 = vpop.trf.xlu0
  %v1601 = vpack.c.bf16 %v1553, %v1553
  %v1602 = vpack.c.bf16 %v1554, %v1554
  %v1603 = vpack.c.bf16 %v1555, %v1555
  %v1604 = vpack.c.bf16 %v1556, %v1556
  %v1605 = vpack.c.bf16 %v1557, %v1557
  %v1606 = vpack.c.bf16 %v1558, %v1558
  %v1607 = vpack.c.bf16 %v1559, %v1559
  %v1608 = vpack.c.bf16 %v1560, %v1560
  %v1609 = vpack.c.bf16 %v1561, %v1561
  %v1610 = vpack.c.bf16 %v1562, %v1562
  %v1611 = vpack.c.bf16 %v1563, %v1563
  %v1612 = vpack.c.bf16 %v1564, %v1564
  %v1613 = vpack.c.bf16 %v1565, %v1565
  %v1614 = vpack.c.bf16 %v1566, %v1566
  %v1615 = vpack.c.bf16 %v1567, %v1567
  %v1616 = vpack.c.bf16 %v1568, %v1568
  %v1617 = vpack.c.bf16 %v1585, %v1585
  %v1618 = vpack.c.bf16 %v1586, %v1586
  %v1619 = vpack.c.bf16 %v1587, %v1587
  %v1620 = vpack.c.bf16 %v1588, %v1588
  %v1621 = vpack.c.bf16 %v1589, %v1589
  %v1622 = vpack.c.bf16 %v1590, %v1590
  %v1623 = vpack.c.bf16 %v1591, %v1591
  %v1624 = vpack.c.bf16 %v1592, %v1592
  %v1625 = vpack.c.bf16 %v1593, %v1593
  %v1626 = vpack.c.bf16 %v1594, %v1594
  %v1627 = vpack.c.bf16 %v1595, %v1595
  %v1628 = vpack.c.bf16 %v1596, %v1596
  %v1629 = vpack.c.bf16 %v1597, %v1597
  %v1630 = vpack.c.bf16 %v1598, %v1598
  %v1631 = vpack.c.bf16 %v1599, %v1599
  %v1632 = vpack.c.bf16 %v1600, %v1600
  %1633 = vst [vmem:[%s5] sm:$0xf] %v1601
  %1634 = vst [vmem:[%s5 + $0x4] sm:$0xf] %v1602
  %1635 = vst [vmem:[%s5 + $0x8] sm:$0xf] %v1603
  %1636 = vst [vmem:[%s5 + $0xc] sm:$0xf] %v1604
  %1637 = vst [vmem:[%s5 + $0x10] sm:$0xf] %v1605
  %1638 = vst [vmem:[%s5 + $0x14] sm:$0xf] %v1606
  %1639 = vst [vmem:[%s5 + $0x18] sm:$0xf] %v1607
  %1640 = vst [vmem:[%s5 + $0x1c] sm:$0xf] %v1608
  %1641 = vst [vmem:[%s5 + $0x20] sm:$0xf] %v1609
  %1642 = vst [vmem:[%s5 + $0x24] sm:$0xf] %v1610
  %1643 = vst [vmem:[%s5 + $0x28] sm:$0xf] %v1611
  %1644 = vst [vmem:[%s5 + $0x2c] sm:$0xf] %v1612
  %1645 = vst [vmem:[%s5 + $0x30] sm:$0xf] %v1613
  %1646 = vst [vmem:[%s5 + $0x34] sm:$0xf] %v1614
  %1647 = vst [vmem:[%s5 + $0x38] sm:$0xf] %v1615
  %1648 = vst [vmem:[%s5 + $0x3c] sm:$0xf] %v1616
  %1649 = vst [vmem:[%s5 + $0x40] sm:$0xf] %v1617
  %1650 = vst [vmem:[%s5 + $0x44] sm:$0xf] %v1618
  %1651 = vst [vmem:[%s5 + $0x48] sm:$0xf] %v1619
  %1652 = vst [vmem:[%s5 + $0x4c] sm:$0xf] %v1620
  %1653 = vst [vmem:[%s5 + $0x50] sm:$0xf] %v1621
  %1654 = vst [vmem:[%s5 + $0x54] sm:$0xf] %v1622
  %1655 = vst [vmem:[%s5 + $0x58] sm:$0xf] %v1623
  %1656 = vst [vmem:[%s5 + $0x5c] sm:$0xf] %v1624
  %1657 = vst [vmem:[%s5 + $0x60] sm:$0xf] %v1625
  %1658 = vst [vmem:[%s5 + $0x64] sm:$0xf] %v1626
  %1659 = vst [vmem:[%s5 + $0x68] sm:$0xf] %v1627
  %1660 = vst [vmem:[%s5 + $0x6c] sm:$0xf] %v1628
  %1661 = vst [vmem:[%s5 + $0x70] sm:$0xf] %v1629
  %1662 = vst [vmem:[%s5 + $0x74] sm:$0xf] %v1630
  %1663 = vst [vmem:[%s5 + $0x78] sm:$0xf] %v1631
  %1664 = vst [vmem:[%s5 + $0x7c] sm:$0xf] %v1632
  // Predicated region
  $region22: #{atq_forward.2} parent=0 // pred_check
    _
  $region23: #{atq_forward.2} parent=0 // pred_check_branch
    %1666 = sbr.rel (0) target = $region25
  $region24: #{atq_forward.2} parent=0 // pred_region
    _
  $region25: #{atq_forward.2} parent=0 // pred_fallthru
    _
  // Predicated region
  $region26: #{atq_forward.2} parent=0 // pred_check
    _
  $region27: #{atq_forward.2} parent=0 // pred_check_branch
    %1668 = sbr.rel (0) target = $region29
  $region28: #{atq_forward.2} parent=0 // pred_region
    _
  $region29: #{atq_forward.2} parent=0 // pred_fallthru
    _

// kernel: atq_forward.3
$region0: #{atq_forward.3}
  #allocation0 [shape = 'u32[]', space=smem, size = 0x4, offset = 0x4, fixed_abs, tag = 'smem constant byte address 0x4 - core index']
  #allocation1 [shape = 'u32[72,128]{1,0:T(1,128)}', space=vmem, size = 0x9000, scoped, tag = 'internal scratch']
  #allocation2 [shape = 'bf16[128,256]{1,0:T(8,128)(2,1)}', space=vmem, size = 0x10000, scoped, tag = 'scratch operand']
  #allocation3 [shape = 'f32[1,1]{1,0:T(1,128)S(6)}', space=smem, size = 0x200, scoped, tag = 'scoped memory for atq_forward.3']
  %s0 = inlined_call_operand.vmem [shape: bf16[128,48], index: 0, kind: input, shape index: {}]
  %s1 = inlined_call_operand.vmem [shape: bf16[48,512], index: 1, kind: input, shape index: {}]
  %s2 = inlined_call_operand.vmem [shape: f32[1,512], index: 2, kind: input, shape index: {}]
  %s3 = inlined_call_operand.vmem [shape: f32[1,512], index: 3, kind: input, shape index: {}]
  %s4 = inlined_call_operand.vmem [shape: f32[1,512], index: 4, kind: input, shape index: {}]
  %s5 = inlined_call_operand.vmem [shape: bf16[512,256], index: 5, kind: input, shape index: {}]
  %s6 = inlined_call_operand.vmem [shape: f32[1,256], index: 6, kind: input, shape index: {}]
  %s7 = inlined_call_operand.vmem [shape: f32[1,256], index: 7, kind: input, shape index: {}]
  %s8 = inlined_call_operand.vmem [shape: f32[1,256], index: 8, kind: input, shape index: {}]
  %s9 = inlined_call_operand.vmem [shape: bf16[256,256], index: 9, kind: input, shape index: {}]
  %s10 = inlined_call_operand.vmem [shape: f32[1,256], index: 10, kind: input, shape index: {}]
  %s11 = inlined_call_operand.vmem [shape: f32[1,256], index: 11, kind: input, shape index: {}]
  %s12 = inlined_call_operand.vmem [shape: f32[1,256], index: 12, kind: input, shape index: {}]
  %s13 = inlined_call_operand.vmem [shape: bf16[256,128], index: 13, kind: input, shape index: {}]
  %s14 = inlined_call_operand.<no memory space> [shape: f32[1,1], index: 14, kind: input, shape index: {}]
  %s15 = inlined_call_operand.vmem [shape: f32[128,128], index: 15, kind: output, shape index: {}]
  %s16 = sld [smem:[#allocation0]]
  $region74: #{atq_forward.3} parent=0
    _
  %s18 = ssub.s32 1, %s16
  %s19 = scalar_select 0, %s18, %s16
  %20 = sst [smem:[#allocation3]] %s14
  // Predicated region
  $region2: #{atq_forward.3} parent=0 // pred_check
    _
  $region3: #{atq_forward.3} parent=0 // pred_check_branch
    %22 = sbr.rel (0) target = $region5
  $region4: #{atq_forward.3} parent=0 // pred_region
    _
  $region5: #{atq_forward.3} parent=0 // pred_fallthru
    _
  // Predicated region
  $region6: #{atq_forward.3} parent=0 // pred_check
    _
  $region7: #{atq_forward.3} parent=0 // pred_check_branch
    %24 = sbr.rel (0) target = $region9
  $region8: #{atq_forward.3} parent=0 // pred_region
    _
  $region9: #{atq_forward.3} parent=0 // pred_fallthru
    _
  // Predicated region
  $region10: #{atq_forward.3} parent=0 // pred_check
    _
  $region11: #{atq_forward.3} parent=0 // pred_check_branch
    %26 = sbr.rel (0) target = $region13
  $region12: #{atq_forward.3} parent=0 // pred_region
    _
  $region13: #{atq_forward.3} parent=0 // pred_fallthru
    _
  // Predicated region
  $region14: #{atq_forward.3} parent=0 // pred_check
    _
  $region15: #{atq_forward.3} parent=0 // pred_check_branch
    %28 = sbr.rel (0) target = $region17
  $region16: #{atq_forward.3} parent=0 // pred_region
    _
  $region17: #{atq_forward.3} parent=0 // pred_fallthru
    _
  // Predicated region
  $region18: #{atq_forward.3} parent=0 // pred_check
    _
  $region19: #{atq_forward.3} parent=0 // pred_check_branch
    %30 = sbr.rel (0) target = $region21
  $region20: #{atq_forward.3} parent=0 // pred_region
    _
  $region21: #{atq_forward.3} parent=0 // pred_fallthru
    _
  // Predicated region
  $region22: #{atq_forward.3} parent=0 // pred_check
    _
  $region23: #{atq_forward.3} parent=0 // pred_check_branch
    %32 = sbr.rel (0) target = $region25
  $region24: #{atq_forward.3} parent=0 // pred_region
    _
  $region25: #{atq_forward.3} parent=0 // pred_fallthru
    _
  // Predicated region
  $region26: #{atq_forward.3} parent=0 // pred_check
    _
  $region27: #{atq_forward.3} parent=0 // pred_check_branch
    %34 = sbr.rel (0) target = $region29
  $region28: #{atq_forward.3} parent=0 // pred_region
    _
  $region29: #{atq_forward.3} parent=0 // pred_fallthru
    _
  // Predicated region
  $region30: #{atq_forward.3} parent=0 // pred_check
    _
  $region31: #{atq_forward.3} parent=0 // pred_check_branch
    %36 = sbr.rel (0) target = $region33
  $region32: #{atq_forward.3} parent=0 // pred_region
    _
  $region33: #{atq_forward.3} parent=0 // pred_fallthru
    _
  // Predicated region
  $region34: #{atq_forward.3} parent=0 // pred_check
    _
  $region35: #{atq_forward.3} parent=0 // pred_check_branch
    %38 = sbr.rel (0) target = $region37
  $region36: #{atq_forward.3} parent=0 // pred_region
    _
  $region37: #{atq_forward.3} parent=0 // pred_fallthru
    _
  // Predicated region
  $region38: #{atq_forward.3} parent=0 // pred_check
    _
  $region39: #{atq_forward.3} parent=0 // pred_check_branch
    %40 = sbr.rel (0) target = $region41
  $region40: #{atq_forward.3} parent=0 // pred_region
    _
  $region41: #{atq_forward.3} parent=0 // pred_fallthru
    _
  // Predicated region
  $region42: #{atq_forward.3} parent=0 // pred_check
    _
  $region43: #{atq_forward.3} parent=0 // pred_check_branch
    %42 = sbr.rel (0) target = $region45
  $region44: #{atq_forward.3} parent=0 // pred_region
    _
  $region45: #{atq_forward.3} parent=0 // pred_fallthru
    _
  // Predicated region
  $region46: #{atq_forward.3} parent=0 // pred_check
    _
  $region47: #{atq_forward.3} parent=0 // pred_check_branch
    %44 = sbr.rel (0) target = $region49
  $region48: #{atq_forward.3} parent=0 // pred_region
    _
  $region49: #{atq_forward.3} parent=0 // pred_fallthru
    _
  // Predicated region
  $region50: #{atq_forward.3} parent=0 // pred_check
    _
  $region51: #{atq_forward.3} parent=0 // pred_check_branch
    %46 = sbr.rel (0) target = $region53
  $region52: #{atq_forward.3} parent=0 // pred_region
    _
  $region53: #{atq_forward.3} parent=0 // pred_fallthru
    _
  // Predicated region
  $region54: #{atq_forward.3} parent=0 // pred_check
    _
  $region55: #{atq_forward.3} parent=0 // pred_check_branch
    %48 = sbr.rel (0) target = $region57
  $region56: #{atq_forward.3} parent=0 // pred_region
    _
  $region57: #{atq_forward.3} parent=0 // pred_fallthru
    _
  // Predicated region
  $region58: #{atq_forward.3} parent=0 // pred_check
    _
  $region59: #{atq_forward.3} parent=0 // pred_check_branch
    %50 = sbr.rel (0) target = $region61
  $region60: #{atq_forward.3} parent=0 // pred_region
    _
  $region61: #{atq_forward.3} parent=0 // pred_fallthru
    _
  %p52 = scmp.eq.s32.totalorder 0, 0
  // Predicated region
  $region62: #{atq_forward.3} parent=0 // pred_check
    %p53 = pneg %p52
  $region63: #{atq_forward.3} parent=0 // pred_check_branch
    %55 = sbr.rel (%p53) target = $region65
  $region64: #{atq_forward.3} parent=0 // pred_region
    %s56 = sld [smem:[#allocation3]]
    %v57 = vld [vmem:[%s0] sm:$0xf]
    %v58 = vld [vmem:[%s0 + $0x4] sm:$0xf]
    %v59 = vld [vmem:[%s0 + $0x8] sm:$0xf]
    %v60 = vld [vmem:[%s0 + $0xc] sm:$0xf]
    %v61 = vld [vmem:[%s0 + $0x10] sm:$0xf]
    %v62 = vld [vmem:[%s0 + $0x14] sm:$0xf]
    %v63 = vld [vmem:[%s0 + $0x18] sm:$0xf]
    %v64 = vld [vmem:[%s0 + $0x1c] sm:$0xf]
    %v65 = vld [vmem:[%s0 + $0x20] sm:$0xf]
    %v66 = vld [vmem:[%s0 + $0x24] sm:$0xf]
    %v67 = vld [vmem:[%s0 + $0x28] sm:$0xf]
    %v68 = vld [vmem:[%s0 + $0x2c] sm:$0xf]
    %v69 = vld [vmem:[%s0 + $0x30] sm:$0xf]
    %v70 = vld [vmem:[%s0 + $0x34] sm:$0xf]
    %v71 = vld [vmem:[%s0 + $0x38] sm:$0xf]
    %v72 = vld [vmem:[%s0 + $0x3c] sm:$0xf]
    %v73 = vld [vmem:[%s1] sm:$0xff]
    %v74 = vld [vmem:[%s1 + $0x8] sm:$0xff]
    %v75 = vld [vmem:[%s1 + $0x10] sm:$0xff]
    %v76 = vld [vmem:[%s1 + $0x18] sm:$0xff]
    %v77 = vld [vmem:[%s1 + $0x20] sm:$0xff]
    %v78 = vld [vmem:[%s1 + $0x28] sm:$0xff]
    %v79 = vld [vmem:[%s1 + $0x30] sm:$0xff]
    %v80 = vld [vmem:[%s1 + $0x38] sm:$0xff]
    %v81 = vld [vmem:[%s1 + $0x40] sm:$0xff]
    %v82 = vld [vmem:[%s1 + $0x48] sm:$0xff]
    %v83 = vld [vmem:[%s1 + $0x50] sm:$0xff]
    %v84 = vld [vmem:[%s1 + $0x58] sm:$0xff]
    %v85 = vld [vmem:[%s2] sm:$0xf]
    %v87 = vperm.slane %v85, 0
    %v88 = vperm.slane %v85, 1
    %v89 = vperm.slane %v85, 2
    %v90 = vperm.slane %v85, 3
    %v111 = vunpack.c.l.b16 %v57
    %v112 = vunpack.c.l.b16 %v58
    %v113 = vunpack.c.l.b16 %v59
    %v114 = vunpack.c.l.b16 %v60
    %v115 = vunpack.c.l.b16 %v61
    %v116 = vunpack.c.l.b16 %v62
    %v117 = vunpack.c.l.b16 %v63
    %v118 = vunpack.c.l.b16 %v64
    %v119 = vunpack.c.l.b16 %v65
    %v120 = vunpack.c.l.b16 %v66
    %v121 = vunpack.c.l.b16 %v67
    %v122 = vunpack.c.l.b16 %v68
    %v123 = vunpack.c.l.b16 %v69
    %v124 = vunpack.c.l.b16 %v70
    %v125 = vunpack.c.l.b16 %v71
    %v126 = vunpack.c.l.b16 %v72
    %v127 = vpack.c.b16 %v112, %v111
    %v128 = vpack.c.b16 %v114, %v113
    %v129 = vpack.c.b16 %v116, %v115
    %v130 = vpack.c.b16 %v118, %v117
    %v131 = vpack.c.b16 %v120, %v119
    %v132 = vpack.c.b16 %v122, %v121
    %v133 = vpack.c.b16 %v124, %v123
    %v134 = vpack.c.b16 %v126, %v125
    %v147 = vunpack.c.l.b16 %v73
    %v148 = vunpack.c.h.b16 %v73
    %v149 = vunpack.c.l.b16 %v74
    %v150 = vunpack.c.h.b16 %v74
    %v151 = vunpack.c.l.b16 %v75
    %v152 = vunpack.c.h.b16 %v75
    %v153 = vunpack.c.l.b16 %v76
    %v154 = vunpack.c.h.b16 %v76
    %v155 = vunpack.c.l.b16 %v77
    %v156 = vunpack.c.h.b16 %v77
    %v157 = vunpack.c.l.b16 %v78
    %v158 = vunpack.c.h.b16 %v78
    %v159 = vunpack.c.l.b16 %v79
    %v160 = vunpack.c.h.b16 %v79
    %v161 = vunpack.c.l.b16 %v80
    %v162 = vunpack.c.h.b16 %v80
    %v163 = vunpack.c.l.b16 %v81
    %v164 = vunpack.c.h.b16 %v81
    %v165 = vunpack.c.l.b16 %v82
    %v166 = vunpack.c.h.b16 %v82
    %v167 = vunpack.c.l.b16 %v83
    %v168 = vunpack.c.h.b16 %v83
    %v169 = vunpack.c.l.b16 %v84
    %v170 = vunpack.c.h.b16 %v84
    %v171 = vpack.c.b16 %v151, %v147
    %v172 = vpack.c.b16 %v152, %v148
    %v173 = vpack.c.b16 %v153, %v149
    %v174 = vpack.c.b16 %v154, %v150
    %v175 = vpack.c.b16 %v159, %v155
    %v176 = vpack.c.b16 %v160, %v156
    %v177 = vpack.c.b16 %v161, %v157
    %v178 = vpack.c.b16 %v162, %v158
    %v179 = vpack.c.b16 %v167, %v163
    %v180 = vpack.c.b16 %v168, %v164
    %v181 = vpack.c.b16 %v169, %v165
    %v182 = vpack.c.b16 %v170, %v166
    %vm195 = vcmask 392192
    %v197 = vsel %vm195, %v127, 0
    %v200 = vsel %vm195, %v128, 0
    %v203 = vsel %vm195, %v129, 0
    %v206 = vsel %vm195, %v130, 0
    %v209 = vsel %vm195, %v131, 0
    %v212 = vsel %vm195, %v132, 0
    %v215 = vsel %vm195, %v133, 0
    %v218 = vsel %vm195, %v134, 0
    %220 = vmatpush.bf16.msra.mxu0 0
    %221 = vmatpush.bf16.msra.mxu0 0
    %222 = vmatpush.bf16.msra.mxu0 0
    %223 = vmatpush.bf16.msra.mxu0 0
    %224 = vmatpush.bf16.msra.mxu0 0
    %225 = vmatpush.bf16.msra.mxu0 %v179
    %226 = vmatpush.bf16.msra.mxu0 %v175
    %227 = vmatpush.bf16.msra.mxu0 %v171
    %228 = vmatmul.bf16.gmra.mxu0 %v197
    %v229 = vpop.f32.mrf.mxu0
    %v230 = vadd.f32 %v87, %v229
    %v231 = vpop.f32.mrf.mxu0
    %v232 = vadd.f32 %v87, %v231
    %233 = vmatmul.bf16.gmra.mxu0 %v200
    %v234 = vpop.f32.mrf.mxu0
    %v235 = vadd.f32 %v87, %v234
    %v236 = vpop.f32.mrf.mxu0
    %v237 = vadd.f32 %v87, %v236
    %238 = vmatmul.bf16.gmra.mxu0 %v203
    %v239 = vpop.f32.mrf.mxu0
    %v240 = vadd.f32 %v87, %v239
    %v241 = vpop.f32.mrf.mxu0
    %v242 = vadd.f32 %v87, %v241
    %243 = vmatmul.bf16.gmra.mxu0 %v206
    %v244 = vpop.f32.mrf.mxu0
    %v245 = vadd.f32 %v87, %v244
    %v246 = vpop.f32.mrf.mxu0
    %v247 = vadd.f32 %v87, %v246
    %248 = vmatmul.bf16.gmra.mxu0 %v209
    %v249 = vpop.f32.mrf.mxu0
    %v250 = vadd.f32 %v87, %v249
    %v251 = vpop.f32.mrf.mxu0
    %v252 = vadd.f32 %v87, %v251
    %253 = vmatmul.bf16.gmra.mxu0 %v212
    %v254 = vpop.f32.mrf.mxu0
    %v255 = vadd.f32 %v87, %v254
    %v256 = vpop.f32.mrf.mxu0
    %v257 = vadd.f32 %v87, %v256
    %258 = vmatmul.bf16.gmra.mxu0 %v215
    %v259 = vpop.f32.mrf.mxu0
    %v260 = vadd.f32 %v87, %v259
    %v261 = vpop.f32.mrf.mxu0
    %v262 = vadd.f32 %v87, %v261
    %263 = vmatmul.bf16.gmra.mxu0 %v218
    %v264 = vpop.f32.mrf.mxu0
    %v265 = vadd.f32 %v87, %v264
    %v266 = vpop.f32.mrf.mxu0
    %v267 = vadd.f32 %v87, %v266
    %268 = vdwg.mxu0
    %269 = vmatpush.bf16.msra.mxu0 0
    %270 = vmatpush.bf16.msra.mxu0 0
    %271 = vmatpush.bf16.msra.mxu0 0
    %272 = vmatpush.bf16.msra.mxu0 0
    %273 = vmatpush.bf16.msra.mxu0 0
    %274 = vmatpush.bf16.msra.mxu0 %v180
    %275 = vmatpush.bf16.msra.mxu0 %v176
    %276 = vmatpush.bf16.msra.mxu0 %v172
    %277 = vmatmul.bf16.gmra.mxu0 %v197
    %v278 = vpop.f32.mrf.mxu0
    %v279 = vadd.f32 %v88, %v278
    %v280 = vpop.f32.mrf.mxu0
    %v281 = vadd.f32 %v88, %v280
    %282 = vmatmul.bf16.gmra.mxu0 %v200
    %v283 = vpop.f32.mrf.mxu0
    %v284 = vadd.f32 %v88, %v283
    %v285 = vpop.f32.mrf.mxu0
    %v286 = vadd.f32 %v88, %v285
    %287 = vmatmul.bf16.gmra.mxu0 %v203
    %v288 = vpop.f32.mrf.mxu0
    %v289 = vadd.f32 %v88, %v288
    %v290 = vpop.f32.mrf.mxu0
    %v291 = vadd.f32 %v88, %v290
    %292 = vmatmul.bf16.gmra.mxu0 %v206
    %v293 = vpop.f32.mrf.mxu0
    %v294 = vadd.f32 %v88, %v293
    %v295 = vpop.f32.mrf.mxu0
    %v296 = vadd.f32 %v88, %v295
    %297 = vmatmul.bf16.gmra.mxu0 %v209
    %v298 = vpop.f32.mrf.mxu0
    %v299 = vadd.f32 %v88, %v298
    %v300 = vpop.f32.mrf.mxu0
    %v301 = vadd.f32 %v88, %v300
    %302 = vmatmul.bf16.gmra.mxu0 %v212
    %v303 = vpop.f32.mrf.mxu0
    %v304 = vadd.f32 %v88, %v303
    %v305 = vpop.f32.mrf.mxu0
    %v306 = vadd.f32 %v88, %v305
    %307 = vmatmul.bf16.gmra.mxu0 %v215
    %v308 = vpop.f32.mrf.mxu0
    %v309 = vadd.f32 %v88, %v308
    %v310 = vpop.f32.mrf.mxu0
    %v311 = vadd.f32 %v88, %v310
    %312 = vmatmul.bf16.gmra.mxu0 %v218
    %v313 = vpop.f32.mrf.mxu0
    %v314 = vadd.f32 %v88, %v313
    %v315 = vpop.f32.mrf.mxu0
    %v316 = vadd.f32 %v88, %v315
    %317 = vdwg.mxu0
    %318 = vmatpush.bf16.msra.mxu0 0
    %319 = vmatpush.bf16.msra.mxu0 0
    %320 = vmatpush.bf16.msra.mxu0 0
    %321 = vmatpush.bf16.msra.mxu0 0
    %322 = vmatpush.bf16.msra.mxu0 0
    %323 = vmatpush.bf16.msra.mxu0 %v181
    %324 = vmatpush.bf16.msra.mxu0 %v177
    %325 = vmatpush.bf16.msra.mxu0 %v173
    %326 = vmatmul.bf16.gmra.mxu0 %v197
    %v327 = vpop.f32.mrf.mxu0
    %v328 = vadd.f32 %v89, %v327
    %v329 = vpop.f32.mrf.mxu0
    %v330 = vadd.f32 %v89, %v329
    %331 = vmatmul.bf16.gmra.mxu0 %v200
    %v332 = vpop.f32.mrf.mxu0
    %v333 = vadd.f32 %v89, %v332
    %v334 = vpop.f32.mrf.mxu0
    %v335 = vadd.f32 %v89, %v334
    %336 = vmatmul.bf16.gmra.mxu0 %v203
    %v337 = vpop.f32.mrf.mxu0
    %v338 = vadd.f32 %v89, %v337
    %v339 = vpop.f32.mrf.mxu0
    %v340 = vadd.f32 %v89, %v339
    %341 = vmatmul.bf16.gmra.mxu0 %v206
    %v342 = vpop.f32.mrf.mxu0
    %v343 = vadd.f32 %v89, %v342
    %v344 = vpop.f32.mrf.mxu0
    %v345 = vadd.f32 %v89, %v344
    %346 = vmatmul.bf16.gmra.mxu0 %v209
    %v347 = vpop.f32.mrf.mxu0
    %v348 = vadd.f32 %v89, %v347
    %v349 = vpop.f32.mrf.mxu0
    %v350 = vadd.f32 %v89, %v349
    %351 = vmatmul.bf16.gmra.mxu0 %v212
    %v352 = vpop.f32.mrf.mxu0
    %v353 = vadd.f32 %v89, %v352
    %v354 = vpop.f32.mrf.mxu0
    %v355 = vadd.f32 %v89, %v354
    %356 = vmatmul.bf16.gmra.mxu0 %v215
    %v357 = vpop.f32.mrf.mxu0
    %v358 = vadd.f32 %v89, %v357
    %v359 = vpop.f32.mrf.mxu0
    %v360 = vadd.f32 %v89, %v359
    %361 = vmatmul.bf16.gmra.mxu0 %v218
    %v362 = vpop.f32.mrf.mxu0
    %v363 = vadd.f32 %v89, %v362
    %v364 = vpop.f32.mrf.mxu0
    %v365 = vadd.f32 %v89, %v364
    %366 = vdwg.mxu0
    %367 = vmatpush.bf16.msra.mxu0 0
    %368 = vmatpush.bf16.msra.mxu0 0
    %369 = vmatpush.bf16.msra.mxu0 0
    %370 = vmatpush.bf16.msra.mxu0 0
    %371 = vmatpush.bf16.msra.mxu0 0
    %372 = vmatpush.bf16.msra.mxu0 %v182
    %373 = vmatpush.bf16.msra.mxu0 %v178
    %374 = vmatpush.bf16.msra.mxu0 %v174
    %375 = vmatmul.bf16.gmra.mxu0 %v197
    %v376 = vpop.f32.mrf.mxu0
    %v377 = vadd.f32 %v90, %v376
    %v378 = vpop.f32.mrf.mxu0
    %v379 = vadd.f32 %v90, %v378
    %380 = vmatmul.bf16.gmra.mxu0 %v200
    %v381 = vpop.f32.mrf.mxu0
    %v382 = vadd.f32 %v90, %v381
    %v383 = vpop.f32.mrf.mxu0
    %v384 = vadd.f32 %v90, %v383
    %385 = vmatmul.bf16.gmra.mxu0 %v203
    %v386 = vpop.f32.mrf.mxu0
    %v387 = vadd.f32 %v90, %v386
    %v388 = vpop.f32.mrf.mxu0
    %v389 = vadd.f32 %v90, %v388
    %390 = vmatmul.bf16.gmra.mxu0 %v206
    %v391 = vpop.f32.mrf.mxu0
    %v392 = vadd.f32 %v90, %v391
    %v393 = vpop.f32.mrf.mxu0
    %v394 = vadd.f32 %v90, %v393
    %395 = vmatmul.bf16.gmra.mxu0 %v209
    %v396 = vpop.f32.mrf.mxu0
    %v397 = vadd.f32 %v90, %v396
    %v398 = vpop.f32.mrf.mxu0
    %v399 = vadd.f32 %v90, %v398
    %400 = vmatmul.bf16.gmra.mxu0 %v212
    %v401 = vpop.f32.mrf.mxu0
    %v402 = vadd.f32 %v90, %v401
    %v403 = vpop.f32.mrf.mxu0
    %v404 = vadd.f32 %v90, %v403
    %405 = vmatmul.bf16.gmra.mxu0 %v215
    %v406 = vpop.f32.mrf.mxu0
    %v407 = vadd.f32 %v90, %v406
    %v408 = vpop.f32.mrf.mxu0
    %v409 = vadd.f32 %v90, %v408
    %410 = vmatmul.bf16.gmra.mxu0 %v218
    %v411 = vpop.f32.mrf.mxu0
    %v412 = vadd.f32 %v90, %v411
    %v413 = vpop.f32.mrf.mxu0
    %v414 = vadd.f32 %v90, %v413
    %415 = vdwg.mxu0
    %v416 = vld [vmem:[%s3] sm:$0xf]
    %v417 = vld [vmem:[%s4] sm:$0xf]
    %v418 = vadd.f32 %v230, %v279
    %v419 = vadd.f32 %v418, %v328
    %v420 = vadd.f32 %v419, %v377
    %421 = vadd.xlane.f32.xlu0 %v420
    %v422 = vpop.xlane.xlu0 %421
    %v423 = vadd.f32 %v232, %v281
    %v424 = vadd.f32 %v423, %v330
    %v425 = vadd.f32 %v424, %v379
    %426 = vadd.xlane.f32.xlu0 %v425
    %v427 = vpop.xlane.xlu0 %426
    %v428 = vadd.f32 %v235, %v284
    %v429 = vadd.f32 %v428, %v333
    %v430 = vadd.f32 %v429, %v382
    %431 = vadd.xlane.f32.xlu0 %v430
    %v432 = vpop.xlane.xlu0 %431
    %v433 = vadd.f32 %v237, %v286
    %v434 = vadd.f32 %v433, %v335
    %v435 = vadd.f32 %v434, %v384
    %436 = vadd.xlane.f32.xlu0 %v435
    %v437 = vpop.xlane.xlu0 %436
    %v438 = vadd.f32 %v240, %v289
    %v439 = vadd.f32 %v438, %v338
    %v440 = vadd.f32 %v439, %v387
    %441 = vadd.xlane.f32.xlu0 %v440
    %v442 = vpop.xlane.xlu0 %441
    %v443 = vadd.f32 %v242, %v291
    %v444 = vadd.f32 %v443, %v340
    %v445 = vadd.f32 %v444, %v389
    %446 = vadd.xlane.f32.xlu0 %v445
    %v447 = vpop.xlane.xlu0 %446
    %v448 = vadd.f32 %v245, %v294
    %v449 = vadd.f32 %v448, %v343
    %v450 = vadd.f32 %v449, %v392
    %451 = vadd.xlane.f32.xlu0 %v450
    %v452 = vpop.xlane.xlu0 %451
    %v453 = vadd.f32 %v247, %v296
    %v454 = vadd.f32 %v453, %v345
    %v455 = vadd.f32 %v454, %v394
    %456 = vadd.xlane.f32.xlu0 %v455
    %v457 = vpop.xlane.xlu0 %456
    %v458 = vadd.f32 %v250, %v299
    %v459 = vadd.f32 %v458, %v348
    %v460 = vadd.f32 %v459, %v397
    %461 = vadd.xlane.f32.xlu0 %v460
    %v462 = vpop.xlane.xlu0 %461
    %v463 = vadd.f32 %v252, %v301
    %v464 = vadd.f32 %v463, %v350
    %v465 = vadd.f32 %v464, %v399
    %466 = vadd.xlane.f32.xlu0 %v465
    %v467 = vpop.xlane.xlu0 %466
    %v468 = vadd.f32 %v255, %v304
    %v469 = vadd.f32 %v468, %v353
    %v470 = vadd.f32 %v469, %v402
    %471 = vadd.xlane.f32.xlu0 %v470
    %v472 = vpop.xlane.xlu0 %471
    %v473 = vadd.f32 %v257, %v306
    %v474 = vadd.f32 %v473, %v355
    %v475 = vadd.f32 %v474, %v404
    %476 = vadd.xlane.f32.xlu0 %v475
    %v477 = vpop.xlane.xlu0 %476
    %v478 = vadd.f32 %v260, %v309
    %v479 = vadd.f32 %v478, %v358
    %v480 = vadd.f32 %v479, %v407
    %481 = vadd.xlane.f32.xlu0 %v480
    %v482 = vpop.xlane.xlu0 %481
    %v483 = vadd.f32 %v262, %v311
    %v484 = vadd.f32 %v483, %v360
    %v485 = vadd.f32 %v484, %v409
    %486 = vadd.xlane.f32.xlu0 %v485
    %v487 = vpop.xlane.xlu0 %486
    %v488 = vadd.f32 %v265, %v314
    %v489 = vadd.f32 %v488, %v363
    %v490 = vadd.f32 %v489, %v412
    %491 = vadd.xlane.f32.xlu0 %v490
    %v492 = vpop.xlane.xlu0 %491
    %v493 = vadd.f32 %v267, %v316
    %v494 = vadd.f32 %v493, %v365
    %v495 = vadd.f32 %v494, %v414
    %496 = vadd.xlane.f32.xlu0 %v495
    %v497 = vpop.xlane.xlu0 %496
    %v498 = vrcp.pop 512.0
    %v499 = vmul.f32 512.0, %v498
    %v500 = vsub.f32 1.0, %v499
    %v501 = vmul.f32 %v498, %v500
    %v502 = vadd.f32 %v498, %v501
    %vm503 = vweird.f32 %v498
    %v504 = vsel %vm503, %v498, %v502
    %v505 = vmul.f32 %v422, %v504
    %v506 = vmul.f32 %v427, %v504
    %v507 = vmul.f32 %v432, %v504
    %v508 = vmul.f32 %v437, %v504
    %v509 = vmul.f32 %v442, %v504
    %v510 = vmul.f32 %v447, %v504
    %v511 = vmul.f32 %v452, %v504
    %v512 = vmul.f32 %v457, %v504
    %v513 = vmul.f32 %v462, %v504
    %v514 = vmul.f32 %v467, %v504
    %v515 = vmul.f32 %v472, %v504
    %v516 = vmul.f32 %v477, %v504
    %v517 = vmul.f32 %v482, %v504
    %v518 = vmul.f32 %v487, %v504
    %v519 = vmul.f32 %v492, %v504
    %v520 = vmul.f32 %v497, %v504
    %v521 = vsub.f32 %v230, %v505
    %v522 = vsub.f32 %v279, %v505
    %v523 = vsub.f32 %v328, %v505
    %v524 = vsub.f32 %v377, %v505
    %v525 = vsub.f32 %v232, %v506
    %v526 = vsub.f32 %v281, %v506
    %v527 = vsub.f32 %v330, %v506
    %v528 = vsub.f32 %v379, %v506
    %v529 = vsub.f32 %v235, %v507
    %v530 = vsub.f32 %v284, %v507
    %v531 = vsub.f32 %v333, %v507
    %v532 = vsub.f32 %v382, %v507
    %v533 = vsub.f32 %v237, %v508
    %v534 = vsub.f32 %v286, %v508
    %v535 = vsub.f32 %v335, %v508
    %v536 = vsub.f32 %v384, %v508
    %v537 = vsub.f32 %v240, %v509
    %v538 = vsub.f32 %v289, %v509
    %v539 = vsub.f32 %v338, %v509
    %v540 = vsub.f32 %v387, %v509
    %v541 = vsub.f32 %v242, %v510
    %v542 = vsub.f32 %v291, %v510
    %v543 = vsub.f32 %v340, %v510
    %v544 = vsub.f32 %v389, %v510
    %v545 = vsub.f32 %v245, %v511
    %v546 = vsub.f32 %v294, %v511
    %v547 = vsub.f32 %v343, %v511
    %v548 = vsub.f32 %v392, %v511
    %v549 = vsub.f32 %v247, %v512
    %v550 = vsub.f32 %v296, %v512
    %v551 = vsub.f32 %v345, %v512
    %v552 = vsub.f32 %v394, %v512
    %v553 = vsub.f32 %v250, %v513
    %v554 = vsub.f32 %v299, %v513
    %v555 = vsub.f32 %v348, %v513
    %v556 = vsub.f32 %v397, %v513
    %v557 = vsub.f32 %v252, %v514
    %v558 = vsub.f32 %v301, %v514
    %v559 = vsub.f32 %v350, %v514
    %v560 = vsub.f32 %v399, %v514
    %v561 = vsub.f32 %v255, %v515
    %v562 = vsub.f32 %v304, %v515
    %v563 = vsub.f32 %v353, %v515
    %v564 = vsub.f32 %v402, %v515
    %v565 = vsub.f32 %v257, %v516
    %v566 = vsub.f32 %v306, %v516
    %v567 = vsub.f32 %v355, %v516
    %v568 = vsub.f32 %v404, %v516
    %v569 = vsub.f32 %v260, %v517
    %v570 = vsub.f32 %v309, %v517
    %v571 = vsub.f32 %v358, %v517
    %v572 = vsub.f32 %v407, %v517
    %v573 = vsub.f32 %v262, %v518
    %v574 = vsub.f32 %v311, %v518
    %v575 = vsub.f32 %v360, %v518
    %v576 = vsub.f32 %v409, %v518
    %v577 = vsub.f32 %v265, %v519
    %v578 = vsub.f32 %v314, %v519
    %v579 = vsub.f32 %v363, %v519
    %v580 = vsub.f32 %v412, %v519
    %v581 = vsub.f32 %v267, %v520
    %v582 = vsub.f32 %v316, %v520
    %v583 = vsub.f32 %v365, %v520
    %v584 = vsub.f32 %v414, %v520
    %v585 = vmul.f32 %v521, %v521
    %v586 = vmul.f32 %v522, %v522
    %v587 = vmul.f32 %v523, %v523
    %v588 = vmul.f32 %v524, %v524
    %v589 = vmul.f32 %v525, %v525
    %v590 = vmul.f32 %v526, %v526
    %v591 = vmul.f32 %v527, %v527
    %v592 = vmul.f32 %v528, %v528
    %v593 = vmul.f32 %v529, %v529
    %v594 = vmul.f32 %v530, %v530
    %v595 = vmul.f32 %v531, %v531
    %v596 = vmul.f32 %v532, %v532
    %v597 = vmul.f32 %v533, %v533
    %v598 = vmul.f32 %v534, %v534
    %v599 = vmul.f32 %v535, %v535
    %v600 = vmul.f32 %v536, %v536
    %v601 = vmul.f32 %v537, %v537
    %v602 = vmul.f32 %v538, %v538
    %v603 = vmul.f32 %v539, %v539
    %v604 = vmul.f32 %v540, %v540
    %v605 = vmul.f32 %v541, %v541
    %v606 = vmul.f32 %v542, %v542
    %v607 = vmul.f32 %v543, %v543
    %v608 = vmul.f32 %v544, %v544
    %v609 = vmul.f32 %v545, %v545
    %v610 = vmul.f32 %v546, %v546
    %v611 = vmul.f32 %v547, %v547
    %v612 = vmul.f32 %v548, %v548
    %v613 = vmul.f32 %v549, %v549
    %v614 = vmul.f32 %v550, %v550
    %v615 = vmul.f32 %v551, %v551
    %v616 = vmul.f32 %v552, %v552
    %v617 = vmul.f32 %v553, %v553
    %v618 = vmul.f32 %v554, %v554
    %v619 = vmul.f32 %v555, %v555
    %v620 = vmul.f32 %v556, %v556
    %v621 = vmul.f32 %v557, %v557
    %v622 = vmul.f32 %v558, %v558
    %v623 = vmul.f32 %v559, %v559
    %v624 = vmul.f32 %v560, %v560
    %v625 = vmul.f32 %v561, %v561
    %v626 = vmul.f32 %v562, %v562
    %v627 = vmul.f32 %v563, %v563
    %v628 = vmul.f32 %v564, %v564
    %v629 = vmul.f32 %v565, %v565
    %v630 = vmul.f32 %v566, %v566
    %v631 = vmul.f32 %v567, %v567
    %v632 = vmul.f32 %v568, %v568
    %v633 = vmul.f32 %v569, %v569
    %v634 = vmul.f32 %v570, %v570
    %v635 = vmul.f32 %v571, %v571
    %v636 = vmul.f32 %v572, %v572
    %v637 = vmul.f32 %v573, %v573
    %v638 = vmul.f32 %v574, %v574
    %v639 = vmul.f32 %v575, %v575
    %v640 = vmul.f32 %v576, %v576
    %v641 = vmul.f32 %v577, %v577
    %v642 = vmul.f32 %v578, %v578
    %v643 = vmul.f32 %v579, %v579
    %v644 = vmul.f32 %v580, %v580
    %v645 = vmul.f32 %v581, %v581
    %v646 = vmul.f32 %v582, %v582
    %v647 = vmul.f32 %v583, %v583
    %v648 = vmul.f32 %v584, %v584
    %v649 = vadd.f32 %v585, %v586
    %v650 = vadd.f32 %v649, %v587
    %v651 = vadd.f32 %v650, %v588
    %652 = vadd.xlane.f32.xlu0 %v651
    %v653 = vpop.xlane.xlu0 %652
    %v654 = vadd.f32 %v589, %v590
    %v655 = vadd.f32 %v654, %v591
    %v656 = vadd.f32 %v655, %v592
    %657 = vadd.xlane.f32.xlu0 %v656
    %v658 = vpop.xlane.xlu0 %657
    %v659 = vadd.f32 %v593, %v594
    %v660 = vadd.f32 %v659, %v595
    %v661 = vadd.f32 %v660, %v596
    %662 = vadd.xlane.f32.xlu0 %v661
    %v663 = vpop.xlane.xlu0 %662
    %v664 = vadd.f32 %v597, %v598
    %v665 = vadd.f32 %v664, %v599
    %v666 = vadd.f32 %v665, %v600
    %667 = vadd.xlane.f32.xlu0 %v666
    %v668 = vpop.xlane.xlu0 %667
    %v669 = vadd.f32 %v601, %v602
    %v670 = vadd.f32 %v669, %v603
    %v671 = vadd.f32 %v670, %v604
    %672 = vadd.xlane.f32.xlu0 %v671
    %v673 = vpop.xlane.xlu0 %672
    %v674 = vadd.f32 %v605, %v606
    %v675 = vadd.f32 %v674, %v607
    %v676 = vadd.f32 %v675, %v608
    %677 = vadd.xlane.f32.xlu0 %v676
    %v678 = vpop.xlane.xlu0 %677
    %v679 = vadd.f32 %v609, %v610
    %v680 = vadd.f32 %v679, %v611
    %v681 = vadd.f32 %v680, %v612
    %682 = vadd.xlane.f32.xlu0 %v681
    %v683 = vpop.xlane.xlu0 %682
    %v684 = vadd.f32 %v613, %v614
    %v685 = vadd.f32 %v684, %v615
    %v686 = vadd.f32 %v685, %v616
    %687 = vadd.xlane.f32.xlu0 %v686
    %v688 = vpop.xlane.xlu0 %687
    %v689 = vadd.f32 %v617, %v618
    %v690 = vadd.f32 %v689, %v619
    %v691 = vadd.f32 %v690, %v620
    %692 = vadd.xlane.f32.xlu0 %v691
    %v693 = vpop.xlane.xlu0 %692
    %v694 = vadd.f32 %v621, %v622
    %v695 = vadd.f32 %v694, %v623
    %v696 = vadd.f32 %v695, %v624
    %697 = vadd.xlane.f32.xlu0 %v696
    %v698 = vpop.xlane.xlu0 %697
    %v699 = vadd.f32 %v625, %v626
    %v700 = vadd.f32 %v699, %v627
    %v701 = vadd.f32 %v700, %v628
    %702 = vadd.xlane.f32.xlu0 %v701
    %v703 = vpop.xlane.xlu0 %702
    %v704 = vadd.f32 %v629, %v630
    %v705 = vadd.f32 %v704, %v631
    %v706 = vadd.f32 %v705, %v632
    %707 = vadd.xlane.f32.xlu0 %v706
    %v708 = vpop.xlane.xlu0 %707
    %v709 = vadd.f32 %v633, %v634
    %v710 = vadd.f32 %v709, %v635
    %v711 = vadd.f32 %v710, %v636
    %712 = vadd.xlane.f32.xlu0 %v711
    %v713 = vpop.xlane.xlu0 %712
    %v714 = vadd.f32 %v637, %v638
    %v715 = vadd.f32 %v714, %v639
    %v716 = vadd.f32 %v715, %v640
    %717 = vadd.xlane.f32.xlu0 %v716
    %v718 = vpop.xlane.xlu0 %717
    %v719 = vadd.f32 %v641, %v642
    %v720 = vadd.f32 %v719, %v643
    %v721 = vadd.f32 %v720, %v644
    %722 = vadd.xlane.f32.xlu0 %v721
    %v723 = vpop.xlane.xlu0 %722
    %v724 = vadd.f32 %v645, %v646
    %v725 = vadd.f32 %v724, %v647
    %v726 = vadd.f32 %v725, %v648
    %727 = vadd.xlane.f32.xlu0 %v726
    %v728 = vpop.xlane.xlu0 %727
    %v729 = vmul.f32 %v653, %v504
    %v730 = vmul.f32 %v658, %v504
    %v731 = vmul.f32 %v663, %v504
    %v732 = vmul.f32 %v668, %v504
    %v733 = vmul.f32 %v673, %v504
    %v734 = vmul.f32 %v678, %v504
    %v735 = vmul.f32 %v683, %v504
    %v736 = vmul.f32 %v688, %v504
    %v737 = vmul.f32 %v693, %v504
    %v738 = vmul.f32 %v698, %v504
    %v739 = vmul.f32 %v703, %v504
    %v740 = vmul.f32 %v708, %v504
    %v741 = vmul.f32 %v713, %v504
    %v742 = vmul.f32 %v718, %v504
    %v743 = vmul.f32 %v723, %v504
    %v744 = vmul.f32 %v728, %v504
    %v745 = vadd.f32 %v729, 1e-05
    %v746 = vadd.f32 %v730, 1e-05
    %v747 = vadd.f32 %v731, 1e-05
    %v748 = vadd.f32 %v732, 1e-05
    %v749 = vadd.f32 %v733, 1e-05
    %v750 = vadd.f32 %v734, 1e-05
    %v751 = vadd.f32 %v735, 1e-05
    %v752 = vadd.f32 %v736, 1e-05
    %v753 = vadd.f32 %v737, 1e-05
    %v754 = vadd.f32 %v738, 1e-05
    %v755 = vadd.f32 %v739, 1e-05
    %v756 = vadd.f32 %v740, 1e-05
    %v757 = vadd.f32 %v741, 1e-05
    %v758 = vadd.f32 %v742, 1e-05
    %v759 = vadd.f32 %v743, 1e-05
    %v760 = vadd.f32 %v744, 1e-05
    %v761 = vrsqrt.pop %v745
    %v762 = vmul.f32 %v761, %v745
    %v763 = vmul.f32 %v762, %v761
    %v764 = vmul.f32 0.5, %v763
    %v765 = vsub.f32 1.5, %v764
    %v766 = vmul.f32 %v761, %v765
    %vm767 = vweird.f32 %v745
    %vm768 = vweird.f32 %v761
    %vm769 = vmor %vm767, %vm768
    %v770 = vsel %vm769, %v761, %v766
    %v771 = vrsqrt.pop %v746
    %v772 = vmul.f32 %v771, %v746
    %v773 = vmul.f32 %v772, %v771
    %v774 = vmul.f32 0.5, %v773
    %v775 = vsub.f32 1.5, %v774
    %v776 = vmul.f32 %v771, %v775
    %vm777 = vweird.f32 %v746
    %vm778 = vweird.f32 %v771
    %vm779 = vmor %vm777, %vm778
    %v780 = vsel %vm779, %v771, %v776
    %v781 = vrsqrt.pop %v747
    %v782 = vmul.f32 %v781, %v747
    %v783 = vmul.f32 %v782, %v781
    %v784 = vmul.f32 0.5, %v783
    %v785 = vsub.f32 1.5, %v784
    %v786 = vmul.f32 %v781, %v785
    %vm787 = vweird.f32 %v747
    %vm788 = vweird.f32 %v781
    %vm789 = vmor %vm787, %vm788
    %v790 = vsel %vm789, %v781, %v786
    %v791 = vrsqrt.pop %v748
    %v792 = vmul.f32 %v791, %v748
    %v793 = vmul.f32 %v792, %v791
    %v794 = vmul.f32 0.5, %v793
    %v795 = vsub.f32 1.5, %v794
    %v796 = vmul.f32 %v791, %v795
    %vm797 = vweird.f32 %v748
    %vm798 = vweird.f32 %v791
    %vm799 = vmor %vm797, %vm798
    %v800 = vsel %vm799, %v791, %v796
    %v801 = vrsqrt.pop %v749
    %v802 = vmul.f32 %v801, %v749
    %v803 = vmul.f32 %v802, %v801
    %v804 = vmul.f32 0.5, %v803
    %v805 = vsub.f32 1.5, %v804
    %v806 = vmul.f32 %v801, %v805
    %vm807 = vweird.f32 %v749
    %vm808 = vweird.f32 %v801
    %vm809 = vmor %vm807, %vm808
    %v810 = vsel %vm809, %v801, %v806
    %v811 = vrsqrt.pop %v750
    %v812 = vmul.f32 %v811, %v750
    %v813 = vmul.f32 %v812, %v811
    %v814 = vmul.f32 0.5, %v813
    %v815 = vsub.f32 1.5, %v814
    %v816 = vmul.f32 %v811, %v815
    %vm817 = vweird.f32 %v750
    %vm818 = vweird.f32 %v811
    %vm819 = vmor %vm817, %vm818
    %v820 = vsel %vm819, %v811, %v816
    %v821 = vrsqrt.pop %v751
    %v822 = vmul.f32 %v821, %v751
    %v823 = vmul.f32 %v822, %v821
    %v824 = vmul.f32 0.5, %v823
    %v825 = vsub.f32 1.5, %v824
    %v826 = vmul.f32 %v821, %v825
    %vm827 = vweird.f32 %v751
    %vm828 = vweird.f32 %v821
    %vm829 = vmor %vm827, %vm828
    %v830 = vsel %vm829, %v821, %v826
    %v831 = vrsqrt.pop %v752
    %v832 = vmul.f32 %v831, %v752
    %v833 = vmul.f32 %v832, %v831
    %v834 = vmul.f32 0.5, %v833
    %v835 = vsub.f32 1.5, %v834
    %v836 = vmul.f32 %v831, %v835
    %vm837 = vweird.f32 %v752
    %vm838 = vweird.f32 %v831
    %vm839 = vmor %vm837, %vm838
    %v840 = vsel %vm839, %v831, %v836
    %v841 = vrsqrt.pop %v753
    %v842 = vmul.f32 %v841, %v753
    %v843 = vmul.f32 %v842, %v841
    %v844 = vmul.f32 0.5, %v843
    %v845 = vsub.f32 1.5, %v844
    %v846 = vmul.f32 %v841, %v845
    %vm847 = vweird.f32 %v753
    %vm848 = vweird.f32 %v841
    %vm849 = vmor %vm847, %vm848
    %v850 = vsel %vm849, %v841, %v846
    %v851 = vrsqrt.pop %v754
    %v852 = vmul.f32 %v851, %v754
    %v853 = vmul.f32 %v852, %v851
    %v854 = vmul.f32 0.5, %v853
    %v855 = vsub.f32 1.5, %v854
    %v856 = vmul.f32 %v851, %v855
    %vm857 = vweird.f32 %v754
    %vm858 = vweird.f32 %v851
    %vm859 = vmor %vm857, %vm858
    %v860 = vsel %vm859, %v851, %v856
    %v861 = vrsqrt.pop %v755
    %v862 = vmul.f32 %v861, %v755
    %v863 = vmul.f32 %v862, %v861
    %v864 = vmul.f32 0.5, %v863
    %v865 = vsub.f32 1.5, %v864
    %v866 = vmul.f32 %v861, %v865
    %vm867 = vweird.f32 %v755
    %vm868 = vweird.f32 %v861
    %vm869 = vmor %vm867, %vm868
    %v870 = vsel %vm869, %v861, %v866
    %v871 = vrsqrt.pop %v756
    %v872 = vmul.f32 %v871, %v756
    %v873 = vmul.f32 %v872, %v871
    %v874 = vmul.f32 0.5, %v873
    %v875 = vsub.f32 1.5, %v874
    %v876 = vmul.f32 %v871, %v875
    %vm877 = vweird.f32 %v756
    %vm878 = vweird.f32 %v871
    %vm879 = vmor %vm877, %vm878
    %v880 = vsel %vm879, %v871, %v876
    %v881 = vrsqrt.pop %v757
    %v882 = vmul.f32 %v881, %v757
    %v883 = vmul.f32 %v882, %v881
    %v884 = vmul.f32 0.5, %v883
    %v885 = vsub.f32 1.5, %v884
    %v886 = vmul.f32 %v881, %v885
    %vm887 = vweird.f32 %v757
    %vm888 = vweird.f32 %v881
    %vm889 = vmor %vm887, %vm888
    %v890 = vsel %vm889, %v881, %v886
    %v891 = vrsqrt.pop %v758
    %v892 = vmul.f32 %v891, %v758
    %v893 = vmul.f32 %v892, %v891
    %v894 = vmul.f32 0.5, %v893
    %v895 = vsub.f32 1.5, %v894
    %v896 = vmul.f32 %v891, %v895
    %vm897 = vweird.f32 %v758
    %vm898 = vweird.f32 %v891
    %vm899 = vmor %vm897, %vm898
    %v900 = vsel %vm899, %v891, %v896
    %v901 = vrsqrt.pop %v759
    %v902 = vmul.f32 %v901, %v759
    %v903 = vmul.f32 %v902, %v901
    %v904 = vmul.f32 0.5, %v903
    %v905 = vsub.f32 1.5, %v904
    %v906 = vmul.f32 %v901, %v905
    %vm907 = vweird.f32 %v759
    %vm908 = vweird.f32 %v901
    %vm909 = vmor %vm907, %vm908
    %v910 = vsel %vm909, %v901, %v906
    %v911 = vrsqrt.pop %v760
    %v912 = vmul.f32 %v911, %v760
    %v913 = vmul.f32 %v912, %v911
    %v914 = vmul.f32 0.5, %v913
    %v915 = vsub.f32 1.5, %v914
    %v916 = vmul.f32 %v911, %v915
    %vm917 = vweird.f32 %v760
    %vm918 = vweird.f32 %v911
    %vm919 = vmor %vm917, %vm918
    %v920 = vsel %vm919, %v911, %v916
    %v921 = vmul.f32 %v521, %v770
    %v922 = vmul.f32 %v522, %v770
    %v923 = vmul.f32 %v523, %v770
    %v924 = vmul.f32 %v524, %v770
    %v925 = vmul.f32 %v525, %v780
    %v926 = vmul.f32 %v526, %v780
    %v927 = vmul.f32 %v527, %v780
    %v928 = vmul.f32 %v528, %v780
    %v929 = vmul.f32 %v529, %v790
    %v930 = vmul.f32 %v530, %v790
    %v931 = vmul.f32 %v531, %v790
    %v932 = vmul.f32 %v532, %v790
    %v933 = vmul.f32 %v533, %v800
    %v934 = vmul.f32 %v534, %v800
    %v935 = vmul.f32 %v535, %v800
    %v936 = vmul.f32 %v536, %v800
    %v937 = vmul.f32 %v537, %v810
    %v938 = vmul.f32 %v538, %v810
    %v939 = vmul.f32 %v539, %v810
    %v940 = vmul.f32 %v540, %v810
    %v941 = vmul.f32 %v541, %v820
    %v942 = vmul.f32 %v542, %v820
    %v943 = vmul.f32 %v543, %v820
    %v944 = vmul.f32 %v544, %v820
    %v945 = vmul.f32 %v545, %v830
    %v946 = vmul.f32 %v546, %v830
    %v947 = vmul.f32 %v547, %v830
    %v948 = vmul.f32 %v548, %v830
    %v949 = vmul.f32 %v549, %v840
    %v950 = vmul.f32 %v550, %v840
    %v951 = vmul.f32 %v551, %v840
    %v952 = vmul.f32 %v552, %v840
    %v953 = vmul.f32 %v553, %v850
    %v954 = vmul.f32 %v554, %v850
    %v955 = vmul.f32 %v555, %v850
    %v956 = vmul.f32 %v556, %v850
    %v957 = vmul.f32 %v557, %v860
    %v958 = vmul.f32 %v558, %v860
    %v959 = vmul.f32 %v559, %v860
    %v960 = vmul.f32 %v560, %v860
    %v961 = vmul.f32 %v561, %v870
    %v962 = vmul.f32 %v562, %v870
    %v963 = vmul.f32 %v563, %v870
    %v964 = vmul.f32 %v564, %v870
    %v965 = vmul.f32 %v565, %v880
    %v966 = vmul.f32 %v566, %v880
    %v967 = vmul.f32 %v567, %v880
    %v968 = vmul.f32 %v568, %v880
    %v969 = vmul.f32 %v569, %v890
    %v970 = vmul.f32 %v570, %v890
    %v971 = vmul.f32 %v571, %v890
    %v972 = vmul.f32 %v572, %v890
    %v973 = vmul.f32 %v573, %v900
    %v974 = vmul.f32 %v574, %v900
    %v975 = vmul.f32 %v575, %v900
    %v976 = vmul.f32 %v576, %v900
    %v977 = vmul.f32 %v577, %v910
    %v978 = vmul.f32 %v578, %v910
    %v979 = vmul.f32 %v579, %v910
    %v980 = vmul.f32 %v580, %v910
    %v981 = vmul.f32 %v581, %v920
    %v982 = vmul.f32 %v582, %v920
    %v983 = vmul.f32 %v583, %v920
    %v984 = vmul.f32 %v584, %v920
    %v986 = vperm.slane %v416, 0
    %v987 = vperm.slane %v416, 1
    %v988 = vperm.slane %v416, 2
    %v989 = vperm.slane %v416, 3
    %v994 = vmul.f32 %v921, %v986
    %v995 = vmul.f32 %v922, %v987
    %v996 = vmul.f32 %v923, %v988
    %v997 = vmul.f32 %v924, %v989
    %v998 = vmul.f32 %v925, %v986
    %v999 = vmul.f32 %v926, %v987
    %v1000 = vmul.f32 %v927, %v988
    %v1001 = vmul.f32 %v928, %v989
    %v1002 = vmul.f32 %v929, %v986
    %v1003 = vmul.f32 %v930, %v987
    %v1004 = vmul.f32 %v931, %v988
    %v1005 = vmul.f32 %v932, %v989
    %v1006 = vmul.f32 %v933, %v986
    %v1007 = vmul.f32 %v934, %v987
    %v1008 = vmul.f32 %v935, %v988
    %v1009 = vmul.f32 %v936, %v989
    %v1010 = vmul.f32 %v937, %v986
    %v1011 = vmul.f32 %v938, %v987
    %v1012 = vmul.f32 %v939, %v988
    %v1013 = vmul.f32 %v940, %v989
    %v1014 = vmul.f32 %v941, %v986
    %v1015 = vmul.f32 %v942, %v987
    %v1016 = vmul.f32 %v943, %v988
    %v1017 = vmul.f32 %v944, %v989
    %v1018 = vmul.f32 %v945, %v986
    %v1019 = vmul.f32 %v946, %v987
    %v1020 = vmul.f32 %v947, %v988
    %v1021 = vmul.f32 %v948, %v989
    %v1022 = vmul.f32 %v949, %v986
    %v1023 = vmul.f32 %v950, %v987
    %v1024 = vmul.f32 %v951, %v988
    %v1025 = vmul.f32 %v952, %v989
    %v1026 = vmul.f32 %v953, %v986
    %v1027 = vmul.f32 %v954, %v987
    %v1028 = vmul.f32 %v955, %v988
    %v1029 = vmul.f32 %v956, %v989
    %v1030 = vmul.f32 %v957, %v986
    %v1031 = vmul.f32 %v958, %v987
    %v1032 = vmul.f32 %v959, %v988
    %v1033 = vmul.f32 %v960, %v989
    %v1034 = vmul.f32 %v961, %v986
    %v1035 = vmul.f32 %v962, %v987
    %v1036 = vmul.f32 %v963, %v988
    %v1037 = vmul.f32 %v964, %v989
    %v1038 = vmul.f32 %v965, %v986
    %v1039 = vmul.f32 %v966, %v987
    %v1040 = vmul.f32 %v967, %v988
    %v1041 = vmul.f32 %v968, %v989
    %v1042 = vmul.f32 %v969, %v986
    %v1043 = vmul.f32 %v970, %v987
    %v1044 = vmul.f32 %v971, %v988
    %v1045 = vmul.f32 %v972, %v989
    %v1046 = vmul.f32 %v973, %v986
    %v1047 = vmul.f32 %v974, %v987
    %v1048 = vmul.f32 %v975, %v988
    %v1049 = vmul.f32 %v976, %v989
    %v1050 = vmul.f32 %v977, %v986
    %v1051 = vmul.f32 %v978, %v987
    %v1052 = vmul.f32 %v979, %v988
    %v1053 = vmul.f32 %v980, %v989
    %v1054 = vmul.f32 %v981, %v986
    %v1055 = vmul.f32 %v982, %v987
    %v1056 = vmul.f32 %v983, %v988
    %v1057 = vmul.f32 %v984, %v989
    %v1059 = vperm.slane %v417, 0
    %v1060 = vperm.slane %v417, 1
    %v1061 = vperm.slane %v417, 2
    %v1062 = vperm.slane %v417, 3
    %v1067 = vadd.f32 %v994, %v1059
    %v1068 = vadd.f32 %v995, %v1060
    %v1069 = vadd.f32 %v996, %v1061
    %v1070 = vadd.f32 %v997, %v1062
    %v1071 = vadd.f32 %v998, %v1059
    %v1072 = vadd.f32 %v999, %v1060
    %v1073 = vadd.f32 %v1000, %v1061
    %v1074 = vadd.f32 %v1001, %v1062
    %v1075 = vadd.f32 %v1002, %v1059
    %v1076 = vadd.f32 %v1003, %v1060
    %v1077 = vadd.f32 %v1004, %v1061
    %v1078 = vadd.f32 %v1005, %v1062
    %v1079 = vadd.f32 %v1006, %v1059
    %v1080 = vadd.f32 %v1007, %v1060
    %v1081 = vadd.f32 %v1008, %v1061
    %v1082 = vadd.f32 %v1009, %v1062
    %v1083 = vadd.f32 %v1010, %v1059
    %v1084 = vadd.f32 %v1011, %v1060
    %v1085 = vadd.f32 %v1012, %v1061
    %v1086 = vadd.f32 %v1013, %v1062
    %v1087 = vadd.f32 %v1014, %v1059
    %v1088 = vadd.f32 %v1015, %v1060
    %v1089 = vadd.f32 %v1016, %v1061
    %v1090 = vadd.f32 %v1017, %v1062
    %v1091 = vadd.f32 %v1018, %v1059
    %v1092 = vadd.f32 %v1019, %v1060
    %v1093 = vadd.f32 %v1020, %v1061
    %v1094 = vadd.f32 %v1021, %v1062
    %v1095 = vadd.f32 %v1022, %v1059
    %v1096 = vadd.f32 %v1023, %v1060
    %v1097 = vadd.f32 %v1024, %v1061
    %v1098 = vadd.f32 %v1025, %v1062
    %v1099 = vadd.f32 %v1026, %v1059
    %v1100 = vadd.f32 %v1027, %v1060
    %v1101 = vadd.f32 %v1028, %v1061
    %v1102 = vadd.f32 %v1029, %v1062
    %v1103 = vadd.f32 %v1030, %v1059
    %v1104 = vadd.f32 %v1031, %v1060
    %v1105 = vadd.f32 %v1032, %v1061
    %v1106 = vadd.f32 %v1033, %v1062
    %v1107 = vadd.f32 %v1034, %v1059
    %v1108 = vadd.f32 %v1035, %v1060
    %v1109 = vadd.f32 %v1036, %v1061
    %v1110 = vadd.f32 %v1037, %v1062
    %v1111 = vadd.f32 %v1038, %v1059
    %v1112 = vadd.f32 %v1039, %v1060
    %v1113 = vadd.f32 %v1040, %v1061
    %v1114 = vadd.f32 %v1041, %v1062
    %v1115 = vadd.f32 %v1042, %v1059
    %v1116 = vadd.f32 %v1043, %v1060
    %v1117 = vadd.f32 %v1044, %v1061
    %v1118 = vadd.f32 %v1045, %v1062
    %v1119 = vadd.f32 %v1046, %v1059
    %v1120 = vadd.f32 %v1047, %v1060
    %v1121 = vadd.f32 %v1048, %v1061
    %v1122 = vadd.f32 %v1049, %v1062
    %v1123 = vadd.f32 %v1050, %v1059
    %v1124 = vadd.f32 %v1051, %v1060
    %v1125 = vadd.f32 %v1052, %v1061
    %v1126 = vadd.f32 %v1053, %v1062
    %v1127 = vadd.f32 %v1054, %v1059
    %v1128 = vadd.f32 %v1055, %v1060
    %v1129 = vadd.f32 %v1056, %v1061
    %v1130 = vadd.f32 %v1057, %v1062
    %v1131 = vpack.c.bf16 %v1071, %v1067
    %v1132 = vpack.c.bf16 %v1072, %v1068
    %v1133 = vpack.c.bf16 %v1073, %v1069
    %v1134 = vpack.c.bf16 %v1074, %v1070
    %v1135 = vpack.c.bf16 %v1079, %v1075
    %v1136 = vpack.c.bf16 %v1080, %v1076
    %v1137 = vpack.c.bf16 %v1081, %v1077
    %v1138 = vpack.c.bf16 %v1082, %v1078
    %v1139 = vpack.c.bf16 %v1087, %v1083
    %v1140 = vpack.c.bf16 %v1088, %v1084
    %v1141 = vpack.c.bf16 %v1089, %v1085
    %v1142 = vpack.c.bf16 %v1090, %v1086
    %v1143 = vpack.c.bf16 %v1095, %v1091
    %v1144 = vpack.c.bf16 %v1096, %v1092
    %v1145 = vpack.c.bf16 %v1097, %v1093
    %v1146 = vpack.c.bf16 %v1098, %v1094
    %v1147 = vpack.c.bf16 %v1103, %v1099
    %v1148 = vpack.c.bf16 %v1104, %v1100
    %v1149 = vpack.c.bf16 %v1105, %v1101
    %v1150 = vpack.c.bf16 %v1106, %v1102
    %v1151 = vpack.c.bf16 %v1111, %v1107
    %v1152 = vpack.c.bf16 %v1112, %v1108
    %v1153 = vpack.c.bf16 %v1113, %v1109
    %v1154 = vpack.c.bf16 %v1114, %v1110
    %v1155 = vpack.c.bf16 %v1119, %v1115
    %v1156 = vpack.c.bf16 %v1120, %v1116
    %v1157 = vpack.c.bf16 %v1121, %v1117
    %v1158 = vpack.c.bf16 %v1122, %v1118
    %v1159 = vpack.c.bf16 %v1127, %v1123
    %v1160 = vpack.c.bf16 %v1128, %v1124
    %v1161 = vpack.c.bf16 %v1129, %v1125
    %v1162 = vpack.c.bf16 %v1130, %v1126
    %v1163 = vld [vmem:[%s5] sm:$0xff]
    %v1164 = vld [vmem:[%s5 + $0x8] sm:$0xff]
    %v1165 = vld [vmem:[%s5 + $0x10] sm:$0xff]
    %v1166 = vld [vmem:[%s5 + $0x18] sm:$0xff]
    %v1167 = vld [vmem:[%s5 + $0x20] sm:$0xff]
    %v1168 = vld [vmem:[%s5 + $0x28] sm:$0xff]
    %v1169 = vld [vmem:[%s5 + $0x30] sm:$0xff]
    %v1170 = vld [vmem:[%s5 + $0x38] sm:$0xff]
    %v1171 = vld [vmem:[%s5 + $0x40] sm:$0xff]
    %v1172 = vld [vmem:[%s5 + $0x48] sm:$0xff]
    %v1173 = vld [vmem:[%s5 + $0x50] sm:$0xff]
    %v1174 = vld [vmem:[%s5 + $0x58] sm:$0xff]
    %v1175 = vld [vmem:[%s5 + $0x60] sm:$0xff]
    %v1176 = vld [vmem:[%s5 + $0x68] sm:$0xff]
    %v1177 = vld [vmem:[%s5 + $0x70] sm:$0xff]
    %v1178 = vld [vmem:[%s5 + $0x78] sm:$0xff]
    %v1179 = vld [vmem:[%s5 + $0x80] sm:$0xff]
    %v1180 = vld [vmem:[%s5 + $0x88] sm:$0xff]
    %v1181 = vld [vmem:[%s5 + $0x90] sm:$0xff]
    %v1182 = vld [vmem:[%s5 + $0x98] sm:$0xff]
    %v1183 = vld [vmem:[%s5 + $0xa0] sm:$0xff]
    %v1184 = vld [vmem:[%s5 + $0xa8] sm:$0xff]
    %v1185 = vld [vmem:[%s5 + $0xb0] sm:$0xff]
    %v1186 = vld [vmem:[%s5 + $0xb8] sm:$0xff]
    %v1187 = vld [vmem:[%s5 + $0xc0] sm:$0xff]
    %v1188 = vld [vmem:[%s5 + $0xc8] sm:$0xff]
    %v1189 = vld [vmem:[%s5 + $0xd0] sm:$0xff]
    %v1190 = vld [vmem:[%s5 + $0xd8] sm:$0xff]
    %v1191 = vld [vmem:[%s5 + $0xe0] sm:$0xff]
    %v1192 = vld [vmem:[%s5 + $0xe8] sm:$0xff]
    %v1193 = vld [vmem:[%s5 + $0xf0] sm:$0xff]
    %v1194 = vld [vmem:[%s5 + $0xf8] sm:$0xff]
    %v1195 = vld [vmem:[%s5 + $0x100] sm:$0xff]
    %v1196 = vld [vmem:[%s5 + $0x108] sm:$0xff]
    %v1197 = vld [vmem:[%s5 + $0x110] sm:$0xff]
    %v1198 = vld [vmem:[%s5 + $0x118] sm:$0xff]
    %v1199 = vld [vmem:[%s5 + $0x120] sm:$0xff]
    %v1200 = vld [vmem:[%s5 + $0x128] sm:$0xff]
    %v1201 = vld [vmem:[%s5 + $0x130] sm:$0xff]
    %v1202 = vld [vmem:[%s5 + $0x138] sm:$0xff]
    %v1203 = vld [vmem:[%s5 + $0x140] sm:$0xff]
    %v1204 = vld [vmem:[%s5 + $0x148] sm:$0xff]
    %v1205 = vld [vmem:[%s5 + $0x150] sm:$0xff]
    %v1206 = vld [vmem:[%s5 + $0x158] sm:$0xff]
    %v1207 = vld [vmem:[%s5 + $0x160] sm:$0xff]
    %v1208 = vld [vmem:[%s5 + $0x168] sm:$0xff]
    %v1209 = vld [vmem:[%s5 + $0x170] sm:$0xff]
    %v1210 = vld [vmem:[%s5 + $0x178] sm:$0xff]
    %v1211 = vld [vmem:[%s5 + $0x180] sm:$0xff]
    %v1212 = vld [vmem:[%s5 + $0x188] sm:$0xff]
    %v1213 = vld [vmem:[%s5 + $0x190] sm:$0xff]
    %v1214 = vld [vmem:[%s5 + $0x198] sm:$0xff]
    %v1215 = vld [vmem:[%s5 + $0x1a0] sm:$0xff]
    %v1216 = vld [vmem:[%s5 + $0x1a8] sm:$0xff]
    %v1217 = vld [vmem:[%s5 + $0x1b0] sm:$0xff]
    %v1218 = vld [vmem:[%s5 + $0x1b8] sm:$0xff]
    %v1219 = vld [vmem:[%s5 + $0x1c0] sm:$0xff]
    %v1220 = vld [vmem:[%s5 + $0x1c8] sm:$0xff]
    %v1221 = vld [vmem:[%s5 + $0x1d0] sm:$0xff]
    %v1222 = vld [vmem:[%s5 + $0x1d8] sm:$0xff]
    %v1223 = vld [vmem:[%s5 + $0x1e0] sm:$0xff]
    %v1224 = vld [vmem:[%s5 + $0x1e8] sm:$0xff]
    %v1225 = vld [vmem:[%s5 + $0x1f0] sm:$0xff]
    %v1226 = vld [vmem:[%s5 + $0x1f8] sm:$0xff]
    %v1227 = vld [vmem:[%s6] sm:$0x3]
    %v1229 = vperm.slane %v1227, 0
    %v1230 = vperm.slane %v1227, 1
    %v1297 = vunpack.c.l.b16 %v1163
    %v1298 = vunpack.c.h.b16 %v1163
    %v1299 = vunpack.c.l.b16 %v1164
    %v1300 = vunpack.c.h.b16 %v1164
    %v1301 = vunpack.c.l.b16 %v1165
    %v1302 = vunpack.c.h.b16 %v1165
    %v1303 = vunpack.c.l.b16 %v1166
    %v1304 = vunpack.c.h.b16 %v1166
    %v1305 = vunpack.c.l.b16 %v1167
    %v1306 = vunpack.c.h.b16 %v1167
    %v1307 = vunpack.c.l.b16 %v1168
    %v1308 = vunpack.c.h.b16 %v1168
    %v1309 = vunpack.c.l.b16 %v1169
    %v1310 = vunpack.c.h.b16 %v1169
    %v1311 = vunpack.c.l.b16 %v1170
    %v1312 = vunpack.c.h.b16 %v1170
    %v1313 = vunpack.c.l.b16 %v1171
    %v1314 = vunpack.c.h.b16 %v1171
    %v1315 = vunpack.c.l.b16 %v1172
    %v1316 = vunpack.c.h.b16 %v1172
    %v1317 = vunpack.c.l.b16 %v1173
    %v1318 = vunpack.c.h.b16 %v1173
    %v1319 = vunpack.c.l.b16 %v1174
    %v1320 = vunpack.c.h.b16 %v1174
    %v1321 = vunpack.c.l.b16 %v1175
    %v1322 = vunpack.c.h.b16 %v1175
    %v1323 = vunpack.c.l.b16 %v1176
    %v1324 = vunpack.c.h.b16 %v1176
    %v1325 = vunpack.c.l.b16 %v1177
    %v1326 = vunpack.c.h.b16 %v1177
    %v1327 = vunpack.c.l.b16 %v1178
    %v1328 = vunpack.c.h.b16 %v1178
    %v1329 = vunpack.c.l.b16 %v1179
    %v1330 = vunpack.c.h.b16 %v1179
    %v1331 = vunpack.c.l.b16 %v1180
    %v1332 = vunpack.c.h.b16 %v1180
    %v1333 = vunpack.c.l.b16 %v1181
    %v1334 = vunpack.c.h.b16 %v1181
    %v1335 = vunpack.c.l.b16 %v1182
    %v1336 = vunpack.c.h.b16 %v1182
    %v1337 = vunpack.c.l.b16 %v1183
    %v1338 = vunpack.c.h.b16 %v1183
    %v1339 = vunpack.c.l.b16 %v1184
    %v1340 = vunpack.c.h.b16 %v1184
    %v1341 = vunpack.c.l.b16 %v1185
    %v1342 = vunpack.c.h.b16 %v1185
    %v1343 = vunpack.c.l.b16 %v1186
    %v1344 = vunpack.c.h.b16 %v1186
    %v1345 = vunpack.c.l.b16 %v1187
    %v1346 = vunpack.c.h.b16 %v1187
    %v1347 = vunpack.c.l.b16 %v1188
    %v1348 = vunpack.c.h.b16 %v1188
    %v1349 = vunpack.c.l.b16 %v1189
    %v1350 = vunpack.c.h.b16 %v1189
    %v1351 = vunpack.c.l.b16 %v1190
    %v1352 = vunpack.c.h.b16 %v1190
    %v1353 = vunpack.c.l.b16 %v1191
    %v1354 = vunpack.c.h.b16 %v1191
    %v1355 = vunpack.c.l.b16 %v1192
    %v1356 = vunpack.c.h.b16 %v1192
    %v1357 = vunpack.c.l.b16 %v1193
    %v1358 = vunpack.c.h.b16 %v1193
    %v1359 = vunpack.c.l.b16 %v1194
    %v1360 = vunpack.c.h.b16 %v1194
    %v1361 = vunpack.c.l.b16 %v1195
    %v1362 = vunpack.c.h.b16 %v1195
    %v1363 = vunpack.c.l.b16 %v1196
    %v1364 = vunpack.c.h.b16 %v1196
    %v1365 = vunpack.c.l.b16 %v1197
    %v1366 = vunpack.c.h.b16 %v1197
    %v1367 = vunpack.c.l.b16 %v1198
    %v1368 = vunpack.c.h.b16 %v1198
    %v1369 = vunpack.c.l.b16 %v1199
    %v1370 = vunpack.c.h.b16 %v1199
    %v1371 = vunpack.c.l.b16 %v1200
    %v1372 = vunpack.c.h.b16 %v1200
    %v1373 = vunpack.c.l.b16 %v1201
    %v1374 = vunpack.c.h.b16 %v1201
    %v1375 = vunpack.c.l.b16 %v1202
    %v1376 = vunpack.c.h.b16 %v1202
    %v1377 = vunpack.c.l.b16 %v1203
    %v1378 = vunpack.c.h.b16 %v1203
    %v1379 = vunpack.c.l.b16 %v1204
    %v1380 = vunpack.c.h.b16 %v1204
    %v1381 = vunpack.c.l.b16 %v1205
    %v1382 = vunpack.c.h.b16 %v1205
    %v1383 = vunpack.c.l.b16 %v1206
    %v1384 = vunpack.c.h.b16 %v1206
    %v1385 = vunpack.c.l.b16 %v1207
    %v1386 = vunpack.c.h.b16 %v1207
    %v1387 = vunpack.c.l.b16 %v1208
    %v1388 = vunpack.c.h.b16 %v1208
    %v1389 = vunpack.c.l.b16 %v1209
    %v1390 = vunpack.c.h.b16 %v1209
    %v1391 = vunpack.c.l.b16 %v1210
    %v1392 = vunpack.c.h.b16 %v1210
    %v1393 = vunpack.c.l.b16 %v1211
    %v1394 = vunpack.c.h.b16 %v1211
    %v1395 = vunpack.c.l.b16 %v1212
    %v1396 = vunpack.c.h.b16 %v1212
    %v1397 = vunpack.c.l.b16 %v1213
    %v1398 = vunpack.c.h.b16 %v1213
    %v1399 = vunpack.c.l.b16 %v1214
    %v1400 = vunpack.c.h.b16 %v1214
    %v1401 = vunpack.c.l.b16 %v1215
    %v1402 = vunpack.c.h.b16 %v1215
    %v1403 = vunpack.c.l.b16 %v1216
    %v1404 = vunpack.c.h.b16 %v1216
    %v1405 = vunpack.c.l.b16 %v1217
    %v1406 = vunpack.c.h.b16 %v1217
    %v1407 = vunpack.c.l.b16 %v1218
    %v1408 = vunpack.c.h.b16 %v1218
    %v1409 = vunpack.c.l.b16 %v1219
    %v1410 = vunpack.c.h.b16 %v1219
    %v1411 = vunpack.c.l.b16 %v1220
    %v1412 = vunpack.c.h.b16 %v1220
    %v1413 = vunpack.c.l.b16 %v1221
    %v1414 = vunpack.c.h.b16 %v1221
    %v1415 = vunpack.c.l.b16 %v1222
    %v1416 = vunpack.c.h.b16 %v1222
    %v1417 = vunpack.c.l.b16 %v1223
    %v1418 = vunpack.c.h.b16 %v1223
    %v1419 = vunpack.c.l.b16 %v1224
    %v1420 = vunpack.c.h.b16 %v1224
    %v1421 = vunpack.c.l.b16 %v1225
    %v1422 = vunpack.c.h.b16 %v1225
    %v1423 = vunpack.c.l.b16 %v1226
    %v1424 = vunpack.c.h.b16 %v1226
    %v1425 = vpack.c.b16 %v1299, %v1297
    %v1426 = vpack.c.b16 %v1300, %v1298
    %v1427 = vpack.c.b16 %v1303, %v1301
    %v1428 = vpack.c.b16 %v1304, %v1302
    %v1429 = vpack.c.b16 %v1307, %v1305
    %v1430 = vpack.c.b16 %v1308, %v1306
    %v1431 = vpack.c.b16 %v1311, %v1309
    %v1432 = vpack.c.b16 %v1312, %v1310
    %v1433 = vpack.c.b16 %v1315, %v1313
    %v1434 = vpack.c.b16 %v1316, %v1314
    %v1435 = vpack.c.b16 %v1319, %v1317
    %v1436 = vpack.c.b16 %v1320, %v1318
    %v1437 = vpack.c.b16 %v1323, %v1321
    %v1438 = vpack.c.b16 %v1324, %v1322
    %v1439 = vpack.c.b16 %v1327, %v1325
    %v1440 = vpack.c.b16 %v1328, %v1326
    %v1441 = vpack.c.b16 %v1331, %v1329
    %v1442 = vpack.c.b16 %v1332, %v1330
    %v1443 = vpack.c.b16 %v1335, %v1333
    %v1444 = vpack.c.b16 %v1336, %v1334
    %v1445 = vpack.c.b16 %v1339, %v1337
    %v1446 = vpack.c.b16 %v1340, %v1338
    %v1447 = vpack.c.b16 %v1343, %v1341
    %v1448 = vpack.c.b16 %v1344, %v1342
    %v1449 = vpack.c.b16 %v1347, %v1345
    %v1450 = vpack.c.b16 %v1348, %v1346
    %v1451 = vpack.c.b16 %v1351, %v1349
    %v1452 = vpack.c.b16 %v1352, %v1350
    %v1453 = vpack.c.b16 %v1355, %v1353
    %v1454 = vpack.c.b16 %v1356, %v1354
    %v1455 = vpack.c.b16 %v1359, %v1357
    %v1456 = vpack.c.b16 %v1360, %v1358
    %v1457 = vpack.c.b16 %v1363, %v1361
    %v1458 = vpack.c.b16 %v1364, %v1362
    %v1459 = vpack.c.b16 %v1367, %v1365
    %v1460 = vpack.c.b16 %v1368, %v1366
    %v1461 = vpack.c.b16 %v1371, %v1369
    %v1462 = vpack.c.b16 %v1372, %v1370
    %v1463 = vpack.c.b16 %v1375, %v1373
    %v1464 = vpack.c.b16 %v1376, %v1374
    %v1465 = vpack.c.b16 %v1379, %v1377
    %v1466 = vpack.c.b16 %v1380, %v1378
    %v1467 = vpack.c.b16 %v1383, %v1381
    %v1468 = vpack.c.b16 %v1384, %v1382
    %v1469 = vpack.c.b16 %v1387, %v1385
    %v1470 = vpack.c.b16 %v1388, %v1386
    %v1471 = vpack.c.b16 %v1391, %v1389
    %v1472 = vpack.c.b16 %v1392, %v1390
    %v1473 = vpack.c.b16 %v1395, %v1393
    %v1474 = vpack.c.b16 %v1396, %v1394
    %v1475 = vpack.c.b16 %v1399, %v1397
    %v1476 = vpack.c.b16 %v1400, %v1398
    %v1477 = vpack.c.b16 %v1403, %v1401
    %v1478 = vpack.c.b16 %v1404, %v1402
    %v1479 = vpack.c.b16 %v1407, %v1405
    %v1480 = vpack.c.b16 %v1408, %v1406
    %v1481 = vpack.c.b16 %v1411, %v1409
    %v1482 = vpack.c.b16 %v1412, %v1410
    %v1483 = vpack.c.b16 %v1415, %v1413
    %v1484 = vpack.c.b16 %v1416, %v1414
    %v1485 = vpack.c.b16 %v1419, %v1417
    %v1486 = vpack.c.b16 %v1420, %v1418
    %v1487 = vpack.c.b16 %v1423, %v1421
    %v1488 = vpack.c.b16 %v1424, %v1422
    %1553 = vmatpush.bf16.msra.mxu0 %v1439
    %1554 = vmatpush.bf16.msra.mxu0 %v1437
    %1555 = vmatpush.bf16.msra.mxu0 %v1435
    %1556 = vmatpush.bf16.msra.mxu0 %v1433
    %1557 = vmatpush.bf16.msra.mxu0 %v1431
    %1558 = vmatpush.bf16.msra.mxu0 %v1429
    %1559 = vmatpush.bf16.msra.mxu0 %v1427
    %1560 = vmatpush.bf16.msra.mxu0 %v1425
    %1561 = vmatmul.bf16.gmra.mxu0 %v1131
    %v1562 = vpop.f32.mrf.mxu0
    %v1563 = vadd.f32 %v1229, %v1562
    %v1564 = vpop.f32.mrf.mxu0
    %v1565 = vadd.f32 %v1229, %v1564
    %1566 = vmatmul.bf16.gmra.mxu0 %v1135
    %v1567 = vpop.f32.mrf.mxu0
    %v1568 = vadd.f32 %v1229, %v1567
    %v1569 = vpop.f32.mrf.mxu0
    %v1570 = vadd.f32 %v1229, %v1569
    %1571 = vmatmul.bf16.gmra.mxu0 %v1139
    %v1572 = vpop.f32.mrf.mxu0
    %v1573 = vadd.f32 %v1229, %v1572
    %v1574 = vpop.f32.mrf.mxu0
    %v1575 = vadd.f32 %v1229, %v1574
    %1576 = vmatmul.bf16.gmra.mxu0 %v1143
    %v1577 = vpop.f32.mrf.mxu0
    %v1578 = vadd.f32 %v1229, %v1577
    %v1579 = vpop.f32.mrf.mxu0
    %v1580 = vadd.f32 %v1229, %v1579
    %1581 = vmatmul.bf16.gmra.mxu0 %v1147
    %v1582 = vpop.f32.mrf.mxu0
    %v1583 = vadd.f32 %v1229, %v1582
    %v1584 = vpop.f32.mrf.mxu0
    %v1585 = vadd.f32 %v1229, %v1584
    %1586 = vmatmul.bf16.gmra.mxu0 %v1151
    %v1587 = vpop.f32.mrf.mxu0
    %v1588 = vadd.f32 %v1229, %v1587
    %v1589 = vpop.f32.mrf.mxu0
    %v1590 = vadd.f32 %v1229, %v1589
    %1591 = vmatmul.bf16.gmra.mxu0 %v1155
    %v1592 = vpop.f32.mrf.mxu0
    %v1593 = vadd.f32 %v1229, %v1592
    %v1594 = vpop.f32.mrf.mxu0
    %v1595 = vadd.f32 %v1229, %v1594
    %1596 = vmatmul.bf16.gmra.mxu0 %v1159
    %v1597 = vpop.f32.mrf.mxu0
    %v1598 = vadd.f32 %v1229, %v1597
    %v1599 = vpop.f32.mrf.mxu0
    %v1600 = vadd.f32 %v1229, %v1599
    %1601 = vdwg.mxu0
    %1602 = vmatpush.bf16.msra.mxu0 %v1455
    %1603 = vmatpush.bf16.msra.mxu0 %v1453
    %1604 = vmatpush.bf16.msra.mxu0 %v1451
    %1605 = vmatpush.bf16.msra.mxu0 %v1449
    %1606 = vmatpush.bf16.msra.mxu0 %v1447
    %1607 = vmatpush.bf16.msra.mxu0 %v1445
    %1608 = vmatpush.bf16.msra.mxu0 %v1443
    %1609 = vmatpush.bf16.msra.mxu0 %v1441
    %1610 = vmatmul.bf16.gmra.mxu0 %v1132
    %v1611 = vpop.f32.mrf.mxu0
    %v1612 = vadd.f32 %v1563, %v1611
    %v1613 = vpop.f32.mrf.mxu0
    %v1614 = vadd.f32 %v1565, %v1613
    %1615 = vmatmul.bf16.gmra.mxu0 %v1136
    %v1616 = vpop.f32.mrf.mxu0
    %v1617 = vadd.f32 %v1568, %v1616
    %v1618 = vpop.f32.mrf.mxu0
    %v1619 = vadd.f32 %v1570, %v1618
    %1620 = vmatmul.bf16.gmra.mxu0 %v1140
    %v1621 = vpop.f32.mrf.mxu0
    %v1622 = vadd.f32 %v1573, %v1621
    %v1623 = vpop.f32.mrf.mxu0
    %v1624 = vadd.f32 %v1575, %v1623
    %1625 = vmatmul.bf16.gmra.mxu0 %v1144
    %v1626 = vpop.f32.mrf.mxu0
    %v1627 = vadd.f32 %v1578, %v1626
    %v1628 = vpop.f32.mrf.mxu0
    %v1629 = vadd.f32 %v1580, %v1628
    %1630 = vmatmul.bf16.gmra.mxu0 %v1148
    %v1631 = vpop.f32.mrf.mxu0
    %v1632 = vadd.f32 %v1583, %v1631
    %v1633 = vpop.f32.mrf.mxu0
    %v1634 = vadd.f32 %v1585, %v1633
    %1635 = vmatmul.bf16.gmra.mxu0 %v1152
    %v1636 = vpop.f32.mrf.mxu0
    %v1637 = vadd.f32 %v1588, %v1636
    %v1638 = vpop.f32.mrf.mxu0
    %v1639 = vadd.f32 %v1590, %v1638
    %1640 = vmatmul.bf16.gmra.mxu0 %v1156
    %v1641 = vpop.f32.mrf.mxu0
    %v1642 = vadd.f32 %v1593, %v1641
    %v1643 = vpop.f32.mrf.mxu0
    %v1644 = vadd.f32 %v1595, %v1643
    %1645 = vmatmul.bf16.gmra.mxu0 %v1160
    %v1646 = vpop.f32.mrf.mxu0
    %v1647 = vadd.f32 %v1598, %v1646
    %v1648 = vpop.f32.mrf.mxu0
    %v1649 = vadd.f32 %v1600, %v1648
    %1650 = vdwg.mxu0
    %1651 = vmatpush.bf16.msra.mxu0 %v1471
    %1652 = vmatpush.bf16.msra.mxu0 %v1469
    %1653 = vmatpush.bf16.msra.mxu0 %v1467
    %1654 = vmatpush.bf16.msra.mxu0 %v1465
    %1655 = vmatpush.bf16.msra.mxu0 %v1463
    %1656 = vmatpush.bf16.msra.mxu0 %v1461
    %1657 = vmatpush.bf16.msra.mxu0 %v1459
    %1658 = vmatpush.bf16.msra.mxu0 %v1457
    %1659 = vmatmul.bf16.gmra.mxu0 %v1133
    %v1660 = vpop.f32.mrf.mxu0
    %v1661 = vadd.f32 %v1612, %v1660
    %v1662 = vpop.f32.mrf.mxu0
    %v1663 = vadd.f32 %v1614, %v1662
    %1664 = vmatmul.bf16.gmra.mxu0 %v1137
    %v1665 = vpop.f32.mrf.mxu0
    %v1666 = vadd.f32 %v1617, %v1665
    %v1667 = vpop.f32.mrf.mxu0
    %v1668 = vadd.f32 %v1619, %v1667
    %1669 = vmatmul.bf16.gmra.mxu0 %v1141
    %v1670 = vpop.f32.mrf.mxu0
    %v1671 = vadd.f32 %v1622, %v1670
    %v1672 = vpop.f32.mrf.mxu0
    %v1673 = vadd.f32 %v1624, %v1672
    %1674 = vmatmul.bf16.gmra.mxu0 %v1145
    %v1675 = vpop.f32.mrf.mxu0
    %v1676 = vadd.f32 %v1627, %v1675
    %v1677 = vpop.f32.mrf.mxu0
    %v1678 = vadd.f32 %v1629, %v1677
    %1679 = vmatmul.bf16.gmra.mxu0 %v1149
    %v1680 = vpop.f32.mrf.mxu0
    %v1681 = vadd.f32 %v1632, %v1680
    %v1682 = vpop.f32.mrf.mxu0
    %v1683 = vadd.f32 %v1634, %v1682
    %1684 = vmatmul.bf16.gmra.mxu0 %v1153
    %v1685 = vpop.f32.mrf.mxu0
    %v1686 = vadd.f32 %v1637, %v1685
    %v1687 = vpop.f32.mrf.mxu0
    %v1688 = vadd.f32 %v1639, %v1687
    %1689 = vmatmul.bf16.gmra.mxu0 %v1157
    %v1690 = vpop.f32.mrf.mxu0
    %v1691 = vadd.f32 %v1642, %v1690
    %v1692 = vpop.f32.mrf.mxu0
    %v1693 = vadd.f32 %v1644, %v1692
    %1694 = vmatmul.bf16.gmra.mxu0 %v1161
    %v1695 = vpop.f32.mrf.mxu0
    %v1696 = vadd.f32 %v1647, %v1695
    %v1697 = vpop.f32.mrf.mxu0
    %v1698 = vadd.f32 %v1649, %v1697
    %1699 = vdwg.mxu0
    %1700 = vmatpush.bf16.msra.mxu0 %v1487
    %1701 = vmatpush.bf16.msra.mxu0 %v1485
    %1702 = vmatpush.bf16.msra.mxu0 %v1483
    %1703 = vmatpush.bf16.msra.mxu0 %v1481
    %1704 = vmatpush.bf16.msra.mxu0 %v1479
    %1705 = vmatpush.bf16.msra.mxu0 %v1477
    %1706 = vmatpush.bf16.msra.mxu0 %v1475
    %1707 = vmatpush.bf16.msra.mxu0 %v1473
    %1708 = vmatmul.bf16.gmra.mxu0 %v1134
    %v1709 = vpop.f32.mrf.mxu0
    %v1710 = vadd.f32 %v1661, %v1709
    %v1711 = vpop.f32.mrf.mxu0
    %v1712 = vadd.f32 %v1663, %v1711
    %1713 = vmatmul.bf16.gmra.mxu0 %v1138
    %v1714 = vpop.f32.mrf.mxu0
    %v1715 = vadd.f32 %v1666, %v1714
    %v1716 = vpop.f32.mrf.mxu0
    %v1717 = vadd.f32 %v1668, %v1716
    %1718 = vmatmul.bf16.gmra.mxu0 %v1142
    %v1719 = vpop.f32.mrf.mxu0
    %v1720 = vadd.f32 %v1671, %v1719
    %v1721 = vpop.f32.mrf.mxu0
    %v1722 = vadd.f32 %v1673, %v1721
    %1723 = vmatmul.bf16.gmra.mxu0 %v1146
    %v1724 = vpop.f32.mrf.mxu0
    %v1725 = vadd.f32 %v1676, %v1724
    %v1726 = vpop.f32.mrf.mxu0
    %v1727 = vadd.f32 %v1678, %v1726
    %1728 = vmatmul.bf16.gmra.mxu0 %v1150
    %v1729 = vpop.f32.mrf.mxu0
    %v1730 = vadd.f32 %v1681, %v1729
    %v1731 = vpop.f32.mrf.mxu0
    %v1732 = vadd.f32 %v1683, %v1731
    %1733 = vmatmul.bf16.gmra.mxu0 %v1154
    %v1734 = vpop.f32.mrf.mxu0
    %v1735 = vadd.f32 %v1686, %v1734
    %v1736 = vpop.f32.mrf.mxu0
    %v1737 = vadd.f32 %v1688, %v1736
    %1738 = vmatmul.bf16.gmra.mxu0 %v1158
    %v1739 = vpop.f32.mrf.mxu0
    %v1740 = vadd.f32 %v1691, %v1739
    %v1741 = vpop.f32.mrf.mxu0
    %v1742 = vadd.f32 %v1693, %v1741
    %1743 = vmatmul.bf16.gmra.mxu0 %v1162
    %v1744 = vpop.f32.mrf.mxu0
    %v1745 = vadd.f32 %v1696, %v1744
    %v1746 = vpop.f32.mrf.mxu0
    %v1747 = vadd.f32 %v1698, %v1746
    %1748 = vdwg.mxu0
    %1749 = vmatpush.bf16.msra.mxu0 %v1440
    %1750 = vmatpush.bf16.msra.mxu0 %v1438
    %1751 = vmatpush.bf16.msra.mxu0 %v1436
    %1752 = vmatpush.bf16.msra.mxu0 %v1434
    %1753 = vmatpush.bf16.msra.mxu0 %v1432
    %1754 = vmatpush.bf16.msra.mxu0 %v1430
    %1755 = vmatpush.bf16.msra.mxu0 %v1428
    %1756 = vmatpush.bf16.msra.mxu0 %v1426
    %1757 = vmatmul.bf16.gmra.mxu0 %v1131
    %v1758 = vpop.f32.mrf.mxu0
    %v1759 = vadd.f32 %v1230, %v1758
    %v1760 = vpop.f32.mrf.mxu0
    %v1761 = vadd.f32 %v1230, %v1760
    %1762 = vmatmul.bf16.gmra.mxu0 %v1135
    %v1763 = vpop.f32.mrf.mxu0
    %v1764 = vadd.f32 %v1230, %v1763
    %v1765 = vpop.f32.mrf.mxu0
    %v1766 = vadd.f32 %v1230, %v1765
    %1767 = vmatmul.bf16.gmra.mxu0 %v1139
    %v1768 = vpop.f32.mrf.mxu0
    %v1769 = vadd.f32 %v1230, %v1768
    %v1770 = vpop.f32.mrf.mxu0
    %v1771 = vadd.f32 %v1230, %v1770
    %1772 = vmatmul.bf16.gmra.mxu0 %v1143
    %v1773 = vpop.f32.mrf.mxu0
    %v1774 = vadd.f32 %v1230, %v1773
    %v1775 = vpop.f32.mrf.mxu0
    %v1776 = vadd.f32 %v1230, %v1775
    %1777 = vmatmul.bf16.gmra.mxu0 %v1147
    %v1778 = vpop.f32.mrf.mxu0
    %v1779 = vadd.f32 %v1230, %v1778
    %v1780 = vpop.f32.mrf.mxu0
    %v1781 = vadd.f32 %v1230, %v1780
    %1782 = vmatmul.bf16.gmra.mxu0 %v1151
    %v1783 = vpop.f32.mrf.mxu0
    %v1784 = vadd.f32 %v1230, %v1783
    %v1785 = vpop.f32.mrf.mxu0
    %v1786 = vadd.f32 %v1230, %v1785
    %1787 = vmatmul.bf16.gmra.mxu0 %v1155
    %v1788 = vpop.f32.mrf.mxu0
    %v1789 = vadd.f32 %v1230, %v1788
    %v1790 = vpop.f32.mrf.mxu0
    %v1791 = vadd.f32 %v1230, %v1790
    %1792 = vmatmul.bf16.gmra.mxu0 %v1159
    %v1793 = vpop.f32.mrf.mxu0
    %v1794 = vadd.f32 %v1230, %v1793
    %v1795 = vpop.f32.mrf.mxu0
    %v1796 = vadd.f32 %v1230, %v1795
    %1797 = vdwg.mxu0
    %1798 = vmatpush.bf16.msra.mxu0 %v1456
    %1799 = vmatpush.bf16.msra.mxu0 %v1454
    %1800 = vmatpush.bf16.msra.mxu0 %v1452
    %1801 = vmatpush.bf16.msra.mxu0 %v1450
    %1802 = vmatpush.bf16.msra.mxu0 %v1448
    %1803 = vmatpush.bf16.msra.mxu0 %v1446
    %1804 = vmatpush.bf16.msra.mxu0 %v1444
    %1805 = vmatpush.bf16.msra.mxu0 %v1442
    %1806 = vmatmul.bf16.gmra.mxu0 %v1132
    %v1807 = vpop.f32.mrf.mxu0
    %v1808 = vadd.f32 %v1759, %v1807
    %v1809 = vpop.f32.mrf.mxu0
    %v1810 = vadd.f32 %v1761, %v1809
    %1811 = vmatmul.bf16.gmra.mxu0 %v1136
    %v1812 = vpop.f32.mrf.mxu0
    %v1813 = vadd.f32 %v1764, %v1812
    %v1814 = vpop.f32.mrf.mxu0
    %v1815 = vadd.f32 %v1766, %v1814
    %1816 = vmatmul.bf16.gmra.mxu0 %v1140
    %v1817 = vpop.f32.mrf.mxu0
    %v1818 = vadd.f32 %v1769, %v1817
    %v1819 = vpop.f32.mrf.mxu0
    %v1820 = vadd.f32 %v1771, %v1819
    %1821 = vmatmul.bf16.gmra.mxu0 %v1144
    %v1822 = vpop.f32.mrf.mxu0
    %v1823 = vadd.f32 %v1774, %v1822
    %v1824 = vpop.f32.mrf.mxu0
    %v1825 = vadd.f32 %v1776, %v1824
    %1826 = vmatmul.bf16.gmra.mxu0 %v1148
    %v1827 = vpop.f32.mrf.mxu0
    %v1828 = vadd.f32 %v1779, %v1827
    %v1829 = vpop.f32.mrf.mxu0
    %v1830 = vadd.f32 %v1781, %v1829
    %1831 = vmatmul.bf16.gmra.mxu0 %v1152
    %v1832 = vpop.f32.mrf.mxu0
    %v1833 = vadd.f32 %v1784, %v1832
    %v1834 = vpop.f32.mrf.mxu0
    %v1835 = vadd.f32 %v1786, %v1834
    %1836 = vmatmul.bf16.gmra.mxu0 %v1156
    %v1837 = vpop.f32.mrf.mxu0
    %v1838 = vadd.f32 %v1789, %v1837
    %v1839 = vpop.f32.mrf.mxu0
    %v1840 = vadd.f32 %v1791, %v1839
    %1841 = vmatmul.bf16.gmra.mxu0 %v1160
    %v1842 = vpop.f32.mrf.mxu0
    %v1843 = vadd.f32 %v1794, %v1842
    %v1844 = vpop.f32.mrf.mxu0
    %v1845 = vadd.f32 %v1796, %v1844
    %1846 = vdwg.mxu0
    %1847 = vmatpush.bf16.msra.mxu0 %v1472
    %1848 = vmatpush.bf16.msra.mxu0 %v1470
    %1849 = vmatpush.bf16.msra.mxu0 %v1468
    %1850 = vmatpush.bf16.msra.mxu0 %v1466
    %1851 = vmatpush.bf16.msra.mxu0 %v1464
    %1852 = vmatpush.bf16.msra.mxu0 %v1462
    %1853 = vmatpush.bf16.msra.mxu0 %v1460
    %1854 = vmatpush.bf16.msra.mxu0 %v1458
    %1855 = vmatmul.bf16.gmra.mxu0 %v1133
    %v1856 = vpop.f32.mrf.mxu0
    %v1857 = vadd.f32 %v1808, %v1856
    %v1858 = vpop.f32.mrf.mxu0
    %v1859 = vadd.f32 %v1810, %v1858
    %1860 = vmatmul.bf16.gmra.mxu0 %v1137
    %v1861 = vpop.f32.mrf.mxu0
    %v1862 = vadd.f32 %v1813, %v1861
    %v1863 = vpop.f32.mrf.mxu0
    %v1864 = vadd.f32 %v1815, %v1863
    %1865 = vmatmul.bf16.gmra.mxu0 %v1141
    %v1866 = vpop.f32.mrf.mxu0
    %v1867 = vadd.f32 %v1818, %v1866
    %v1868 = vpop.f32.mrf.mxu0
    %v1869 = vadd.f32 %v1820, %v1868
    %1870 = vmatmul.bf16.gmra.mxu0 %v1145
    %v1871 = vpop.f32.mrf.mxu0
    %v1872 = vadd.f32 %v1823, %v1871
    %v1873 = vpop.f32.mrf.mxu0
    %v1874 = vadd.f32 %v1825, %v1873
    %1875 = vmatmul.bf16.gmra.mxu0 %v1149
    %v1876 = vpop.f32.mrf.mxu0
    %v1877 = vadd.f32 %v1828, %v1876
    %v1878 = vpop.f32.mrf.mxu0
    %v1879 = vadd.f32 %v1830, %v1878
    %1880 = vmatmul.bf16.gmra.mxu0 %v1153
    %v1881 = vpop.f32.mrf.mxu0
    %v1882 = vadd.f32 %v1833, %v1881
    %v1883 = vpop.f32.mrf.mxu0
    %v1884 = vadd.f32 %v1835, %v1883
    %1885 = vmatmul.bf16.gmra.mxu0 %v1157
    %v1886 = vpop.f32.mrf.mxu0
    %v1887 = vadd.f32 %v1838, %v1886
    %v1888 = vpop.f32.mrf.mxu0
    %v1889 = vadd.f32 %v1840, %v1888
    %1890 = vmatmul.bf16.gmra.mxu0 %v1161
    %v1891 = vpop.f32.mrf.mxu0
    %v1892 = vadd.f32 %v1843, %v1891
    %v1893 = vpop.f32.mrf.mxu0
    %v1894 = vadd.f32 %v1845, %v1893
    %1895 = vdwg.mxu0
    %1896 = vmatpush.bf16.msra.mxu0 %v1488
    %1897 = vmatpush.bf16.msra.mxu0 %v1486
    %1898 = vmatpush.bf16.msra.mxu0 %v1484
    %1899 = vmatpush.bf16.msra.mxu0 %v1482
    %1900 = vmatpush.bf16.msra.mxu0 %v1480
    %1901 = vmatpush.bf16.msra.mxu0 %v1478
    %1902 = vmatpush.bf16.msra.mxu0 %v1476
    %1903 = vmatpush.bf16.msra.mxu0 %v1474
    %1904 = vmatmul.bf16.gmra.mxu0 %v1134
    %v1905 = vpop.f32.mrf.mxu0
    %v1906 = vadd.f32 %v1857, %v1905
    %v1907 = vpop.f32.mrf.mxu0
    %v1908 = vadd.f32 %v1859, %v1907
    %1909 = vmatmul.bf16.gmra.mxu0 %v1138
    %v1910 = vpop.f32.mrf.mxu0
    %v1911 = vadd.f32 %v1862, %v1910
    %v1912 = vpop.f32.mrf.mxu0
    %v1913 = vadd.f32 %v1864, %v1912
    %1914 = vmatmul.bf16.gmra.mxu0 %v1142
    %v1915 = vpop.f32.mrf.mxu0
    %v1916 = vadd.f32 %v1867, %v1915
    %v1917 = vpop.f32.mrf.mxu0
    %v1918 = vadd.f32 %v1869, %v1917
    %1919 = vmatmul.bf16.gmra.mxu0 %v1146
    %v1920 = vpop.f32.mrf.mxu0
    %v1921 = vadd.f32 %v1872, %v1920
    %v1922 = vpop.f32.mrf.mxu0
    %v1923 = vadd.f32 %v1874, %v1922
    %1924 = vmatmul.bf16.gmra.mxu0 %v1150
    %v1925 = vpop.f32.mrf.mxu0
    %v1926 = vadd.f32 %v1877, %v1925
    %v1927 = vpop.f32.mrf.mxu0
    %v1928 = vadd.f32 %v1879, %v1927
    %1929 = vmatmul.bf16.gmra.mxu0 %v1154
    %v1930 = vpop.f32.mrf.mxu0
    %v1931 = vadd.f32 %v1882, %v1930
    %v1932 = vpop.f32.mrf.mxu0
    %v1933 = vadd.f32 %v1884, %v1932
    %1934 = vmatmul.bf16.gmra.mxu0 %v1158
    %v1935 = vpop.f32.mrf.mxu0
    %v1936 = vadd.f32 %v1887, %v1935
    %v1937 = vpop.f32.mrf.mxu0
    %v1938 = vadd.f32 %v1889, %v1937
    %1939 = vmatmul.bf16.gmra.mxu0 %v1162
    %v1940 = vpop.f32.mrf.mxu0
    %v1941 = vadd.f32 %v1892, %v1940
    %v1942 = vpop.f32.mrf.mxu0
    %v1943 = vadd.f32 %v1894, %v1942
    %1944 = vdwg.mxu0
    %v1945 = vmul.f32 %v1710, 0.5
    %v1946 = vmul.f32 %v1906, 0.5
    %v1947 = vmul.f32 %v1712, 0.5
    %v1948 = vmul.f32 %v1908, 0.5
    %v1949 = vmul.f32 %v1715, 0.5
    %v1950 = vmul.f32 %v1911, 0.5
    %v1951 = vmul.f32 %v1717, 0.5
    %v1952 = vmul.f32 %v1913, 0.5
    %v1953 = vmul.f32 %v1720, 0.5
    %v1954 = vmul.f32 %v1916, 0.5
    %v1955 = vmul.f32 %v1722, 0.5
    %v1956 = vmul.f32 %v1918, 0.5
    %v1957 = vmul.f32 %v1725, 0.5
    %v1958 = vmul.f32 %v1921, 0.5
    %v1959 = vmul.f32 %v1727, 0.5
    %v1960 = vmul.f32 %v1923, 0.5
    %v1961 = vmul.f32 %v1730, 0.5
    %v1962 = vmul.f32 %v1926, 0.5
    %v1963 = vmul.f32 %v1732, 0.5
    %v1964 = vmul.f32 %v1928, 0.5
    %v1965 = vmul.f32 %v1735, 0.5
    %v1966 = vmul.f32 %v1931, 0.5
    %v1967 = vmul.f32 %v1737, 0.5
    %v1968 = vmul.f32 %v1933, 0.5
    %v1969 = vmul.f32 %v1740, 0.5
    %v1970 = vmul.f32 %v1936, 0.5
    %v1971 = vmul.f32 %v1742, 0.5
    %v1972 = vmul.f32 %v1938, 0.5
    %v1973 = vmul.f32 %v1745, 0.5
    %v1974 = vmul.f32 %v1941, 0.5
    %v1975 = vmul.f32 %v1747, 0.5
    %v1976 = vmul.f32 %v1943, 0.5
    %v1977 = vmul.f32 %v1710, 0.70710677
    %v1978 = vmul.f32 %v1906, 0.70710677
    %v1979 = vmul.f32 %v1712, 0.70710677
    %v1980 = vmul.f32 %v1908, 0.70710677
    %v1981 = vmul.f32 %v1715, 0.70710677
    %v1982 = vmul.f32 %v1911, 0.70710677
    %v1983 = vmul.f32 %v1717, 0.70710677
    %v1984 = vmul.f32 %v1913, 0.70710677
    %v1985 = vmul.f32 %v1720, 0.70710677
    %v1986 = vmul.f32 %v1916, 0.70710677
    %v1987 = vmul.f32 %v1722, 0.70710677
    %v1988 = vmul.f32 %v1918, 0.70710677
    %v1989 = vmul.f32 %v1725, 0.70710677
    %v1990 = vmul.f32 %v1921, 0.70710677
    %v1991 = vmul.f32 %v1727, 0.70710677
    %v1992 = vmul.f32 %v1923, 0.70710677
    %v1993 = vmul.f32 %v1730, 0.70710677
    %v1994 = vmul.f32 %v1926, 0.70710677
    %v1995 = vmul.f32 %v1732, 0.70710677
    %v1996 = vmul.f32 %v1928, 0.70710677
    %v1997 = vmul.f32 %v1735, 0.70710677
    %v1998 = vmul.f32 %v1931, 0.70710677
    %v1999 = vmul.f32 %v1737, 0.70710677
    %v2000 = vmul.f32 %v1933, 0.70710677
    %v2001 = vmul.f32 %v1740, 0.70710677
    %v2002 = vmul.f32 %v1936, 0.70710677
    %v2003 = vmul.f32 %v1742, 0.70710677
    %v2004 = vmul.f32 %v1938, 0.70710677
    %v2005 = vmul.f32 %v1745, 0.70710677
    %v2006 = vmul.f32 %v1941, 0.70710677
    %v2007 = vmul.f32 %v1747, 0.70710677
    %v2008 = vmul.f32 %v1943, 0.70710677
    %v2009 = vmul.f32 %v1977, %v1977
    %v2010 = vmin.f32 16.0, %v2009
    %v2011 = vmul.f32 %v2010, 2.1237322e-06
    %v2012 = vadd.f32 %v2011, 0.00028619796
    %v2013 = vmul.f32 %v2010, %v2012
    %v2014 = vadd.f32 %v2013, 0.0036580483
    %v2015 = vmul.f32 %v2010, %v2014
    %v2016 = vadd.f32 %v2015, 0.05243302
    %v2017 = vmul.f32 %v2010, %v2016
    %v2018 = vadd.f32 %v2017, 0.18741608
    %v2019 = vmul.f32 %v2010, %v2018
    %v2020 = vadd.f32 %v2019, 1.1283791
    %v2021 = vmul.f32 %v1977, %v2020
    %v2022 = vmul.f32 %v2010, 3.8918573e-05
    %v2023 = vadd.f32 %v2022, 0.001143296
    %v2024 = vmul.f32 %v2010, %v2023
    %v2025 = vadd.f32 %v2024, 0.014752088
    %v2026 = vmul.f32 %v2010, %v2025
    %v2027 = vadd.f32 %v2026, 0.112945676
    %v2028 = vmul.f32 %v2010, %v2027
    %v2029 = vadd.f32 %v2028, 0.4994258
    %v2030 = vmul.f32 %v2010, %v2029
    %v2031 = vadd.f32 %v2030, 1.0
    %v2032 = vrcp.pop %v2031
    %v2033 = vmul.f32 %v2031, %v2032
    %v2034 = vsub.f32 1.0, %v2033
    %v2035 = vmul.f32 %v2032, %v2034
    %v2036 = vadd.f32 %v2032, %v2035
    %vm2037 = vweird.f32 %v2031
    %vm2038 = vweird.f32 %v2032
    %vm2039 = vmor %vm2037, %vm2038
    %v2040 = vsel %vm2039, %v2032, %v2036
    %v2041 = vand.u32 2147483647, %v2031
    %vm2042 = vcmp.eq.f32.partialorder %v2041, 8.507059e+37
    %v2043 = vand.u32 %v2031, 2147483648
    %v2044 = vor.u32 1.1754944e-38, %v2043
    %v2045 = vsel %vm2042, %v2044, %v2040
    %v2046 = vmul.f32 %v2021, %v2045
    %v2047 = vmin.f32 %v2046, 1.0
    %v2048 = vmax.f32 %v2047, -1.0
    %v2049 = vmul.f32 %v1978, %v1978
    %v2050 = vmin.f32 16.0, %v2049
    %v2051 = vmul.f32 %v2050, 2.1237322e-06
    %v2052 = vadd.f32 %v2051, 0.00028619796
    %v2053 = vmul.f32 %v2050, %v2052
    %v2054 = vadd.f32 %v2053, 0.0036580483
    %v2055 = vmul.f32 %v2050, %v2054
    %v2056 = vadd.f32 %v2055, 0.05243302
    %v2057 = vmul.f32 %v2050, %v2056
    %v2058 = vadd.f32 %v2057, 0.18741608
    %v2059 = vmul.f32 %v2050, %v2058
    %v2060 = vadd.f32 %v2059, 1.1283791
    %v2061 = vmul.f32 %v1978, %v2060
    %v2062 = vmul.f32 %v2050, 3.8918573e-05
    %v2063 = vadd.f32 %v2062, 0.001143296
    %v2064 = vmul.f32 %v2050, %v2063
    %v2065 = vadd.f32 %v2064, 0.014752088
    %v2066 = vmul.f32 %v2050, %v2065
    %v2067 = vadd.f32 %v2066, 0.112945676
    %v2068 = vmul.f32 %v2050, %v2067
    %v2069 = vadd.f32 %v2068, 0.4994258
    %v2070 = vmul.f32 %v2050, %v2069
    %v2071 = vadd.f32 %v2070, 1.0
    %v2072 = vrcp.pop %v2071
    %v2073 = vmul.f32 %v2071, %v2072
    %v2074 = vsub.f32 1.0, %v2073
    %v2075 = vmul.f32 %v2072, %v2074
    %v2076 = vadd.f32 %v2072, %v2075
    %vm2077 = vweird.f32 %v2071
    %vm2078 = vweird.f32 %v2072
    %vm2079 = vmor %vm2077, %vm2078
    %v2080 = vsel %vm2079, %v2072, %v2076
    %v2081 = vand.u32 2147483647, %v2071
    %vm2082 = vcmp.eq.f32.partialorder %v2081, 8.507059e+37
    %v2083 = vand.u32 %v2071, 2147483648
    %v2084 = vor.u32 1.1754944e-38, %v2083
    %v2085 = vsel %vm2082, %v2084, %v2080
    %v2086 = vmul.f32 %v2061, %v2085
    %v2087 = vmin.f32 %v2086, 1.0
    %v2088 = vmax.f32 %v2087, -1.0
    %v2089 = vmul.f32 %v1979, %v1979
    %v2090 = vmin.f32 16.0, %v2089
    %v2091 = vmul.f32 %v2090, 2.1237322e-06
    %v2092 = vadd.f32 %v2091, 0.00028619796
    %v2093 = vmul.f32 %v2090, %v2092
    %v2094 = vadd.f32 %v2093, 0.0036580483
    %v2095 = vmul.f32 %v2090, %v2094
    %v2096 = vadd.f32 %v2095, 0.05243302
    %v2097 = vmul.f32 %v2090, %v2096
    %v2098 = vadd.f32 %v2097, 0.18741608
    %v2099 = vmul.f32 %v2090, %v2098
    %v2100 = vadd.f32 %v2099, 1.1283791
    %v2101 = vmul.f32 %v1979, %v2100
    %v2102 = vmul.f32 %v2090, 3.8918573e-05
    %v2103 = vadd.f32 %v2102, 0.001143296
    %v2104 = vmul.f32 %v2090, %v2103
    %v2105 = vadd.f32 %v2104, 0.014752088
    %v2106 = vmul.f32 %v2090, %v2105
    %v2107 = vadd.f32 %v2106, 0.112945676
    %v2108 = vmul.f32 %v2090, %v2107
    %v2109 = vadd.f32 %v2108, 0.4994258
    %v2110 = vmul.f32 %v2090, %v2109
    %v2111 = vadd.f32 %v2110, 1.0
    %v2112 = vrcp.pop %v2111
    %v2113 = vmul.f32 %v2111, %v2112
    %v2114 = vsub.f32 1.0, %v2113
    %v2115 = vmul.f32 %v2112, %v2114
    %v2116 = vadd.f32 %v2112, %v2115
    %vm2117 = vweird.f32 %v2111
    %vm2118 = vweird.f32 %v2112
    %vm2119 = vmor %vm2117, %vm2118
    %v2120 = vsel %vm2119, %v2112, %v2116
    %v2121 = vand.u32 2147483647, %v2111
    %vm2122 = vcmp.eq.f32.partialorder %v2121, 8.507059e+37
    %v2123 = vand.u32 %v2111, 2147483648
    %v2124 = vor.u32 1.1754944e-38, %v2123
    %v2125 = vsel %vm2122, %v2124, %v2120
    %v2126 = vmul.f32 %v2101, %v2125
    %v2127 = vmin.f32 %v2126, 1.0
    %v2128 = vmax.f32 %v2127, -1.0
    %v2129 = vmul.f32 %v1980, %v1980
    %v2130 = vmin.f32 16.0, %v2129
    %v2131 = vmul.f32 %v2130, 2.1237322e-06
    %v2132 = vadd.f32 %v2131, 0.00028619796
    %v2133 = vmul.f32 %v2130, %v2132
    %v2134 = vadd.f32 %v2133, 0.0036580483
    %v2135 = vmul.f32 %v2130, %v2134
    %v2136 = vadd.f32 %v2135, 0.05243302
    %v2137 = vmul.f32 %v2130, %v2136
    %v2138 = vadd.f32 %v2137, 0.18741608
    %v2139 = vmul.f32 %v2130, %v2138
    %v2140 = vadd.f32 %v2139, 1.1283791
    %v2141 = vmul.f32 %v1980, %v2140
    %v2142 = vmul.f32 %v2130, 3.8918573e-05
    %v2143 = vadd.f32 %v2142, 0.001143296
    %v2144 = vmul.f32 %v2130, %v2143
    %v2145 = vadd.f32 %v2144, 0.014752088
    %v2146 = vmul.f32 %v2130, %v2145
    %v2147 = vadd.f32 %v2146, 0.112945676
    %v2148 = vmul.f32 %v2130, %v2147
    %v2149 = vadd.f32 %v2148, 0.4994258
    %v2150 = vmul.f32 %v2130, %v2149
    %v2151 = vadd.f32 %v2150, 1.0
    %v2152 = vrcp.pop %v2151
    %v2153 = vmul.f32 %v2151, %v2152
    %v2154 = vsub.f32 1.0, %v2153
    %v2155 = vmul.f32 %v2152, %v2154
    %v2156 = vadd.f32 %v2152, %v2155
    %vm2157 = vweird.f32 %v2151
    %vm2158 = vweird.f32 %v2152
    %vm2159 = vmor %vm2157, %vm2158
    %v2160 = vsel %vm2159, %v2152, %v2156
    %v2161 = vand.u32 2147483647, %v2151
    %vm2162 = vcmp.eq.f32.partialorder %v2161, 8.507059e+37
    %v2163 = vand.u32 %v2151, 2147483648
    %v2164 = vor.u32 1.1754944e-38, %v2163
    %v2165 = vsel %vm2162, %v2164, %v2160
    %v2166 = vmul.f32 %v2141, %v2165
    %v2167 = vmin.f32 %v2166, 1.0
    %v2168 = vmax.f32 %v2167, -1.0
    %v2169 = vmul.f32 %v1981, %v1981
    %v2170 = vmin.f32 16.0, %v2169
    %v2171 = vmul.f32 %v2170, 2.1237322e-06
    %v2172 = vadd.f32 %v2171, 0.00028619796
    %v2173 = vmul.f32 %v2170, %v2172
    %v2174 = vadd.f32 %v2173, 0.0036580483
    %v2175 = vmul.f32 %v2170, %v2174
    %v2176 = vadd.f32 %v2175, 0.05243302
    %v2177 = vmul.f32 %v2170, %v2176
    %v2178 = vadd.f32 %v2177, 0.18741608
    %v2179 = vmul.f32 %v2170, %v2178
    %v2180 = vadd.f32 %v2179, 1.1283791
    %v2181 = vmul.f32 %v1981, %v2180
    %v2182 = vmul.f32 %v2170, 3.8918573e-05
    %v2183 = vadd.f32 %v2182, 0.001143296
    %v2184 = vmul.f32 %v2170, %v2183
    %v2185 = vadd.f32 %v2184, 0.014752088
    %v2186 = vmul.f32 %v2170, %v2185
    %v2187 = vadd.f32 %v2186, 0.112945676
    %v2188 = vmul.f32 %v2170, %v2187
    %v2189 = vadd.f32 %v2188, 0.4994258
    %v2190 = vmul.f32 %v2170, %v2189
    %v2191 = vadd.f32 %v2190, 1.0
    %v2192 = vrcp.pop %v2191
    %v2193 = vmul.f32 %v2191, %v2192
    %v2194 = vsub.f32 1.0, %v2193
    %v2195 = vmul.f32 %v2192, %v2194
    %v2196 = vadd.f32 %v2192, %v2195
    %vm2197 = vweird.f32 %v2191
    %vm2198 = vweird.f32 %v2192
    %vm2199 = vmor %vm2197, %vm2198
    %v2200 = vsel %vm2199, %v2192, %v2196
    %v2201 = vand.u32 2147483647, %v2191
    %vm2202 = vcmp.eq.f32.partialorder %v2201, 8.507059e+37
    %v2203 = vand.u32 %v2191, 2147483648
    %v2204 = vor.u32 1.1754944e-38, %v2203
    %v2205 = vsel %vm2202, %v2204, %v2200
    %v2206 = vmul.f32 %v2181, %v2205
    %v2207 = vmin.f32 %v2206, 1.0
    %v2208 = vmax.f32 %v2207, -1.0
    %v2209 = vmul.f32 %v1982, %v1982
    %v2210 = vmin.f32 16.0, %v2209
    %v2211 = vmul.f32 %v2210, 2.1237322e-06
    %v2212 = vadd.f32 %v2211, 0.00028619796
    %v2213 = vmul.f32 %v2210, %v2212
    %v2214 = vadd.f32 %v2213, 0.0036580483
    %v2215 = vmul.f32 %v2210, %v2214
    %v2216 = vadd.f32 %v2215, 0.05243302
    %v2217 = vmul.f32 %v2210, %v2216
    %v2218 = vadd.f32 %v2217, 0.18741608
    %v2219 = vmul.f32 %v2210, %v2218
    %v2220 = vadd.f32 %v2219, 1.1283791
    %v2221 = vmul.f32 %v1982, %v2220
    %v2222 = vmul.f32 %v2210, 3.8918573e-05
    %v2223 = vadd.f32 %v2222, 0.001143296
    %v2224 = vmul.f32 %v2210, %v2223
    %v2225 = vadd.f32 %v2224, 0.014752088
    %v2226 = vmul.f32 %v2210, %v2225
    %v2227 = vadd.f32 %v2226, 0.112945676
    %v2228 = vmul.f32 %v2210, %v2227
    %v2229 = vadd.f32 %v2228, 0.4994258
    %v2230 = vmul.f32 %v2210, %v2229
    %v2231 = vadd.f32 %v2230, 1.0
    %v2232 = vrcp.pop %v2231
    %v2233 = vmul.f32 %v2231, %v2232
    %v2234 = vsub.f32 1.0, %v2233
    %v2235 = vmul.f32 %v2232, %v2234
    %v2236 = vadd.f32 %v2232, %v2235
    %vm2237 = vweird.f32 %v2231
    %vm2238 = vweird.f32 %v2232
    %vm2239 = vmor %vm2237, %vm2238
    %v2240 = vsel %vm2239, %v2232, %v2236
    %v2241 = vand.u32 2147483647, %v2231
    %vm2242 = vcmp.eq.f32.partialorder %v2241, 8.507059e+37
    %v2243 = vand.u32 %v2231, 2147483648
    %v2244 = vor.u32 1.1754944e-38, %v2243
    %v2245 = vsel %vm2242, %v2244, %v2240
    %v2246 = vmul.f32 %v2221, %v2245
    %v2247 = vmin.f32 %v2246, 1.0
    %v2248 = vmax.f32 %v2247, -1.0
    %v2249 = vmul.f32 %v1983, %v1983
    %v2250 = vmin.f32 16.0, %v2249
    %v2251 = vmul.f32 %v2250, 2.1237322e-06
    %v2252 = vadd.f32 %v2251, 0.00028619796
    %v2253 = vmul.f32 %v2250, %v2252
    %v2254 = vadd.f32 %v2253, 0.0036580483
    %v2255 = vmul.f32 %v2250, %v2254
    %v2256 = vadd.f32 %v2255, 0.05243302
    %v2257 = vmul.f32 %v2250, %v2256
    %v2258 = vadd.f32 %v2257, 0.18741608
    %v2259 = vmul.f32 %v2250, %v2258
    %v2260 = vadd.f32 %v2259, 1.1283791
    %v2261 = vmul.f32 %v1983, %v2260
    %v2262 = vmul.f32 %v2250, 3.8918573e-05
    %v2263 = vadd.f32 %v2262, 0.001143296
    %v2264 = vmul.f32 %v2250, %v2263
    %v2265 = vadd.f32 %v2264, 0.014752088
    %v2266 = vmul.f32 %v2250, %v2265
    %v2267 = vadd.f32 %v2266, 0.112945676
    %v2268 = vmul.f32 %v2250, %v2267
    %v2269 = vadd.f32 %v2268, 0.4994258
    %v2270 = vmul.f32 %v2250, %v2269
    %v2271 = vadd.f32 %v2270, 1.0
    %v2272 = vrcp.pop %v2271
    %v2273 = vmul.f32 %v2271, %v2272
    %v2274 = vsub.f32 1.0, %v2273
    %v2275 = vmul.f32 %v2272, %v2274
    %v2276 = vadd.f32 %v2272, %v2275
    %vm2277 = vweird.f32 %v2271
    %vm2278 = vweird.f32 %v2272
    %vm2279 = vmor %vm2277, %vm2278
    %v2280 = vsel %vm2279, %v2272, %v2276
    %v2281 = vand.u32 2147483647, %v2271
    %vm2282 = vcmp.eq.f32.partialorder %v2281, 8.507059e+37
    %v2283 = vand.u32 %v2271, 2147483648
    %v2284 = vor.u32 1.1754944e-38, %v2283
    %v2285 = vsel %vm2282, %v2284, %v2280
    %v2286 = vmul.f32 %v2261, %v2285
    %v2287 = vmin.f32 %v2286, 1.0
    %v2288 = vmax.f32 %v2287, -1.0
    %v2289 = vmul.f32 %v1984, %v1984
    %v2290 = vmin.f32 16.0, %v2289
    %v2291 = vmul.f32 %v2290, 2.1237322e-06
    %v2292 = vadd.f32 %v2291, 0.00028619796
    %v2293 = vmul.f32 %v2290, %v2292
    %v2294 = vadd.f32 %v2293, 0.0036580483
    %v2295 = vmul.f32 %v2290, %v2294
    %v2296 = vadd.f32 %v2295, 0.05243302
    %v2297 = vmul.f32 %v2290, %v2296
    %v2298 = vadd.f32 %v2297, 0.18741608
    %v2299 = vmul.f32 %v2290, %v2298
    %v2300 = vadd.f32 %v2299, 1.1283791
    %v2301 = vmul.f32 %v1984, %v2300
    %v2302 = vmul.f32 %v2290, 3.8918573e-05
    %v2303 = vadd.f32 %v2302, 0.001143296
    %v2304 = vmul.f32 %v2290, %v2303
    %v2305 = vadd.f32 %v2304, 0.014752088
    %v2306 = vmul.f32 %v2290, %v2305
    %v2307 = vadd.f32 %v2306, 0.112945676
    %v2308 = vmul.f32 %v2290, %v2307
    %v2309 = vadd.f32 %v2308, 0.4994258
    %v2310 = vmul.f32 %v2290, %v2309
    %v2311 = vadd.f32 %v2310, 1.0
    %v2312 = vrcp.pop %v2311
    %v2313 = vmul.f32 %v2311, %v2312
    %v2314 = vsub.f32 1.0, %v2313
    %v2315 = vmul.f32 %v2312, %v2314
    %v2316 = vadd.f32 %v2312, %v2315
    %vm2317 = vweird.f32 %v2311
    %vm2318 = vweird.f32 %v2312
    %vm2319 = vmor %vm2317, %vm2318
    %v2320 = vsel %vm2319, %v2312, %v2316
    %v2321 = vand.u32 2147483647, %v2311
    %vm2322 = vcmp.eq.f32.partialorder %v2321, 8.507059e+37
    %v2323 = vand.u32 %v2311, 2147483648
    %v2324 = vor.u32 1.1754944e-38, %v2323
    %v2325 = vsel %vm2322, %v2324, %v2320
    %v2326 = vmul.f32 %v2301, %v2325
    %v2327 = vmin.f32 %v2326, 1.0
    %v2328 = vmax.f32 %v2327, -1.0
    %v2329 = vmul.f32 %v1985, %v1985
    %v2330 = vmin.f32 16.0, %v2329
    %v2331 = vmul.f32 %v2330, 2.1237322e-06
    %v2332 = vadd.f32 %v2331, 0.00028619796
    %v2333 = vmul.f32 %v2330, %v2332
    %v2334 = vadd.f32 %v2333, 0.0036580483
    %v2335 = vmul.f32 %v2330, %v2334
    %v2336 = vadd.f32 %v2335, 0.05243302
    %v2337 = vmul.f32 %v2330, %v2336
    %v2338 = vadd.f32 %v2337, 0.18741608
    %v2339 = vmul.f32 %v2330, %v2338
    %v2340 = vadd.f32 %v2339, 1.1283791
    %v2341 = vmul.f32 %v1985, %v2340
    %v2342 = vmul.f32 %v2330, 3.8918573e-05
    %v2343 = vadd.f32 %v2342, 0.001143296
    %v2344 = vmul.f32 %v2330, %v2343
    %v2345 = vadd.f32 %v2344, 0.014752088
    %v2346 = vmul.f32 %v2330, %v2345
    %v2347 = vadd.f32 %v2346, 0.112945676
    %v2348 = vmul.f32 %v2330, %v2347
    %v2349 = vadd.f32 %v2348, 0.4994258
    %v2350 = vmul.f32 %v2330, %v2349
    %v2351 = vadd.f32 %v2350, 1.0
    %v2352 = vrcp.pop %v2351
    %v2353 = vmul.f32 %v2351, %v2352
    %v2354 = vsub.f32 1.0, %v2353
    %v2355 = vmul.f32 %v2352, %v2354
    %v2356 = vadd.f32 %v2352, %v2355
    %vm2357 = vweird.f32 %v2351
    %vm2358 = vweird.f32 %v2352
    %vm2359 = vmor %vm2357, %vm2358
    %v2360 = vsel %vm2359, %v2352, %v2356
    %v2361 = vand.u32 2147483647, %v2351
    %vm2362 = vcmp.eq.f32.partialorder %v2361, 8.507059e+37
    %v2363 = vand.u32 %v2351, 2147483648
    %v2364 = vor.u32 1.1754944e-38, %v2363
    %v2365 = vsel %vm2362, %v2364, %v2360
    %v2366 = vmul.f32 %v2341, %v2365
    %v2367 = vmin.f32 %v2366, 1.0
    %v2368 = vmax.f32 %v2367, -1.0
    %v2369 = vmul.f32 %v1986, %v1986
    %v2370 = vmin.f32 16.0, %v2369
    %v2371 = vmul.f32 %v2370, 2.1237322e-06
    %v2372 = vadd.f32 %v2371, 0.00028619796
    %v2373 = vmul.f32 %v2370, %v2372
    %v2374 = vadd.f32 %v2373, 0.0036580483
    %v2375 = vmul.f32 %v2370, %v2374
    %v2376 = vadd.f32 %v2375, 0.05243302
    %v2377 = vmul.f32 %v2370, %v2376
    %v2378 = vadd.f32 %v2377, 0.18741608
    %v2379 = vmul.f32 %v2370, %v2378
    %v2380 = vadd.f32 %v2379, 1.1283791
    %v2381 = vmul.f32 %v1986, %v2380
    %v2382 = vmul.f32 %v2370, 3.8918573e-05
    %v2383 = vadd.f32 %v2382, 0.001143296
    %v2384 = vmul.f32 %v2370, %v2383
    %v2385 = vadd.f32 %v2384, 0.014752088
    %v2386 = vmul.f32 %v2370, %v2385
    %v2387 = vadd.f32 %v2386, 0.112945676
    %v2388 = vmul.f32 %v2370, %v2387
    %v2389 = vadd.f32 %v2388, 0.4994258
    %v2390 = vmul.f32 %v2370, %v2389
    %v2391 = vadd.f32 %v2390, 1.0
    %v2392 = vrcp.pop %v2391
    %v2393 = vmul.f32 %v2391, %v2392
    %v2394 = vsub.f32 1.0, %v2393
    %v2395 = vmul.f32 %v2392, %v2394
    %v2396 = vadd.f32 %v2392, %v2395
    %vm2397 = vweird.f32 %v2391
    %vm2398 = vweird.f32 %v2392
    %vm2399 = vmor %vm2397, %vm2398
    %v2400 = vsel %vm2399, %v2392, %v2396
    %v2401 = vand.u32 2147483647, %v2391
    %vm2402 = vcmp.eq.f32.partialorder %v2401, 8.507059e+37
    %v2403 = vand.u32 %v2391, 2147483648
    %v2404 = vor.u32 1.1754944e-38, %v2403
    %v2405 = vsel %vm2402, %v2404, %v2400
    %v2406 = vmul.f32 %v2381, %v2405
    %v2407 = vmin.f32 %v2406, 1.0
    %v2408 = vmax.f32 %v2407, -1.0
    %v2409 = vmul.f32 %v1987, %v1987
    %v2410 = vmin.f32 16.0, %v2409
    %v2411 = vmul.f32 %v2410, 2.1237322e-06
    %v2412 = vadd.f32 %v2411, 0.00028619796
    %v2413 = vmul.f32 %v2410, %v2412
    %v2414 = vadd.f32 %v2413, 0.0036580483
    %v2415 = vmul.f32 %v2410, %v2414
    %v2416 = vadd.f32 %v2415, 0.05243302
    %v2417 = vmul.f32 %v2410, %v2416
    %v2418 = vadd.f32 %v2417, 0.18741608
    %v2419 = vmul.f32 %v2410, %v2418
    %v2420 = vadd.f32 %v2419, 1.1283791
    %v2421 = vmul.f32 %v1987, %v2420
    %v2422 = vmul.f32 %v2410, 3.8918573e-05
    %v2423 = vadd.f32 %v2422, 0.001143296
    %v2424 = vmul.f32 %v2410, %v2423
    %v2425 = vadd.f32 %v2424, 0.014752088
    %v2426 = vmul.f32 %v2410, %v2425
    %v2427 = vadd.f32 %v2426, 0.112945676
    %v2428 = vmul.f32 %v2410, %v2427
    %v2429 = vadd.f32 %v2428, 0.4994258
    %v2430 = vmul.f32 %v2410, %v2429
    %v2431 = vadd.f32 %v2430, 1.0
    %v2432 = vrcp.pop %v2431
    %v2433 = vmul.f32 %v2431, %v2432
    %v2434 = vsub.f32 1.0, %v2433
    %v2435 = vmul.f32 %v2432, %v2434
    %v2436 = vadd.f32 %v2432, %v2435
    %vm2437 = vweird.f32 %v2431
    %vm2438 = vweird.f32 %v2432
    %vm2439 = vmor %vm2437, %vm2438
    %v2440 = vsel %vm2439, %v2432, %v2436
    %v2441 = vand.u32 2147483647, %v2431
    %vm2442 = vcmp.eq.f32.partialorder %v2441, 8.507059e+37
    %v2443 = vand.u32 %v2431, 2147483648
    %v2444 = vor.u32 1.1754944e-38, %v2443
    %v2445 = vsel %vm2442, %v2444, %v2440
    %v2446 = vmul.f32 %v2421, %v2445
    %v2447 = vmin.f32 %v2446, 1.0
    %v2448 = vmax.f32 %v2447, -1.0
    %v2449 = vmul.f32 %v1988, %v1988
    %v2450 = vmin.f32 16.0, %v2449
    %v2451 = vmul.f32 %v2450, 2.1237322e-06
    %v2452 = vadd.f32 %v2451, 0.00028619796
    %v2453 = vmul.f32 %v2450, %v2452
    %v2454 = vadd.f32 %v2453, 0.0036580483
    %v2455 = vmul.f32 %v2450, %v2454
    %v2456 = vadd.f32 %v2455, 0.05243302
    %v2457 = vmul.f32 %v2450, %v2456
    %v2458 = vadd.f32 %v2457, 0.18741608
    %v2459 = vmul.f32 %v2450, %v2458
    %v2460 = vadd.f32 %v2459, 1.1283791
    %v2461 = vmul.f32 %v1988, %v2460
    %v2462 = vmul.f32 %v2450, 3.8918573e-05
    %v2463 = vadd.f32 %v2462, 0.001143296
    %v2464 = vmul.f32 %v2450, %v2463
    %v2465 = vadd.f32 %v2464, 0.014752088
    %v2466 = vmul.f32 %v2450, %v2465
    %v2467 = vadd.f32 %v2466, 0.112945676
    %v2468 = vmul.f32 %v2450, %v2467
    %v2469 = vadd.f32 %v2468, 0.4994258
    %v2470 = vmul.f32 %v2450, %v2469
    %v2471 = vadd.f32 %v2470, 1.0
    %v2472 = vrcp.pop %v2471
    %v2473 = vmul.f32 %v2471, %v2472
    %v2474 = vsub.f32 1.0, %v2473
    %v2475 = vmul.f32 %v2472, %v2474
    %v2476 = vadd.f32 %v2472, %v2475
    %vm2477 = vweird.f32 %v2471
    %vm2478 = vweird.f32 %v2472
    %vm2479 = vmor %vm2477, %vm2478
    %v2480 = vsel %vm2479, %v2472, %v2476
    %v2481 = vand.u32 2147483647, %v2471
    %vm2482 = vcmp.eq.f32.partialorder %v2481, 8.507059e+37
    %v2483 = vand.u32 %v2471, 2147483648
    %v2484 = vor.u32 1.1754944e-38, %v2483
    %v2485 = vsel %vm2482, %v2484, %v2480
    %v2486 = vmul.f32 %v2461, %v2485
    %v2487 = vmin.f32 %v2486, 1.0
    %v2488 = vmax.f32 %v2487, -1.0
    %v2489 = vmul.f32 %v1989, %v1989
    %v2490 = vmin.f32 16.0, %v2489
    %v2491 = vmul.f32 %v2490, 2.1237322e-06
    %v2492 = vadd.f32 %v2491, 0.00028619796
    %v2493 = vmul.f32 %v2490, %v2492
    %v2494 = vadd.f32 %v2493, 0.0036580483
    %v2495 = vmul.f32 %v2490, %v2494
    %v2496 = vadd.f32 %v2495, 0.05243302
    %v2497 = vmul.f32 %v2490, %v2496
    %v2498 = vadd.f32 %v2497, 0.18741608
    %v2499 = vmul.f32 %v2490, %v2498
    %v2500 = vadd.f32 %v2499, 1.1283791
    %v2501 = vmul.f32 %v1989, %v2500
    %v2502 = vmul.f32 %v2490, 3.8918573e-05
    %v2503 = vadd.f32 %v2502, 0.001143296
    %v2504 = vmul.f32 %v2490, %v2503
    %v2505 = vadd.f32 %v2504, 0.014752088
    %v2506 = vmul.f32 %v2490, %v2505
    %v2507 = vadd.f32 %v2506, 0.112945676
    %v2508 = vmul.f32 %v2490, %v2507
    %v2509 = vadd.f32 %v2508, 0.4994258
    %v2510 = vmul.f32 %v2490, %v2509
    %v2511 = vadd.f32 %v2510, 1.0
    %v2512 = vrcp.pop %v2511
    %v2513 = vmul.f32 %v2511, %v2512
    %v2514 = vsub.f32 1.0, %v2513
    %v2515 = vmul.f32 %v2512, %v2514
    %v2516 = vadd.f32 %v2512, %v2515
    %vm2517 = vweird.f32 %v2511
    %vm2518 = vweird.f32 %v2512
    %vm2519 = vmor %vm2517, %vm2518
    %v2520 = vsel %vm2519, %v2512, %v2516
    %v2521 = vand.u32 2147483647, %v2511
    %vm2522 = vcmp.eq.f32.partialorder %v2521, 8.507059e+37
    %v2523 = vand.u32 %v2511, 2147483648
    %v2524 = vor.u32 1.1754944e-38, %v2523
    %v2525 = vsel %vm2522, %v2524, %v2520
    %v2526 = vmul.f32 %v2501, %v2525
    %v2527 = vmin.f32 %v2526, 1.0
    %v2528 = vmax.f32 %v2527, -1.0
    %v2529 = vmul.f32 %v1990, %v1990
    %v2530 = vmin.f32 16.0, %v2529
    %v2531 = vmul.f32 %v2530, 2.1237322e-06
    %v2532 = vadd.f32 %v2531, 0.00028619796
    %v2533 = vmul.f32 %v2530, %v2532
    %v2534 = vadd.f32 %v2533, 0.0036580483
    %v2535 = vmul.f32 %v2530, %v2534
    %v2536 = vadd.f32 %v2535, 0.05243302
    %v2537 = vmul.f32 %v2530, %v2536
    %v2538 = vadd.f32 %v2537, 0.18741608
    %v2539 = vmul.f32 %v2530, %v2538
    %v2540 = vadd.f32 %v2539, 1.1283791
    %v2541 = vmul.f32 %v1990, %v2540
    %v2542 = vmul.f32 %v2530, 3.8918573e-05
    %v2543 = vadd.f32 %v2542, 0.001143296
    %v2544 = vmul.f32 %v2530, %v2543
    %v2545 = vadd.f32 %v2544, 0.014752088
    %v2546 = vmul.f32 %v2530, %v2545
    %v2547 = vadd.f32 %v2546, 0.112945676
    %v2548 = vmul.f32 %v2530, %v2547
    %v2549 = vadd.f32 %v2548, 0.4994258
    %v2550 = vmul.f32 %v2530, %v2549
    %v2551 = vadd.f32 %v2550, 1.0
    %v2552 = vrcp.pop %v2551
    %v2553 = vmul.f32 %v2551, %v2552
    %v2554 = vsub.f32 1.0, %v2553
    %v2555 = vmul.f32 %v2552, %v2554
    %v2556 = vadd.f32 %v2552, %v2555
    %vm2557 = vweird.f32 %v2551
    %vm2558 = vweird.f32 %v2552
    %vm2559 = vmor %vm2557, %vm2558
    %v2560 = vsel %vm2559, %v2552, %v2556
    %v2561 = vand.u32 2147483647, %v2551
    %vm2562 = vcmp.eq.f32.partialorder %v2561, 8.507059e+37
    %v2563 = vand.u32 %v2551, 2147483648
    %v2564 = vor.u32 1.1754944e-38, %v2563
    %v2565 = vsel %vm2562, %v2564, %v2560
    %v2566 = vmul.f32 %v2541, %v2565
    %v2567 = vmin.f32 %v2566, 1.0
    %v2568 = vmax.f32 %v2567, -1.0
    %v2569 = vmul.f32 %v1991, %v1991
    %v2570 = vmin.f32 16.0, %v2569
    %v2571 = vmul.f32 %v2570, 2.1237322e-06
    %v2572 = vadd.f32 %v2571, 0.00028619796
    %v2573 = vmul.f32 %v2570, %v2572
    %v2574 = vadd.f32 %v2573, 0.0036580483
    %v2575 = vmul.f32 %v2570, %v2574
    %v2576 = vadd.f32 %v2575, 0.05243302
    %v2577 = vmul.f32 %v2570, %v2576
    %v2578 = vadd.f32 %v2577, 0.18741608
    %v2579 = vmul.f32 %v2570, %v2578
    %v2580 = vadd.f32 %v2579, 1.1283791
    %v2581 = vmul.f32 %v1991, %v2580
    %v2582 = vmul.f32 %v2570, 3.8918573e-05
    %v2583 = vadd.f32 %v2582, 0.001143296
    %v2584 = vmul.f32 %v2570, %v2583
    %v2585 = vadd.f32 %v2584, 0.014752088
    %v2586 = vmul.f32 %v2570, %v2585
    %v2587 = vadd.f32 %v2586, 0.112945676
    %v2588 = vmul.f32 %v2570, %v2587
    %v2589 = vadd.f32 %v2588, 0.4994258
    %v2590 = vmul.f32 %v2570, %v2589
    %v2591 = vadd.f32 %v2590, 1.0
    %v2592 = vrcp.pop %v2591
    %v2593 = vmul.f32 %v2591, %v2592
    %v2594 = vsub.f32 1.0, %v2593
    %v2595 = vmul.f32 %v2592, %v2594
    %v2596 = vadd.f32 %v2592, %v2595
    %vm2597 = vweird.f32 %v2591
    %vm2598 = vweird.f32 %v2592
    %vm2599 = vmor %vm2597, %vm2598
    %v2600 = vsel %vm2599, %v2592, %v2596
    %v2601 = vand.u32 2147483647, %v2591
    %vm2602 = vcmp.eq.f32.partialorder %v2601, 8.507059e+37
    %v2603 = vand.u32 %v2591, 2147483648
    %v2604 = vor.u32 1.1754944e-38, %v2603
    %v2605 = vsel %vm2602, %v2604, %v2600
    %v2606 = vmul.f32 %v2581, %v2605
    %v2607 = vmin.f32 %v2606, 1.0
    %v2608 = vmax.f32 %v2607, -1.0
    %v2609 = vmul.f32 %v1992, %v1992
    %v2610 = vmin.f32 16.0, %v2609
    %v2611 = vmul.f32 %v2610, 2.1237322e-06
    %v2612 = vadd.f32 %v2611, 0.00028619796
    %v2613 = vmul.f32 %v2610, %v2612
    %v2614 = vadd.f32 %v2613, 0.0036580483
    %v2615 = vmul.f32 %v2610, %v2614
    %v2616 = vadd.f32 %v2615, 0.05243302
    %v2617 = vmul.f32 %v2610, %v2616
    %v2618 = vadd.f32 %v2617, 0.18741608
    %v2619 = vmul.f32 %v2610, %v2618
    %v2620 = vadd.f32 %v2619, 1.1283791
    %v2621 = vmul.f32 %v1992, %v2620
    %v2622 = vmul.f32 %v2610, 3.8918573e-05
    %v2623 = vadd.f32 %v2622, 0.001143296
    %v2624 = vmul.f32 %v2610, %v2623
    %v2625 = vadd.f32 %v2624, 0.014752088
    %v2626 = vmul.f32 %v2610, %v2625
    %v2627 = vadd.f32 %v2626, 0.112945676
    %v2628 = vmul.f32 %v2610, %v2627
    %v2629 = vadd.f32 %v2628, 0.4994258
    %v2630 = vmul.f32 %v2610, %v2629
    %v2631 = vadd.f32 %v2630, 1.0
    %v2632 = vrcp.pop %v2631
    %v2633 = vmul.f32 %v2631, %v2632
    %v2634 = vsub.f32 1.0, %v2633
    %v2635 = vmul.f32 %v2632, %v2634
    %v2636 = vadd.f32 %v2632, %v2635
    %vm2637 = vweird.f32 %v2631
    %vm2638 = vweird.f32 %v2632
    %vm2639 = vmor %vm2637, %vm2638
    %v2640 = vsel %vm2639, %v2632, %v2636
    %v2641 = vand.u32 2147483647, %v2631
    %vm2642 = vcmp.eq.f32.partialorder %v2641, 8.507059e+37
    %v2643 = vand.u32 %v2631, 2147483648
    %v2644 = vor.u32 1.1754944e-38, %v2643
    %v2645 = vsel %vm2642, %v2644, %v2640
    %v2646 = vmul.f32 %v2621, %v2645
    %v2647 = vmin.f32 %v2646, 1.0
    %v2648 = vmax.f32 %v2647, -1.0
    %v2649 = vmul.f32 %v1993, %v1993
    %v2650 = vmin.f32 16.0, %v2649
    %v2651 = vmul.f32 %v2650, 2.1237322e-06
    %v2652 = vadd.f32 %v2651, 0.00028619796
    %v2653 = vmul.f32 %v2650, %v2652
    %v2654 = vadd.f32 %v2653, 0.0036580483
    %v2655 = vmul.f32 %v2650, %v2654
    %v2656 = vadd.f32 %v2655, 0.05243302
    %v2657 = vmul.f32 %v2650, %v2656
    %v2658 = vadd.f32 %v2657, 0.18741608
    %v2659 = vmul.f32 %v2650, %v2658
    %v2660 = vadd.f32 %v2659, 1.1283791
    %v2661 = vmul.f32 %v1993, %v2660
    %v2662 = vmul.f32 %v2650, 3.8918573e-05
    %v2663 = vadd.f32 %v2662, 0.001143296
    %v2664 = vmul.f32 %v2650, %v2663
    %v2665 = vadd.f32 %v2664, 0.014752088
    %v2666 = vmul.f32 %v2650, %v2665
    %v2667 = vadd.f32 %v2666, 0.112945676
    %v2668 = vmul.f32 %v2650, %v2667
    %v2669 = vadd.f32 %v2668, 0.4994258
    %v2670 = vmul.f32 %v2650, %v2669
    %v2671 = vadd.f32 %v2670, 1.0
    %v2672 = vrcp.pop %v2671
    %v2673 = vmul.f32 %v2671, %v2672
    %v2674 = vsub.f32 1.0, %v2673
    %v2675 = vmul.f32 %v2672, %v2674
    %v2676 = vadd.f32 %v2672, %v2675
    %vm2677 = vweird.f32 %v2671
    %vm2678 = vweird.f32 %v2672
    %vm2679 = vmor %vm2677, %vm2678
    %v2680 = vsel %vm2679, %v2672, %v2676
    %v2681 = vand.u32 2147483647, %v2671
    %vm2682 = vcmp.eq.f32.partialorder %v2681, 8.507059e+37
    %v2683 = vand.u32 %v2671, 2147483648
    %v2684 = vor.u32 1.1754944e-38, %v2683
    %v2685 = vsel %vm2682, %v2684, %v2680
    %v2686 = vmul.f32 %v2661, %v2685
    %v2687 = vmin.f32 %v2686, 1.0
    %v2688 = vmax.f32 %v2687, -1.0
    %v2689 = vmul.f32 %v1994, %v1994
    %v2690 = vmin.f32 16.0, %v2689
    %v2691 = vmul.f32 %v2690, 2.1237322e-06
    %v2692 = vadd.f32 %v2691, 0.00028619796
    %v2693 = vmul.f32 %v2690, %v2692
    %v2694 = vadd.f32 %v2693, 0.0036580483
    %v2695 = vmul.f32 %v2690, %v2694
    %v2696 = vadd.f32 %v2695, 0.05243302
    %v2697 = vmul.f32 %v2690, %v2696
    %v2698 = vadd.f32 %v2697, 0.18741608
    %v2699 = vmul.f32 %v2690, %v2698
    %v2700 = vadd.f32 %v2699, 1.1283791
    %v2701 = vmul.f32 %v1994, %v2700
    %v2702 = vmul.f32 %v2690, 3.8918573e-05
    %v2703 = vadd.f32 %v2702, 0.001143296
    %v2704 = vmul.f32 %v2690, %v2703
    %v2705 = vadd.f32 %v2704, 0.014752088
    %v2706 = vmul.f32 %v2690, %v2705
    %v2707 = vadd.f32 %v2706, 0.112945676
    %v2708 = vmul.f32 %v2690, %v2707
    %v2709 = vadd.f32 %v2708, 0.4994258
    %v2710 = vmul.f32 %v2690, %v2709
    %v2711 = vadd.f32 %v2710, 1.0
    %v2712 = vrcp.pop %v2711
    %v2713 = vmul.f32 %v2711, %v2712
    %v2714 = vsub.f32 1.0, %v2713
    %v2715 = vmul.f32 %v2712, %v2714
    %v2716 = vadd.f32 %v2712, %v2715
    %vm2717 = vweird.f32 %v2711
    %vm2718 = vweird.f32 %v2712
    %vm2719 = vmor %vm2717, %vm2718
    %v2720 = vsel %vm2719, %v2712, %v2716
    %v2721 = vand.u32 2147483647, %v2711
    %vm2722 = vcmp.eq.f32.partialorder %v2721, 8.507059e+37
    %v2723 = vand.u32 %v2711, 2147483648
    %v2724 = vor.u32 1.1754944e-38, %v2723
    %v2725 = vsel %vm2722, %v2724, %v2720
    %v2726 = vmul.f32 %v2701, %v2725
    %v2727 = vmin.f32 %v2726, 1.0
    %v2728 = vmax.f32 %v2727, -1.0
    %v2729 = vmul.f32 %v1995, %v1995
    %v2730 = vmin.f32 16.0, %v2729
    %v2731 = vmul.f32 %v2730, 2.1237322e-06
    %v2732 = vadd.f32 %v2731, 0.00028619796
    %v2733 = vmul.f32 %v2730, %v2732
    %v2734 = vadd.f32 %v2733, 0.0036580483
    %v2735 = vmul.f32 %v2730, %v2734
    %v2736 = vadd.f32 %v2735, 0.05243302
    %v2737 = vmul.f32 %v2730, %v2736
    %v2738 = vadd.f32 %v2737, 0.18741608
    %v2739 = vmul.f32 %v2730, %v2738
    %v2740 = vadd.f32 %v2739, 1.1283791
    %v2741 = vmul.f32 %v1995, %v2740
    %v2742 = vmul.f32 %v2730, 3.8918573e-05
    %v2743 = vadd.f32 %v2742, 0.001143296
    %v2744 = vmul.f32 %v2730, %v2743
    %v2745 = vadd.f32 %v2744, 0.014752088
    %v2746 = vmul.f32 %v2730, %v2745
    %v2747 = vadd.f32 %v2746, 0.112945676
    %v2748 = vmul.f32 %v2730, %v2747
    %v2749 = vadd.f32 %v2748, 0.4994258
    %v2750 = vmul.f32 %v2730, %v2749
    %v2751 = vadd.f32 %v2750, 1.0
    %v2752 = vrcp.pop %v2751
    %v2753 = vmul.f32 %v2751, %v2752
    %v2754 = vsub.f32 1.0, %v2753
    %v2755 = vmul.f32 %v2752, %v2754
    %v2756 = vadd.f32 %v2752, %v2755
    %vm2757 = vweird.f32 %v2751
    %vm2758 = vweird.f32 %v2752
    %vm2759 = vmor %vm2757, %vm2758
    %v2760 = vsel %vm2759, %v2752, %v2756
    %v2761 = vand.u32 2147483647, %v2751
    %vm2762 = vcmp.eq.f32.partialorder %v2761, 8.507059e+37
    %v2763 = vand.u32 %v2751, 2147483648
    %v2764 = vor.u32 1.1754944e-38, %v2763
    %v2765 = vsel %vm2762, %v2764, %v2760
    %v2766 = vmul.f32 %v2741, %v2765
    %v2767 = vmin.f32 %v2766, 1.0
    %v2768 = vmax.f32 %v2767, -1.0
    %v2769 = vmul.f32 %v1996, %v1996
    %v2770 = vmin.f32 16.0, %v2769
    %v2771 = vmul.f32 %v2770, 2.1237322e-06
    %v2772 = vadd.f32 %v2771, 0.00028619796
    %v2773 = vmul.f32 %v2770, %v2772
    %v2774 = vadd.f32 %v2773, 0.0036580483
    %v2775 = vmul.f32 %v2770, %v2774
    %v2776 = vadd.f32 %v2775, 0.05243302
    %v2777 = vmul.f32 %v2770, %v2776
    %v2778 = vadd.f32 %v2777, 0.18741608
    %v2779 = vmul.f32 %v2770, %v2778
    %v2780 = vadd.f32 %v2779, 1.1283791
    %v2781 = vmul.f32 %v1996, %v2780
    %v2782 = vmul.f32 %v2770, 3.8918573e-05
    %v2783 = vadd.f32 %v2782, 0.001143296
    %v2784 = vmul.f32 %v2770, %v2783
    %v2785 = vadd.f32 %v2784, 0.014752088
    %v2786 = vmul.f32 %v2770, %v2785
    %v2787 = vadd.f32 %v2786, 0.112945676
    %v2788 = vmul.f32 %v2770, %v2787
    %v2789 = vadd.f32 %v2788, 0.4994258
    %v2790 = vmul.f32 %v2770, %v2789
    %v2791 = vadd.f32 %v2790, 1.0
    %v2792 = vrcp.pop %v2791
    %v2793 = vmul.f32 %v2791, %v2792
    %v2794 = vsub.f32 1.0, %v2793
    %v2795 = vmul.f32 %v2792, %v2794
    %v2796 = vadd.f32 %v2792, %v2795
    %vm2797 = vweird.f32 %v2791
    %vm2798 = vweird.f32 %v2792
    %vm2799 = vmor %vm2797, %vm2798
    %v2800 = vsel %vm2799, %v2792, %v2796
    %v2801 = vand.u32 2147483647, %v2791
    %vm2802 = vcmp.eq.f32.partialorder %v2801, 8.507059e+37
    %v2803 = vand.u32 %v2791, 2147483648
    %v2804 = vor.u32 1.1754944e-38, %v2803
    %v2805 = vsel %vm2802, %v2804, %v2800
    %v2806 = vmul.f32 %v2781, %v2805
    %v2807 = vmin.f32 %v2806, 1.0
    %v2808 = vmax.f32 %v2807, -1.0
    %v2809 = vmul.f32 %v1997, %v1997
    %v2810 = vmin.f32 16.0, %v2809
    %v2811 = vmul.f32 %v2810, 2.1237322e-06
    %v2812 = vadd.f32 %v2811, 0.00028619796
    %v2813 = vmul.f32 %v2810, %v2812
    %v2814 = vadd.f32 %v2813, 0.0036580483
    %v2815 = vmul.f32 %v2810, %v2814
    %v2816 = vadd.f32 %v2815, 0.05243302
    %v2817 = vmul.f32 %v2810, %v2816
    %v2818 = vadd.f32 %v2817, 0.18741608
    %v2819 = vmul.f32 %v2810, %v2818
    %v2820 = vadd.f32 %v2819, 1.1283791
    %v2821 = vmul.f32 %v1997, %v2820
    %v2822 = vmul.f32 %v2810, 3.8918573e-05
    %v2823 = vadd.f32 %v2822, 0.001143296
    %v2824 = vmul.f32 %v2810, %v2823
    %v2825 = vadd.f32 %v2824, 0.014752088
    %v2826 = vmul.f32 %v2810, %v2825
    %v2827 = vadd.f32 %v2826, 0.112945676
    %v2828 = vmul.f32 %v2810, %v2827
    %v2829 = vadd.f32 %v2828, 0.4994258
    %v2830 = vmul.f32 %v2810, %v2829
    %v2831 = vadd.f32 %v2830, 1.0
    %v2832 = vrcp.pop %v2831
    %v2833 = vmul.f32 %v2831, %v2832
    %v2834 = vsub.f32 1.0, %v2833
    %v2835 = vmul.f32 %v2832, %v2834
    %v2836 = vadd.f32 %v2832, %v2835
    %vm2837 = vweird.f32 %v2831
    %vm2838 = vweird.f32 %v2832
    %vm2839 = vmor %vm2837, %vm2838
    %v2840 = vsel %vm2839, %v2832, %v2836
    %v2841 = vand.u32 2147483647, %v2831
    %vm2842 = vcmp.eq.f32.partialorder %v2841, 8.507059e+37
    %v2843 = vand.u32 %v2831, 2147483648
    %v2844 = vor.u32 1.1754944e-38, %v2843
    %v2845 = vsel %vm2842, %v2844, %v2840
    %v2846 = vmul.f32 %v2821, %v2845
    %v2847 = vmin.f32 %v2846, 1.0
    %v2848 = vmax.f32 %v2847, -1.0
    %v2849 = vmul.f32 %v1998, %v1998
    %v2850 = vmin.f32 16.0, %v2849
    %v2851 = vmul.f32 %v2850, 2.1237322e-06
    %v2852 = vadd.f32 %v2851, 0.00028619796
    %v2853 = vmul.f32 %v2850, %v2852
    %v2854 = vadd.f32 %v2853, 0.0036580483
    %v2855 = vmul.f32 %v2850, %v2854
    %v2856 = vadd.f32 %v2855, 0.05243302
    %v2857 = vmul.f32 %v2850, %v2856
    %v2858 = vadd.f32 %v2857, 0.18741608
    %v2859 = vmul.f32 %v2850, %v2858
    %v2860 = vadd.f32 %v2859, 1.1283791
    %v2861 = vmul.f32 %v1998, %v2860
    %v2862 = vmul.f32 %v2850, 3.8918573e-05
    %v2863 = vadd.f32 %v2862, 0.001143296
    %v2864 = vmul.f32 %v2850, %v2863
    %v2865 = vadd.f32 %v2864, 0.014752088
    %v2866 = vmul.f32 %v2850, %v2865
    %v2867 = vadd.f32 %v2866, 0.112945676
    %v2868 = vmul.f32 %v2850, %v2867
    %v2869 = vadd.f32 %v2868, 0.4994258
    %v2870 = vmul.f32 %v2850, %v2869
    %v2871 = vadd.f32 %v2870, 1.0
    %v2872 = vrcp.pop %v2871
    %v2873 = vmul.f32 %v2871, %v2872
    %v2874 = vsub.f32 1.0, %v2873
    %v2875 = vmul.f32 %v2872, %v2874
    %v2876 = vadd.f32 %v2872, %v2875
    %vm2877 = vweird.f32 %v2871
    %vm2878 = vweird.f32 %v2872
    %vm2879 = vmor %vm2877, %vm2878
    %v2880 = vsel %vm2879, %v2872, %v2876
    %v2881 = vand.u32 2147483647, %v2871
    %vm2882 = vcmp.eq.f32.partialorder %v2881, 8.507059e+37
    %v2883 = vand.u32 %v2871, 2147483648
    %v2884 = vor.u32 1.1754944e-38, %v2883
    %v2885 = vsel %vm2882, %v2884, %v2880
    %v2886 = vmul.f32 %v2861, %v2885
    %v2887 = vmin.f32 %v2886, 1.0
    %v2888 = vmax.f32 %v2887, -1.0
    %v2889 = vmul.f32 %v1999, %v1999
    %v2890 = vmin.f32 16.0, %v2889
    %v2891 = vmul.f32 %v2890, 2.1237322e-06
    %v2892 = vadd.f32 %v2891, 0.00028619796
    %v2893 = vmul.f32 %v2890, %v2892
    %v2894 = vadd.f32 %v2893, 0.0036580483
    %v2895 = vmul.f32 %v2890, %v2894
    %v2896 = vadd.f32 %v2895, 0.05243302
    %v2897 = vmul.f32 %v2890, %v2896
    %v2898 = vadd.f32 %v2897, 0.18741608
    %v2899 = vmul.f32 %v2890, %v2898
    %v2900 = vadd.f32 %v2899, 1.1283791
    %v2901 = vmul.f32 %v1999, %v2900
    %v2902 = vmul.f32 %v2890, 3.8918573e-05
    %v2903 = vadd.f32 %v2902, 0.001143296
    %v2904 = vmul.f32 %v2890, %v2903
    %v2905 = vadd.f32 %v2904, 0.014752088
    %v2906 = vmul.f32 %v2890, %v2905
    %v2907 = vadd.f32 %v2906, 0.112945676
    %v2908 = vmul.f32 %v2890, %v2907
    %v2909 = vadd.f32 %v2908, 0.4994258
    %v2910 = vmul.f32 %v2890, %v2909
    %v2911 = vadd.f32 %v2910, 1.0
    %v2912 = vrcp.pop %v2911
    %v2913 = vmul.f32 %v2911, %v2912
    %v2914 = vsub.f32 1.0, %v2913
    %v2915 = vmul.f32 %v2912, %v2914
    %v2916 = vadd.f32 %v2912, %v2915
    %vm2917 = vweird.f32 %v2911
    %vm2918 = vweird.f32 %v2912
    %vm2919 = vmor %vm2917, %vm2918
    %v2920 = vsel %vm2919, %v2912, %v2916
    %v2921 = vand.u32 2147483647, %v2911
    %vm2922 = vcmp.eq.f32.partialorder %v2921, 8.507059e+37
    %v2923 = vand.u32 %v2911, 2147483648
    %v2924 = vor.u32 1.1754944e-38, %v2923
    %v2925 = vsel %vm2922, %v2924, %v2920
    %v2926 = vmul.f32 %v2901, %v2925
    %v2927 = vmin.f32 %v2926, 1.0
    %v2928 = vmax.f32 %v2927, -1.0
    %v2929 = vmul.f32 %v2000, %v2000
    %v2930 = vmin.f32 16.0, %v2929
    %v2931 = vmul.f32 %v2930, 2.1237322e-06
    %v2932 = vadd.f32 %v2931, 0.00028619796
    %v2933 = vmul.f32 %v2930, %v2932
    %v2934 = vadd.f32 %v2933, 0.0036580483
    %v2935 = vmul.f32 %v2930, %v2934
    %v2936 = vadd.f32 %v2935, 0.05243302
    %v2937 = vmul.f32 %v2930, %v2936
    %v2938 = vadd.f32 %v2937, 0.18741608
    %v2939 = vmul.f32 %v2930, %v2938
    %v2940 = vadd.f32 %v2939, 1.1283791
    %v2941 = vmul.f32 %v2000, %v2940
    %v2942 = vmul.f32 %v2930, 3.8918573e-05
    %v2943 = vadd.f32 %v2942, 0.001143296
    %v2944 = vmul.f32 %v2930, %v2943
    %v2945 = vadd.f32 %v2944, 0.014752088
    %v2946 = vmul.f32 %v2930, %v2945
    %v2947 = vadd.f32 %v2946, 0.112945676
    %v2948 = vmul.f32 %v2930, %v2947
    %v2949 = vadd.f32 %v2948, 0.4994258
    %v2950 = vmul.f32 %v2930, %v2949
    %v2951 = vadd.f32 %v2950, 1.0
    %v2952 = vrcp.pop %v2951
    %v2953 = vmul.f32 %v2951, %v2952
    %v2954 = vsub.f32 1.0, %v2953
    %v2955 = vmul.f32 %v2952, %v2954
    %v2956 = vadd.f32 %v2952, %v2955
    %vm2957 = vweird.f32 %v2951
    %vm2958 = vweird.f32 %v2952
    %vm2959 = vmor %vm2957, %vm2958
    %v2960 = vsel %vm2959, %v2952, %v2956
    %v2961 = vand.u32 2147483647, %v2951
    %vm2962 = vcmp.eq.f32.partialorder %v2961, 8.507059e+37
    %v2963 = vand.u32 %v2951, 2147483648
    %v2964 = vor.u32 1.1754944e-38, %v2963
    %v2965 = vsel %vm2962, %v2964, %v2960
    %v2966 = vmul.f32 %v2941, %v2965
    %v2967 = vmin.f32 %v2966, 1.0
    %v2968 = vmax.f32 %v2967, -1.0
    %v2969 = vmul.f32 %v2001, %v2001
    %v2970 = vmin.f32 16.0, %v2969
    %v2971 = vmul.f32 %v2970, 2.1237322e-06
    %v2972 = vadd.f32 %v2971, 0.00028619796
    %v2973 = vmul.f32 %v2970, %v2972
    %v2974 = vadd.f32 %v2973, 0.0036580483
    %v2975 = vmul.f32 %v2970, %v2974
    %v2976 = vadd.f32 %v2975, 0.05243302
    %v2977 = vmul.f32 %v2970, %v2976
    %v2978 = vadd.f32 %v2977, 0.18741608
    %v2979 = vmul.f32 %v2970, %v2978
    %v2980 = vadd.f32 %v2979, 1.1283791
    %v2981 = vmul.f32 %v2001, %v2980
    %v2982 = vmul.f32 %v2970, 3.8918573e-05
    %v2983 = vadd.f32 %v2982, 0.001143296
    %v2984 = vmul.f32 %v2970, %v2983
    %v2985 = vadd.f32 %v2984, 0.014752088
    %v2986 = vmul.f32 %v2970, %v2985
    %v2987 = vadd.f32 %v2986, 0.112945676
    %v2988 = vmul.f32 %v2970, %v2987
    %v2989 = vadd.f32 %v2988, 0.4994258
    %v2990 = vmul.f32 %v2970, %v2989
    %v2991 = vadd.f32 %v2990, 1.0
    %v2992 = vrcp.pop %v2991
    %v2993 = vmul.f32 %v2991, %v2992
    %v2994 = vsub.f32 1.0, %v2993
    %v2995 = vmul.f32 %v2992, %v2994
    %v2996 = vadd.f32 %v2992, %v2995
    %vm2997 = vweird.f32 %v2991
    %vm2998 = vweird.f32 %v2992
    %vm2999 = vmor %vm2997, %vm2998
    %v3000 = vsel %vm2999, %v2992, %v2996
    %v3001 = vand.u32 2147483647, %v2991
    %vm3002 = vcmp.eq.f32.partialorder %v3001, 8.507059e+37
    %v3003 = vand.u32 %v2991, 2147483648
    %v3004 = vor.u32 1.1754944e-38, %v3003
    %v3005 = vsel %vm3002, %v3004, %v3000
    %v3006 = vmul.f32 %v2981, %v3005
    %v3007 = vmin.f32 %v3006, 1.0
    %v3008 = vmax.f32 %v3007, -1.0
    %v3009 = vmul.f32 %v2002, %v2002
    %v3010 = vmin.f32 16.0, %v3009
    %v3011 = vmul.f32 %v3010, 2.1237322e-06
    %v3012 = vadd.f32 %v3011, 0.00028619796
    %v3013 = vmul.f32 %v3010, %v3012
    %v3014 = vadd.f32 %v3013, 0.0036580483
    %v3015 = vmul.f32 %v3010, %v3014
    %v3016 = vadd.f32 %v3015, 0.05243302
    %v3017 = vmul.f32 %v3010, %v3016
    %v3018 = vadd.f32 %v3017, 0.18741608
    %v3019 = vmul.f32 %v3010, %v3018
    %v3020 = vadd.f32 %v3019, 1.1283791
    %v3021 = vmul.f32 %v2002, %v3020
    %v3022 = vmul.f32 %v3010, 3.8918573e-05
    %v3023 = vadd.f32 %v3022, 0.001143296
    %v3024 = vmul.f32 %v3010, %v3023
    %v3025 = vadd.f32 %v3024, 0.014752088
    %v3026 = vmul.f32 %v3010, %v3025
    %v3027 = vadd.f32 %v3026, 0.112945676
    %v3028 = vmul.f32 %v3010, %v3027
    %v3029 = vadd.f32 %v3028, 0.4994258
    %v3030 = vmul.f32 %v3010, %v3029
    %v3031 = vadd.f32 %v3030, 1.0
    %v3032 = vrcp.pop %v3031
    %v3033 = vmul.f32 %v3031, %v3032
    %v3034 = vsub.f32 1.0, %v3033
    %v3035 = vmul.f32 %v3032, %v3034
    %v3036 = vadd.f32 %v3032, %v3035
    %vm3037 = vweird.f32 %v3031
    %vm3038 = vweird.f32 %v3032
    %vm3039 = vmor %vm3037, %vm3038
    %v3040 = vsel %vm3039, %v3032, %v3036
    %v3041 = vand.u32 2147483647, %v3031
    %vm3042 = vcmp.eq.f32.partialorder %v3041, 8.507059e+37
    %v3043 = vand.u32 %v3031, 2147483648
    %v3044 = vor.u32 1.1754944e-38, %v3043
    %v3045 = vsel %vm3042, %v3044, %v3040
    %v3046 = vmul.f32 %v3021, %v3045
    %v3047 = vmin.f32 %v3046, 1.0
    %v3048 = vmax.f32 %v3047, -1.0
    %v3049 = vmul.f32 %v2003, %v2003
    %v3050 = vmin.f32 16.0, %v3049
    %v3051 = vmul.f32 %v3050, 2.1237322e-06
    %v3052 = vadd.f32 %v3051, 0.00028619796
    %v3053 = vmul.f32 %v3050, %v3052
    %v3054 = vadd.f32 %v3053, 0.0036580483
    %v3055 = vmul.f32 %v3050, %v3054
    %v3056 = vadd.f32 %v3055, 0.05243302
    %v3057 = vmul.f32 %v3050, %v3056
    %v3058 = vadd.f32 %v3057, 0.18741608
    %v3059 = vmul.f32 %v3050, %v3058
    %v3060 = vadd.f32 %v3059, 1.1283791
    %v3061 = vmul.f32 %v2003, %v3060
    %v3062 = vmul.f32 %v3050, 3.8918573e-05
    %v3063 = vadd.f32 %v3062, 0.001143296
    %v3064 = vmul.f32 %v3050, %v3063
    %v3065 = vadd.f32 %v3064, 0.014752088
    %v3066 = vmul.f32 %v3050, %v3065
    %v3067 = vadd.f32 %v3066, 0.112945676
    %v3068 = vmul.f32 %v3050, %v3067
    %v3069 = vadd.f32 %v3068, 0.4994258
    %v3070 = vmul.f32 %v3050, %v3069
    %v3071 = vadd.f32 %v3070, 1.0
    %v3072 = vrcp.pop %v3071
    %v3073 = vmul.f32 %v3071, %v3072
    %v3074 = vsub.f32 1.0, %v3073
    %v3075 = vmul.f32 %v3072, %v3074
    %v3076 = vadd.f32 %v3072, %v3075
    %vm3077 = vweird.f32 %v3071
    %vm3078 = vweird.f32 %v3072
    %vm3079 = vmor %vm3077, %vm3078
    %v3080 = vsel %vm3079, %v3072, %v3076
    %v3081 = vand.u32 2147483647, %v3071
    %vm3082 = vcmp.eq.f32.partialorder %v3081, 8.507059e+37
    %v3083 = vand.u32 %v3071, 2147483648
    %v3084 = vor.u32 1.1754944e-38, %v3083
    %v3085 = vsel %vm3082, %v3084, %v3080
    %v3086 = vmul.f32 %v3061, %v3085
    %v3087 = vmin.f32 %v3086, 1.0
    %v3088 = vmax.f32 %v3087, -1.0
    %v3089 = vmul.f32 %v2004, %v2004
    %v3090 = vmin.f32 16.0, %v3089
    %v3091 = vmul.f32 %v3090, 2.1237322e-06
    %v3092 = vadd.f32 %v3091, 0.00028619796
    %v3093 = vmul.f32 %v3090, %v3092
    %v3094 = vadd.f32 %v3093, 0.0036580483
    %v3095 = vmul.f32 %v3090, %v3094
    %v3096 = vadd.f32 %v3095, 0.05243302
    %v3097 = vmul.f32 %v3090, %v3096
    %v3098 = vadd.f32 %v3097, 0.18741608
    %v3099 = vmul.f32 %v3090, %v3098
    %v3100 = vadd.f32 %v3099, 1.1283791
    %v3101 = vmul.f32 %v2004, %v3100
    %v3102 = vmul.f32 %v3090, 3.8918573e-05
    %v3103 = vadd.f32 %v3102, 0.001143296
    %v3104 = vmul.f32 %v3090, %v3103
    %v3105 = vadd.f32 %v3104, 0.014752088
    %v3106 = vmul.f32 %v3090, %v3105
    %v3107 = vadd.f32 %v3106, 0.112945676
    %v3108 = vmul.f32 %v3090, %v3107
    %v3109 = vadd.f32 %v3108, 0.4994258
    %v3110 = vmul.f32 %v3090, %v3109
    %v3111 = vadd.f32 %v3110, 1.0
    %v3112 = vrcp.pop %v3111
    %v3113 = vmul.f32 %v3111, %v3112
    %v3114 = vsub.f32 1.0, %v3113
    %v3115 = vmul.f32 %v3112, %v3114
    %v3116 = vadd.f32 %v3112, %v3115
    %vm3117 = vweird.f32 %v3111
    %vm3118 = vweird.f32 %v3112
    %vm3119 = vmor %vm3117, %vm3118
    %v3120 = vsel %vm3119, %v3112, %v3116
    %v3121 = vand.u32 2147483647, %v3111
    %vm3122 = vcmp.eq.f32.partialorder %v3121, 8.507059e+37
    %v3123 = vand.u32 %v3111, 2147483648
    %v3124 = vor.u32 1.1754944e-38, %v3123
    %v3125 = vsel %vm3122, %v3124, %v3120
    %v3126 = vmul.f32 %v3101, %v3125
    %v3127 = vmin.f32 %v3126, 1.0
    %v3128 = vmax.f32 %v3127, -1.0
    %v3129 = vmul.f32 %v2005, %v2005
    %v3130 = vmin.f32 16.0, %v3129
    %v3131 = vmul.f32 %v3130, 2.1237322e-06
    %v3132 = vadd.f32 %v3131, 0.00028619796
    %v3133 = vmul.f32 %v3130, %v3132
    %v3134 = vadd.f32 %v3133, 0.0036580483
    %v3135 = vmul.f32 %v3130, %v3134
    %v3136 = vadd.f32 %v3135, 0.05243302
    %v3137 = vmul.f32 %v3130, %v3136
    %v3138 = vadd.f32 %v3137, 0.18741608
    %v3139 = vmul.f32 %v3130, %v3138
    %v3140 = vadd.f32 %v3139, 1.1283791
    %v3141 = vmul.f32 %v2005, %v3140
    %v3142 = vmul.f32 %v3130, 3.8918573e-05
    %v3143 = vadd.f32 %v3142, 0.001143296
    %v3144 = vmul.f32 %v3130, %v3143
    %v3145 = vadd.f32 %v3144, 0.014752088
    %v3146 = vmul.f32 %v3130, %v3145
    %v3147 = vadd.f32 %v3146, 0.112945676
    %v3148 = vmul.f32 %v3130, %v3147
    %v3149 = vadd.f32 %v3148, 0.4994258
    %v3150 = vmul.f32 %v3130, %v3149
    %v3151 = vadd.f32 %v3150, 1.0
    %v3152 = vrcp.pop %v3151
    %v3153 = vmul.f32 %v3151, %v3152
    %v3154 = vsub.f32 1.0, %v3153
    %v3155 = vmul.f32 %v3152, %v3154
    %v3156 = vadd.f32 %v3152, %v3155
    %vm3157 = vweird.f32 %v3151
    %vm3158 = vweird.f32 %v3152
    %vm3159 = vmor %vm3157, %vm3158
    %v3160 = vsel %vm3159, %v3152, %v3156
    %v3161 = vand.u32 2147483647, %v3151
    %vm3162 = vcmp.eq.f32.partialorder %v3161, 8.507059e+37
    %v3163 = vand.u32 %v3151, 2147483648
    %v3164 = vor.u32 1.1754944e-38, %v3163
    %v3165 = vsel %vm3162, %v3164, %v3160
    %v3166 = vmul.f32 %v3141, %v3165
    %v3167 = vmin.f32 %v3166, 1.0
    %v3168 = vmax.f32 %v3167, -1.0
    %v3169 = vmul.f32 %v2006, %v2006
    %v3170 = vmin.f32 16.0, %v3169
    %v3171 = vmul.f32 %v3170, 2.1237322e-06
    %v3172 = vadd.f32 %v3171, 0.00028619796
    %v3173 = vmul.f32 %v3170, %v3172
    %v3174 = vadd.f32 %v3173, 0.0036580483
    %v3175 = vmul.f32 %v3170, %v3174
    %v3176 = vadd.f32 %v3175, 0.05243302
    %v3177 = vmul.f32 %v3170, %v3176
    %v3178 = vadd.f32 %v3177, 0.18741608
    %v3179 = vmul.f32 %v3170, %v3178
    %v3180 = vadd.f32 %v3179, 1.1283791
    %v3181 = vmul.f32 %v2006, %v3180
    %v3182 = vmul.f32 %v3170, 3.8918573e-05
    %v3183 = vadd.f32 %v3182, 0.001143296
    %v3184 = vmul.f32 %v3170, %v3183
    %v3185 = vadd.f32 %v3184, 0.014752088
    %v3186 = vmul.f32 %v3170, %v3185
    %v3187 = vadd.f32 %v3186, 0.112945676
    %v3188 = vmul.f32 %v3170, %v3187
    %v3189 = vadd.f32 %v3188, 0.4994258
    %v3190 = vmul.f32 %v3170, %v3189
    %v3191 = vadd.f32 %v3190, 1.0
    %v3192 = vrcp.pop %v3191
    %v3193 = vmul.f32 %v3191, %v3192
    %v3194 = vsub.f32 1.0, %v3193
    %v3195 = vmul.f32 %v3192, %v3194
    %v3196 = vadd.f32 %v3192, %v3195
    %vm3197 = vweird.f32 %v3191
    %vm3198 = vweird.f32 %v3192
    %vm3199 = vmor %vm3197, %vm3198
    %v3200 = vsel %vm3199, %v3192, %v3196
    %v3201 = vand.u32 2147483647, %v3191
    %vm3202 = vcmp.eq.f32.partialorder %v3201, 8.507059e+37
    %v3203 = vand.u32 %v3191, 2147483648
    %v3204 = vor.u32 1.1754944e-38, %v3203
    %v3205 = vsel %vm3202, %v3204, %v3200
    %v3206 = vmul.f32 %v3181, %v3205
    %v3207 = vmin.f32 %v3206, 1.0
    %v3208 = vmax.f32 %v3207, -1.0
    %v3209 = vmul.f32 %v2007, %v2007
    %v3210 = vmin.f32 16.0, %v3209
    %v3211 = vmul.f32 %v3210, 2.1237322e-06
    %v3212 = vadd.f32 %v3211, 0.00028619796
    %v3213 = vmul.f32 %v3210, %v3212
    %v3214 = vadd.f32 %v3213, 0.0036580483
    %v3215 = vmul.f32 %v3210, %v3214
    %v3216 = vadd.f32 %v3215, 0.05243302
    %v3217 = vmul.f32 %v3210, %v3216
    %v3218 = vadd.f32 %v3217, 0.18741608
    %v3219 = vmul.f32 %v3210, %v3218
    %v3220 = vadd.f32 %v3219, 1.1283791
    %v3221 = vmul.f32 %v2007, %v3220
    %v3222 = vmul.f32 %v3210, 3.8918573e-05
    %v3223 = vadd.f32 %v3222, 0.001143296
    %v3224 = vmul.f32 %v3210, %v3223
    %v3225 = vadd.f32 %v3224, 0.014752088
    %v3226 = vmul.f32 %v3210, %v3225
    %v3227 = vadd.f32 %v3226, 0.112945676
    %v3228 = vmul.f32 %v3210, %v3227
    %v3229 = vadd.f32 %v3228, 0.4994258
    %v3230 = vmul.f32 %v3210, %v3229
    %v3231 = vadd.f32 %v3230, 1.0
    %v3232 = vrcp.pop %v3231
    %v3233 = vmul.f32 %v3231, %v3232
    %v3234 = vsub.f32 1.0, %v3233
    %v3235 = vmul.f32 %v3232, %v3234
    %v3236 = vadd.f32 %v3232, %v3235
    %vm3237 = vweird.f32 %v3231
    %vm3238 = vweird.f32 %v3232
    %vm3239 = vmor %vm3237, %vm3238
    %v3240 = vsel %vm3239, %v3232, %v3236
    %v3241 = vand.u32 2147483647, %v3231
    %vm3242 = vcmp.eq.f32.partialorder %v3241, 8.507059e+37
    %v3243 = vand.u32 %v3231, 2147483648
    %v3244 = vor.u32 1.1754944e-38, %v3243
    %v3245 = vsel %vm3242, %v3244, %v3240
    %v3246 = vmul.f32 %v3221, %v3245
    %v3247 = vmin.f32 %v3246, 1.0
    %v3248 = vmax.f32 %v3247, -1.0
    %v3249 = vmul.f32 %v2008, %v2008
    %v3250 = vmin.f32 16.0, %v3249
    %v3251 = vmul.f32 %v3250, 2.1237322e-06
    %v3252 = vadd.f32 %v3251, 0.00028619796
    %v3253 = vmul.f32 %v3250, %v3252
    %v3254 = vadd.f32 %v3253, 0.0036580483
    %v3255 = vmul.f32 %v3250, %v3254
    %v3256 = vadd.f32 %v3255, 0.05243302
    %v3257 = vmul.f32 %v3250, %v3256
    %v3258 = vadd.f32 %v3257, 0.18741608
    %v3259 = vmul.f32 %v3250, %v3258
    %v3260 = vadd.f32 %v3259, 1.1283791
    %v3261 = vmul.f32 %v2008, %v3260
    %v3262 = vmul.f32 %v3250, 3.8918573e-05
    %v3263 = vadd.f32 %v3262, 0.001143296
    %v3264 = vmul.f32 %v3250, %v3263
    %v3265 = vadd.f32 %v3264, 0.014752088
    %v3266 = vmul.f32 %v3250, %v3265
    %v3267 = vadd.f32 %v3266, 0.112945676
    %v3268 = vmul.f32 %v3250, %v3267
    %v3269 = vadd.f32 %v3268, 0.4994258
    %v3270 = vmul.f32 %v3250, %v3269
    %v3271 = vadd.f32 %v3270, 1.0
    %v3272 = vrcp.pop %v3271
    %v3273 = vmul.f32 %v3271, %v3272
    %v3274 = vsub.f32 1.0, %v3273
    %v3275 = vmul.f32 %v3272, %v3274
    %v3276 = vadd.f32 %v3272, %v3275
    %vm3277 = vweird.f32 %v3271
    %vm3278 = vweird.f32 %v3272
    %vm3279 = vmor %vm3277, %vm3278
    %v3280 = vsel %vm3279, %v3272, %v3276
    %v3281 = vand.u32 2147483647, %v3271
    %vm3282 = vcmp.eq.f32.partialorder %v3281, 8.507059e+37
    %v3283 = vand.u32 %v3271, 2147483648
    %v3284 = vor.u32 1.1754944e-38, %v3283
    %v3285 = vsel %vm3282, %v3284, %v3280
    %v3286 = vmul.f32 %v3261, %v3285
    %v3287 = vmin.f32 %v3286, 1.0
    %v3288 = vmax.f32 %v3287, -1.0
    %v3289 = vadd.f32 %v2048, 1.0
    %v3290 = vadd.f32 %v2088, 1.0
    %v3291 = vadd.f32 %v2128, 1.0
    %v3292 = vadd.f32 %v2168, 1.0
    %v3293 = vadd.f32 %v2208, 1.0
    %v3294 = vadd.f32 %v2248, 1.0
    %v3295 = vadd.f32 %v2288, 1.0
    %v3296 = vadd.f32 %v2328, 1.0
    %v3297 = vadd.f32 %v2368, 1.0
    %v3298 = vadd.f32 %v2408, 1.0
    %v3299 = vadd.f32 %v2448, 1.0
    %v3300 = vadd.f32 %v2488, 1.0
    %v3301 = vadd.f32 %v2528, 1.0
    %v3302 = vadd.f32 %v2568, 1.0
    %v3303 = vadd.f32 %v2608, 1.0
    %v3304 = vadd.f32 %v2648, 1.0
    %v3305 = vadd.f32 %v2688, 1.0
    %v3306 = vadd.f32 %v2728, 1.0
    %v3307 = vadd.f32 %v2768, 1.0
    %v3308 = vadd.f32 %v2808, 1.0
    %v3309 = vadd.f32 %v2848, 1.0
    %v3310 = vadd.f32 %v2888, 1.0
    %v3311 = vadd.f32 %v2928, 1.0
    %v3312 = vadd.f32 %v2968, 1.0
    %v3313 = vadd.f32 %v3008, 1.0
    %v3314 = vadd.f32 %v3048, 1.0
    %v3315 = vadd.f32 %v3088, 1.0
    %v3316 = vadd.f32 %v3128, 1.0
    %v3317 = vadd.f32 %v3168, 1.0
    %v3318 = vadd.f32 %v3208, 1.0
    %v3319 = vadd.f32 %v3248, 1.0
    %v3320 = vadd.f32 %v3288, 1.0
    %v3321 = vmul.f32 %v1945, %v3289
    %v3322 = vmul.f32 %v1946, %v3290
    %v3323 = vmul.f32 %v1947, %v3291
    %v3324 = vmul.f32 %v1948, %v3292
    %v3325 = vmul.f32 %v1949, %v3293
    %v3326 = vmul.f32 %v1950, %v3294
    %v3327 = vmul.f32 %v1951, %v3295
    %v3328 = vmul.f32 %v1952, %v3296
    %v3329 = vmul.f32 %v1953, %v3297
    %v3330 = vmul.f32 %v1954, %v3298
    %v3331 = vmul.f32 %v1955, %v3299
    %v3332 = vmul.f32 %v1956, %v3300
    %v3333 = vmul.f32 %v1957, %v3301
    %v3334 = vmul.f32 %v1958, %v3302
    %v3335 = vmul.f32 %v1959, %v3303
    %v3336 = vmul.f32 %v1960, %v3304
    %v3337 = vmul.f32 %v1961, %v3305
    %v3338 = vmul.f32 %v1962, %v3306
    %v3339 = vmul.f32 %v1963, %v3307
    %v3340 = vmul.f32 %v1964, %v3308
    %v3341 = vmul.f32 %v1965, %v3309
    %v3342 = vmul.f32 %v1966, %v3310
    %v3343 = vmul.f32 %v1967, %v3311
    %v3344 = vmul.f32 %v1968, %v3312
    %v3345 = vmul.f32 %v1969, %v3313
    %v3346 = vmul.f32 %v1970, %v3314
    %v3347 = vmul.f32 %v1971, %v3315
    %v3348 = vmul.f32 %v1972, %v3316
    %v3349 = vmul.f32 %v1973, %v3317
    %v3350 = vmul.f32 %v1974, %v3318
    %v3351 = vmul.f32 %v1975, %v3319
    %v3352 = vmul.f32 %v1976, %v3320
    %v3353 = vld [vmem:[%s7] sm:$0x3]
    %v3354 = vld [vmem:[%s8] sm:$0x3]
    %v3355 = vadd.f32 %v3321, %v3322
    %3356 = vadd.xlane.f32.xlu0 %v3355
    %v3357 = vpop.xlane.xlu0 %3356
    %v3358 = vadd.f32 %v3323, %v3324
    %3359 = vadd.xlane.f32.xlu0 %v3358
    %v3360 = vpop.xlane.xlu0 %3359
    %v3361 = vadd.f32 %v3325, %v3326
    %3362 = vadd.xlane.f32.xlu0 %v3361
    %v3363 = vpop.xlane.xlu0 %3362
    %v3364 = vadd.f32 %v3327, %v3328
    %3365 = vadd.xlane.f32.xlu0 %v3364
    %v3366 = vpop.xlane.xlu0 %3365
    %v3367 = vadd.f32 %v3329, %v3330
    %3368 = vadd.xlane.f32.xlu0 %v3367
    %v3369 = vpop.xlane.xlu0 %3368
    %v3370 = vadd.f32 %v3331, %v3332
    %3371 = vadd.xlane.f32.xlu0 %v3370
    %v3372 = vpop.xlane.xlu0 %3371
    %v3373 = vadd.f32 %v3333, %v3334
    %3374 = vadd.xlane.f32.xlu0 %v3373
    %v3375 = vpop.xlane.xlu0 %3374
    %v3376 = vadd.f32 %v3335, %v3336
    %3377 = vadd.xlane.f32.xlu0 %v3376
    %v3378 = vpop.xlane.xlu0 %3377
    %v3379 = vadd.f32 %v3337, %v3338
    %3380 = vadd.xlane.f32.xlu0 %v3379
    %v3381 = vpop.xlane.xlu0 %3380
    %v3382 = vadd.f32 %v3339, %v3340
    %3383 = vadd.xlane.f32.xlu0 %v3382
    %v3384 = vpop.xlane.xlu0 %3383
    %v3385 = vadd.f32 %v3341, %v3342
    %3386 = vadd.xlane.f32.xlu0 %v3385
    %v3387 = vpop.xlane.xlu0 %3386
    %v3388 = vadd.f32 %v3343, %v3344
    %3389 = vadd.xlane.f32.xlu0 %v3388
    %v3390 = vpop.xlane.xlu0 %3389
    %v3391 = vadd.f32 %v3345, %v3346
    %3392 = vadd.xlane.f32.xlu0 %v3391
    %v3393 = vpop.xlane.xlu0 %3392
    %v3394 = vadd.f32 %v3347, %v3348
    %3395 = vadd.xlane.f32.xlu0 %v3394
    %v3396 = vpop.xlane.xlu0 %3395
    %v3397 = vadd.f32 %v3349, %v3350
    %3398 = vadd.xlane.f32.xlu0 %v3397
    %v3399 = vpop.xlane.xlu0 %3398
    %v3400 = vadd.f32 %v3351, %v3352
    %3401 = vadd.xlane.f32.xlu0 %v3400
    %v3402 = vpop.xlane.xlu0 %3401
    %v3403 = vrcp.pop 256.0
    %v3404 = vmul.f32 256.0, %v3403
    %v3405 = vsub.f32 1.0, %v3404
    %v3406 = vmul.f32 %v3403, %v3405
    %v3407 = vadd.f32 %v3403, %v3406
    %vm3408 = vweird.f32 %v3403
    %v3409 = vsel %vm3408, %v3403, %v3407
    %v3410 = vmul.f32 %v3357, %v3409
    %v3411 = vmul.f32 %v3360, %v3409
    %v3412 = vmul.f32 %v3363, %v3409
    %v3413 = vmul.f32 %v3366, %v3409
    %v3414 = vmul.f32 %v3369, %v3409
    %v3415 = vmul.f32 %v3372, %v3409
    %v3416 = vmul.f32 %v3375, %v3409
    %v3417 = vmul.f32 %v3378, %v3409
    %v3418 = vmul.f32 %v3381, %v3409
    %v3419 = vmul.f32 %v3384, %v3409
    %v3420 = vmul.f32 %v3387, %v3409
    %v3421 = vmul.f32 %v3390, %v3409
    %v3422 = vmul.f32 %v3393, %v3409
    %v3423 = vmul.f32 %v3396, %v3409
    %v3424 = vmul.f32 %v3399, %v3409
    %v3425 = vmul.f32 %v3402, %v3409
    %v3426 = vsub.f32 %v3321, %v3410
    %v3427 = vsub.f32 %v3322, %v3410
    %v3428 = vsub.f32 %v3323, %v3411
    %v3429 = vsub.f32 %v3324, %v3411
    %v3430 = vsub.f32 %v3325, %v3412
    %v3431 = vsub.f32 %v3326, %v3412
    %v3432 = vsub.f32 %v3327, %v3413
    %v3433 = vsub.f32 %v3328, %v3413
    %v3434 = vsub.f32 %v3329, %v3414
    %v3435 = vsub.f32 %v3330, %v3414
    %v3436 = vsub.f32 %v3331, %v3415
    %v3437 = vsub.f32 %v3332, %v3415
    %v3438 = vsub.f32 %v3333, %v3416
    %v3439 = vsub.f32 %v3334, %v3416
    %v3440 = vsub.f32 %v3335, %v3417
    %v3441 = vsub.f32 %v3336, %v3417
    %v3442 = vsub.f32 %v3337, %v3418
    %v3443 = vsub.f32 %v3338, %v3418
    %v3444 = vsub.f32 %v3339, %v3419
    %v3445 = vsub.f32 %v3340, %v3419
    %v3446 = vsub.f32 %v3341, %v3420
    %v3447 = vsub.f32 %v3342, %v3420
    %v3448 = vsub.f32 %v3343, %v3421
    %v3449 = vsub.f32 %v3344, %v3421
    %v3450 = vsub.f32 %v3345, %v3422
    %v3451 = vsub.f32 %v3346, %v3422
    %v3452 = vsub.f32 %v3347, %v3423
    %v3453 = vsub.f32 %v3348, %v3423
    %v3454 = vsub.f32 %v3349, %v3424
    %v3455 = vsub.f32 %v3350, %v3424
    %v3456 = vsub.f32 %v3351, %v3425
    %v3457 = vsub.f32 %v3352, %v3425
    %v3458 = vmul.f32 %v3426, %v3426
    %v3459 = vmul.f32 %v3427, %v3427
    %v3460 = vmul.f32 %v3428, %v3428
    %v3461 = vmul.f32 %v3429, %v3429
    %v3462 = vmul.f32 %v3430, %v3430
    %v3463 = vmul.f32 %v3431, %v3431
    %v3464 = vmul.f32 %v3432, %v3432
    %v3465 = vmul.f32 %v3433, %v3433
    %v3466 = vmul.f32 %v3434, %v3434
    %v3467 = vmul.f32 %v3435, %v3435
    %v3468 = vmul.f32 %v3436, %v3436
    %v3469 = vmul.f32 %v3437, %v3437
    %v3470 = vmul.f32 %v3438, %v3438
    %v3471 = vmul.f32 %v3439, %v3439
    %v3472 = vmul.f32 %v3440, %v3440
    %v3473 = vmul.f32 %v3441, %v3441
    %v3474 = vmul.f32 %v3442, %v3442
    %v3475 = vmul.f32 %v3443, %v3443
    %v3476 = vmul.f32 %v3444, %v3444
    %v3477 = vmul.f32 %v3445, %v3445
    %v3478 = vmul.f32 %v3446, %v3446
    %v3479 = vmul.f32 %v3447, %v3447
    %v3480 = vmul.f32 %v3448, %v3448
    %v3481 = vmul.f32 %v3449, %v3449
    %v3482 = vmul.f32 %v3450, %v3450
    %v3483 = vmul.f32 %v3451, %v3451
    %v3484 = vmul.f32 %v3452, %v3452
    %v3485 = vmul.f32 %v3453, %v3453
    %v3486 = vmul.f32 %v3454, %v3454
    %v3487 = vmul.f32 %v3455, %v3455
    %v3488 = vmul.f32 %v3456, %v3456
    %v3489 = vmul.f32 %v3457, %v3457
    %v3490 = vadd.f32 %v3458, %v3459
    %3491 = vadd.xlane.f32.xlu0 %v3490
    %v3492 = vpop.xlane.xlu0 %3491
    %v3493 = vadd.f32 %v3460, %v3461
    %3494 = vadd.xlane.f32.xlu0 %v3493
    %v3495 = vpop.xlane.xlu0 %3494
    %v3496 = vadd.f32 %v3462, %v3463
    %3497 = vadd.xlane.f32.xlu0 %v3496
    %v3498 = vpop.xlane.xlu0 %3497
    %v3499 = vadd.f32 %v3464, %v3465
    %3500 = vadd.xlane.f32.xlu0 %v3499
    %v3501 = vpop.xlane.xlu0 %3500
    %v3502 = vadd.f32 %v3466, %v3467
    %3503 = vadd.xlane.f32.xlu0 %v3502
    %v3504 = vpop.xlane.xlu0 %3503
    %v3505 = vadd.f32 %v3468, %v3469
    %3506 = vadd.xlane.f32.xlu0 %v3505
    %v3507 = vpop.xlane.xlu0 %3506
    %v3508 = vadd.f32 %v3470, %v3471
    %3509 = vadd.xlane.f32.xlu0 %v3508
    %v3510 = vpop.xlane.xlu0 %3509
    %v3511 = vadd.f32 %v3472, %v3473
    %3512 = vadd.xlane.f32.xlu0 %v3511
    %v3513 = vpop.xlane.xlu0 %3512
    %v3514 = vadd.f32 %v3474, %v3475
    %3515 = vadd.xlane.f32.xlu0 %v3514
    %v3516 = vpop.xlane.xlu0 %3515
    %v3517 = vadd.f32 %v3476, %v3477
    %3518 = vadd.xlane.f32.xlu0 %v3517
    %v3519 = vpop.xlane.xlu0 %3518
    %v3520 = vadd.f32 %v3478, %v3479
    %3521 = vadd.xlane.f32.xlu0 %v3520
    %v3522 = vpop.xlane.xlu0 %3521
    %v3523 = vadd.f32 %v3480, %v3481
    %3524 = vadd.xlane.f32.xlu0 %v3523
    %v3525 = vpop.xlane.xlu0 %3524
    %v3526 = vadd.f32 %v3482, %v3483
    %3527 = vadd.xlane.f32.xlu0 %v3526
    %v3528 = vpop.xlane.xlu0 %3527
    %v3529 = vadd.f32 %v3484, %v3485
    %3530 = vadd.xlane.f32.xlu0 %v3529
    %v3531 = vpop.xlane.xlu0 %3530
    %v3532 = vadd.f32 %v3486, %v3487
    %3533 = vadd.xlane.f32.xlu0 %v3532
    %v3534 = vpop.xlane.xlu0 %3533
    %v3535 = vadd.f32 %v3488, %v3489
    %3536 = vadd.xlane.f32.xlu0 %v3535
    %v3537 = vpop.xlane.xlu0 %3536
    %v3538 = vmul.f32 %v3492, %v3409
    %v3539 = vmul.f32 %v3495, %v3409
    %v3540 = vmul.f32 %v3498, %v3409
    %v3541 = vmul.f32 %v3501, %v3409
    %v3542 = vmul.f32 %v3504, %v3409
    %v3543 = vmul.f32 %v3507, %v3409
    %v3544 = vmul.f32 %v3510, %v3409
    %v3545 = vmul.f32 %v3513, %v3409
    %v3546 = vmul.f32 %v3516, %v3409
    %v3547 = vmul.f32 %v3519, %v3409
    %v3548 = vmul.f32 %v3522, %v3409
    %v3549 = vmul.f32 %v3525, %v3409
    %v3550 = vmul.f32 %v3528, %v3409
    %v3551 = vmul.f32 %v3531, %v3409
    %v3552 = vmul.f32 %v3534, %v3409
    %v3553 = vmul.f32 %v3537, %v3409
    %v3554 = vadd.f32 %v3538, 1e-05
    %v3555 = vadd.f32 %v3539, 1e-05
    %v3556 = vadd.f32 %v3540, 1e-05
    %v3557 = vadd.f32 %v3541, 1e-05
    %v3558 = vadd.f32 %v3542, 1e-05
    %v3559 = vadd.f32 %v3543, 1e-05
    %v3560 = vadd.f32 %v3544, 1e-05
    %v3561 = vadd.f32 %v3545, 1e-05
    %v3562 = vadd.f32 %v3546, 1e-05
    %v3563 = vadd.f32 %v3547, 1e-05
    %v3564 = vadd.f32 %v3548, 1e-05
    %v3565 = vadd.f32 %v3549, 1e-05
    %v3566 = vadd.f32 %v3550, 1e-05
    %v3567 = vadd.f32 %v3551, 1e-05
    %v3568 = vadd.f32 %v3552, 1e-05
    %v3569 = vadd.f32 %v3553, 1e-05
    %v3570 = vrsqrt.pop %v3554
    %v3571 = vmul.f32 %v3570, %v3554
    %v3572 = vmul.f32 %v3571, %v3570
    %v3573 = vmul.f32 0.5, %v3572
    %v3574 = vsub.f32 1.5, %v3573
    %v3575 = vmul.f32 %v3570, %v3574
    %vm3576 = vweird.f32 %v3554
    %vm3577 = vweird.f32 %v3570
    %vm3578 = vmor %vm3576, %vm3577
    %v3579 = vsel %vm3578, %v3570, %v3575
    %v3580 = vrsqrt.pop %v3555
    %v3581 = vmul.f32 %v3580, %v3555
    %v3582 = vmul.f32 %v3581, %v3580
    %v3583 = vmul.f32 0.5, %v3582
    %v3584 = vsub.f32 1.5, %v3583
    %v3585 = vmul.f32 %v3580, %v3584
    %vm3586 = vweird.f32 %v3555
    %vm3587 = vweird.f32 %v3580
    %vm3588 = vmor %vm3586, %vm3587
    %v3589 = vsel %vm3588, %v3580, %v3585
    %v3590 = vrsqrt.pop %v3556
    %v3591 = vmul.f32 %v3590, %v3556
    %v3592 = vmul.f32 %v3591, %v3590
    %v3593 = vmul.f32 0.5, %v3592
    %v3594 = vsub.f32 1.5, %v3593
    %v3595 = vmul.f32 %v3590, %v3594
    %vm3596 = vweird.f32 %v3556
    %vm3597 = vweird.f32 %v3590
    %vm3598 = vmor %vm3596, %vm3597
    %v3599 = vsel %vm3598, %v3590, %v3595
    %v3600 = vrsqrt.pop %v3557
    %v3601 = vmul.f32 %v3600, %v3557
    %v3602 = vmul.f32 %v3601, %v3600
    %v3603 = vmul.f32 0.5, %v3602
    %v3604 = vsub.f32 1.5, %v3603
    %v3605 = vmul.f32 %v3600, %v3604
    %vm3606 = vweird.f32 %v3557
    %vm3607 = vweird.f32 %v3600
    %vm3608 = vmor %vm3606, %vm3607
    %v3609 = vsel %vm3608, %v3600, %v3605
    %v3610 = vrsqrt.pop %v3558
    %v3611 = vmul.f32 %v3610, %v3558
    %v3612 = vmul.f32 %v3611, %v3610
    %v3613 = vmul.f32 0.5, %v3612
    %v3614 = vsub.f32 1.5, %v3613
    %v3615 = vmul.f32 %v3610, %v3614
    %vm3616 = vweird.f32 %v3558
    %vm3617 = vweird.f32 %v3610
    %vm3618 = vmor %vm3616, %vm3617
    %v3619 = vsel %vm3618, %v3610, %v3615
    %v3620 = vrsqrt.pop %v3559
    %v3621 = vmul.f32 %v3620, %v3559
    %v3622 = vmul.f32 %v3621, %v3620
    %v3623 = vmul.f32 0.5, %v3622
    %v3624 = vsub.f32 1.5, %v3623
    %v3625 = vmul.f32 %v3620, %v3624
    %vm3626 = vweird.f32 %v3559
    %vm3627 = vweird.f32 %v3620
    %vm3628 = vmor %vm3626, %vm3627
    %v3629 = vsel %vm3628, %v3620, %v3625
    %v3630 = vrsqrt.pop %v3560
    %v3631 = vmul.f32 %v3630, %v3560
    %v3632 = vmul.f32 %v3631, %v3630
    %v3633 = vmul.f32 0.5, %v3632
    %v3634 = vsub.f32 1.5, %v3633
    %v3635 = vmul.f32 %v3630, %v3634
    %vm3636 = vweird.f32 %v3560
    %vm3637 = vweird.f32 %v3630
    %vm3638 = vmor %vm3636, %vm3637
    %v3639 = vsel %vm3638, %v3630, %v3635
    %v3640 = vrsqrt.pop %v3561
    %v3641 = vmul.f32 %v3640, %v3561
    %v3642 = vmul.f32 %v3641, %v3640
    %v3643 = vmul.f32 0.5, %v3642
    %v3644 = vsub.f32 1.5, %v3643
    %v3645 = vmul.f32 %v3640, %v3644
    %vm3646 = vweird.f32 %v3561
    %vm3647 = vweird.f32 %v3640
    %vm3648 = vmor %vm3646, %vm3647
    %v3649 = vsel %vm3648, %v3640, %v3645
    %v3650 = vrsqrt.pop %v3562
    %v3651 = vmul.f32 %v3650, %v3562
    %v3652 = vmul.f32 %v3651, %v3650
    %v3653 = vmul.f32 0.5, %v3652
    %v3654 = vsub.f32 1.5, %v3653
    %v3655 = vmul.f32 %v3650, %v3654
    %vm3656 = vweird.f32 %v3562
    %vm3657 = vweird.f32 %v3650
    %vm3658 = vmor %vm3656, %vm3657
    %v3659 = vsel %vm3658, %v3650, %v3655
    %v3660 = vrsqrt.pop %v3563
    %v3661 = vmul.f32 %v3660, %v3563
    %v3662 = vmul.f32 %v3661, %v3660
    %v3663 = vmul.f32 0.5, %v3662
    %v3664 = vsub.f32 1.5, %v3663
    %v3665 = vmul.f32 %v3660, %v3664
    %vm3666 = vweird.f32 %v3563
    %vm3667 = vweird.f32 %v3660
    %vm3668 = vmor %vm3666, %vm3667
    %v3669 = vsel %vm3668, %v3660, %v3665
    %v3670 = vrsqrt.pop %v3564
    %v3671 = vmul.f32 %v3670, %v3564
    %v3672 = vmul.f32 %v3671, %v3670
    %v3673 = vmul.f32 0.5, %v3672
    %v3674 = vsub.f32 1.5, %v3673
    %v3675 = vmul.f32 %v3670, %v3674
    %vm3676 = vweird.f32 %v3564
    %vm3677 = vweird.f32 %v3670
    %vm3678 = vmor %vm3676, %vm3677
    %v3679 = vsel %vm3678, %v3670, %v3675
    %v3680 = vrsqrt.pop %v3565
    %v3681 = vmul.f32 %v3680, %v3565
    %v3682 = vmul.f32 %v3681, %v3680
    %v3683 = vmul.f32 0.5, %v3682
    %v3684 = vsub.f32 1.5, %v3683
    %v3685 = vmul.f32 %v3680, %v3684
    %vm3686 = vweird.f32 %v3565
    %vm3687 = vweird.f32 %v3680
    %vm3688 = vmor %vm3686, %vm3687
    %v3689 = vsel %vm3688, %v3680, %v3685
    %v3690 = vrsqrt.pop %v3566
    %v3691 = vmul.f32 %v3690, %v3566
    %v3692 = vmul.f32 %v3691, %v3690
    %v3693 = vmul.f32 0.5, %v3692
    %v3694 = vsub.f32 1.5, %v3693
    %v3695 = vmul.f32 %v3690, %v3694
    %vm3696 = vweird.f32 %v3566
    %vm3697 = vweird.f32 %v3690
    %vm3698 = vmor %vm3696, %vm3697
    %v3699 = vsel %vm3698, %v3690, %v3695
    %v3700 = vrsqrt.pop %v3567
    %v3701 = vmul.f32 %v3700, %v3567
    %v3702 = vmul.f32 %v3701, %v3700
    %v3703 = vmul.f32 0.5, %v3702
    %v3704 = vsub.f32 1.5, %v3703
    %v3705 = vmul.f32 %v3700, %v3704
    %vm3706 = vweird.f32 %v3567
    %vm3707 = vweird.f32 %v3700
    %vm3708 = vmor %vm3706, %vm3707
    %v3709 = vsel %vm3708, %v3700, %v3705
    %v3710 = vrsqrt.pop %v3568
    %v3711 = vmul.f32 %v3710, %v3568
    %v3712 = vmul.f32 %v3711, %v3710
    %v3713 = vmul.f32 0.5, %v3712
    %v3714 = vsub.f32 1.5, %v3713
    %v3715 = vmul.f32 %v3710, %v3714
    %vm3716 = vweird.f32 %v3568
    %vm3717 = vweird.f32 %v3710
    %vm3718 = vmor %vm3716, %vm3717
    %v3719 = vsel %vm3718, %v3710, %v3715
    %v3720 = vrsqrt.pop %v3569
    %v3721 = vmul.f32 %v3720, %v3569
    %v3722 = vmul.f32 %v3721, %v3720
    %v3723 = vmul.f32 0.5, %v3722
    %v3724 = vsub.f32 1.5, %v3723
    %v3725 = vmul.f32 %v3720, %v3724
    %vm3726 = vweird.f32 %v3569
    %vm3727 = vweird.f32 %v3720
    %vm3728 = vmor %vm3726, %vm3727
    %v3729 = vsel %vm3728, %v3720, %v3725
    %v3730 = vmul.f32 %v3426, %v3579
    %v3731 = vmul.f32 %v3427, %v3579
    %v3732 = vmul.f32 %v3428, %v3589
    %v3733 = vmul.f32 %v3429, %v3589
    %v3734 = vmul.f32 %v3430, %v3599
    %v3735 = vmul.f32 %v3431, %v3599
    %v3736 = vmul.f32 %v3432, %v3609
    %v3737 = vmul.f32 %v3433, %v3609
    %v3738 = vmul.f32 %v3434, %v3619
    %v3739 = vmul.f32 %v3435, %v3619
    %v3740 = vmul.f32 %v3436, %v3629
    %v3741 = vmul.f32 %v3437, %v3629
    %v3742 = vmul.f32 %v3438, %v3639
    %v3743 = vmul.f32 %v3439, %v3639
    %v3744 = vmul.f32 %v3440, %v3649
    %v3745 = vmul.f32 %v3441, %v3649
    %v3746 = vmul.f32 %v3442, %v3659
    %v3747 = vmul.f32 %v3443, %v3659
    %v3748 = vmul.f32 %v3444, %v3669
    %v3749 = vmul.f32 %v3445, %v3669
    %v3750 = vmul.f32 %v3446, %v3679
    %v3751 = vmul.f32 %v3447, %v3679
    %v3752 = vmul.f32 %v3448, %v3689
    %v3753 = vmul.f32 %v3449, %v3689
    %v3754 = vmul.f32 %v3450, %v3699
    %v3755 = vmul.f32 %v3451, %v3699
    %v3756 = vmul.f32 %v3452, %v3709
    %v3757 = vmul.f32 %v3453, %v3709
    %v3758 = vmul.f32 %v3454, %v3719
    %v3759 = vmul.f32 %v3455, %v3719
    %v3760 = vmul.f32 %v3456, %v3729
    %v3761 = vmul.f32 %v3457, %v3729
    %v3763 = vperm.slane %v3353, 0
    %v3764 = vperm.slane %v3353, 1
    %v3767 = vmul.f32 %v3730, %v3763
    %v3768 = vmul.f32 %v3731, %v3764
    %v3769 = vmul.f32 %v3732, %v3763
    %v3770 = vmul.f32 %v3733, %v3764
    %v3771 = vmul.f32 %v3734, %v3763
    %v3772 = vmul.f32 %v3735, %v3764
    %v3773 = vmul.f32 %v3736, %v3763
    %v3774 = vmul.f32 %v3737, %v3764
    %v3775 = vmul.f32 %v3738, %v3763
    %v3776 = vmul.f32 %v3739, %v3764
    %v3777 = vmul.f32 %v3740, %v3763
    %v3778 = vmul.f32 %v3741, %v3764
    %v3779 = vmul.f32 %v3742, %v3763
    %v3780 = vmul.f32 %v3743, %v3764
    %v3781 = vmul.f32 %v3744, %v3763
    %v3782 = vmul.f32 %v3745, %v3764
    %v3783 = vmul.f32 %v3746, %v3763
    %v3784 = vmul.f32 %v3747, %v3764
    %v3785 = vmul.f32 %v3748, %v3763
    %v3786 = vmul.f32 %v3749, %v3764
    %v3787 = vmul.f32 %v3750, %v3763
    %v3788 = vmul.f32 %v3751, %v3764
    %v3789 = vmul.f32 %v3752, %v3763
    %v3790 = vmul.f32 %v3753, %v3764
    %v3791 = vmul.f32 %v3754, %v3763
    %v3792 = vmul.f32 %v3755, %v3764
    %v3793 = vmul.f32 %v3756, %v3763
    %v3794 = vmul.f32 %v3757, %v3764
    %v3795 = vmul.f32 %v3758, %v3763
    %v3796 = vmul.f32 %v3759, %v3764
    %v3797 = vmul.f32 %v3760, %v3763
    %v3798 = vmul.f32 %v3761, %v3764
    %v3800 = vperm.slane %v3354, 0
    %v3801 = vperm.slane %v3354, 1
    %v3804 = vadd.f32 %v3767, %v3800
    %v3805 = vadd.f32 %v3768, %v3801
    %v3806 = vadd.f32 %v3769, %v3800
    %v3807 = vadd.f32 %v3770, %v3801
    %v3808 = vadd.f32 %v3771, %v3800
    %v3809 = vadd.f32 %v3772, %v3801
    %v3810 = vadd.f32 %v3773, %v3800
    %v3811 = vadd.f32 %v3774, %v3801
    %v3812 = vadd.f32 %v3775, %v3800
    %v3813 = vadd.f32 %v3776, %v3801
    %v3814 = vadd.f32 %v3777, %v3800
    %v3815 = vadd.f32 %v3778, %v3801
    %v3816 = vadd.f32 %v3779, %v3800
    %v3817 = vadd.f32 %v3780, %v3801
    %v3818 = vadd.f32 %v3781, %v3800
    %v3819 = vadd.f32 %v3782, %v3801
    %v3820 = vadd.f32 %v3783, %v3800
    %v3821 = vadd.f32 %v3784, %v3801
    %v3822 = vadd.f32 %v3785, %v3800
    %v3823 = vadd.f32 %v3786, %v3801
    %v3824 = vadd.f32 %v3787, %v3800
    %v3825 = vadd.f32 %v3788, %v3801
    %v3826 = vadd.f32 %v3789, %v3800
    %v3827 = vadd.f32 %v3790, %v3801
    %v3828 = vadd.f32 %v3791, %v3800
    %v3829 = vadd.f32 %v3792, %v3801
    %v3830 = vadd.f32 %v3793, %v3800
    %v3831 = vadd.f32 %v3794, %v3801
    %v3832 = vadd.f32 %v3795, %v3800
    %v3833 = vadd.f32 %v3796, %v3801
    %v3834 = vadd.f32 %v3797, %v3800
    %v3835 = vadd.f32 %v3798, %v3801
    %v3836 = vmul.f32 %v3804, %v3804
    %v3837 = vmul.f32 %v3805, %v3805
    %v3838 = vmul.f32 %v3806, %v3806
    %v3839 = vmul.f32 %v3807, %v3807
    %v3840 = vmul.f32 %v3808, %v3808
    %v3841 = vmul.f32 %v3809, %v3809
    %v3842 = vmul.f32 %v3810, %v3810
    %v3843 = vmul.f32 %v3811, %v3811
    %v3844 = vmul.f32 %v3812, %v3812
    %v3845 = vmul.f32 %v3813, %v3813
    %v3846 = vmul.f32 %v3814, %v3814
    %v3847 = vmul.f32 %v3815, %v3815
    %v3848 = vmul.f32 %v3816, %v3816
    %v3849 = vmul.f32 %v3817, %v3817
    %v3850 = vmul.f32 %v3818, %v3818
    %v3851 = vmul.f32 %v3819, %v3819
    %v3852 = vmul.f32 %v3820, %v3820
    %v3853 = vmul.f32 %v3821, %v3821
    %v3854 = vmul.f32 %v3822, %v3822
    %v3855 = vmul.f32 %v3823, %v3823
    %v3856 = vmul.f32 %v3824, %v3824
    %v3857 = vmul.f32 %v3825, %v3825
    %v3858 = vmul.f32 %v3826, %v3826
    %v3859 = vmul.f32 %v3827, %v3827
    %v3860 = vmul.f32 %v3828, %v3828
    %v3861 = vmul.f32 %v3829, %v3829
    %v3862 = vmul.f32 %v3830, %v3830
    %v3863 = vmul.f32 %v3831, %v3831
    %v3864 = vmul.f32 %v3832, %v3832
    %v3865 = vmul.f32 %v3833, %v3833
    %v3866 = vmul.f32 %v3834, %v3834
    %v3867 = vmul.f32 %v3835, %v3835
    %v3868 = vadd.f32 %v3836, %v3837
    %3869 = vadd.xlane.f32.xlu0 %v3868
    %v3870 = vpop.xlane.xlu0 %3869
    %v3871 = vadd.f32 %v3838, %v3839
    %3872 = vadd.xlane.f32.xlu0 %v3871
    %v3873 = vpop.xlane.xlu0 %3872
    %v3874 = vadd.f32 %v3840, %v3841
    %3875 = vadd.xlane.f32.xlu0 %v3874
    %v3876 = vpop.xlane.xlu0 %3875
    %v3877 = vadd.f32 %v3842, %v3843
    %3878 = vadd.xlane.f32.xlu0 %v3877
    %v3879 = vpop.xlane.xlu0 %3878
    %v3880 = vadd.f32 %v3844, %v3845
    %3881 = vadd.xlane.f32.xlu0 %v3880
    %v3882 = vpop.xlane.xlu0 %3881
    %v3883 = vadd.f32 %v3846, %v3847
    %3884 = vadd.xlane.f32.xlu0 %v3883
    %v3885 = vpop.xlane.xlu0 %3884
    %v3886 = vadd.f32 %v3848, %v3849
    %3887 = vadd.xlane.f32.xlu0 %v3886
    %v3888 = vpop.xlane.xlu0 %3887
    %v3889 = vadd.f32 %v3850, %v3851
    %3890 = vadd.xlane.f32.xlu0 %v3889
    %v3891 = vpop.xlane.xlu0 %3890
    %v3892 = vadd.f32 %v3852, %v3853
    %3893 = vadd.xlane.f32.xlu0 %v3892
    %v3894 = vpop.xlane.xlu0 %3893
    %v3895 = vadd.f32 %v3854, %v3855
    %3896 = vadd.xlane.f32.xlu0 %v3895
    %v3897 = vpop.xlane.xlu0 %3896
    %v3898 = vadd.f32 %v3856, %v3857
    %3899 = vadd.xlane.f32.xlu0 %v3898
    %v3900 = vpop.xlane.xlu0 %3899
    %v3901 = vadd.f32 %v3858, %v3859
    %3902 = vadd.xlane.f32.xlu0 %v3901
    %v3903 = vpop.xlane.xlu0 %3902
    %v3904 = vadd.f32 %v3860, %v3861
    %3905 = vadd.xlane.f32.xlu0 %v3904
    %v3906 = vpop.xlane.xlu0 %3905
    %v3907 = vadd.f32 %v3862, %v3863
    %3908 = vadd.xlane.f32.xlu0 %v3907
    %v3909 = vpop.xlane.xlu0 %3908
    %v3910 = vadd.f32 %v3864, %v3865
    %3911 = vadd.xlane.f32.xlu0 %v3910
    %v3912 = vpop.xlane.xlu0 %3911
    %v3913 = vadd.f32 %v3866, %v3867
    %3914 = vadd.xlane.f32.xlu0 %v3913
    %v3915 = vpop.xlane.xlu0 %3914
    %v3916 = vrsqrt.pop %v3870
    %v3917 = vmul.f32 %v3916, %v3870
    %v3918 = vmul.f32 %v3917, %v3916
    %v3919 = vmul.f32 0.5, %v3918
    %v3920 = vsub.f32 1.5, %v3919
    %v3921 = vmul.f32 %v3916, %v3920
    %v3922 = vmul.f32 %v3870, %v3921
    %vm3923 = vcmp.eq.f32.partialorder %v3870, inf
    %v3924 = vsel %vm3923, %v3870, %v3922
    %vm3925 = vcmp.eq.f32.partialorder %v3870, 0.0
    %v3926 = vand.u32 %v3870, 2147483648
    %v3927 = vsel %vm3925, %v3926, %v3924
    %v3928 = vrsqrt.pop %v3873
    %v3929 = vmul.f32 %v3928, %v3873
    %v3930 = vmul.f32 %v3929, %v3928
    %v3931 = vmul.f32 0.5, %v3930
    %v3932 = vsub.f32 1.5, %v3931
    %v3933 = vmul.f32 %v3928, %v3932
    %v3934 = vmul.f32 %v3873, %v3933
    %vm3935 = vcmp.eq.f32.partialorder %v3873, inf
    %v3936 = vsel %vm3935, %v3873, %v3934
    %vm3937 = vcmp.eq.f32.partialorder %v3873, 0.0
    %v3938 = vand.u32 %v3873, 2147483648
    %v3939 = vsel %vm3937, %v3938, %v3936
    %v3940 = vrsqrt.pop %v3876
    %v3941 = vmul.f32 %v3940, %v3876
    %v3942 = vmul.f32 %v3941, %v3940
    %v3943 = vmul.f32 0.5, %v3942
    %v3944 = vsub.f32 1.5, %v3943
    %v3945 = vmul.f32 %v3940, %v3944
    %v3946 = vmul.f32 %v3876, %v3945
    %vm3947 = vcmp.eq.f32.partialorder %v3876, inf
    %v3948 = vsel %vm3947, %v3876, %v3946
    %vm3949 = vcmp.eq.f32.partialorder %v3876, 0.0
    %v3950 = vand.u32 %v3876, 2147483648
    %v3951 = vsel %vm3949, %v3950, %v3948
    %v3952 = vrsqrt.pop %v3879
    %v3953 = vmul.f32 %v3952, %v3879
    %v3954 = vmul.f32 %v3953, %v3952
    %v3955 = vmul.f32 0.5, %v3954
    %v3956 = vsub.f32 1.5, %v3955
    %v3957 = vmul.f32 %v3952, %v3956
    %v3958 = vmul.f32 %v3879, %v3957
    %vm3959 = vcmp.eq.f32.partialorder %v3879, inf
    %v3960 = vsel %vm3959, %v3879, %v3958
    %vm3961 = vcmp.eq.f32.partialorder %v3879, 0.0
    %v3962 = vand.u32 %v3879, 2147483648
    %v3963 = vsel %vm3961, %v3962, %v3960
    %v3964 = vrsqrt.pop %v3882
    %v3965 = vmul.f32 %v3964, %v3882
    %v3966 = vmul.f32 %v3965, %v3964
    %v3967 = vmul.f32 0.5, %v3966
    %v3968 = vsub.f32 1.5, %v3967
    %v3969 = vmul.f32 %v3964, %v3968
    %v3970 = vmul.f32 %v3882, %v3969
    %vm3971 = vcmp.eq.f32.partialorder %v3882, inf
    %v3972 = vsel %vm3971, %v3882, %v3970
    %vm3973 = vcmp.eq.f32.partialorder %v3882, 0.0
    %v3974 = vand.u32 %v3882, 2147483648
    %v3975 = vsel %vm3973, %v3974, %v3972
    %v3976 = vrsqrt.pop %v3885
    %v3977 = vmul.f32 %v3976, %v3885
    %v3978 = vmul.f32 %v3977, %v3976
    %v3979 = vmul.f32 0.5, %v3978
    %v3980 = vsub.f32 1.5, %v3979
    %v3981 = vmul.f32 %v3976, %v3980
    %v3982 = vmul.f32 %v3885, %v3981
    %vm3983 = vcmp.eq.f32.partialorder %v3885, inf
    %v3984 = vsel %vm3983, %v3885, %v3982
    %vm3985 = vcmp.eq.f32.partialorder %v3885, 0.0
    %v3986 = vand.u32 %v3885, 2147483648
    %v3987 = vsel %vm3985, %v3986, %v3984
    %v3988 = vrsqrt.pop %v3888
    %v3989 = vmul.f32 %v3988, %v3888
    %v3990 = vmul.f32 %v3989, %v3988
    %v3991 = vmul.f32 0.5, %v3990
    %v3992 = vsub.f32 1.5, %v3991
    %v3993 = vmul.f32 %v3988, %v3992
    %v3994 = vmul.f32 %v3888, %v3993
    %vm3995 = vcmp.eq.f32.partialorder %v3888, inf
    %v3996 = vsel %vm3995, %v3888, %v3994
    %vm3997 = vcmp.eq.f32.partialorder %v3888, 0.0
    %v3998 = vand.u32 %v3888, 2147483648
    %v3999 = vsel %vm3997, %v3998, %v3996
    %v4000 = vrsqrt.pop %v3891
    %v4001 = vmul.f32 %v4000, %v3891
    %v4002 = vmul.f32 %v4001, %v4000
    %v4003 = vmul.f32 0.5, %v4002
    %v4004 = vsub.f32 1.5, %v4003
    %v4005 = vmul.f32 %v4000, %v4004
    %v4006 = vmul.f32 %v3891, %v4005
    %vm4007 = vcmp.eq.f32.partialorder %v3891, inf
    %v4008 = vsel %vm4007, %v3891, %v4006
    %vm4009 = vcmp.eq.f32.partialorder %v3891, 0.0
    %v4010 = vand.u32 %v3891, 2147483648
    %v4011 = vsel %vm4009, %v4010, %v4008
    %v4012 = vrsqrt.pop %v3894
    %v4013 = vmul.f32 %v4012, %v3894
    %v4014 = vmul.f32 %v4013, %v4012
    %v4015 = vmul.f32 0.5, %v4014
    %v4016 = vsub.f32 1.5, %v4015
    %v4017 = vmul.f32 %v4012, %v4016
    %v4018 = vmul.f32 %v3894, %v4017
    %vm4019 = vcmp.eq.f32.partialorder %v3894, inf
    %v4020 = vsel %vm4019, %v3894, %v4018
    %vm4021 = vcmp.eq.f32.partialorder %v3894, 0.0
    %v4022 = vand.u32 %v3894, 2147483648
    %v4023 = vsel %vm4021, %v4022, %v4020
    %v4024 = vrsqrt.pop %v3897
    %v4025 = vmul.f32 %v4024, %v3897
    %v4026 = vmul.f32 %v4025, %v4024
    %v4027 = vmul.f32 0.5, %v4026
    %v4028 = vsub.f32 1.5, %v4027
    %v4029 = vmul.f32 %v4024, %v4028
    %v4030 = vmul.f32 %v3897, %v4029
    %vm4031 = vcmp.eq.f32.partialorder %v3897, inf
    %v4032 = vsel %vm4031, %v3897, %v4030
    %vm4033 = vcmp.eq.f32.partialorder %v3897, 0.0
    %v4034 = vand.u32 %v3897, 2147483648
    %v4035 = vsel %vm4033, %v4034, %v4032
    %v4036 = vrsqrt.pop %v3900
    %v4037 = vmul.f32 %v4036, %v3900
    %v4038 = vmul.f32 %v4037, %v4036
    %v4039 = vmul.f32 0.5, %v4038
    %v4040 = vsub.f32 1.5, %v4039
    %v4041 = vmul.f32 %v4036, %v4040
    %v4042 = vmul.f32 %v3900, %v4041
    %vm4043 = vcmp.eq.f32.partialorder %v3900, inf
    %v4044 = vsel %vm4043, %v3900, %v4042
    %vm4045 = vcmp.eq.f32.partialorder %v3900, 0.0
    %v4046 = vand.u32 %v3900, 2147483648
    %v4047 = vsel %vm4045, %v4046, %v4044
    %v4048 = vrsqrt.pop %v3903
    %v4049 = vmul.f32 %v4048, %v3903
    %v4050 = vmul.f32 %v4049, %v4048
    %v4051 = vmul.f32 0.5, %v4050
    %v4052 = vsub.f32 1.5, %v4051
    %v4053 = vmul.f32 %v4048, %v4052
    %v4054 = vmul.f32 %v3903, %v4053
    %vm4055 = vcmp.eq.f32.partialorder %v3903, inf
    %v4056 = vsel %vm4055, %v3903, %v4054
    %vm4057 = vcmp.eq.f32.partialorder %v3903, 0.0
    %v4058 = vand.u32 %v3903, 2147483648
    %v4059 = vsel %vm4057, %v4058, %v4056
    %v4060 = vrsqrt.pop %v3906
    %v4061 = vmul.f32 %v4060, %v3906
    %v4062 = vmul.f32 %v4061, %v4060
    %v4063 = vmul.f32 0.5, %v4062
    %v4064 = vsub.f32 1.5, %v4063
    %v4065 = vmul.f32 %v4060, %v4064
    %v4066 = vmul.f32 %v3906, %v4065
    %vm4067 = vcmp.eq.f32.partialorder %v3906, inf
    %v4068 = vsel %vm4067, %v3906, %v4066
    %vm4069 = vcmp.eq.f32.partialorder %v3906, 0.0
    %v4070 = vand.u32 %v3906, 2147483648
    %v4071 = vsel %vm4069, %v4070, %v4068
    %v4072 = vrsqrt.pop %v3909
    %v4073 = vmul.f32 %v4072, %v3909
    %v4074 = vmul.f32 %v4073, %v4072
    %v4075 = vmul.f32 0.5, %v4074
    %v4076 = vsub.f32 1.5, %v4075
    %v4077 = vmul.f32 %v4072, %v4076
    %v4078 = vmul.f32 %v3909, %v4077
    %vm4079 = vcmp.eq.f32.partialorder %v3909, inf
    %v4080 = vsel %vm4079, %v3909, %v4078
    %vm4081 = vcmp.eq.f32.partialorder %v3909, 0.0
    %v4082 = vand.u32 %v3909, 2147483648
    %v4083 = vsel %vm4081, %v4082, %v4080
    %v4084 = vrsqrt.pop %v3912
    %v4085 = vmul.f32 %v4084, %v3912
    %v4086 = vmul.f32 %v4085, %v4084
    %v4087 = vmul.f32 0.5, %v4086
    %v4088 = vsub.f32 1.5, %v4087
    %v4089 = vmul.f32 %v4084, %v4088
    %v4090 = vmul.f32 %v3912, %v4089
    %vm4091 = vcmp.eq.f32.partialorder %v3912, inf
    %v4092 = vsel %vm4091, %v3912, %v4090
    %vm4093 = vcmp.eq.f32.partialorder %v3912, 0.0
    %v4094 = vand.u32 %v3912, 2147483648
    %v4095 = vsel %vm4093, %v4094, %v4092
    %v4096 = vrsqrt.pop %v3915
    %v4097 = vmul.f32 %v4096, %v3915
    %v4098 = vmul.f32 %v4097, %v4096
    %v4099 = vmul.f32 0.5, %v4098
    %v4100 = vsub.f32 1.5, %v4099
    %v4101 = vmul.f32 %v4096, %v4100
    %v4102 = vmul.f32 %v3915, %v4101
    %vm4103 = vcmp.eq.f32.partialorder %v3915, inf
    %v4104 = vsel %vm4103, %v3915, %v4102
    %vm4105 = vcmp.eq.f32.partialorder %v3915, 0.0
    %v4106 = vand.u32 %v3915, 2147483648
    %v4107 = vsel %vm4105, %v4106, %v4104
    %v4108 = vmax.f32 %v3927, 1e-12
    %v4109 = vmax.f32 %v3939, 1e-12
    %v4110 = vmax.f32 %v3951, 1e-12
    %v4111 = vmax.f32 %v3963, 1e-12
    %v4112 = vmax.f32 %v3975, 1e-12
    %v4113 = vmax.f32 %v3987, 1e-12
    %v4114 = vmax.f32 %v3999, 1e-12
    %v4115 = vmax.f32 %v4011, 1e-12
    %v4116 = vmax.f32 %v4023, 1e-12
    %v4117 = vmax.f32 %v4035, 1e-12
    %v4118 = vmax.f32 %v4047, 1e-12
    %v4119 = vmax.f32 %v4059, 1e-12
    %v4120 = vmax.f32 %v4071, 1e-12
    %v4121 = vmax.f32 %v4083, 1e-12
    %v4122 = vmax.f32 %v4095, 1e-12
    %v4123 = vmax.f32 %v4107, 1e-12
    %v4124 = vrcp.pop %v4108
    %v4125 = vmul.f32 %v4108, %v4124
    %v4126 = vsub.f32 1.0, %v4125
    %v4127 = vmul.f32 %v4124, %v4126
    %v4128 = vadd.f32 %v4124, %v4127
    %vm4129 = vweird.f32 %v4108
    %vm4130 = vweird.f32 %v4124
    %vm4131 = vmor %vm4129, %vm4130
    %v4132 = vsel %vm4131, %v4124, %v4128
    %v4133 = vand.u32 2147483647, %v4108
    %vm4134 = vcmp.eq.f32.partialorder %v4133, 8.507059e+37
    %v4135 = vand.u32 %v4108, 2147483648
    %v4136 = vor.u32 1.1754944e-38, %v4135
    %v4137 = vsel %vm4134, %v4136, %v4132
    %v4138 = vmul.f32 %v3804, %v4137
    %v4139 = vmul.f32 %v3805, %v4137
    %v4140 = vrcp.pop %v4109
    %v4141 = vmul.f32 %v4109, %v4140
    %v4142 = vsub.f32 1.0, %v4141
    %v4143 = vmul.f32 %v4140, %v4142
    %v4144 = vadd.f32 %v4140, %v4143
    %vm4145 = vweird.f32 %v4109
    %vm4146 = vweird.f32 %v4140
    %vm4147 = vmor %vm4145, %vm4146
    %v4148 = vsel %vm4147, %v4140, %v4144
    %v4149 = vand.u32 2147483647, %v4109
    %vm4150 = vcmp.eq.f32.partialorder %v4149, 8.507059e+37
    %v4151 = vand.u32 %v4109, 2147483648
    %v4152 = vor.u32 1.1754944e-38, %v4151
    %v4153 = vsel %vm4150, %v4152, %v4148
    %v4154 = vmul.f32 %v3806, %v4153
    %v4155 = vmul.f32 %v3807, %v4153
    %v4156 = vrcp.pop %v4110
    %v4157 = vmul.f32 %v4110, %v4156
    %v4158 = vsub.f32 1.0, %v4157
    %v4159 = vmul.f32 %v4156, %v4158
    %v4160 = vadd.f32 %v4156, %v4159
    %vm4161 = vweird.f32 %v4110
    %vm4162 = vweird.f32 %v4156
    %vm4163 = vmor %vm4161, %vm4162
    %v4164 = vsel %vm4163, %v4156, %v4160
    %v4165 = vand.u32 2147483647, %v4110
    %vm4166 = vcmp.eq.f32.partialorder %v4165, 8.507059e+37
    %v4167 = vand.u32 %v4110, 2147483648
    %v4168 = vor.u32 1.1754944e-38, %v4167
    %v4169 = vsel %vm4166, %v4168, %v4164
    %v4170 = vmul.f32 %v3808, %v4169
    %v4171 = vmul.f32 %v3809, %v4169
    %v4172 = vrcp.pop %v4111
    %v4173 = vmul.f32 %v4111, %v4172
    %v4174 = vsub.f32 1.0, %v4173
    %v4175 = vmul.f32 %v4172, %v4174
    %v4176 = vadd.f32 %v4172, %v4175
    %vm4177 = vweird.f32 %v4111
    %vm4178 = vweird.f32 %v4172
    %vm4179 = vmor %vm4177, %vm4178
    %v4180 = vsel %vm4179, %v4172, %v4176
    %v4181 = vand.u32 2147483647, %v4111
    %vm4182 = vcmp.eq.f32.partialorder %v4181, 8.507059e+37
    %v4183 = vand.u32 %v4111, 2147483648
    %v4184 = vor.u32 1.1754944e-38, %v4183
    %v4185 = vsel %vm4182, %v4184, %v4180
    %v4186 = vmul.f32 %v3810, %v4185
    %v4187 = vmul.f32 %v3811, %v4185
    %v4188 = vrcp.pop %v4112
    %v4189 = vmul.f32 %v4112, %v4188
    %v4190 = vsub.f32 1.0, %v4189
    %v4191 = vmul.f32 %v4188, %v4190
    %v4192 = vadd.f32 %v4188, %v4191
    %vm4193 = vweird.f32 %v4112
    %vm4194 = vweird.f32 %v4188
    %vm4195 = vmor %vm4193, %vm4194
    %v4196 = vsel %vm4195, %v4188, %v4192
    %v4197 = vand.u32 2147483647, %v4112
    %vm4198 = vcmp.eq.f32.partialorder %v4197, 8.507059e+37
    %v4199 = vand.u32 %v4112, 2147483648
    %v4200 = vor.u32 1.1754944e-38, %v4199
    %v4201 = vsel %vm4198, %v4200, %v4196
    %v4202 = vmul.f32 %v3812, %v4201
    %v4203 = vmul.f32 %v3813, %v4201
    %v4204 = vrcp.pop %v4113
    %v4205 = vmul.f32 %v4113, %v4204
    %v4206 = vsub.f32 1.0, %v4205
    %v4207 = vmul.f32 %v4204, %v4206
    %v4208 = vadd.f32 %v4204, %v4207
    %vm4209 = vweird.f32 %v4113
    %vm4210 = vweird.f32 %v4204
    %vm4211 = vmor %vm4209, %vm4210
    %v4212 = vsel %vm4211, %v4204, %v4208
    %v4213 = vand.u32 2147483647, %v4113
    %vm4214 = vcmp.eq.f32.partialorder %v4213, 8.507059e+37
    %v4215 = vand.u32 %v4113, 2147483648
    %v4216 = vor.u32 1.1754944e-38, %v4215
    %v4217 = vsel %vm4214, %v4216, %v4212
    %v4218 = vmul.f32 %v3814, %v4217
    %v4219 = vmul.f32 %v3815, %v4217
    %v4220 = vrcp.pop %v4114
    %v4221 = vmul.f32 %v4114, %v4220
    %v4222 = vsub.f32 1.0, %v4221
    %v4223 = vmul.f32 %v4220, %v4222
    %v4224 = vadd.f32 %v4220, %v4223
    %vm4225 = vweird.f32 %v4114
    %vm4226 = vweird.f32 %v4220
    %vm4227 = vmor %vm4225, %vm4226
    %v4228 = vsel %vm4227, %v4220, %v4224
    %v4229 = vand.u32 2147483647, %v4114
    %vm4230 = vcmp.eq.f32.partialorder %v4229, 8.507059e+37
    %v4231 = vand.u32 %v4114, 2147483648
    %v4232 = vor.u32 1.1754944e-38, %v4231
    %v4233 = vsel %vm4230, %v4232, %v4228
    %v4234 = vmul.f32 %v3816, %v4233
    %v4235 = vmul.f32 %v3817, %v4233
    %v4236 = vrcp.pop %v4115
    %v4237 = vmul.f32 %v4115, %v4236
    %v4238 = vsub.f32 1.0, %v4237
    %v4239 = vmul.f32 %v4236, %v4238
    %v4240 = vadd.f32 %v4236, %v4239
    %vm4241 = vweird.f32 %v4115
    %vm4242 = vweird.f32 %v4236
    %vm4243 = vmor %vm4241, %vm4242
    %v4244 = vsel %vm4243, %v4236, %v4240
    %v4245 = vand.u32 2147483647, %v4115
    %vm4246 = vcmp.eq.f32.partialorder %v4245, 8.507059e+37
    %v4247 = vand.u32 %v4115, 2147483648
    %v4248 = vor.u32 1.1754944e-38, %v4247
    %v4249 = vsel %vm4246, %v4248, %v4244
    %v4250 = vmul.f32 %v3818, %v4249
    %v4251 = vmul.f32 %v3819, %v4249
    %v4252 = vrcp.pop %v4116
    %v4253 = vmul.f32 %v4116, %v4252
    %v4254 = vsub.f32 1.0, %v4253
    %v4255 = vmul.f32 %v4252, %v4254
    %v4256 = vadd.f32 %v4252, %v4255
    %vm4257 = vweird.f32 %v4116
    %vm4258 = vweird.f32 %v4252
    %vm4259 = vmor %vm4257, %vm4258
    %v4260 = vsel %vm4259, %v4252, %v4256
    %v4261 = vand.u32 2147483647, %v4116
    %vm4262 = vcmp.eq.f32.partialorder %v4261, 8.507059e+37
    %v4263 = vand.u32 %v4116, 2147483648
    %v4264 = vor.u32 1.1754944e-38, %v4263
    %v4265 = vsel %vm4262, %v4264, %v4260
    %v4266 = vmul.f32 %v3820, %v4265
    %v4267 = vmul.f32 %v3821, %v4265
    %v4268 = vrcp.pop %v4117
    %v4269 = vmul.f32 %v4117, %v4268
    %v4270 = vsub.f32 1.0, %v4269
    %v4271 = vmul.f32 %v4268, %v4270
    %v4272 = vadd.f32 %v4268, %v4271
    %vm4273 = vweird.f32 %v4117
    %vm4274 = vweird.f32 %v4268
    %vm4275 = vmor %vm4273, %vm4274
    %v4276 = vsel %vm4275, %v4268, %v4272
    %v4277 = vand.u32 2147483647, %v4117
    %vm4278 = vcmp.eq.f32.partialorder %v4277, 8.507059e+37
    %v4279 = vand.u32 %v4117, 2147483648
    %v4280 = vor.u32 1.1754944e-38, %v4279
    %v4281 = vsel %vm4278, %v4280, %v4276
    %v4282 = vmul.f32 %v3822, %v4281
    %v4283 = vmul.f32 %v3823, %v4281
    %v4284 = vrcp.pop %v4118
    %v4285 = vmul.f32 %v4118, %v4284
    %v4286 = vsub.f32 1.0, %v4285
    %v4287 = vmul.f32 %v4284, %v4286
    %v4288 = vadd.f32 %v4284, %v4287
    %vm4289 = vweird.f32 %v4118
    %vm4290 = vweird.f32 %v4284
    %vm4291 = vmor %vm4289, %vm4290
    %v4292 = vsel %vm4291, %v4284, %v4288
    %v4293 = vand.u32 2147483647, %v4118
    %vm4294 = vcmp.eq.f32.partialorder %v4293, 8.507059e+37
    %v4295 = vand.u32 %v4118, 2147483648
    %v4296 = vor.u32 1.1754944e-38, %v4295
    %v4297 = vsel %vm4294, %v4296, %v4292
    %v4298 = vmul.f32 %v3824, %v4297
    %v4299 = vmul.f32 %v3825, %v4297
    %v4300 = vrcp.pop %v4119
    %v4301 = vmul.f32 %v4119, %v4300
    %v4302 = vsub.f32 1.0, %v4301
    %v4303 = vmul.f32 %v4300, %v4302
    %v4304 = vadd.f32 %v4300, %v4303
    %vm4305 = vweird.f32 %v4119
    %vm4306 = vweird.f32 %v4300
    %vm4307 = vmor %vm4305, %vm4306
    %v4308 = vsel %vm4307, %v4300, %v4304
    %v4309 = vand.u32 2147483647, %v4119
    %vm4310 = vcmp.eq.f32.partialorder %v4309, 8.507059e+37
    %v4311 = vand.u32 %v4119, 2147483648
    %v4312 = vor.u32 1.1754944e-38, %v4311
    %v4313 = vsel %vm4310, %v4312, %v4308
    %v4314 = vmul.f32 %v3826, %v4313
    %v4315 = vmul.f32 %v3827, %v4313
    %v4316 = vrcp.pop %v4120
    %v4317 = vmul.f32 %v4120, %v4316
    %v4318 = vsub.f32 1.0, %v4317
    %v4319 = vmul.f32 %v4316, %v4318
    %v4320 = vadd.f32 %v4316, %v4319
    %vm4321 = vweird.f32 %v4120
    %vm4322 = vweird.f32 %v4316
    %vm4323 = vmor %vm4321, %vm4322
    %v4324 = vsel %vm4323, %v4316, %v4320
    %v4325 = vand.u32 2147483647, %v4120
    %vm4326 = vcmp.eq.f32.partialorder %v4325, 8.507059e+37
    %v4327 = vand.u32 %v4120, 2147483648
    %v4328 = vor.u32 1.1754944e-38, %v4327
    %v4329 = vsel %vm4326, %v4328, %v4324
    %v4330 = vmul.f32 %v3828, %v4329
    %v4331 = vmul.f32 %v3829, %v4329
    %v4332 = vrcp.pop %v4121
    %v4333 = vmul.f32 %v4121, %v4332
    %v4334 = vsub.f32 1.0, %v4333
    %v4335 = vmul.f32 %v4332, %v4334
    %v4336 = vadd.f32 %v4332, %v4335
    %vm4337 = vweird.f32 %v4121
    %vm4338 = vweird.f32 %v4332
    %vm4339 = vmor %vm4337, %vm4338
    %v4340 = vsel %vm4339, %v4332, %v4336
    %v4341 = vand.u32 2147483647, %v4121
    %vm4342 = vcmp.eq.f32.partialorder %v4341, 8.507059e+37
    %v4343 = vand.u32 %v4121, 2147483648
    %v4344 = vor.u32 1.1754944e-38, %v4343
    %v4345 = vsel %vm4342, %v4344, %v4340
    %v4346 = vmul.f32 %v3830, %v4345
    %v4347 = vmul.f32 %v3831, %v4345
    %v4348 = vrcp.pop %v4122
    %v4349 = vmul.f32 %v4122, %v4348
    %v4350 = vsub.f32 1.0, %v4349
    %v4351 = vmul.f32 %v4348, %v4350
    %v4352 = vadd.f32 %v4348, %v4351
    %vm4353 = vweird.f32 %v4122
    %vm4354 = vweird.f32 %v4348
    %vm4355 = vmor %vm4353, %vm4354
    %v4356 = vsel %vm4355, %v4348, %v4352
    %v4357 = vand.u32 2147483647, %v4122
    %vm4358 = vcmp.eq.f32.partialorder %v4357, 8.507059e+37
    %v4359 = vand.u32 %v4122, 2147483648
    %v4360 = vor.u32 1.1754944e-38, %v4359
    %v4361 = vsel %vm4358, %v4360, %v4356
    %v4362 = vmul.f32 %v3832, %v4361
    %v4363 = vmul.f32 %v3833, %v4361
    %v4364 = vrcp.pop %v4123
    %v4365 = vmul.f32 %v4123, %v4364
    %v4366 = vsub.f32 1.0, %v4365
    %v4367 = vmul.f32 %v4364, %v4366
    %v4368 = vadd.f32 %v4364, %v4367
    %vm4369 = vweird.f32 %v4123
    %vm4370 = vweird.f32 %v4364
    %vm4371 = vmor %vm4369, %vm4370
    %v4372 = vsel %vm4371, %v4364, %v4368
    %v4373 = vand.u32 2147483647, %v4123
    %vm4374 = vcmp.eq.f32.partialorder %v4373, 8.507059e+37
    %v4375 = vand.u32 %v4123, 2147483648
    %v4376 = vor.u32 1.1754944e-38, %v4375
    %v4377 = vsel %vm4374, %v4376, %v4372
    %v4378 = vmul.f32 %v3834, %v4377
    %v4379 = vmul.f32 %v3835, %v4377
    %v4380 = vpack.c.bf16 %v4154, %v4138
    %v4381 = vpack.c.bf16 %v4155, %v4139
    %v4382 = vpack.c.bf16 %v4186, %v4170
    %v4383 = vpack.c.bf16 %v4187, %v4171
    %v4384 = vpack.c.bf16 %v4218, %v4202
    %v4385 = vpack.c.bf16 %v4219, %v4203
    %v4386 = vpack.c.bf16 %v4250, %v4234
    %v4387 = vpack.c.bf16 %v4251, %v4235
    %v4388 = vpack.c.bf16 %v4282, %v4266
    %v4389 = vpack.c.bf16 %v4283, %v4267
    %v4390 = vpack.c.bf16 %v4314, %v4298
    %v4391 = vpack.c.bf16 %v4315, %v4299
    %v4392 = vpack.c.bf16 %v4346, %v4330
    %v4393 = vpack.c.bf16 %v4347, %v4331
    %v4394 = vpack.c.bf16 %v4378, %v4362
    %v4395 = vpack.c.bf16 %v4379, %v4363
    %v4396 = vld [vmem:[%s9] sm:$0xff]
    %v4397 = vld [vmem:[%s9 + $0x8] sm:$0xff]
    %v4398 = vld [vmem:[%s9 + $0x10] sm:$0xff]
    %v4399 = vld [vmem:[%s9 + $0x18] sm:$0xff]
    %v4400 = vld [vmem:[%s9 + $0x20] sm:$0xff]
    %v4401 = vld [vmem:[%s9 + $0x28] sm:$0xff]
    %v4402 = vld [vmem:[%s9 + $0x30] sm:$0xff]
    %v4403 = vld [vmem:[%s9 + $0x38] sm:$0xff]
    %v4404 = vld [vmem:[%s9 + $0x40] sm:$0xff]
    %v4405 = vld [vmem:[%s9 + $0x48] sm:$0xff]
    %v4406 = vld [vmem:[%s9 + $0x50] sm:$0xff]
    %v4407 = vld [vmem:[%s9 + $0x58] sm:$0xff]
    %v4408 = vld [vmem:[%s9 + $0x60] sm:$0xff]
    %v4409 = vld [vmem:[%s9 + $0x68] sm:$0xff]
    %v4410 = vld [vmem:[%s9 + $0x70] sm:$0xff]
    %v4411 = vld [vmem:[%s9 + $0x78] sm:$0xff]
    %v4412 = vld [vmem:[%s9 + $0x80] sm:$0xff]
    %v4413 = vld [vmem:[%s9 + $0x88] sm:$0xff]
    %v4414 = vld [vmem:[%s9 + $0x90] sm:$0xff]
    %v4415 = vld [vmem:[%s9 + $0x98] sm:$0xff]
    %v4416 = vld [vmem:[%s9 + $0xa0] sm:$0xff]
    %v4417 = vld [vmem:[%s9 + $0xa8] sm:$0xff]
    %v4418 = vld [vmem:[%s9 + $0xb0] sm:$0xff]
    %v4419 = vld [vmem:[%s9 + $0xb8] sm:$0xff]
    %v4420 = vld [vmem:[%s9 + $0xc0] sm:$0xff]
    %v4421 = vld [vmem:[%s9 + $0xc8] sm:$0xff]
    %v4422 = vld [vmem:[%s9 + $0xd0] sm:$0xff]
    %v4423 = vld [vmem:[%s9 + $0xd8] sm:$0xff]
    %v4424 = vld [vmem:[%s9 + $0xe0] sm:$0xff]
    %v4425 = vld [vmem:[%s9 + $0xe8] sm:$0xff]
    %v4426 = vld [vmem:[%s9 + $0xf0] sm:$0xff]
    %v4427 = vld [vmem:[%s9 + $0xf8] sm:$0xff]
    %v4428 = vld [vmem:[%s10] sm:$0x3]
    %v4430 = vperm.slane %v4428, 0
    %v4431 = vperm.slane %v4428, 1
    %v4466 = vunpack.c.l.b16 %v4396
    %v4467 = vunpack.c.h.b16 %v4396
    %v4468 = vunpack.c.l.b16 %v4397
    %v4469 = vunpack.c.h.b16 %v4397
    %v4470 = vunpack.c.l.b16 %v4398
    %v4471 = vunpack.c.h.b16 %v4398
    %v4472 = vunpack.c.l.b16 %v4399
    %v4473 = vunpack.c.h.b16 %v4399
    %v4474 = vunpack.c.l.b16 %v4400
    %v4475 = vunpack.c.h.b16 %v4400
    %v4476 = vunpack.c.l.b16 %v4401
    %v4477 = vunpack.c.h.b16 %v4401
    %v4478 = vunpack.c.l.b16 %v4402
    %v4479 = vunpack.c.h.b16 %v4402
    %v4480 = vunpack.c.l.b16 %v4403
    %v4481 = vunpack.c.h.b16 %v4403
    %v4482 = vunpack.c.l.b16 %v4404
    %v4483 = vunpack.c.h.b16 %v4404
    %v4484 = vunpack.c.l.b16 %v4405
    %v4485 = vunpack.c.h.b16 %v4405
    %v4486 = vunpack.c.l.b16 %v4406
    %v4487 = vunpack.c.h.b16 %v4406
    %v4488 = vunpack.c.l.b16 %v4407
    %v4489 = vunpack.c.h.b16 %v4407
    %v4490 = vunpack.c.l.b16 %v4408
    %v4491 = vunpack.c.h.b16 %v4408
    %v4492 = vunpack.c.l.b16 %v4409
    %v4493 = vunpack.c.h.b16 %v4409
    %v4494 = vunpack.c.l.b16 %v4410
    %v4495 = vunpack.c.h.b16 %v4410
    %v4496 = vunpack.c.l.b16 %v4411
    %v4497 = vunpack.c.h.b16 %v4411
    %v4498 = vunpack.c.l.b16 %v4412
    %v4499 = vunpack.c.h.b16 %v4412
    %v4500 = vunpack.c.l.b16 %v4413
    %v4501 = vunpack.c.h.b16 %v4413
    %v4502 = vunpack.c.l.b16 %v4414
    %v4503 = vunpack.c.h.b16 %v4414
    %v4504 = vunpack.c.l.b16 %v4415
    %v4505 = vunpack.c.h.b16 %v4415
    %v4506 = vunpack.c.l.b16 %v4416
    %v4507 = vunpack.c.h.b16 %v4416
    %v4508 = vunpack.c.l.b16 %v4417
    %v4509 = vunpack.c.h.b16 %v4417
    %v4510 = vunpack.c.l.b16 %v4418
    %v4511 = vunpack.c.h.b16 %v4418
    %v4512 = vunpack.c.l.b16 %v4419
    %v4513 = vunpack.c.h.b16 %v4419
    %v4514 = vunpack.c.l.b16 %v4420
    %v4515 = vunpack.c.h.b16 %v4420
    %v4516 = vunpack.c.l.b16 %v4421
    %v4517 = vunpack.c.h.b16 %v4421
    %v4518 = vunpack.c.l.b16 %v4422
    %v4519 = vunpack.c.h.b16 %v4422
    %v4520 = vunpack.c.l.b16 %v4423
    %v4521 = vunpack.c.h.b16 %v4423
    %v4522 = vunpack.c.l.b16 %v4424
    %v4523 = vunpack.c.h.b16 %v4424
    %v4524 = vunpack.c.l.b16 %v4425
    %v4525 = vunpack.c.h.b16 %v4425
    %v4526 = vunpack.c.l.b16 %v4426
    %v4527 = vunpack.c.h.b16 %v4426
    %v4528 = vunpack.c.l.b16 %v4427
    %v4529 = vunpack.c.h.b16 %v4427
    %v4530 = vpack.c.b16 %v4468, %v4466
    %v4531 = vpack.c.b16 %v4469, %v4467
    %v4532 = vpack.c.b16 %v4472, %v4470
    %v4533 = vpack.c.b16 %v4473, %v4471
    %v4534 = vpack.c.b16 %v4476, %v4474
    %v4535 = vpack.c.b16 %v4477, %v4475
    %v4536 = vpack.c.b16 %v4480, %v4478
    %v4537 = vpack.c.b16 %v4481, %v4479
    %v4538 = vpack.c.b16 %v4484, %v4482
    %v4539 = vpack.c.b16 %v4485, %v4483
    %v4540 = vpack.c.b16 %v4488, %v4486
    %v4541 = vpack.c.b16 %v4489, %v4487
    %v4542 = vpack.c.b16 %v4492, %v4490
    %v4543 = vpack.c.b16 %v4493, %v4491
    %v4544 = vpack.c.b16 %v4496, %v4494
    %v4545 = vpack.c.b16 %v4497, %v4495
    %v4546 = vpack.c.b16 %v4500, %v4498
    %v4547 = vpack.c.b16 %v4501, %v4499
    %v4548 = vpack.c.b16 %v4504, %v4502
    %v4549 = vpack.c.b16 %v4505, %v4503
    %v4550 = vpack.c.b16 %v4508, %v4506
    %v4551 = vpack.c.b16 %v4509, %v4507
    %v4552 = vpack.c.b16 %v4512, %v4510
    %v4553 = vpack.c.b16 %v4513, %v4511
    %v4554 = vpack.c.b16 %v4516, %v4514
    %v4555 = vpack.c.b16 %v4517, %v4515
    %v4556 = vpack.c.b16 %v4520, %v4518
    %v4557 = vpack.c.b16 %v4521, %v4519
    %v4558 = vpack.c.b16 %v4524, %v4522
    %v4559 = vpack.c.b16 %v4525, %v4523
    %v4560 = vpack.c.b16 %v4528, %v4526
    %v4561 = vpack.c.b16 %v4529, %v4527
    %4594 = vmatpush.bf16.msra.mxu0 %v4544
    %4595 = vmatpush.bf16.msra.mxu0 %v4542
    %4596 = vmatpush.bf16.msra.mxu0 %v4540
    %4597 = vmatpush.bf16.msra.mxu0 %v4538
    %4598 = vmatpush.bf16.msra.mxu0 %v4536
    %4599 = vmatpush.bf16.msra.mxu0 %v4534
    %4600 = vmatpush.bf16.msra.mxu0 %v4532
    %4601 = vmatpush.bf16.msra.mxu0 %v4530
    %4602 = vmatmul.bf16.gmra.mxu0 %v4380
    %v4603 = vpop.f32.mrf.mxu0
    %v4604 = vadd.f32 %v4430, %v4603
    %v4605 = vpop.f32.mrf.mxu0
    %v4606 = vadd.f32 %v4430, %v4605
    %4607 = vmatmul.bf16.gmra.mxu0 %v4382
    %v4608 = vpop.f32.mrf.mxu0
    %v4609 = vadd.f32 %v4430, %v4608
    %v4610 = vpop.f32.mrf.mxu0
    %v4611 = vadd.f32 %v4430, %v4610
    %4612 = vmatmul.bf16.gmra.mxu0 %v4384
    %v4613 = vpop.f32.mrf.mxu0
    %v4614 = vadd.f32 %v4430, %v4613
    %v4615 = vpop.f32.mrf.mxu0
    %v4616 = vadd.f32 %v4430, %v4615
    %4617 = vmatmul.bf16.gmra.mxu0 %v4386
    %v4618 = vpop.f32.mrf.mxu0
    %v4619 = vadd.f32 %v4430, %v4618
    %v4620 = vpop.f32.mrf.mxu0
    %v4621 = vadd.f32 %v4430, %v4620
    %4622 = vmatmul.bf16.gmra.mxu0 %v4388
    %v4623 = vpop.f32.mrf.mxu0
    %v4624 = vadd.f32 %v4430, %v4623
    %v4625 = vpop.f32.mrf.mxu0
    %v4626 = vadd.f32 %v4430, %v4625
    %4627 = vmatmul.bf16.gmra.mxu0 %v4390
    %v4628 = vpop.f32.mrf.mxu0
    %v4629 = vadd.f32 %v4430, %v4628
    %v4630 = vpop.f32.mrf.mxu0
    %v4631 = vadd.f32 %v4430, %v4630
    %4632 = vmatmul.bf16.gmra.mxu0 %v4392
    %v4633 = vpop.f32.mrf.mxu0
    %v4634 = vadd.f32 %v4430, %v4633
    %v4635 = vpop.f32.mrf.mxu0
    %v4636 = vadd.f32 %v4430, %v4635
    %4637 = vmatmul.bf16.gmra.mxu0 %v4394
    %v4638 = vpop.f32.mrf.mxu0
    %v4639 = vadd.f32 %v4430, %v4638
    %v4640 = vpop.f32.mrf.mxu0
    %v4641 = vadd.f32 %v4430, %v4640
    %4642 = vdwg.mxu0
    %4643 = vmatpush.bf16.msra.mxu0 %v4560
    %4644 = vmatpush.bf16.msra.mxu0 %v4558
    %4645 = vmatpush.bf16.msra.mxu0 %v4556
    %4646 = vmatpush.bf16.msra.mxu0 %v4554
    %4647 = vmatpush.bf16.msra.mxu0 %v4552
    %4648 = vmatpush.bf16.msra.mxu0 %v4550
    %4649 = vmatpush.bf16.msra.mxu0 %v4548
    %4650 = vmatpush.bf16.msra.mxu0 %v4546
    %4651 = vmatmul.bf16.gmra.mxu0 %v4381
    %v4652 = vpop.f32.mrf.mxu0
    %v4653 = vadd.f32 %v4604, %v4652
    %v4654 = vpop.f32.mrf.mxu0
    %v4655 = vadd.f32 %v4606, %v4654
    %4656 = vmatmul.bf16.gmra.mxu0 %v4383
    %v4657 = vpop.f32.mrf.mxu0
    %v4658 = vadd.f32 %v4609, %v4657
    %v4659 = vpop.f32.mrf.mxu0
    %v4660 = vadd.f32 %v4611, %v4659
    %4661 = vmatmul.bf16.gmra.mxu0 %v4385
    %v4662 = vpop.f32.mrf.mxu0
    %v4663 = vadd.f32 %v4614, %v4662
    %v4664 = vpop.f32.mrf.mxu0
    %v4665 = vadd.f32 %v4616, %v4664
    %4666 = vmatmul.bf16.gmra.mxu0 %v4387
    %v4667 = vpop.f32.mrf.mxu0
    %v4668 = vadd.f32 %v4619, %v4667
    %v4669 = vpop.f32.mrf.mxu0
    %v4670 = vadd.f32 %v4621, %v4669
    %4671 = vmatmul.bf16.gmra.mxu0 %v4389
    %v4672 = vpop.f32.mrf.mxu0
    %v4673 = vadd.f32 %v4624, %v4672
    %v4674 = vpop.f32.mrf.mxu0
    %v4675 = vadd.f32 %v4626, %v4674
    %4676 = vmatmul.bf16.gmra.mxu0 %v4391
    %v4677 = vpop.f32.mrf.mxu0
    %v4678 = vadd.f32 %v4629, %v4677
    %v4679 = vpop.f32.mrf.mxu0
    %v4680 = vadd.f32 %v4631, %v4679
    %4681 = vmatmul.bf16.gmra.mxu0 %v4393
    %v4682 = vpop.f32.mrf.mxu0
    %v4683 = vadd.f32 %v4634, %v4682
    %v4684 = vpop.f32.mrf.mxu0
    %v4685 = vadd.f32 %v4636, %v4684
    %4686 = vmatmul.bf16.gmra.mxu0 %v4395
    %v4687 = vpop.f32.mrf.mxu0
    %v4688 = vadd.f32 %v4639, %v4687
    %v4689 = vpop.f32.mrf.mxu0
    %v4690 = vadd.f32 %v4641, %v4689
    %4691 = vdwg.mxu0
    %4692 = vmatpush.bf16.msra.mxu0 %v4545
    %4693 = vmatpush.bf16.msra.mxu0 %v4543
    %4694 = vmatpush.bf16.msra.mxu0 %v4541
    %4695 = vmatpush.bf16.msra.mxu0 %v4539
    %4696 = vmatpush.bf16.msra.mxu0 %v4537
    %4697 = vmatpush.bf16.msra.mxu0 %v4535
    %4698 = vmatpush.bf16.msra.mxu0 %v4533
    %4699 = vmatpush.bf16.msra.mxu0 %v4531
    %4700 = vmatmul.bf16.gmra.mxu0 %v4380
    %v4701 = vpop.f32.mrf.mxu0
    %v4702 = vadd.f32 %v4431, %v4701
    %v4703 = vpop.f32.mrf.mxu0
    %v4704 = vadd.f32 %v4431, %v4703
    %4705 = vmatmul.bf16.gmra.mxu0 %v4382
    %v4706 = vpop.f32.mrf.mxu0
    %v4707 = vadd.f32 %v4431, %v4706
    %v4708 = vpop.f32.mrf.mxu0
    %v4709 = vadd.f32 %v4431, %v4708
    %4710 = vmatmul.bf16.gmra.mxu0 %v4384
    %v4711 = vpop.f32.mrf.mxu0
    %v4712 = vadd.f32 %v4431, %v4711
    %v4713 = vpop.f32.mrf.mxu0
    %v4714 = vadd.f32 %v4431, %v4713
    %4715 = vmatmul.bf16.gmra.mxu0 %v4386
    %v4716 = vpop.f32.mrf.mxu0
    %v4717 = vadd.f32 %v4431, %v4716
    %v4718 = vpop.f32.mrf.mxu0
    %v4719 = vadd.f32 %v4431, %v4718
    %4720 = vmatmul.bf16.gmra.mxu0 %v4388
    %v4721 = vpop.f32.mrf.mxu0
    %v4722 = vadd.f32 %v4431, %v4721
    %v4723 = vpop.f32.mrf.mxu0
    %v4724 = vadd.f32 %v4431, %v4723
    %4725 = vmatmul.bf16.gmra.mxu0 %v4390
    %v4726 = vpop.f32.mrf.mxu0
    %v4727 = vadd.f32 %v4431, %v4726
    %v4728 = vpop.f32.mrf.mxu0
    %v4729 = vadd.f32 %v4431, %v4728
    %4730 = vmatmul.bf16.gmra.mxu0 %v4392
    %v4731 = vpop.f32.mrf.mxu0
    %v4732 = vadd.f32 %v4431, %v4731
    %v4733 = vpop.f32.mrf.mxu0
    %v4734 = vadd.f32 %v4431, %v4733
    %4735 = vmatmul.bf16.gmra.mxu0 %v4394
    %v4736 = vpop.f32.mrf.mxu0
    %v4737 = vadd.f32 %v4431, %v4736
    %v4738 = vpop.f32.mrf.mxu0
    %v4739 = vadd.f32 %v4431, %v4738
    %4740 = vdwg.mxu0
    %4741 = vmatpush.bf16.msra.mxu0 %v4561
    %4742 = vmatpush.bf16.msra.mxu0 %v4559
    %4743 = vmatpush.bf16.msra.mxu0 %v4557
    %4744 = vmatpush.bf16.msra.mxu0 %v4555
    %4745 = vmatpush.bf16.msra.mxu0 %v4553
    %4746 = vmatpush.bf16.msra.mxu0 %v4551
    %4747 = vmatpush.bf16.msra.mxu0 %v4549
    %4748 = vmatpush.bf16.msra.mxu0 %v4547
    %4749 = vmatmul.bf16.gmra.mxu0 %v4381
    %v4750 = vpop.f32.mrf.mxu0
    %v4751 = vadd.f32 %v4702, %v4750
    %v4752 = vpop.f32.mrf.mxu0
    %v4753 = vadd.f32 %v4704, %v4752
    %4754 = vmatmul.bf16.gmra.mxu0 %v4383
    %v4755 = vpop.f32.mrf.mxu0
    %v4756 = vadd.f32 %v4707, %v4755
    %v4757 = vpop.f32.mrf.mxu0
    %v4758 = vadd.f32 %v4709, %v4757
    %4759 = vmatmul.bf16.gmra.mxu0 %v4385
    %v4760 = vpop.f32.mrf.mxu0
    %v4761 = vadd.f32 %v4712, %v4760
    %v4762 = vpop.f32.mrf.mxu0
    %v4763 = vadd.f32 %v4714, %v4762
    %4764 = vmatmul.bf16.gmra.mxu0 %v4387
    %v4765 = vpop.f32.mrf.mxu0
    %v4766 = vadd.f32 %v4717, %v4765
    %v4767 = vpop.f32.mrf.mxu0
    %v4768 = vadd.f32 %v4719, %v4767
    %4769 = vmatmul.bf16.gmra.mxu0 %v4389
    %v4770 = vpop.f32.mrf.mxu0
    %v4771 = vadd.f32 %v4722, %v4770
    %v4772 = vpop.f32.mrf.mxu0
    %v4773 = vadd.f32 %v4724, %v4772
    %4774 = vmatmul.bf16.gmra.mxu0 %v4391
    %v4775 = vpop.f32.mrf.mxu0
    %v4776 = vadd.f32 %v4727, %v4775
    %v4777 = vpop.f32.mrf.mxu0
    %v4778 = vadd.f32 %v4729, %v4777
    %4779 = vmatmul.bf16.gmra.mxu0 %v4393
    %v4780 = vpop.f32.mrf.mxu0
    %v4781 = vadd.f32 %v4732, %v4780
    %v4782 = vpop.f32.mrf.mxu0
    %v4783 = vadd.f32 %v4734, %v4782
    %4784 = vmatmul.bf16.gmra.mxu0 %v4395
    %v4785 = vpop.f32.mrf.mxu0
    %v4786 = vadd.f32 %v4737, %v4785
    %v4787 = vpop.f32.mrf.mxu0
    %v4788 = vadd.f32 %v4739, %v4787
    %4789 = vdwg.mxu0
    %v4790 = vld [vmem:[%s11] sm:$0x3]
    %v4791 = vld [vmem:[%s12] sm:$0x3]
    %v4792 = vadd.f32 %v4653, %v4751
    %4793 = vadd.xlane.f32.xlu0 %v4792
    %v4794 = vpop.xlane.xlu0 %4793
    %v4795 = vadd.f32 %v4655, %v4753
    %4796 = vadd.xlane.f32.xlu0 %v4795
    %v4797 = vpop.xlane.xlu0 %4796
    %v4798 = vadd.f32 %v4658, %v4756
    %4799 = vadd.xlane.f32.xlu0 %v4798
    %v4800 = vpop.xlane.xlu0 %4799
    %v4801 = vadd.f32 %v4660, %v4758
    %4802 = vadd.xlane.f32.xlu0 %v4801
    %v4803 = vpop.xlane.xlu0 %4802
    %v4804 = vadd.f32 %v4663, %v4761
    %4805 = vadd.xlane.f32.xlu0 %v4804
    %v4806 = vpop.xlane.xlu0 %4805
    %v4807 = vadd.f32 %v4665, %v4763
    %4808 = vadd.xlane.f32.xlu0 %v4807
    %v4809 = vpop.xlane.xlu0 %4808
    %v4810 = vadd.f32 %v4668, %v4766
    %4811 = vadd.xlane.f32.xlu0 %v4810
    %v4812 = vpop.xlane.xlu0 %4811
    %v4813 = vadd.f32 %v4670, %v4768
    %4814 = vadd.xlane.f32.xlu0 %v4813
    %v4815 = vpop.xlane.xlu0 %4814
    %v4816 = vadd.f32 %v4673, %v4771
    %4817 = vadd.xlane.f32.xlu0 %v4816
    %v4818 = vpop.xlane.xlu0 %4817
    %v4819 = vadd.f32 %v4675, %v4773
    %4820 = vadd.xlane.f32.xlu0 %v4819
    %v4821 = vpop.xlane.xlu0 %4820
    %v4822 = vadd.f32 %v4678, %v4776
    %4823 = vadd.xlane.f32.xlu0 %v4822
    %v4824 = vpop.xlane.xlu0 %4823
    %v4825 = vadd.f32 %v4680, %v4778
    %4826 = vadd.xlane.f32.xlu0 %v4825
    %v4827 = vpop.xlane.xlu0 %4826
    %v4828 = vadd.f32 %v4683, %v4781
    %4829 = vadd.xlane.f32.xlu0 %v4828
    %v4830 = vpop.xlane.xlu0 %4829
    %v4831 = vadd.f32 %v4685, %v4783
    %4832 = vadd.xlane.f32.xlu0 %v4831
    %v4833 = vpop.xlane.xlu0 %4832
    %v4834 = vadd.f32 %v4688, %v4786
    %4835 = vadd.xlane.f32.xlu0 %v4834
    %v4836 = vpop.xlane.xlu0 %4835
    %v4837 = vadd.f32 %v4690, %v4788
    %4838 = vadd.xlane.f32.xlu0 %v4837
    %v4839 = vpop.xlane.xlu0 %4838
    %v4840 = vmul.f32 %v4794, %v3409
    %v4841 = vmul.f32 %v4797, %v3409
    %v4842 = vmul.f32 %v4800, %v3409
    %v4843 = vmul.f32 %v4803, %v3409
    %v4844 = vmul.f32 %v4806, %v3409
    %v4845 = vmul.f32 %v4809, %v3409
    %v4846 = vmul.f32 %v4812, %v3409
    %v4847 = vmul.f32 %v4815, %v3409
    %v4848 = vmul.f32 %v4818, %v3409
    %v4849 = vmul.f32 %v4821, %v3409
    %v4850 = vmul.f32 %v4824, %v3409
    %v4851 = vmul.f32 %v4827, %v3409
    %v4852 = vmul.f32 %v4830, %v3409
    %v4853 = vmul.f32 %v4833, %v3409
    %v4854 = vmul.f32 %v4836, %v3409
    %v4855 = vmul.f32 %v4839, %v3409
    %v4856 = vsub.f32 %v4653, %v4840
    %v4857 = vsub.f32 %v4751, %v4840
    %v4858 = vsub.f32 %v4655, %v4841
    %v4859 = vsub.f32 %v4753, %v4841
    %v4860 = vsub.f32 %v4658, %v4842
    %v4861 = vsub.f32 %v4756, %v4842
    %v4862 = vsub.f32 %v4660, %v4843
    %v4863 = vsub.f32 %v4758, %v4843
    %v4864 = vsub.f32 %v4663, %v4844
    %v4865 = vsub.f32 %v4761, %v4844
    %v4866 = vsub.f32 %v4665, %v4845
    %v4867 = vsub.f32 %v4763, %v4845
    %v4868 = vsub.f32 %v4668, %v4846
    %v4869 = vsub.f32 %v4766, %v4846
    %v4870 = vsub.f32 %v4670, %v4847
    %v4871 = vsub.f32 %v4768, %v4847
    %v4872 = vsub.f32 %v4673, %v4848
    %v4873 = vsub.f32 %v4771, %v4848
    %v4874 = vsub.f32 %v4675, %v4849
    %v4875 = vsub.f32 %v4773, %v4849
    %v4876 = vsub.f32 %v4678, %v4850
    %v4877 = vsub.f32 %v4776, %v4850
    %v4878 = vsub.f32 %v4680, %v4851
    %v4879 = vsub.f32 %v4778, %v4851
    %v4880 = vsub.f32 %v4683, %v4852
    %v4881 = vsub.f32 %v4781, %v4852
    %v4882 = vsub.f32 %v4685, %v4853
    %v4883 = vsub.f32 %v4783, %v4853
    %v4884 = vsub.f32 %v4688, %v4854
    %v4885 = vsub.f32 %v4786, %v4854
    %v4886 = vsub.f32 %v4690, %v4855
    %v4887 = vsub.f32 %v4788, %v4855
    %v4888 = vmul.f32 %v4856, %v4856
    %v4889 = vmul.f32 %v4857, %v4857
    %v4890 = vmul.f32 %v4858, %v4858
    %v4891 = vmul.f32 %v4859, %v4859
    %v4892 = vmul.f32 %v4860, %v4860
    %v4893 = vmul.f32 %v4861, %v4861
    %v4894 = vmul.f32 %v4862, %v4862
    %v4895 = vmul.f32 %v4863, %v4863
    %v4896 = vmul.f32 %v4864, %v4864
    %v4897 = vmul.f32 %v4865, %v4865
    %v4898 = vmul.f32 %v4866, %v4866
    %v4899 = vmul.f32 %v4867, %v4867
    %v4900 = vmul.f32 %v4868, %v4868
    %v4901 = vmul.f32 %v4869, %v4869
    %v4902 = vmul.f32 %v4870, %v4870
    %v4903 = vmul.f32 %v4871, %v4871
    %v4904 = vmul.f32 %v4872, %v4872
    %v4905 = vmul.f32 %v4873, %v4873
    %v4906 = vmul.f32 %v4874, %v4874
    %v4907 = vmul.f32 %v4875, %v4875
    %v4908 = vmul.f32 %v4876, %v4876
    %v4909 = vmul.f32 %v4877, %v4877
    %v4910 = vmul.f32 %v4878, %v4878
    %v4911 = vmul.f32 %v4879, %v4879
    %v4912 = vmul.f32 %v4880, %v4880
    %v4913 = vmul.f32 %v4881, %v4881
    %v4914 = vmul.f32 %v4882, %v4882
    %v4915 = vmul.f32 %v4883, %v4883
    %v4916 = vmul.f32 %v4884, %v4884
    %v4917 = vmul.f32 %v4885, %v4885
    %v4918 = vmul.f32 %v4886, %v4886
    %v4919 = vmul.f32 %v4887, %v4887
    %v4920 = vadd.f32 %v4888, %v4889
    %4921 = vadd.xlane.f32.xlu0 %v4920
    %v4922 = vpop.xlane.xlu0 %4921
    %v4923 = vadd.f32 %v4890, %v4891
    %4924 = vadd.xlane.f32.xlu0 %v4923
    %v4925 = vpop.xlane.xlu0 %4924
    %v4926 = vadd.f32 %v4892, %v4893
    %4927 = vadd.xlane.f32.xlu0 %v4926
    %v4928 = vpop.xlane.xlu0 %4927
    %v4929 = vadd.f32 %v4894, %v4895
    %4930 = vadd.xlane.f32.xlu0 %v4929
    %v4931 = vpop.xlane.xlu0 %4930
    %v4932 = vadd.f32 %v4896, %v4897
    %4933 = vadd.xlane.f32.xlu0 %v4932
    %v4934 = vpop.xlane.xlu0 %4933
    %v4935 = vadd.f32 %v4898, %v4899
    %4936 = vadd.xlane.f32.xlu0 %v4935
    %v4937 = vpop.xlane.xlu0 %4936
    %v4938 = vadd.f32 %v4900, %v4901
    %4939 = vadd.xlane.f32.xlu0 %v4938
    %v4940 = vpop.xlane.xlu0 %4939
    %v4941 = vadd.f32 %v4902, %v4903
    %4942 = vadd.xlane.f32.xlu0 %v4941
    %v4943 = vpop.xlane.xlu0 %4942
    %v4944 = vadd.f32 %v4904, %v4905
    %4945 = vadd.xlane.f32.xlu0 %v4944
    %v4946 = vpop.xlane.xlu0 %4945
    %v4947 = vadd.f32 %v4906, %v4907
    %4948 = vadd.xlane.f32.xlu0 %v4947
    %v4949 = vpop.xlane.xlu0 %4948
    %v4950 = vadd.f32 %v4908, %v4909
    %4951 = vadd.xlane.f32.xlu0 %v4950
    %v4952 = vpop.xlane.xlu0 %4951
    %v4953 = vadd.f32 %v4910, %v4911
    %4954 = vadd.xlane.f32.xlu0 %v4953
    %v4955 = vpop.xlane.xlu0 %4954
    %v4956 = vadd.f32 %v4912, %v4913
    %4957 = vadd.xlane.f32.xlu0 %v4956
    %v4958 = vpop.xlane.xlu0 %4957
    %v4959 = vadd.f32 %v4914, %v4915
    %4960 = vadd.xlane.f32.xlu0 %v4959
    %v4961 = vpop.xlane.xlu0 %4960
    %v4962 = vadd.f32 %v4916, %v4917
    %4963 = vadd.xlane.f32.xlu0 %v4962
    %v4964 = vpop.xlane.xlu0 %4963
    %v4965 = vadd.f32 %v4918, %v4919
    %4966 = vadd.xlane.f32.xlu0 %v4965
    %v4967 = vpop.xlane.xlu0 %4966
    %v4968 = vmul.f32 %v4922, %v3409
    %v4969 = vmul.f32 %v4925, %v3409
    %v4970 = vmul.f32 %v4928, %v3409
    %v4971 = vmul.f32 %v4931, %v3409
    %v4972 = vmul.f32 %v4934, %v3409
    %v4973 = vmul.f32 %v4937, %v3409
    %v4974 = vmul.f32 %v4940, %v3409
    %v4975 = vmul.f32 %v4943, %v3409
    %v4976 = vmul.f32 %v4946, %v3409
    %v4977 = vmul.f32 %v4949, %v3409
    %v4978 = vmul.f32 %v4952, %v3409
    %v4979 = vmul.f32 %v4955, %v3409
    %v4980 = vmul.f32 %v4958, %v3409
    %v4981 = vmul.f32 %v4961, %v3409
    %v4982 = vmul.f32 %v4964, %v3409
    %v4983 = vmul.f32 %v4967, %v3409
    %v4984 = vadd.f32 %v4968, 1e-05
    %v4985 = vadd.f32 %v4969, 1e-05
    %v4986 = vadd.f32 %v4970, 1e-05
    %v4987 = vadd.f32 %v4971, 1e-05
    %v4988 = vadd.f32 %v4972, 1e-05
    %v4989 = vadd.f32 %v4973, 1e-05
    %v4990 = vadd.f32 %v4974, 1e-05
    %v4991 = vadd.f32 %v4975, 1e-05
    %v4992 = vadd.f32 %v4976, 1e-05
    %v4993 = vadd.f32 %v4977, 1e-05
    %v4994 = vadd.f32 %v4978, 1e-05
    %v4995 = vadd.f32 %v4979, 1e-05
    %v4996 = vadd.f32 %v4980, 1e-05
    %v4997 = vadd.f32 %v4981, 1e-05
    %v4998 = vadd.f32 %v4982, 1e-05
    %v4999 = vadd.f32 %v4983, 1e-05
    %v5000 = vrsqrt.pop %v4984
    %v5001 = vmul.f32 %v5000, %v4984
    %v5002 = vmul.f32 %v5001, %v5000
    %v5003 = vmul.f32 0.5, %v5002
    %v5004 = vsub.f32 1.5, %v5003
    %v5005 = vmul.f32 %v5000, %v5004
    %vm5006 = vweird.f32 %v4984
    %vm5007 = vweird.f32 %v5000
    %vm5008 = vmor %vm5006, %vm5007
    %v5009 = vsel %vm5008, %v5000, %v5005
    %v5010 = vrsqrt.pop %v4985
    %v5011 = vmul.f32 %v5010, %v4985
    %v5012 = vmul.f32 %v5011, %v5010
    %v5013 = vmul.f32 0.5, %v5012
    %v5014 = vsub.f32 1.5, %v5013
    %v5015 = vmul.f32 %v5010, %v5014
    %vm5016 = vweird.f32 %v4985
    %vm5017 = vweird.f32 %v5010
    %vm5018 = vmor %vm5016, %vm5017
    %v5019 = vsel %vm5018, %v5010, %v5015
    %v5020 = vrsqrt.pop %v4986
    %v5021 = vmul.f32 %v5020, %v4986
    %v5022 = vmul.f32 %v5021, %v5020
    %v5023 = vmul.f32 0.5, %v5022
    %v5024 = vsub.f32 1.5, %v5023
    %v5025 = vmul.f32 %v5020, %v5024
    %vm5026 = vweird.f32 %v4986
    %vm5027 = vweird.f32 %v5020
    %vm5028 = vmor %vm5026, %vm5027
    %v5029 = vsel %vm5028, %v5020, %v5025
    %v5030 = vrsqrt.pop %v4987
    %v5031 = vmul.f32 %v5030, %v4987
    %v5032 = vmul.f32 %v5031, %v5030
    %v5033 = vmul.f32 0.5, %v5032
    %v5034 = vsub.f32 1.5, %v5033
    %v5035 = vmul.f32 %v5030, %v5034
    %vm5036 = vweird.f32 %v4987
    %vm5037 = vweird.f32 %v5030
    %vm5038 = vmor %vm5036, %vm5037
    %v5039 = vsel %vm5038, %v5030, %v5035
    %v5040 = vrsqrt.pop %v4988
    %v5041 = vmul.f32 %v5040, %v4988
    %v5042 = vmul.f32 %v5041, %v5040
    %v5043 = vmul.f32 0.5, %v5042
    %v5044 = vsub.f32 1.5, %v5043
    %v5045 = vmul.f32 %v5040, %v5044
    %vm5046 = vweird.f32 %v4988
    %vm5047 = vweird.f32 %v5040
    %vm5048 = vmor %vm5046, %vm5047
    %v5049 = vsel %vm5048, %v5040, %v5045
    %v5050 = vrsqrt.pop %v4989
    %v5051 = vmul.f32 %v5050, %v4989
    %v5052 = vmul.f32 %v5051, %v5050
    %v5053 = vmul.f32 0.5, %v5052
    %v5054 = vsub.f32 1.5, %v5053
    %v5055 = vmul.f32 %v5050, %v5054
    %vm5056 = vweird.f32 %v4989
    %vm5057 = vweird.f32 %v5050
    %vm5058 = vmor %vm5056, %vm5057
    %v5059 = vsel %vm5058, %v5050, %v5055
    %v5060 = vrsqrt.pop %v4990
    %v5061 = vmul.f32 %v5060, %v4990
    %v5062 = vmul.f32 %v5061, %v5060
    %v5063 = vmul.f32 0.5, %v5062
    %v5064 = vsub.f32 1.5, %v5063
    %v5065 = vmul.f32 %v5060, %v5064
    %vm5066 = vweird.f32 %v4990
    %vm5067 = vweird.f32 %v5060
    %vm5068 = vmor %vm5066, %vm5067
    %v5069 = vsel %vm5068, %v5060, %v5065
    %v5070 = vrsqrt.pop %v4991
    %v5071 = vmul.f32 %v5070, %v4991
    %v5072 = vmul.f32 %v5071, %v5070
    %v5073 = vmul.f32 0.5, %v5072
    %v5074 = vsub.f32 1.5, %v5073
    %v5075 = vmul.f32 %v5070, %v5074
    %vm5076 = vweird.f32 %v4991
    %vm5077 = vweird.f32 %v5070
    %vm5078 = vmor %vm5076, %vm5077
    %v5079 = vsel %vm5078, %v5070, %v5075
    %v5080 = vrsqrt.pop %v4992
    %v5081 = vmul.f32 %v5080, %v4992
    %v5082 = vmul.f32 %v5081, %v5080
    %v5083 = vmul.f32 0.5, %v5082
    %v5084 = vsub.f32 1.5, %v5083
    %v5085 = vmul.f32 %v5080, %v5084
    %vm5086 = vweird.f32 %v4992
    %vm5087 = vweird.f32 %v5080
    %vm5088 = vmor %vm5086, %vm5087
    %v5089 = vsel %vm5088, %v5080, %v5085
    %v5090 = vrsqrt.pop %v4993
    %v5091 = vmul.f32 %v5090, %v4993
    %v5092 = vmul.f32 %v5091, %v5090
    %v5093 = vmul.f32 0.5, %v5092
    %v5094 = vsub.f32 1.5, %v5093
    %v5095 = vmul.f32 %v5090, %v5094
    %vm5096 = vweird.f32 %v4993
    %vm5097 = vweird.f32 %v5090
    %vm5098 = vmor %vm5096, %vm5097
    %v5099 = vsel %vm5098, %v5090, %v5095
    %v5100 = vrsqrt.pop %v4994
    %v5101 = vmul.f32 %v5100, %v4994
    %v5102 = vmul.f32 %v5101, %v5100
    %v5103 = vmul.f32 0.5, %v5102
    %v5104 = vsub.f32 1.5, %v5103
    %v5105 = vmul.f32 %v5100, %v5104
    %vm5106 = vweird.f32 %v4994
    %vm5107 = vweird.f32 %v5100
    %vm5108 = vmor %vm5106, %vm5107
    %v5109 = vsel %vm5108, %v5100, %v5105
    %v5110 = vrsqrt.pop %v4995
    %v5111 = vmul.f32 %v5110, %v4995
    %v5112 = vmul.f32 %v5111, %v5110
    %v5113 = vmul.f32 0.5, %v5112
    %v5114 = vsub.f32 1.5, %v5113
    %v5115 = vmul.f32 %v5110, %v5114
    %vm5116 = vweird.f32 %v4995
    %vm5117 = vweird.f32 %v5110
    %vm5118 = vmor %vm5116, %vm5117
    %v5119 = vsel %vm5118, %v5110, %v5115
    %v5120 = vrsqrt.pop %v4996
    %v5121 = vmul.f32 %v5120, %v4996
    %v5122 = vmul.f32 %v5121, %v5120
    %v5123 = vmul.f32 0.5, %v5122
    %v5124 = vsub.f32 1.5, %v5123
    %v5125 = vmul.f32 %v5120, %v5124
    %vm5126 = vweird.f32 %v4996
    %vm5127 = vweird.f32 %v5120
    %vm5128 = vmor %vm5126, %vm5127
    %v5129 = vsel %vm5128, %v5120, %v5125
    %v5130 = vrsqrt.pop %v4997
    %v5131 = vmul.f32 %v5130, %v4997
    %v5132 = vmul.f32 %v5131, %v5130
    %v5133 = vmul.f32 0.5, %v5132
    %v5134 = vsub.f32 1.5, %v5133
    %v5135 = vmul.f32 %v5130, %v5134
    %vm5136 = vweird.f32 %v4997
    %vm5137 = vweird.f32 %v5130
    %vm5138 = vmor %vm5136, %vm5137
    %v5139 = vsel %vm5138, %v5130, %v5135
    %v5140 = vrsqrt.pop %v4998
    %v5141 = vmul.f32 %v5140, %v4998
    %v5142 = vmul.f32 %v5141, %v5140
    %v5143 = vmul.f32 0.5, %v5142
    %v5144 = vsub.f32 1.5, %v5143
    %v5145 = vmul.f32 %v5140, %v5144
    %vm5146 = vweird.f32 %v4998
    %vm5147 = vweird.f32 %v5140
    %vm5148 = vmor %vm5146, %vm5147
    %v5149 = vsel %vm5148, %v5140, %v5145
    %v5150 = vrsqrt.pop %v4999
    %v5151 = vmul.f32 %v5150, %v4999
    %v5152 = vmul.f32 %v5151, %v5150
    %v5153 = vmul.f32 0.5, %v5152
    %v5154 = vsub.f32 1.5, %v5153
    %v5155 = vmul.f32 %v5150, %v5154
    %vm5156 = vweird.f32 %v4999
    %vm5157 = vweird.f32 %v5150
    %vm5158 = vmor %vm5156, %vm5157
    %v5159 = vsel %vm5158, %v5150, %v5155
    %v5160 = vmul.f32 %v4856, %v5009
    %v5161 = vmul.f32 %v4857, %v5009
    %v5162 = vmul.f32 %v4858, %v5019
    %v5163 = vmul.f32 %v4859, %v5019
    %v5164 = vmul.f32 %v4860, %v5029
    %v5165 = vmul.f32 %v4861, %v5029
    %v5166 = vmul.f32 %v4862, %v5039
    %v5167 = vmul.f32 %v4863, %v5039
    %v5168 = vmul.f32 %v4864, %v5049
    %v5169 = vmul.f32 %v4865, %v5049
    %v5170 = vmul.f32 %v4866, %v5059
    %v5171 = vmul.f32 %v4867, %v5059
    %v5172 = vmul.f32 %v4868, %v5069
    %v5173 = vmul.f32 %v4869, %v5069
    %v5174 = vmul.f32 %v4870, %v5079
    %v5175 = vmul.f32 %v4871, %v5079
    %v5176 = vmul.f32 %v4872, %v5089
    %v5177 = vmul.f32 %v4873, %v5089
    %v5178 = vmul.f32 %v4874, %v5099
    %v5179 = vmul.f32 %v4875, %v5099
    %v5180 = vmul.f32 %v4876, %v5109
    %v5181 = vmul.f32 %v4877, %v5109
    %v5182 = vmul.f32 %v4878, %v5119
    %v5183 = vmul.f32 %v4879, %v5119
    %v5184 = vmul.f32 %v4880, %v5129
    %v5185 = vmul.f32 %v4881, %v5129
    %v5186 = vmul.f32 %v4882, %v5139
    %v5187 = vmul.f32 %v4883, %v5139
    %v5188 = vmul.f32 %v4884, %v5149
    %v5189 = vmul.f32 %v4885, %v5149
    %v5190 = vmul.f32 %v4886, %v5159
    %v5191 = vmul.f32 %v4887, %v5159
    %v5193 = vperm.slane %v4790, 0
    %v5194 = vperm.slane %v4790, 1
    %v5197 = vmul.f32 %v5160, %v5193
    %v5198 = vmul.f32 %v5161, %v5194
    %v5199 = vmul.f32 %v5162, %v5193
    %v5200 = vmul.f32 %v5163, %v5194
    %v5201 = vmul.f32 %v5164, %v5193
    %v5202 = vmul.f32 %v5165, %v5194
    %v5203 = vmul.f32 %v5166, %v5193
    %v5204 = vmul.f32 %v5167, %v5194
    %v5205 = vmul.f32 %v5168, %v5193
    %v5206 = vmul.f32 %v5169, %v5194
    %v5207 = vmul.f32 %v5170, %v5193
    %v5208 = vmul.f32 %v5171, %v5194
    %v5209 = vmul.f32 %v5172, %v5193
    %v5210 = vmul.f32 %v5173, %v5194
    %v5211 = vmul.f32 %v5174, %v5193
    %v5212 = vmul.f32 %v5175, %v5194
    %v5213 = vmul.f32 %v5176, %v5193
    %v5214 = vmul.f32 %v5177, %v5194
    %v5215 = vmul.f32 %v5178, %v5193
    %v5216 = vmul.f32 %v5179, %v5194
    %v5217 = vmul.f32 %v5180, %v5193
    %v5218 = vmul.f32 %v5181, %v5194
    %v5219 = vmul.f32 %v5182, %v5193
    %v5220 = vmul.f32 %v5183, %v5194
    %v5221 = vmul.f32 %v5184, %v5193
    %v5222 = vmul.f32 %v5185, %v5194
    %v5223 = vmul.f32 %v5186, %v5193
    %v5224 = vmul.f32 %v5187, %v5194
    %v5225 = vmul.f32 %v5188, %v5193
    %v5226 = vmul.f32 %v5189, %v5194
    %v5227 = vmul.f32 %v5190, %v5193
    %v5228 = vmul.f32 %v5191, %v5194
    %v5230 = vperm.slane %v4791, 0
    %v5231 = vperm.slane %v4791, 1
    %v5234 = vadd.f32 %v5197, %v5230
    %v5235 = vadd.f32 %v5198, %v5231
    %v5236 = vadd.f32 %v5199, %v5230
    %v5237 = vadd.f32 %v5200, %v5231
    %v5238 = vadd.f32 %v5201, %v5230
    %v5239 = vadd.f32 %v5202, %v5231
    %v5240 = vadd.f32 %v5203, %v5230
    %v5241 = vadd.f32 %v5204, %v5231
    %v5242 = vadd.f32 %v5205, %v5230
    %v5243 = vadd.f32 %v5206, %v5231
    %v5244 = vadd.f32 %v5207, %v5230
    %v5245 = vadd.f32 %v5208, %v5231
    %v5246 = vadd.f32 %v5209, %v5230
    %v5247 = vadd.f32 %v5210, %v5231
    %v5248 = vadd.f32 %v5211, %v5230
    %v5249 = vadd.f32 %v5212, %v5231
    %v5250 = vadd.f32 %v5213, %v5230
    %v5251 = vadd.f32 %v5214, %v5231
    %v5252 = vadd.f32 %v5215, %v5230
    %v5253 = vadd.f32 %v5216, %v5231
    %v5254 = vadd.f32 %v5217, %v5230
    %v5255 = vadd.f32 %v5218, %v5231
    %v5256 = vadd.f32 %v5219, %v5230
    %v5257 = vadd.f32 %v5220, %v5231
    %v5258 = vadd.f32 %v5221, %v5230
    %v5259 = vadd.f32 %v5222, %v5231
    %v5260 = vadd.f32 %v5223, %v5230
    %v5261 = vadd.f32 %v5224, %v5231
    %v5262 = vadd.f32 %v5225, %v5230
    %v5263 = vadd.f32 %v5226, %v5231
    %v5264 = vadd.f32 %v5227, %v5230
    %v5265 = vadd.f32 %v5228, %v5231
    %v5266 = vmul.f32 %v5234, %v5234
    %v5267 = vmul.f32 %v5235, %v5235
    %v5268 = vmul.f32 %v5236, %v5236
    %v5269 = vmul.f32 %v5237, %v5237
    %v5270 = vmul.f32 %v5238, %v5238
    %v5271 = vmul.f32 %v5239, %v5239
    %v5272 = vmul.f32 %v5240, %v5240
    %v5273 = vmul.f32 %v5241, %v5241
    %v5274 = vmul.f32 %v5242, %v5242
    %v5275 = vmul.f32 %v5243, %v5243
    %v5276 = vmul.f32 %v5244, %v5244
    %v5277 = vmul.f32 %v5245, %v5245
    %v5278 = vmul.f32 %v5246, %v5246
    %v5279 = vmul.f32 %v5247, %v5247
    %v5280 = vmul.f32 %v5248, %v5248
    %v5281 = vmul.f32 %v5249, %v5249
    %v5282 = vmul.f32 %v5250, %v5250
    %v5283 = vmul.f32 %v5251, %v5251
    %v5284 = vmul.f32 %v5252, %v5252
    %v5285 = vmul.f32 %v5253, %v5253
    %v5286 = vmul.f32 %v5254, %v5254
    %v5287 = vmul.f32 %v5255, %v5255
    %v5288 = vmul.f32 %v5256, %v5256
    %v5289 = vmul.f32 %v5257, %v5257
    %v5290 = vmul.f32 %v5258, %v5258
    %v5291 = vmul.f32 %v5259, %v5259
    %v5292 = vmul.f32 %v5260, %v5260
    %v5293 = vmul.f32 %v5261, %v5261
    %v5294 = vmul.f32 %v5262, %v5262
    %v5295 = vmul.f32 %v5263, %v5263
    %v5296 = vmul.f32 %v5264, %v5264
    %v5297 = vmul.f32 %v5265, %v5265
    %v5298 = vadd.f32 %v5266, %v5267
    %5299 = vadd.xlane.f32.xlu0 %v5298
    %v5300 = vpop.xlane.xlu0 %5299
    %v5301 = vadd.f32 %v5268, %v5269
    %5302 = vadd.xlane.f32.xlu0 %v5301
    %v5303 = vpop.xlane.xlu0 %5302
    %v5304 = vadd.f32 %v5270, %v5271
    %5305 = vadd.xlane.f32.xlu0 %v5304
    %v5306 = vpop.xlane.xlu0 %5305
    %v5307 = vadd.f32 %v5272, %v5273
    %5308 = vadd.xlane.f32.xlu0 %v5307
    %v5309 = vpop.xlane.xlu0 %5308
    %v5310 = vadd.f32 %v5274, %v5275
    %5311 = vadd.xlane.f32.xlu0 %v5310
    %v5312 = vpop.xlane.xlu0 %5311
    %v5313 = vadd.f32 %v5276, %v5277
    %5314 = vadd.xlane.f32.xlu0 %v5313
    %v5315 = vpop.xlane.xlu0 %5314
    %v5316 = vadd.f32 %v5278, %v5279
    %5317 = vadd.xlane.f32.xlu0 %v5316
    %v5318 = vpop.xlane.xlu0 %5317
    %v5319 = vadd.f32 %v5280, %v5281
    %5320 = vadd.xlane.f32.xlu0 %v5319
    %v5321 = vpop.xlane.xlu0 %5320
    %v5322 = vadd.f32 %v5282, %v5283
    %5323 = vadd.xlane.f32.xlu0 %v5322
    %v5324 = vpop.xlane.xlu0 %5323
    %v5325 = vadd.f32 %v5284, %v5285
    %5326 = vadd.xlane.f32.xlu0 %v5325
    %v5327 = vpop.xlane.xlu0 %5326
    %v5328 = vadd.f32 %v5286, %v5287
    %5329 = vadd.xlane.f32.xlu0 %v5328
    %v5330 = vpop.xlane.xlu0 %5329
    %v5331 = vadd.f32 %v5288, %v5289
    %5332 = vadd.xlane.f32.xlu0 %v5331
    %v5333 = vpop.xlane.xlu0 %5332
    %v5334 = vadd.f32 %v5290, %v5291
    %5335 = vadd.xlane.f32.xlu0 %v5334
    %v5336 = vpop.xlane.xlu0 %5335
    %v5337 = vadd.f32 %v5292, %v5293
    %5338 = vadd.xlane.f32.xlu0 %v5337
    %v5339 = vpop.xlane.xlu0 %5338
    %v5340 = vadd.f32 %v5294, %v5295
    %5341 = vadd.xlane.f32.xlu0 %v5340
    %v5342 = vpop.xlane.xlu0 %5341
    %v5343 = vadd.f32 %v5296, %v5297
    %5344 = vadd.xlane.f32.xlu0 %v5343
    %v5345 = vpop.xlane.xlu0 %5344
    %v5346 = vrsqrt.pop %v5300
    %v5347 = vmul.f32 %v5346, %v5300
    %v5348 = vmul.f32 %v5347, %v5346
    %v5349 = vmul.f32 0.5, %v5348
    %v5350 = vsub.f32 1.5, %v5349
    %v5351 = vmul.f32 %v5346, %v5350
    %v5352 = vmul.f32 %v5300, %v5351
    %vm5353 = vcmp.eq.f32.partialorder %v5300, inf
    %v5354 = vsel %vm5353, %v5300, %v5352
    %vm5355 = vcmp.eq.f32.partialorder %v5300, 0.0
    %v5356 = vand.u32 %v5300, 2147483648
    %v5357 = vsel %vm5355, %v5356, %v5354
    %v5358 = vrsqrt.pop %v5303
    %v5359 = vmul.f32 %v5358, %v5303
    %v5360 = vmul.f32 %v5359, %v5358
    %v5361 = vmul.f32 0.5, %v5360
    %v5362 = vsub.f32 1.5, %v5361
    %v5363 = vmul.f32 %v5358, %v5362
    %v5364 = vmul.f32 %v5303, %v5363
    %vm5365 = vcmp.eq.f32.partialorder %v5303, inf
    %v5366 = vsel %vm5365, %v5303, %v5364
    %vm5367 = vcmp.eq.f32.partialorder %v5303, 0.0
    %v5368 = vand.u32 %v5303, 2147483648
    %v5369 = vsel %vm5367, %v5368, %v5366
    %v5370 = vrsqrt.pop %v5306
    %v5371 = vmul.f32 %v5370, %v5306
    %v5372 = vmul.f32 %v5371, %v5370
    %v5373 = vmul.f32 0.5, %v5372
    %v5374 = vsub.f32 1.5, %v5373
    %v5375 = vmul.f32 %v5370, %v5374
    %v5376 = vmul.f32 %v5306, %v5375
    %vm5377 = vcmp.eq.f32.partialorder %v5306, inf
    %v5378 = vsel %vm5377, %v5306, %v5376
    %vm5379 = vcmp.eq.f32.partialorder %v5306, 0.0
    %v5380 = vand.u32 %v5306, 2147483648
    %v5381 = vsel %vm5379, %v5380, %v5378
    %v5382 = vrsqrt.pop %v5309
    %v5383 = vmul.f32 %v5382, %v5309
    %v5384 = vmul.f32 %v5383, %v5382
    %v5385 = vmul.f32 0.5, %v5384
    %v5386 = vsub.f32 1.5, %v5385
    %v5387 = vmul.f32 %v5382, %v5386
    %v5388 = vmul.f32 %v5309, %v5387
    %vm5389 = vcmp.eq.f32.partialorder %v5309, inf
    %v5390 = vsel %vm5389, %v5309, %v5388
    %vm5391 = vcmp.eq.f32.partialorder %v5309, 0.0
    %v5392 = vand.u32 %v5309, 2147483648
    %v5393 = vsel %vm5391, %v5392, %v5390
    %v5394 = vrsqrt.pop %v5312
    %v5395 = vmul.f32 %v5394, %v5312
    %v5396 = vmul.f32 %v5395, %v5394
    %v5397 = vmul.f32 0.5, %v5396
    %v5398 = vsub.f32 1.5, %v5397
    %v5399 = vmul.f32 %v5394, %v5398
    %v5400 = vmul.f32 %v5312, %v5399
    %vm5401 = vcmp.eq.f32.partialorder %v5312, inf
    %v5402 = vsel %vm5401, %v5312, %v5400
    %vm5403 = vcmp.eq.f32.partialorder %v5312, 0.0
    %v5404 = vand.u32 %v5312, 2147483648
    %v5405 = vsel %vm5403, %v5404, %v5402
    %v5406 = vrsqrt.pop %v5315
    %v5407 = vmul.f32 %v5406, %v5315
    %v5408 = vmul.f32 %v5407, %v5406
    %v5409 = vmul.f32 0.5, %v5408
    %v5410 = vsub.f32 1.5, %v5409
    %v5411 = vmul.f32 %v5406, %v5410
    %v5412 = vmul.f32 %v5315, %v5411
    %vm5413 = vcmp.eq.f32.partialorder %v5315, inf
    %v5414 = vsel %vm5413, %v5315, %v5412
    %vm5415 = vcmp.eq.f32.partialorder %v5315, 0.0
    %v5416 = vand.u32 %v5315, 2147483648
    %v5417 = vsel %vm5415, %v5416, %v5414
    %v5418 = vrsqrt.pop %v5318
    %v5419 = vmul.f32 %v5418, %v5318
    %v5420 = vmul.f32 %v5419, %v5418
    %v5421 = vmul.f32 0.5, %v5420
    %v5422 = vsub.f32 1.5, %v5421
    %v5423 = vmul.f32 %v5418, %v5422
    %v5424 = vmul.f32 %v5318, %v5423
    %vm5425 = vcmp.eq.f32.partialorder %v5318, inf
    %v5426 = vsel %vm5425, %v5318, %v5424
    %vm5427 = vcmp.eq.f32.partialorder %v5318, 0.0
    %v5428 = vand.u32 %v5318, 2147483648
    %v5429 = vsel %vm5427, %v5428, %v5426
    %v5430 = vrsqrt.pop %v5321
    %v5431 = vmul.f32 %v5430, %v5321
    %v5432 = vmul.f32 %v5431, %v5430
    %v5433 = vmul.f32 0.5, %v5432
    %v5434 = vsub.f32 1.5, %v5433
    %v5435 = vmul.f32 %v5430, %v5434
    %v5436 = vmul.f32 %v5321, %v5435
    %vm5437 = vcmp.eq.f32.partialorder %v5321, inf
    %v5438 = vsel %vm5437, %v5321, %v5436
    %vm5439 = vcmp.eq.f32.partialorder %v5321, 0.0
    %v5440 = vand.u32 %v5321, 2147483648
    %v5441 = vsel %vm5439, %v5440, %v5438
    %v5442 = vrsqrt.pop %v5324
    %v5443 = vmul.f32 %v5442, %v5324
    %v5444 = vmul.f32 %v5443, %v5442
    %v5445 = vmul.f32 0.5, %v5444
    %v5446 = vsub.f32 1.5, %v5445
    %v5447 = vmul.f32 %v5442, %v5446
    %v5448 = vmul.f32 %v5324, %v5447
    %vm5449 = vcmp.eq.f32.partialorder %v5324, inf
    %v5450 = vsel %vm5449, %v5324, %v5448
    %vm5451 = vcmp.eq.f32.partialorder %v5324, 0.0
    %v5452 = vand.u32 %v5324, 2147483648
    %v5453 = vsel %vm5451, %v5452, %v5450
    %v5454 = vrsqrt.pop %v5327
    %v5455 = vmul.f32 %v5454, %v5327
    %v5456 = vmul.f32 %v5455, %v5454
    %v5457 = vmul.f32 0.5, %v5456
    %v5458 = vsub.f32 1.5, %v5457
    %v5459 = vmul.f32 %v5454, %v5458
    %v5460 = vmul.f32 %v5327, %v5459
    %vm5461 = vcmp.eq.f32.partialorder %v5327, inf
    %v5462 = vsel %vm5461, %v5327, %v5460
    %vm5463 = vcmp.eq.f32.partialorder %v5327, 0.0
    %v5464 = vand.u32 %v5327, 2147483648
    %v5465 = vsel %vm5463, %v5464, %v5462
    %v5466 = vrsqrt.pop %v5330
    %v5467 = vmul.f32 %v5466, %v5330
    %v5468 = vmul.f32 %v5467, %v5466
    %v5469 = vmul.f32 0.5, %v5468
    %v5470 = vsub.f32 1.5, %v5469
    %v5471 = vmul.f32 %v5466, %v5470
    %v5472 = vmul.f32 %v5330, %v5471
    %vm5473 = vcmp.eq.f32.partialorder %v5330, inf
    %v5474 = vsel %vm5473, %v5330, %v5472
    %vm5475 = vcmp.eq.f32.partialorder %v5330, 0.0
    %v5476 = vand.u32 %v5330, 2147483648
    %v5477 = vsel %vm5475, %v5476, %v5474
    %v5478 = vrsqrt.pop %v5333
    %v5479 = vmul.f32 %v5478, %v5333
    %v5480 = vmul.f32 %v5479, %v5478
    %v5481 = vmul.f32 0.5, %v5480
    %v5482 = vsub.f32 1.5, %v5481
    %v5483 = vmul.f32 %v5478, %v5482
    %v5484 = vmul.f32 %v5333, %v5483
    %vm5485 = vcmp.eq.f32.partialorder %v5333, inf
    %v5486 = vsel %vm5485, %v5333, %v5484
    %vm5487 = vcmp.eq.f32.partialorder %v5333, 0.0
    %v5488 = vand.u32 %v5333, 2147483648
    %v5489 = vsel %vm5487, %v5488, %v5486
    %v5490 = vrsqrt.pop %v5336
    %v5491 = vmul.f32 %v5490, %v5336
    %v5492 = vmul.f32 %v5491, %v5490
    %v5493 = vmul.f32 0.5, %v5492
    %v5494 = vsub.f32 1.5, %v5493
    %v5495 = vmul.f32 %v5490, %v5494
    %v5496 = vmul.f32 %v5336, %v5495
    %vm5497 = vcmp.eq.f32.partialorder %v5336, inf
    %v5498 = vsel %vm5497, %v5336, %v5496
    %vm5499 = vcmp.eq.f32.partialorder %v5336, 0.0
    %v5500 = vand.u32 %v5336, 2147483648
    %v5501 = vsel %vm5499, %v5500, %v5498
    %v5502 = vrsqrt.pop %v5339
    %v5503 = vmul.f32 %v5502, %v5339
    %v5504 = vmul.f32 %v5503, %v5502
    %v5505 = vmul.f32 0.5, %v5504
    %v5506 = vsub.f32 1.5, %v5505
    %v5507 = vmul.f32 %v5502, %v5506
    %v5508 = vmul.f32 %v5339, %v5507
    %vm5509 = vcmp.eq.f32.partialorder %v5339, inf
    %v5510 = vsel %vm5509, %v5339, %v5508
    %vm5511 = vcmp.eq.f32.partialorder %v5339, 0.0
    %v5512 = vand.u32 %v5339, 2147483648
    %v5513 = vsel %vm5511, %v5512, %v5510
    %v5514 = vrsqrt.pop %v5342
    %v5515 = vmul.f32 %v5514, %v5342
    %v5516 = vmul.f32 %v5515, %v5514
    %v5517 = vmul.f32 0.5, %v5516
    %v5518 = vsub.f32 1.5, %v5517
    %v5519 = vmul.f32 %v5514, %v5518
    %v5520 = vmul.f32 %v5342, %v5519
    %vm5521 = vcmp.eq.f32.partialorder %v5342, inf
    %v5522 = vsel %vm5521, %v5342, %v5520
    %vm5523 = vcmp.eq.f32.partialorder %v5342, 0.0
    %v5524 = vand.u32 %v5342, 2147483648
    %v5525 = vsel %vm5523, %v5524, %v5522
    %v5526 = vrsqrt.pop %v5345
    %v5527 = vmul.f32 %v5526, %v5345
    %v5528 = vmul.f32 %v5527, %v5526
    %v5529 = vmul.f32 0.5, %v5528
    %v5530 = vsub.f32 1.5, %v5529
    %v5531 = vmul.f32 %v5526, %v5530
    %v5532 = vmul.f32 %v5345, %v5531
    %vm5533 = vcmp.eq.f32.partialorder %v5345, inf
    %v5534 = vsel %vm5533, %v5345, %v5532
    %vm5535 = vcmp.eq.f32.partialorder %v5345, 0.0
    %v5536 = vand.u32 %v5345, 2147483648
    %v5537 = vsel %vm5535, %v5536, %v5534
    %v5538 = vmax.f32 %v5357, 1e-12
    %v5539 = vmax.f32 %v5369, 1e-12
    %v5540 = vmax.f32 %v5381, 1e-12
    %v5541 = vmax.f32 %v5393, 1e-12
    %v5542 = vmax.f32 %v5405, 1e-12
    %v5543 = vmax.f32 %v5417, 1e-12
    %v5544 = vmax.f32 %v5429, 1e-12
    %v5545 = vmax.f32 %v5441, 1e-12
    %v5546 = vmax.f32 %v5453, 1e-12
    %v5547 = vmax.f32 %v5465, 1e-12
    %v5548 = vmax.f32 %v5477, 1e-12
    %v5549 = vmax.f32 %v5489, 1e-12
    %v5550 = vmax.f32 %v5501, 1e-12
    %v5551 = vmax.f32 %v5513, 1e-12
    %v5552 = vmax.f32 %v5525, 1e-12
    %v5553 = vmax.f32 %v5537, 1e-12
    %v5554 = vrcp.pop %v5538
    %v5555 = vmul.f32 %v5538, %v5554
    %v5556 = vsub.f32 1.0, %v5555
    %v5557 = vmul.f32 %v5554, %v5556
    %v5558 = vadd.f32 %v5554, %v5557
    %vm5559 = vweird.f32 %v5538
    %vm5560 = vweird.f32 %v5554
    %vm5561 = vmor %vm5559, %vm5560
    %v5562 = vsel %vm5561, %v5554, %v5558
    %v5563 = vand.u32 2147483647, %v5538
    %vm5564 = vcmp.eq.f32.partialorder %v5563, 8.507059e+37
    %v5565 = vand.u32 %v5538, 2147483648
    %v5566 = vor.u32 1.1754944e-38, %v5565
    %v5567 = vsel %vm5564, %v5566, %v5562
    %v5568 = vmul.f32 %v5234, %v5567
    %v5569 = vmul.f32 %v5235, %v5567
    %v5570 = vrcp.pop %v5539
    %v5571 = vmul.f32 %v5539, %v5570
    %v5572 = vsub.f32 1.0, %v5571
    %v5573 = vmul.f32 %v5570, %v5572
    %v5574 = vadd.f32 %v5570, %v5573
    %vm5575 = vweird.f32 %v5539
    %vm5576 = vweird.f32 %v5570
    %vm5577 = vmor %vm5575, %vm5576
    %v5578 = vsel %vm5577, %v5570, %v5574
    %v5579 = vand.u32 2147483647, %v5539
    %vm5580 = vcmp.eq.f32.partialorder %v5579, 8.507059e+37
    %v5581 = vand.u32 %v5539, 2147483648
    %v5582 = vor.u32 1.1754944e-38, %v5581
    %v5583 = vsel %vm5580, %v5582, %v5578
    %v5584 = vmul.f32 %v5236, %v5583
    %v5585 = vmul.f32 %v5237, %v5583
    %v5586 = vrcp.pop %v5540
    %v5587 = vmul.f32 %v5540, %v5586
    %v5588 = vsub.f32 1.0, %v5587
    %v5589 = vmul.f32 %v5586, %v5588
    %v5590 = vadd.f32 %v5586, %v5589
    %vm5591 = vweird.f32 %v5540
    %vm5592 = vweird.f32 %v5586
    %vm5593 = vmor %vm5591, %vm5592
    %v5594 = vsel %vm5593, %v5586, %v5590
    %v5595 = vand.u32 2147483647, %v5540
    %vm5596 = vcmp.eq.f32.partialorder %v5595, 8.507059e+37
    %v5597 = vand.u32 %v5540, 2147483648
    %v5598 = vor.u32 1.1754944e-38, %v5597
    %v5599 = vsel %vm5596, %v5598, %v5594
    %v5600 = vmul.f32 %v5238, %v5599
    %v5601 = vmul.f32 %v5239, %v5599
    %v5602 = vrcp.pop %v5541
    %v5603 = vmul.f32 %v5541, %v5602
    %v5604 = vsub.f32 1.0, %v5603
    %v5605 = vmul.f32 %v5602, %v5604
    %v5606 = vadd.f32 %v5602, %v5605
    %vm5607 = vweird.f32 %v5541
    %vm5608 = vweird.f32 %v5602
    %vm5609 = vmor %vm5607, %vm5608
    %v5610 = vsel %vm5609, %v5602, %v5606
    %v5611 = vand.u32 2147483647, %v5541
    %vm5612 = vcmp.eq.f32.partialorder %v5611, 8.507059e+37
    %v5613 = vand.u32 %v5541, 2147483648
    %v5614 = vor.u32 1.1754944e-38, %v5613
    %v5615 = vsel %vm5612, %v5614, %v5610
    %v5616 = vmul.f32 %v5240, %v5615
    %v5617 = vmul.f32 %v5241, %v5615
    %v5618 = vrcp.pop %v5542
    %v5619 = vmul.f32 %v5542, %v5618
    %v5620 = vsub.f32 1.0, %v5619
    %v5621 = vmul.f32 %v5618, %v5620
    %v5622 = vadd.f32 %v5618, %v5621
    %vm5623 = vweird.f32 %v5542
    %vm5624 = vweird.f32 %v5618
    %vm5625 = vmor %vm5623, %vm5624
    %v5626 = vsel %vm5625, %v5618, %v5622
    %v5627 = vand.u32 2147483647, %v5542
    %vm5628 = vcmp.eq.f32.partialorder %v5627, 8.507059e+37
    %v5629 = vand.u32 %v5542, 2147483648
    %v5630 = vor.u32 1.1754944e-38, %v5629
    %v5631 = vsel %vm5628, %v5630, %v5626
    %v5632 = vmul.f32 %v5242, %v5631
    %v5633 = vmul.f32 %v5243, %v5631
    %v5634 = vrcp.pop %v5543
    %v5635 = vmul.f32 %v5543, %v5634
    %v5636 = vsub.f32 1.0, %v5635
    %v5637 = vmul.f32 %v5634, %v5636
    %v5638 = vadd.f32 %v5634, %v5637
    %vm5639 = vweird.f32 %v5543
    %vm5640 = vweird.f32 %v5634
    %vm5641 = vmor %vm5639, %vm5640
    %v5642 = vsel %vm5641, %v5634, %v5638
    %v5643 = vand.u32 2147483647, %v5543
    %vm5644 = vcmp.eq.f32.partialorder %v5643, 8.507059e+37
    %v5645 = vand.u32 %v5543, 2147483648
    %v5646 = vor.u32 1.1754944e-38, %v5645
    %v5647 = vsel %vm5644, %v5646, %v5642
    %v5648 = vmul.f32 %v5244, %v5647
    %v5649 = vmul.f32 %v5245, %v5647
    %v5650 = vrcp.pop %v5544
    %v5651 = vmul.f32 %v5544, %v5650
    %v5652 = vsub.f32 1.0, %v5651
    %v5653 = vmul.f32 %v5650, %v5652
    %v5654 = vadd.f32 %v5650, %v5653
    %vm5655 = vweird.f32 %v5544
    %vm5656 = vweird.f32 %v5650
    %vm5657 = vmor %vm5655, %vm5656
    %v5658 = vsel %vm5657, %v5650, %v5654
    %v5659 = vand.u32 2147483647, %v5544
    %vm5660 = vcmp.eq.f32.partialorder %v5659, 8.507059e+37
    %v5661 = vand.u32 %v5544, 2147483648
    %v5662 = vor.u32 1.1754944e-38, %v5661
    %v5663 = vsel %vm5660, %v5662, %v5658
    %v5664 = vmul.f32 %v5246, %v5663
    %v5665 = vmul.f32 %v5247, %v5663
    %v5666 = vrcp.pop %v5545
    %v5667 = vmul.f32 %v5545, %v5666
    %v5668 = vsub.f32 1.0, %v5667
    %v5669 = vmul.f32 %v5666, %v5668
    %v5670 = vadd.f32 %v5666, %v5669
    %vm5671 = vweird.f32 %v5545
    %vm5672 = vweird.f32 %v5666
    %vm5673 = vmor %vm5671, %vm5672
    %v5674 = vsel %vm5673, %v5666, %v5670
    %v5675 = vand.u32 2147483647, %v5545
    %vm5676 = vcmp.eq.f32.partialorder %v5675, 8.507059e+37
    %v5677 = vand.u32 %v5545, 2147483648
    %v5678 = vor.u32 1.1754944e-38, %v5677
    %v5679 = vsel %vm5676, %v5678, %v5674
    %v5680 = vmul.f32 %v5248, %v5679
    %v5681 = vmul.f32 %v5249, %v5679
    %v5682 = vrcp.pop %v5546
    %v5683 = vmul.f32 %v5546, %v5682
    %v5684 = vsub.f32 1.0, %v5683
    %v5685 = vmul.f32 %v5682, %v5684
    %v5686 = vadd.f32 %v5682, %v5685
    %vm5687 = vweird.f32 %v5546
    %vm5688 = vweird.f32 %v5682
    %vm5689 = vmor %vm5687, %vm5688
    %v5690 = vsel %vm5689, %v5682, %v5686
    %v5691 = vand.u32 2147483647, %v5546
    %vm5692 = vcmp.eq.f32.partialorder %v5691, 8.507059e+37
    %v5693 = vand.u32 %v5546, 2147483648
    %v5694 = vor.u32 1.1754944e-38, %v5693
    %v5695 = vsel %vm5692, %v5694, %v5690
    %v5696 = vmul.f32 %v5250, %v5695
    %v5697 = vmul.f32 %v5251, %v5695
    %v5698 = vrcp.pop %v5547
    %v5699 = vmul.f32 %v5547, %v5698
    %v5700 = vsub.f32 1.0, %v5699
    %v5701 = vmul.f32 %v5698, %v5700
    %v5702 = vadd.f32 %v5698, %v5701
    %vm5703 = vweird.f32 %v5547
    %vm5704 = vweird.f32 %v5698
    %vm5705 = vmor %vm5703, %vm5704
    %v5706 = vsel %vm5705, %v5698, %v5702
    %v5707 = vand.u32 2147483647, %v5547
    %vm5708 = vcmp.eq.f32.partialorder %v5707, 8.507059e+37
    %v5709 = vand.u32 %v5547, 2147483648
    %v5710 = vor.u32 1.1754944e-38, %v5709
    %v5711 = vsel %vm5708, %v5710, %v5706
    %v5712 = vmul.f32 %v5252, %v5711
    %v5713 = vmul.f32 %v5253, %v5711
    %v5714 = vrcp.pop %v5548
    %v5715 = vmul.f32 %v5548, %v5714
    %v5716 = vsub.f32 1.0, %v5715
    %v5717 = vmul.f32 %v5714, %v5716
    %v5718 = vadd.f32 %v5714, %v5717
    %vm5719 = vweird.f32 %v5548
    %vm5720 = vweird.f32 %v5714
    %vm5721 = vmor %vm5719, %vm5720
    %v5722 = vsel %vm5721, %v5714, %v5718
    %v5723 = vand.u32 2147483647, %v5548
    %vm5724 = vcmp.eq.f32.partialorder %v5723, 8.507059e+37
    %v5725 = vand.u32 %v5548, 2147483648
    %v5726 = vor.u32 1.1754944e-38, %v5725
    %v5727 = vsel %vm5724, %v5726, %v5722
    %v5728 = vmul.f32 %v5254, %v5727
    %v5729 = vmul.f32 %v5255, %v5727
    %v5730 = vrcp.pop %v5549
    %v5731 = vmul.f32 %v5549, %v5730
    %v5732 = vsub.f32 1.0, %v5731
    %v5733 = vmul.f32 %v5730, %v5732
    %v5734 = vadd.f32 %v5730, %v5733
    %vm5735 = vweird.f32 %v5549
    %vm5736 = vweird.f32 %v5730
    %vm5737 = vmor %vm5735, %vm5736
    %v5738 = vsel %vm5737, %v5730, %v5734
    %v5739 = vand.u32 2147483647, %v5549
    %vm5740 = vcmp.eq.f32.partialorder %v5739, 8.507059e+37
    %v5741 = vand.u32 %v5549, 2147483648
    %v5742 = vor.u32 1.1754944e-38, %v5741
    %v5743 = vsel %vm5740, %v5742, %v5738
    %v5744 = vmul.f32 %v5256, %v5743
    %v5745 = vmul.f32 %v5257, %v5743
    %v5746 = vrcp.pop %v5550
    %v5747 = vmul.f32 %v5550, %v5746
    %v5748 = vsub.f32 1.0, %v5747
    %v5749 = vmul.f32 %v5746, %v5748
    %v5750 = vadd.f32 %v5746, %v5749
    %vm5751 = vweird.f32 %v5550
    %vm5752 = vweird.f32 %v5746
    %vm5753 = vmor %vm5751, %vm5752
    %v5754 = vsel %vm5753, %v5746, %v5750
    %v5755 = vand.u32 2147483647, %v5550
    %vm5756 = vcmp.eq.f32.partialorder %v5755, 8.507059e+37
    %v5757 = vand.u32 %v5550, 2147483648
    %v5758 = vor.u32 1.1754944e-38, %v5757
    %v5759 = vsel %vm5756, %v5758, %v5754
    %v5760 = vmul.f32 %v5258, %v5759
    %v5761 = vmul.f32 %v5259, %v5759
    %v5762 = vrcp.pop %v5551
    %v5763 = vmul.f32 %v5551, %v5762
    %v5764 = vsub.f32 1.0, %v5763
    %v5765 = vmul.f32 %v5762, %v5764
    %v5766 = vadd.f32 %v5762, %v5765
    %vm5767 = vweird.f32 %v5551
    %vm5768 = vweird.f32 %v5762
    %vm5769 = vmor %vm5767, %vm5768
    %v5770 = vsel %vm5769, %v5762, %v5766
    %v5771 = vand.u32 2147483647, %v5551
    %vm5772 = vcmp.eq.f32.partialorder %v5771, 8.507059e+37
    %v5773 = vand.u32 %v5551, 2147483648
    %v5774 = vor.u32 1.1754944e-38, %v5773
    %v5775 = vsel %vm5772, %v5774, %v5770
    %v5776 = vmul.f32 %v5260, %v5775
    %v5777 = vmul.f32 %v5261, %v5775
    %v5778 = vrcp.pop %v5552
    %v5779 = vmul.f32 %v5552, %v5778
    %v5780 = vsub.f32 1.0, %v5779
    %v5781 = vmul.f32 %v5778, %v5780
    %v5782 = vadd.f32 %v5778, %v5781
    %vm5783 = vweird.f32 %v5552
    %vm5784 = vweird.f32 %v5778
    %vm5785 = vmor %vm5783, %vm5784
    %v5786 = vsel %vm5785, %v5778, %v5782
    %v5787 = vand.u32 2147483647, %v5552
    %vm5788 = vcmp.eq.f32.partialorder %v5787, 8.507059e+37
    %v5789 = vand.u32 %v5552, 2147483648
    %v5790 = vor.u32 1.1754944e-38, %v5789
    %v5791 = vsel %vm5788, %v5790, %v5786
    %v5792 = vmul.f32 %v5262, %v5791
    %v5793 = vmul.f32 %v5263, %v5791
    %v5794 = vrcp.pop %v5553
    %v5795 = vmul.f32 %v5553, %v5794
    %v5796 = vsub.f32 1.0, %v5795
    %v5797 = vmul.f32 %v5794, %v5796
    %v5798 = vadd.f32 %v5794, %v5797
    %vm5799 = vweird.f32 %v5553
    %vm5800 = vweird.f32 %v5794
    %vm5801 = vmor %vm5799, %vm5800
    %v5802 = vsel %vm5801, %v5794, %v5798
    %v5803 = vand.u32 2147483647, %v5553
    %vm5804 = vcmp.eq.f32.partialorder %v5803, 8.507059e+37
    %v5805 = vand.u32 %v5553, 2147483648
    %v5806 = vor.u32 1.1754944e-38, %v5805
    %v5807 = vsel %vm5804, %v5806, %v5802
    %v5808 = vmul.f32 %v5264, %v5807
    %v5809 = vmul.f32 %v5265, %v5807
    %v5810 = vstv %s56
    %v5811 = vmul.f32 %v5568, %v5810
    %v5812 = vmul.f32 %v5569, %v5810
    %v5813 = vmul.f32 %v5584, %v5810
    %v5814 = vmul.f32 %v5585, %v5810
    %v5815 = vmul.f32 %v5600, %v5810
    %v5816 = vmul.f32 %v5601, %v5810
    %v5817 = vmul.f32 %v5616, %v5810
    %v5818 = vmul.f32 %v5617, %v5810
    %v5819 = vmul.f32 %v5632, %v5810
    %v5820 = vmul.f32 %v5633, %v5810
    %v5821 = vmul.f32 %v5648, %v5810
    %v5822 = vmul.f32 %v5649, %v5810
    %v5823 = vmul.f32 %v5664, %v5810
    %v5824 = vmul.f32 %v5665, %v5810
    %v5825 = vmul.f32 %v5680, %v5810
    %v5826 = vmul.f32 %v5681, %v5810
    %v5827 = vmul.f32 %v5696, %v5810
    %v5828 = vmul.f32 %v5697, %v5810
    %v5829 = vmul.f32 %v5712, %v5810
    %v5830 = vmul.f32 %v5713, %v5810
    %v5831 = vmul.f32 %v5728, %v5810
    %v5832 = vmul.f32 %v5729, %v5810
    %v5833 = vmul.f32 %v5744, %v5810
    %v5834 = vmul.f32 %v5745, %v5810
    %v5835 = vmul.f32 %v5760, %v5810
    %v5836 = vmul.f32 %v5761, %v5810
    %v5837 = vmul.f32 %v5776, %v5810
    %v5838 = vmul.f32 %v5777, %v5810
    %v5839 = vmul.f32 %v5792, %v5810
    %v5840 = vmul.f32 %v5793, %v5810
    %v5841 = vmul.f32 %v5808, %v5810
    %v5842 = vmul.f32 %v5809, %v5810
    %v5843 = vpack.c.bf16 %v5812, %v5811
    %v5844 = vpack.c.bf16 %v5814, %v5813
    %v5845 = vpack.c.bf16 %v5816, %v5815
    %v5846 = vpack.c.bf16 %v5818, %v5817
    %v5847 = vpack.c.bf16 %v5820, %v5819
    %v5848 = vpack.c.bf16 %v5822, %v5821
    %v5849 = vpack.c.bf16 %v5824, %v5823
    %v5850 = vpack.c.bf16 %v5826, %v5825
    %v5851 = vpack.c.bf16 %v5828, %v5827
    %v5852 = vpack.c.bf16 %v5830, %v5829
    %v5853 = vpack.c.bf16 %v5832, %v5831
    %v5854 = vpack.c.bf16 %v5834, %v5833
    %v5855 = vpack.c.bf16 %v5836, %v5835
    %v5856 = vpack.c.bf16 %v5838, %v5837
    %v5857 = vpack.c.bf16 %v5840, %v5839
    %v5858 = vpack.c.bf16 %v5842, %v5841
    %s5859 = smul.u32 0, 2
    %s5860 = smul.addr %s5859, 4
    %s5861 = scalar_lea.vmem [#allocation2], %s5860
    %5862 = vst [vmem:[%s5861] sm:$0xff] %v5843
    %5863 = vst [vmem:[%s5861 + $0x8] sm:$0xff] %v5844
    %5864 = vst [vmem:[%s5861 + $0x10] sm:$0xff] %v5845
    %5865 = vst [vmem:[%s5861 + $0x18] sm:$0xff] %v5846
    %5866 = vst [vmem:[%s5861 + $0x20] sm:$0xff] %v5847
    %5867 = vst [vmem:[%s5861 + $0x28] sm:$0xff] %v5848
    %5868 = vst [vmem:[%s5861 + $0x30] sm:$0xff] %v5849
    %5869 = vst [vmem:[%s5861 + $0x38] sm:$0xff] %v5850
    %5870 = vst [vmem:[%s5861 + $0x40] sm:$0xff] %v5851
    %5871 = vst [vmem:[%s5861 + $0x48] sm:$0xff] %v5852
    %5872 = vst [vmem:[%s5861 + $0x50] sm:$0xff] %v5853
    %5873 = vst [vmem:[%s5861 + $0x58] sm:$0xff] %v5854
    %5874 = vst [vmem:[%s5861 + $0x60] sm:$0xff] %v5855
    %5875 = vst [vmem:[%s5861 + $0x68] sm:$0xff] %v5856
    %5876 = vst [vmem:[%s5861 + $0x70] sm:$0xff] %v5857
    %5877 = vst [vmem:[%s5861 + $0x78] sm:$0xff] %v5858
  $region65: #{atq_forward.3} parent=0 // pred_fallthru
    _
  %s5878 = smul.u32 0, 128
  %s5879 = sshra.s32 %s5878, 7
  %s5880 = sand.u32 %s5878, 127
  %s5881 = smul.addr %s5879, 4
  %s5882 = scalar_lea.vmem %s13, %s5881
  %v5883 = vld [vmem:[%s5882] sm:$0xf]
  %v5884 = vld [vmem:[%s5882 + $0x4] sm:$0xf]
  %v5885 = vld [vmem:[%s5882 + $0x8] sm:$0xf]
  %v5886 = vld [vmem:[%s5882 + $0xc] sm:$0xf]
  %v5887 = vld [vmem:[%s5882 + $0x10] sm:$0xf]
  %v5888 = vld [vmem:[%s5882 + $0x14] sm:$0xf]
  %v5889 = vld [vmem:[%s5882 + $0x18] sm:$0xf]
  %v5890 = vld [vmem:[%s5882 + $0x1c] sm:$0xf]
  %v5891 = vld [vmem:[%s5882 + $0x20] sm:$0xf]
  %v5892 = vld [vmem:[%s5882 + $0x24] sm:$0xf]
  %v5893 = vld [vmem:[%s5882 + $0x28] sm:$0xf]
  %v5894 = vld [vmem:[%s5882 + $0x2c] sm:$0xf]
  %v5895 = vld [vmem:[%s5882 + $0x30] sm:$0xf]
  %v5896 = vld [vmem:[%s5882 + $0x34] sm:$0xf]
  %v5897 = vld [vmem:[%s5882 + $0x38] sm:$0xf]
  %v5898 = vld [vmem:[%s5882 + $0x3c] sm:$0xf]
  %v5899 = vld [vmem:[%s5882 + $0x40] sm:$0xf]
  %v5900 = vld [vmem:[%s5882 + $0x44] sm:$0xf]
  %v5901 = vld [vmem:[%s5882 + $0x48] sm:$0xf]
  %v5902 = vld [vmem:[%s5882 + $0x4c] sm:$0xf]
  %v5903 = vld [vmem:[%s5882 + $0x50] sm:$0xf]
  %v5904 = vld [vmem:[%s5882 + $0x54] sm:$0xf]
  %v5905 = vld [vmem:[%s5882 + $0x58] sm:$0xf]
  %v5906 = vld [vmem:[%s5882 + $0x5c] sm:$0xf]
  %v5907 = vld [vmem:[%s5882 + $0x60] sm:$0xf]
  %v5908 = vld [vmem:[%s5882 + $0x64] sm:$0xf]
  %v5909 = vld [vmem:[%s5882 + $0x68] sm:$0xf]
  %v5910 = vld [vmem:[%s5882 + $0x6c] sm:$0xf]
  %v5911 = vld [vmem:[%s5882 + $0x70] sm:$0xf]
  %v5912 = vld [vmem:[%s5882 + $0x74] sm:$0xf]
  %v5913 = vld [vmem:[%s5882 + $0x78] sm:$0xf]
  %v5914 = vld [vmem:[%s5882 + $0x7c] sm:$0xf]
  %v5915 = vld [vmem:[#allocation2] sm:$0xff]
  %v5916 = vld [vmem:[#allocation2 + $0x8] sm:$0xff]
  %v5917 = vld [vmem:[#allocation2 + $0x10] sm:$0xff]
  %v5918 = vld [vmem:[#allocation2 + $0x18] sm:$0xff]
  %v5919 = vld [vmem:[#allocation2 + $0x20] sm:$0xff]
  %v5920 = vld [vmem:[#allocation2 + $0x28] sm:$0xff]
  %v5921 = vld [vmem:[#allocation2 + $0x30] sm:$0xff]
  %v5922 = vld [vmem:[#allocation2 + $0x38] sm:$0xff]
  %v5923 = vld [vmem:[#allocation2 + $0x40] sm:$0xff]
  %v5924 = vld [vmem:[#allocation2 + $0x48] sm:$0xff]
  %v5925 = vld [vmem:[#allocation2 + $0x50] sm:$0xff]
  %v5926 = vld [vmem:[#allocation2 + $0x58] sm:$0xff]
  %v5927 = vld [vmem:[#allocation2 + $0x60] sm:$0xff]
  %v5928 = vld [vmem:[#allocation2 + $0x68] sm:$0xff]
  %v5929 = vld [vmem:[#allocation2 + $0x70] sm:$0xff]
  %v5930 = vld [vmem:[#allocation2 + $0x78] sm:$0xff]
  %v5947 = vunpack.c.l.b16 %v5915
  %v5948 = vunpack.c.h.b16 %v5915
  %v5949 = vunpack.c.l.b16 %v5916
  %v5950 = vunpack.c.h.b16 %v5916
  %v5951 = vunpack.c.l.b16 %v5917
  %v5952 = vunpack.c.h.b16 %v5917
  %v5953 = vunpack.c.l.b16 %v5918
  %v5954 = vunpack.c.h.b16 %v5918
  %v5955 = vunpack.c.l.b16 %v5919
  %v5956 = vunpack.c.h.b16 %v5919
  %v5957 = vunpack.c.l.b16 %v5920
  %v5958 = vunpack.c.h.b16 %v5920
  %v5959 = vunpack.c.l.b16 %v5921
  %v5960 = vunpack.c.h.b16 %v5921
  %v5961 = vunpack.c.l.b16 %v5922
  %v5962 = vunpack.c.h.b16 %v5922
  %v5963 = vunpack.c.l.b16 %v5923
  %v5964 = vunpack.c.h.b16 %v5923
  %v5965 = vunpack.c.l.b16 %v5924
  %v5966 = vunpack.c.h.b16 %v5924
  %v5967 = vunpack.c.l.b16 %v5925
  %v5968 = vunpack.c.h.b16 %v5925
  %v5969 = vunpack.c.l.b16 %v5926
  %v5970 = vunpack.c.h.b16 %v5926
  %v5971 = vunpack.c.l.b16 %v5927
  %v5972 = vunpack.c.h.b16 %v5927
  %v5973 = vunpack.c.l.b16 %v5928
  %v5974 = vunpack.c.h.b16 %v5928
  %v5975 = vunpack.c.l.b16 %v5929
  %v5976 = vunpack.c.h.b16 %v5929
  %v5977 = vunpack.c.l.b16 %v5930
  %v5978 = vunpack.c.h.b16 %v5930
  %v5979 = vpack.c.b16 %v5949, %v5947
  %v5980 = vpack.c.b16 %v5950, %v5948
  %v5981 = vpack.c.b16 %v5953, %v5951
  %v5982 = vpack.c.b16 %v5954, %v5952
  %v5983 = vpack.c.b16 %v5957, %v5955
  %v5984 = vpack.c.b16 %v5958, %v5956
  %v5985 = vpack.c.b16 %v5961, %v5959
  %v5986 = vpack.c.b16 %v5962, %v5960
  %v5987 = vpack.c.b16 %v5965, %v5963
  %v5988 = vpack.c.b16 %v5966, %v5964
  %v5989 = vpack.c.b16 %v5969, %v5967
  %v5990 = vpack.c.b16 %v5970, %v5968
  %v5991 = vpack.c.b16 %v5973, %v5971
  %v5992 = vpack.c.b16 %v5974, %v5972
  %v5993 = vpack.c.b16 %v5977, %v5975
  %v5994 = vpack.c.b16 %v5978, %v5976
  %v6043 = vunpack.c.l.b16 %v5883
  %v6044 = vunpack.c.l.b16 %v5884
  %v6045 = vunpack.c.l.b16 %v5885
  %v6046 = vunpack.c.l.b16 %v5886
  %v6047 = vunpack.c.l.b16 %v5887
  %v6048 = vunpack.c.l.b16 %v5888
  %v6049 = vunpack.c.l.b16 %v5889
  %v6050 = vunpack.c.l.b16 %v5890
  %v6051 = vunpack.c.l.b16 %v5891
  %v6052 = vunpack.c.l.b16 %v5892
  %v6053 = vunpack.c.l.b16 %v5893
  %v6054 = vunpack.c.l.b16 %v5894
  %v6055 = vunpack.c.l.b16 %v5895
  %v6056 = vunpack.c.l.b16 %v5896
  %v6057 = vunpack.c.l.b16 %v5897
  %v6058 = vunpack.c.l.b16 %v5898
  %v6059 = vunpack.c.l.b16 %v5899
  %v6060 = vunpack.c.l.b16 %v5900
  %v6061 = vunpack.c.l.b16 %v5901
  %v6062 = vunpack.c.l.b16 %v5902
  %v6063 = vunpack.c.l.b16 %v5903
  %v6064 = vunpack.c.l.b16 %v5904
  %v6065 = vunpack.c.l.b16 %v5905
  %v6066 = vunpack.c.l.b16 %v5906
  %v6067 = vunpack.c.l.b16 %v5907
  %v6068 = vunpack.c.l.b16 %v5908
  %v6069 = vunpack.c.l.b16 %v5909
  %v6070 = vunpack.c.l.b16 %v5910
  %v6071 = vunpack.c.l.b16 %v5911
  %v6072 = vunpack.c.l.b16 %v5912
  %v6073 = vunpack.c.l.b16 %v5913
  %v6074 = vunpack.c.l.b16 %v5914
  %v6075 = vpack.c.b16 %v6044, %v6043
  %v6076 = vpack.c.b16 %v6046, %v6045
  %v6077 = vpack.c.b16 %v6048, %v6047
  %v6078 = vpack.c.b16 %v6050, %v6049
  %v6079 = vpack.c.b16 %v6052, %v6051
  %v6080 = vpack.c.b16 %v6054, %v6053
  %v6081 = vpack.c.b16 %v6056, %v6055
  %v6082 = vpack.c.b16 %v6058, %v6057
  %v6083 = vpack.c.b16 %v6060, %v6059
  %v6084 = vpack.c.b16 %v6062, %v6061
  %v6085 = vpack.c.b16 %v6064, %v6063
  %v6086 = vpack.c.b16 %v6066, %v6065
  %v6087 = vpack.c.b16 %v6068, %v6067
  %v6088 = vpack.c.b16 %v6070, %v6069
  %v6089 = vpack.c.b16 %v6072, %v6071
  %v6090 = vpack.c.b16 %v6074, %v6073
  %6107 = vmatpush.bf16.msra.mxu0 %v6082
  %6108 = vmatpush.bf16.msra.mxu0 %v6081
  %6109 = vmatpush.bf16.msra.mxu0 %v6080
  %6110 = vmatpush.bf16.msra.mxu0 %v6079
  %6111 = vmatpush.bf16.msra.mxu0 %v6078
  %6112 = vmatpush.bf16.msra.mxu0 %v6077
  %6113 = vmatpush.bf16.msra.mxu0 %v6076
  %6114 = vmatpush.bf16.msra.mxu0 %v6075
  %6115 = vmatmul.bf16.gmra.mxu0 %v5979
  %v6116 = vpop.f32.mrf.mxu0
  %v6117 = vadd.f32 0.0, %v6116
  %v6118 = vpop.f32.mrf.mxu0
  %v6119 = vadd.f32 0.0, %v6118
  %6120 = vmatmul.bf16.gmra.mxu0 %v5981
  %v6121 = vpop.f32.mrf.mxu0
  %v6122 = vadd.f32 0.0, %v6121
  %v6123 = vpop.f32.mrf.mxu0
  %v6124 = vadd.f32 0.0, %v6123
  %6125 = vmatmul.bf16.gmra.mxu0 %v5983
  %v6126 = vpop.f32.mrf.mxu0
  %v6127 = vadd.f32 0.0, %v6126
  %v6128 = vpop.f32.mrf.mxu0
  %v6129 = vadd.f32 0.0, %v6128
  %6130 = vmatmul.bf16.gmra.mxu0 %v5985
  %v6131 = vpop.f32.mrf.mxu0
  %v6132 = vadd.f32 0.0, %v6131
  %v6133 = vpop.f32.mrf.mxu0
  %v6134 = vadd.f32 0.0, %v6133
  %6135 = vmatmul.bf16.gmra.mxu0 %v5987
  %v6136 = vpop.f32.mrf.mxu0
  %v6137 = vadd.f32 0.0, %v6136
  %v6138 = vpop.f32.mrf.mxu0
  %v6139 = vadd.f32 0.0, %v6138
  %6140 = vmatmul.bf16.gmra.mxu0 %v5989
  %v6141 = vpop.f32.mrf.mxu0
  %v6142 = vadd.f32 0.0, %v6141
  %v6143 = vpop.f32.mrf.mxu0
  %v6144 = vadd.f32 0.0, %v6143
  %6145 = vmatmul.bf16.gmra.mxu0 %v5991
  %v6146 = vpop.f32.mrf.mxu0
  %v6147 = vadd.f32 0.0, %v6146
  %v6148 = vpop.f32.mrf.mxu0
  %v6149 = vadd.f32 0.0, %v6148
  %6150 = vmatmul.bf16.gmra.mxu0 %v5993
  %v6151 = vpop.f32.mrf.mxu0
  %v6152 = vadd.f32 0.0, %v6151
  %v6153 = vpop.f32.mrf.mxu0
  %v6154 = vadd.f32 0.0, %v6153
  %6155 = vdwg.mxu0
  %6156 = vmatpush.bf16.msra.mxu0 %v6090
  %6157 = vmatpush.bf16.msra.mxu0 %v6089
  %6158 = vmatpush.bf16.msra.mxu0 %v6088
  %6159 = vmatpush.bf16.msra.mxu0 %v6087
  %6160 = vmatpush.bf16.msra.mxu0 %v6086
  %6161 = vmatpush.bf16.msra.mxu0 %v6085
  %6162 = vmatpush.bf16.msra.mxu0 %v6084
  %6163 = vmatpush.bf16.msra.mxu0 %v6083
  %6164 = vmatmul.bf16.gmra.mxu0 %v5980
  %v6165 = vpop.f32.mrf.mxu0
  %v6166 = vadd.f32 %v6117, %v6165
  %v6167 = vpop.f32.mrf.mxu0
  %v6168 = vadd.f32 %v6119, %v6167
  %6169 = vmatmul.bf16.gmra.mxu0 %v5982
  %v6170 = vpop.f32.mrf.mxu0
  %v6171 = vadd.f32 %v6122, %v6170
  %v6172 = vpop.f32.mrf.mxu0
  %v6173 = vadd.f32 %v6124, %v6172
  %6174 = vmatmul.bf16.gmra.mxu0 %v5984
  %v6175 = vpop.f32.mrf.mxu0
  %v6176 = vadd.f32 %v6127, %v6175
  %v6177 = vpop.f32.mrf.mxu0
  %v6178 = vadd.f32 %v6129, %v6177
  %6179 = vmatmul.bf16.gmra.mxu0 %v5986
  %v6180 = vpop.f32.mrf.mxu0
  %v6181 = vadd.f32 %v6132, %v6180
  %v6182 = vpop.f32.mrf.mxu0
  %v6183 = vadd.f32 %v6134, %v6182
  %6184 = vmatmul.bf16.gmra.mxu0 %v5988
  %v6185 = vpop.f32.mrf.mxu0
  %v6186 = vadd.f32 %v6137, %v6185
  %v6187 = vpop.f32.mrf.mxu0
  %v6188 = vadd.f32 %v6139, %v6187
  %6189 = vmatmul.bf16.gmra.mxu0 %v5990
  %v6190 = vpop.f32.mrf.mxu0
  %v6191 = vadd.f32 %v6142, %v6190
  %v6192 = vpop.f32.mrf.mxu0
  %v6193 = vadd.f32 %v6144, %v6192
  %6194 = vmatmul.bf16.gmra.mxu0 %v5992
  %v6195 = vpop.f32.mrf.mxu0
  %v6196 = vadd.f32 %v6147, %v6195
  %v6197 = vpop.f32.mrf.mxu0
  %v6198 = vadd.f32 %v6149, %v6197
  %6199 = vmatmul.bf16.gmra.mxu0 %v5994
  %v6200 = vpop.f32.mrf.mxu0
  %v6201 = vadd.f32 %v6152, %v6200
  %v6202 = vpop.f32.mrf.mxu0
  %v6203 = vadd.f32 %v6154, %v6202
  %6204 = vdwg.mxu0
  %6205 = vst [vmem:[%s15] sm:$0xff] %v6166
  %6206 = vst [vmem:[%s15 + $0x8] sm:$0xff] %v6168
  %6207 = vst [vmem:[%s15 + $0x10] sm:$0xff] %v6171
  %6208 = vst [vmem:[%s15 + $0x18] sm:$0xff] %v6173
  %6209 = vst [vmem:[%s15 + $0x20] sm:$0xff] %v6176
  %6210 = vst [vmem:[%s15 + $0x28] sm:$0xff] %v6178
  %6211 = vst [vmem:[%s15 + $0x30] sm:$0xff] %v6181
  %6212 = vst [vmem:[%s15 + $0x38] sm:$0xff] %v6183
  %6213 = vst [vmem:[%s15 + $0x40] sm:$0xff] %v6186
  %6214 = vst [vmem:[%s15 + $0x48] sm:$0xff] %v6188
  %6215 = vst [vmem:[%s15 + $0x50] sm:$0xff] %v6191
  %6216 = vst [vmem:[%s15 + $0x58] sm:$0xff] %v6193
  %6217 = vst [vmem:[%s15 + $0x60] sm:$0xff] %v6196
  %6218 = vst [vmem:[%s15 + $0x68] sm:$0xff] %v6198
  %6219 = vst [vmem:[%s15 + $0x70] sm:$0xff] %v6201
  %6220 = vst [vmem:[%s15 + $0x78] sm:$0xff] %v6203
  // Predicated region
  $region66: #{atq_forward.3} parent=0 // pred_check
    _
  $region67: #{atq_forward.3} parent=0 // pred_check_branch
    %6222 = sbr.rel (0) target = $region69
  $region68: #{atq_forward.3} parent=0 // pred_region
    _
  $region69: #{atq_forward.3} parent=0 // pred_fallthru
    _
  // Predicated region
  $region70: #{atq_forward.3} parent=0 // pred_check
    _
  $region71: #{atq_forward.3} parent=0 // pred_check_branch
    %6224 = sbr.rel (0) target = $region73
  $region72: #{atq_forward.3} parent=0 // pred_region
    _
  $region73: #{atq_forward.3} parent=0 // pred_fallthru
    _

</llo_original>
